<compile_context>
chip_gen: v6e
topology: v6e:2x2x1
jax: 0.10.0
libtpu: 0.0.40
codegen_flags: <defaults>
</compile_context>

<pallas_src>
import jax
import jax.numpy as jnp
from jax.experimental import pallas as pl
from jax.experimental.pallas import tpu as pltpu


def _round_up(x, m):
    return ((x + m - 1) // m) * m


def _cdiv(a, b):
    return -(-a // b)


def _device_kind():
    try:
        return jax.devices()[0].device_kind.lower()
    except Exception:
        return ""


def _use_bf16_elementwise():
    # v6e/v7x have bf16 VALUs; v5e (and older) emulate bf16 elementwise -> keep f32.
    kind = _device_kind()
    if not kind:
        return False
    for old in ("v2", "v3", "v4", "v5"):
        if old in kind:
            return False
    return True


def _tensorcores_per_chip():
    # v7x has 2 TensorCores per chip; earlier inference chips have 1.
    return 2 if "v7" in _device_kind() else 1


def _vmem_capacity_bytes():
    try:
        return int(pltpu.get_tpu_info().vmem_capacity_bytes)
    except Exception:
        return 64 << 20  # conservative: v7x per-TC VMEM


def _make_kernel(use_bf16_ew):
    ew_dtype = jnp.bfloat16 if use_bf16_ew else jnp.float32

    def kernel(x_ref, w1_ref, b1_ref, w2_ref, cw_ref, cb_ref, b2_ref, o_ref):
        # x_ref : (TB, HW) f32  VMEM  batch tile, flattened spatial (in_ch = 1)
        # w1_ref: (F, 32)  bf16 VMEM  fc1 weight, rows channel-major (c*HW + hw)
        # b1_ref: (1, 32)  f32  VMEM
        # w2_ref: (1, 32)  f32  VMEM  fc2 weight as a row
        # cw_ref: (1, 16)  f32  SMEM  conv1 1x1 weights (one scalar per channel)
        # cb_ref: (1, 16)  f32  SMEM  conv1 bias
        # b2_ref: (1, 1)   f32  SMEM  fc2 bias
        # o_ref : (1, TB)  f32  VMEM  lane-dense output row for this batch tile
        x = x_ref[...]
        tb, hw = x.shape
        n_ch = w1_ref.shape[0] // hw              # static (= 16)
        x = x.astype(ew_dtype)

        # conv1 (1x1) + ReLU fused per-channel into the fc1 accumulation:
        # the (TB, 16*HW) feature tensor is never materialized.
        acc = jnp.zeros((tb, 32), jnp.float32)
        for c in range(n_ch):                     # static, fully unrolled
            cw_c = cw_ref[0, c].astype(ew_dtype)
            cb_c = cb_ref[0, c].astype(ew_dtype)
            t = jnp.maximum(x * cw_c + cb_c, 0.0).astype(jnp.bfloat16)  # (TB, HW)
            acc = acc + jnp.dot(t, w1_ref[c * hw:(c + 1) * hw, :],
                                preferred_element_type=jnp.float32)     # (TB, 32)

        h = jnp.maximum(acc + b1_ref[...], 0.0)   # (TB, 32) f32

        # fc2: (1, 32) . (TB, 32)^T -> (1, TB) lane-dense (unmasked stores).
        o = jax.lax.dot_general(w2_ref[...], h,
                                dimension_numbers=(((1,), (1,)), ((), ())),
                                preferred_element_type=jnp.float32)
        o_ref[...] = o + b2_ref[0, 0]

    return kernel


def cnn_forward(x_nchw, params, *, batch_tile=1024):
    conv_w, conv_b, fc1_w, fc1_b, fc2_w, fc2_b = params
    B, C, H, W = x_nchw.shape
    assert C == 1
    HW = H * W
    F = 16 * HW

    use_bf16_ew = _use_bf16_elementwise()
    ew_bytes = 2 if use_bf16_ew else 4
    vmem_cap = _vmem_capacity_bytes()

    # Estimated per-step VMEM working set for a batch tile of `tb` rows.
    def per_step_vmem(tb):
        return (2 * tb * HW * 4            # x tile (double buffered, f32)
                + 2 * tb * 4               # output row (double buffered)
                + F * 32 * 2               # fc1 weight (bf16, resident)
                + tb * HW * (ew_bytes + 2)  # x cast + per-channel bf16 temp
                + 2 * tb * 32 * 4          # acc + h
                + (64 << 10))              # small params / slack

    # --- batch-tile selection -------------------------------------------------
    # Largest lane-aligned TB that fits the VMEM budget (and the requested cap).
    budget = (vmem_cap * 2) // 5           # ~40% of per-core VMEM for the pipeline
    tb_max = _round_up(max(128, min(batch_tile, 4096)), 128)
    while tb_max > 128 and per_step_vmem(tb_max) > budget:
        tb_max -= 128

    # Derive TB from a tile count so padding waste stays < 128 rows per tile,
    # and force >= 2 (even) tiles on multi-TensorCore chips so "parallel"
    # sharding actually uses both cores.
    B_al = _round_up(max(B, 1), 128)
    n_tiles = max(1, _cdiv(B_al, tb_max))
    if _tensorcores_per_chip() >= 2 and B_al > 128:
        n_tiles = max(n_tiles, 2)
        if n_tiles % 2:
            n_tiles += 1
    TB = _round_up(_cdiv(B, n_tiles), 128)
    B_pad = TB * n_tiles
    grid = (n_tiles,)

    # --- operand layout -------------------------------------------------------
    x2 = x_nchw.reshape(B, HW).astype(jnp.float32)           # (B, HW)
    if B_pad != B:
        x2 = jnp.pad(x2, ((0, B_pad - B), (0, 0)))           # tail padding

    # fc1 weight transposed to (F, 32); rows channel-major (c*HW + hw) so they
    # match torch's view(-1, 16*H*W).
    w1 = fc1_w.T.astype(jnp.bfloat16)                        # (F, 32)
    b1 = fc1_b.reshape(1, 32).astype(jnp.float32)
    w2 = fc2_w.reshape(1, 32).astype(jnp.float32)
    cw = conv_w.reshape(1, 16).astype(jnp.float32)
    cb = conv_b.reshape(1, 16).astype(jnp.float32)
    b2 = fc2_b.reshape(1, 1).astype(jnp.float32)

    # Never request the full per-core VMEM (headroom for Mosaic scratch).
    vmem_limit = int(min(max(per_step_vmem(TB) + (4 << 20), 16 << 20),
                         (vmem_cap * 3) // 4))

    cost = pl.CostEstimate(
        flops=int(2 * B_pad * F * 32 + 4 * B_pad * F),
        transcendentals=0,
        bytes_accessed=int(B_pad * HW * 4 + F * 32 * 2 + B_pad * 4))

    kernel = _make_kernel(use_bf16_ew)

    def make_in_specs(single_buffer_weights):
        kw = {"pipeline_mode": pl.Buffered(1)} if single_buffer_weights else {}
        smem = pltpu.MemorySpace.SMEM
        return [
            pl.BlockSpec((TB, HW), lambda i: (i, 0)),            # x: tiled over batch
            pl.BlockSpec((F, 32), lambda i: (0, 0), **kw),       # fc1 weight: resident
            pl.BlockSpec((1, 32), lambda i: (0, 0), **kw),       # fc1 bias
            pl.BlockSpec((1, 32), lambda i: (0, 0), **kw),       # fc2 weight row
            pl.BlockSpec(memory_space=smem),                     # conv1 weight (1,16)
            pl.BlockSpec(memory_space=smem),                     # conv1 bias   (1,16)
            pl.BlockSpec(memory_space=smem),                     # fc2 bias     (1,1)
        ]

    def run(single_buffer_weights):
        return pl.pallas_call(
            kernel,
            out_shape=jax.ShapeDtypeStruct((1, B_pad), jnp.float32),
            grid=grid,
            in_specs=make_in_specs(single_buffer_weights),
            out_specs=pl.BlockSpec((1, TB), lambda i: (0, i)),
            compiler_params=pltpu.CompilerParams(
                dimension_semantics=("parallel",),
                vmem_limit_bytes=vmem_limit),
            cost_estimate=cost,
        )(x2, w1, b1, w2, cw, cb, b2)

    try:
        res = run(True)       # single-buffer the constant-index weight blocks
    except Exception:
        res = run(False)      # fallback: default double-buffering

    return res[0, :B].reshape(B, 1)


def init_params(height, width, key):
    """Deterministic synthetic init mirroring the PyTorch layer shapes."""
    F = 16 * height * width
    ks = jax.random.split(key, 6)

    def u(k, shape, fan_in):
        bound = 1.0 / jnp.sqrt(jnp.float32(fan_in))
        return jax.random.uniform(k, shape, jnp.float32, -bound, bound)

    conv_w = u(ks[0], (16, 1, 1, 1), 1)     # Conv2d(1, 16, k=1).weight
    conv_b = u(ks[1], (16,), 1)             # Conv2d bias
    fc1_w = u(ks[2], (32, F), F)            # Linear(F, 32).weight
    fc1_b = u(ks[3], (32,), F)
    fc2_w = u(ks[4], (1, 32), 32)           # Linear(32, 1).weight
    fc2_b = u(ks[5], (1,), 32)
    return conv_w, conv_b, fc1_w, fc1_b, fc2_w, fc2_b


def reference_forward(x_nchw, params):
    """Pure-JAX (f32) reference matching the PyTorch forward exactly."""
    conv_w, conv_b, fc1_w, fc1_b, fc2_w, fc2_b = params
    B = x_nchw.shape[0]
    y = jnp.maximum(conv_w.reshape(1, 16, 1, 1) * x_nchw
                    + conv_b.reshape(1, 16, 1, 1), 0.0)       # (B,16,H,W)
    y = y.reshape(B, -1)                                      # (B, 16*H*W)
    y = jnp.maximum(y @ fc1_w.T + fc1_b, 0.0)                 # (B, 32)
    return y @ fc2_w.T + fc2_b                                # (B, 1)


if __name__ == "__main__":
    height, width = 8, 16            # HW = 128 (lane-aligned spatial size)
    batch = 4
    key = jax.random.PRNGKey(0)
    kx, kp = jax.random.split(key)
    x = jax.random.normal(kx, (batch, 1, height, width), dtype=jnp.float32)
    params = init_params(height, width, kp)

    out = jax.block_until_ready(cnn_forward(x, params))
    ref = reference_forward(x, params)

    assert out.shape == (batch, 1)
    # fc1 (and conv elementwise on v6e/v7x) runs in bf16 with f32 accumulation.
    assert jnp.allclose(out, ref, atol=2e-2, rtol=2e-2), (out, ref)
    print("KERNEL_OK")
</pallas_src>

<mosaic_0001>
module attributes {stable_mosaic.version = 11 : i64} {
  func.func @kernel(%arg0: i32, %arg1: memref<128x128xf32, #tpu.memory_space<vmem>>, %arg2: memref<2048x32xbf16, #tpu.memory_space<vmem>>, %arg3: memref<1x32xf32, #tpu.memory_space<vmem>>, %arg4: memref<1x32xf32, #tpu.memory_space<vmem>>, %arg5: memref<1x16xf32, #tpu.memory_space<smem>>, %arg6: memref<1x16xf32, #tpu.memory_space<smem>>, %arg7: memref<1x1xf32, #tpu.memory_space<smem>>, %arg8: memref<1x128xf32, #tpu.memory_space<vmem>>) attributes {dimension_semantics = [#tpu.dimension_semantics<parallel>], iteration_bounds = array<i64: 1>, scalar_prefetch = 0 : i64, scratch_operands = 0 : i64, tpu.core_type = #tpu.core_type<tc>, window_params = [{transform_indices = @transform_0, window_bounds = array<i64: 128, 128>}, {pipeline_mode = #tpu.pipeline_mode<synchronous>, transform_indices = @transform_1, window_bounds = array<i64: 2048, 32>}, {pipeline_mode = #tpu.pipeline_mode<synchronous>, transform_indices = @transform_2, window_bounds = array<i64: 1, 32>}, {pipeline_mode = #tpu.pipeline_mode<synchronous>, transform_indices = @transform_3, window_bounds = array<i64: 1, 32>}, {transform_indices = @transform_4, window_bounds = array<i64: 1, 16>}, {transform_indices = @transform_5, window_bounds = array<i64: 1, 16>}, {transform_indices = @transform_6, window_bounds = array<i64: 1, 1>}, {transform_indices = @transform_7, window_bounds = array<i64: 1, 128>}]} {
    %c0 = arith.constant 0 : index
    %c0_0 = arith.constant 0 : index
    %0 = vector.load %arg1[%c0, %c0_0] : memref<128x128xf32, #tpu.memory_space<vmem>>, vector<128x128xf32>
    %1 = arith.truncf %0 : vector<128x128xf32> to vector<128x128xbf16>
    %cst = arith.constant 0.000000e+00 : f32
    %2 = vector.broadcast %cst : f32 to vector<128x32xf32>
    %c0_1 = arith.constant 0 : index
    %c0_2 = arith.constant 0 : index
    %3 = memref.load %arg5[%c0_1, %c0_2] : memref<1x16xf32, #tpu.memory_space<smem>>
    %4 = arith.truncf %3 : f32 to bf16
    %c0_3 = arith.constant 0 : index
    %c0_4 = arith.constant 0 : index
    %5 = memref.load %arg6[%c0_3, %c0_4] : memref<1x16xf32, #tpu.memory_space<smem>>
    %6 = arith.truncf %5 : f32 to bf16
    %7 = vector.broadcast %4 : bf16 to vector<128x128xbf16>
    %8 = arith.mulf %1, %7 : vector<128x128xbf16>
    %9 = vector.broadcast %6 : bf16 to vector<128x128xbf16>
    %10 = arith.addf %8, %9 : vector<128x128xbf16>
    %cst_5 = arith.constant 0.000000e+00 : bf16
    %11 = vector.broadcast %cst_5 : bf16 to vector<128x128xbf16>
    %12 = arith.maximumf %10, %11 : vector<128x128xbf16>
    %c0_6 = arith.constant 0 : index
    %c0_7 = arith.constant 0 : index
    %13 = vector.load %arg2[%c0_6, %c0_7] : memref<2048x32xbf16, #tpu.memory_space<vmem>>, vector<128x32xbf16>
    %cst_8 = arith.constant dense<0.000000e+00> : vector<128x32xf32>
    %14 = tpu.matmul %12, %13, %cst_8 {dimension_numbers = #tpu.dot_dimension_numbers<[1], [0], [0], [1], [0, 0, 1, 1], [], []>} : vector<128x128xbf16>, vector<128x32xbf16>, vector<128x32xf32> -> vector<128x32xf32>
    %15 = arith.addf %2, %14 : vector<128x32xf32>
    %c0_9 = arith.constant 0 : index
    %c1 = arith.constant 1 : index
    %16 = memref.load %arg5[%c0_9, %c1] : memref<1x16xf32, #tpu.memory_space<smem>>
    %17 = arith.truncf %16 : f32 to bf16
    %c0_10 = arith.constant 0 : index
    %c1_11 = arith.constant 1 : index
    %18 = memref.load %arg6[%c0_10, %c1_11] : memref<1x16xf32, #tpu.memory_space<smem>>
    %19 = arith.truncf %18 : f32 to bf16
    %20 = vector.broadcast %17 : bf16 to vector<128x128xbf16>
    %21 = arith.mulf %1, %20 : vector<128x128xbf16>
    %22 = vector.broadcast %19 : bf16 to vector<128x128xbf16>
    %23 = arith.addf %21, %22 : vector<128x128xbf16>
    %cst_12 = arith.constant 0.000000e+00 : bf16
    %24 = vector.broadcast %cst_12 : bf16 to vector<128x128xbf16>
    %25 = arith.maximumf %23, %24 : vector<128x128xbf16>
    %c128 = arith.constant 128 : index
    %c0_13 = arith.constant 0 : index
    %26 = vector.load %arg2[%c128, %c0_13] : memref<2048x32xbf16, #tpu.memory_space<vmem>>, vector<128x32xbf16>
    %cst_14 = arith.constant dense<0.000000e+00> : vector<128x32xf32>
    %27 = tpu.matmul %25, %26, %cst_14 {dimension_numbers = #tpu.dot_dimension_numbers<[1], [0], [0], [1], [0, 0, 1, 1], [], []>} : vector<128x128xbf16>, vector<128x32xbf16>, vector<128x32xf32> -> vector<128x32xf32>
    %28 = arith.addf %15, %27 : vector<128x32xf32>
    %c0_15 = arith.constant 0 : index
    %c2 = arith.constant 2 : index
    %29 = memref.load %arg5[%c0_15, %c2] : memref<1x16xf32, #tpu.memory_space<smem>>
    %30 = arith.truncf %29 : f32 to bf16
    %c0_16 = arith.constant 0 : index
    %c2_17 = arith.constant 2 : index
    %31 = memref.load %arg6[%c0_16, %c2_17] : memref<1x16xf32, #tpu.memory_space<smem>>
    %32 = arith.truncf %31 : f32 to bf16
    %33 = vector.broadcast %30 : bf16 to vector<128x128xbf16>
    %34 = arith.mulf %1, %33 : vector<128x128xbf16>
    %35 = vector.broadcast %32 : bf16 to vector<128x128xbf16>
    %36 = arith.addf %34, %35 : vector<128x128xbf16>
    %cst_18 = arith.constant 0.000000e+00 : bf16
    %37 = vector.broadcast %cst_18 : bf16 to vector<128x128xbf16>
    %38 = arith.maximumf %36, %37 : vector<128x128xbf16>
    %c256 = arith.constant 256 : index
    %c0_19 = arith.constant 0 : index
    %39 = vector.load %arg2[%c256, %c0_19] : memref<2048x32xbf16, #tpu.memory_space<vmem>>, vector<128x32xbf16>
    %cst_20 = arith.constant dense<0.000000e+00> : vector<128x32xf32>
    %40 = tpu.matmul %38, %39, %cst_20 {dimension_numbers = #tpu.dot_dimension_numbers<[1], [0], [0], [1], [0, 0, 1, 1], [], []>} : vector<128x128xbf16>, vector<128x32xbf16>, vector<128x32xf32> -> vector<128x32xf32>
    %41 = arith.addf %28, %40 : vector<128x32xf32>
    %c0_21 = arith.constant 0 : index
    %c3 = arith.constant 3 : index
    %42 = memref.load %arg5[%c0_21, %c3] : memref<1x16xf32, #tpu.memory_space<smem>>
    %43 = arith.truncf %42 : f32 to bf16
    %c0_22 = arith.constant 0 : index
    %c3_23 = arith.constant 3 : index
    %44 = memref.load %arg6[%c0_22, %c3_23] : memref<1x16xf32, #tpu.memory_space<smem>>
    %45 = arith.truncf %44 : f32 to bf16
    %46 = vector.broadcast %43 : bf16 to vector<128x128xbf16>
    %47 = arith.mulf %1, %46 : vector<128x128xbf16>
    %48 = vector.broadcast %45 : bf16 to vector<128x128xbf16>
    %49 = arith.addf %47, %48 : vector<128x128xbf16>
    %cst_24 = arith.constant 0.000000e+00 : bf16
    %50 = vector.broadcast %cst_24 : bf16 to vector<128x128xbf16>
    %51 = arith.maximumf %49, %50 : vector<128x128xbf16>
    %c384 = arith.constant 384 : index
    %c0_25 = arith.constant 0 : index
    %52 = vector.load %arg2[%c384, %c0_25] : memref<2048x32xbf16, #tpu.memory_space<vmem>>, vector<128x32xbf16>
    %cst_26 = arith.constant dense<0.000000e+00> : vector<128x32xf32>
    %53 = tpu.matmul %51, %52, %cst_26 {dimension_numbers = #tpu.dot_dimension_numbers<[1], [0], [0], [1], [0, 0, 1, 1], [], []>} : vector<128x128xbf16>, vector<128x32xbf16>, vector<128x32xf32> -> vector<128x32xf32>
    %54 = arith.addf %41, %53 : vector<128x32xf32>
    %c0_27 = arith.constant 0 : index
    %c4 = arith.constant 4 : index
    %55 = memref.load %arg5[%c0_27, %c4] : memref<1x16xf32, #tpu.memory_space<smem>>
    %56 = arith.truncf %55 : f32 to bf16
    %c0_28 = arith.constant 0 : index
    %c4_29 = arith.constant 4 : index
    %57 = memref.load %arg6[%c0_28, %c4_29] : memref<1x16xf32, #tpu.memory_space<smem>>
    %58 = arith.truncf %57 : f32 to bf16
    %59 = vector.broadcast %56 : bf16 to vector<128x128xbf16>
    %60 = arith.mulf %1, %59 : vector<128x128xbf16>
    %61 = vector.broadcast %58 : bf16 to vector<128x128xbf16>
    %62 = arith.addf %60, %61 : vector<128x128xbf16>
    %cst_30 = arith.constant 0.000000e+00 : bf16
    %63 = vector.broadcast %cst_30 : bf16 to vector<128x128xbf16>
    %64 = arith.maximumf %62, %63 : vector<128x128xbf16>
    %c512 = arith.constant 512 : index
    %c0_31 = arith.constant 0 : index
    %65 = vector.load %arg2[%c512, %c0_31] : memref<2048x32xbf16, #tpu.memory_space<vmem>>, vector<128x32xbf16>
    %cst_32 = arith.constant dense<0.000000e+00> : vector<128x32xf32>
    %66 = tpu.matmul %64, %65, %cst_32 {dimension_numbers = #tpu.dot_dimension_numbers<[1], [0], [0], [1], [0, 0, 1, 1], [], []>} : vector<128x128xbf16>, vector<128x32xbf16>, vector<128x32xf32> -> vector<128x32xf32>
    %67 = arith.addf %54, %66 : vector<128x32xf32>
    %c0_33 = arith.constant 0 : index
    %c5 = arith.constant 5 : index
    %68 = memref.load %arg5[%c0_33, %c5] : memref<1x16xf32, #tpu.memory_space<smem>>
    %69 = arith.truncf %68 : f32 to bf16
    %c0_34 = arith.constant 0 : index
    %c5_35 = arith.constant 5 : index
    %70 = memref.load %arg6[%c0_34, %c5_35] : memref<1x16xf32, #tpu.memory_space<smem>>
    %71 = arith.truncf %70 : f32 to bf16
    %72 = vector.broadcast %69 : bf16 to vector<128x128xbf16>
    %73 = arith.mulf %1, %72 : vector<128x128xbf16>
    %74 = vector.broadcast %71 : bf16 to vector<128x128xbf16>
    %75 = arith.addf %73, %74 : vector<128x128xbf16>
    %cst_36 = arith.constant 0.000000e+00 : bf16
    %76 = vector.broadcast %cst_36 : bf16 to vector<128x128xbf16>
    %77 = arith.maximumf %75, %76 : vector<128x128xbf16>
    %c640 = arith.constant 640 : index
    %c0_37 = arith.constant 0 : index
    %78 = vector.load %arg2[%c640, %c0_37] : memref<2048x32xbf16, #tpu.memory_space<vmem>>, vector<128x32xbf16>
    %cst_38 = arith.constant dense<0.000000e+00> : vector<128x32xf32>
    %79 = tpu.matmul %77, %78, %cst_38 {dimension_numbers = #tpu.dot_dimension_numbers<[1], [0], [0], [1], [0, 0, 1, 1], [], []>} : vector<128x128xbf16>, vector<128x32xbf16>, vector<128x32xf32> -> vector<128x32xf32>
    %80 = arith.addf %67, %79 : vector<128x32xf32>
    %c0_39 = arith.constant 0 : index
    %c6 = arith.constant 6 : index
    %81 = memref.load %arg5[%c0_39, %c6] : memref<1x16xf32, #tpu.memory_space<smem>>
    %82 = arith.truncf %81 : f32 to bf16
    %c0_40 = arith.constant 0 : index
    %c6_41 = arith.constant 6 : index
    %83 = memref.load %arg6[%c0_40, %c6_41] : memref<1x16xf32, #tpu.memory_space<smem>>
    %84 = arith.truncf %83 : f32 to bf16
    %85 = vector.broadcast %82 : bf16 to vector<128x128xbf16>
    %86 = arith.mulf %1, %85 : vector<128x128xbf16>
    %87 = vector.broadcast %84 : bf16 to vector<128x128xbf16>
    %88 = arith.addf %86, %87 : vector<128x128xbf16>
    %cst_42 = arith.constant 0.000000e+00 : bf16
    %89 = vector.broadcast %cst_42 : bf16 to vector<128x128xbf16>
    %90 = arith.maximumf %88, %89 : vector<128x128xbf16>
    %c768 = arith.constant 768 : index
    %c0_43 = arith.constant 0 : index
    %91 = vector.load %arg2[%c768, %c0_43] : memref<2048x32xbf16, #tpu.memory_space<vmem>>, vector<128x32xbf16>
    %cst_44 = arith.constant dense<0.000000e+00> : vector<128x32xf32>
    %92 = tpu.matmul %90, %91, %cst_44 {dimension_numbers = #tpu.dot_dimension_numbers<[1], [0], [0], [1], [0, 0, 1, 1], [], []>} : vector<128x128xbf16>, vector<128x32xbf16>, vector<128x32xf32> -> vector<128x32xf32>
    %93 = arith.addf %80, %92 : vector<128x32xf32>
    %c0_45 = arith.constant 0 : index
    %c7 = arith.constant 7 : index
    %94 = memref.load %arg5[%c0_45, %c7] : memref<1x16xf32, #tpu.memory_space<smem>>
    %95 = arith.truncf %94 : f32 to bf16
    %c0_46 = arith.constant 0 : index
    %c7_47 = arith.constant 7 : index
    %96 = memref.load %arg6[%c0_46, %c7_47] : memref<1x16xf32, #tpu.memory_space<smem>>
    %97 = arith.truncf %96 : f32 to bf16
    %98 = vector.broadcast %95 : bf16 to vector<128x128xbf16>
    %99 = arith.mulf %1, %98 : vector<128x128xbf16>
    %100 = vector.broadcast %97 : bf16 to vector<128x128xbf16>
    %101 = arith.addf %99, %100 : vector<128x128xbf16>
    %cst_48 = arith.constant 0.000000e+00 : bf16
    %102 = vector.broadcast %cst_48 : bf16 to vector<128x128xbf16>
    %103 = arith.maximumf %101, %102 : vector<128x128xbf16>
    %c896 = arith.constant 896 : index
    %c0_49 = arith.constant 0 : index
    %104 = vector.load %arg2[%c896, %c0_49] : memref<2048x32xbf16, #tpu.memory_space<vmem>>, vector<128x32xbf16>
    %cst_50 = arith.constant dense<0.000000e+00> : vector<128x32xf32>
    %105 = tpu.matmul %103, %104, %cst_50 {dimension_numbers = #tpu.dot_dimension_numbers<[1], [0], [0], [1], [0, 0, 1, 1], [], []>} : vector<128x128xbf16>, vector<128x32xbf16>, vector<128x32xf32> -> vector<128x32xf32>
    %106 = arith.addf %93, %105 : vector<128x32xf32>
    %c0_51 = arith.constant 0 : index
    %c8 = arith.constant 8 : index
    %107 = memref.load %arg5[%c0_51, %c8] : memref<1x16xf32, #tpu.memory_space<smem>>
    %108 = arith.truncf %107 : f32 to bf16
    %c0_52 = arith.constant 0 : index
    %c8_53 = arith.constant 8 : index
    %109 = memref.load %arg6[%c0_52, %c8_53] : memref<1x16xf32, #tpu.memory_space<smem>>
    %110 = arith.truncf %109 : f32 to bf16
    %111 = vector.broadcast %108 : bf16 to vector<128x128xbf16>
    %112 = arith.mulf %1, %111 : vector<128x128xbf16>
    %113 = vector.broadcast %110 : bf16 to vector<128x128xbf16>
    %114 = arith.addf %112, %113 : vector<128x128xbf16>
    %cst_54 = arith.constant 0.000000e+00 : bf16
    %115 = vector.broadcast %cst_54 : bf16 to vector<128x128xbf16>
    %116 = arith.maximumf %114, %115 : vector<128x128xbf16>
    %c1024 = arith.constant 1024 : index
    %c0_55 = arith.constant 0 : index
    %117 = vector.load %arg2[%c1024, %c0_55] : memref<2048x32xbf16, #tpu.memory_space<vmem>>, vector<128x32xbf16>
    %cst_56 = arith.constant dense<0.000000e+00> : vector<128x32xf32>
    %118 = tpu.matmul %116, %117, %cst_56 {dimension_numbers = #tpu.dot_dimension_numbers<[1], [0], [0], [1], [0, 0, 1, 1], [], []>} : vector<128x128xbf16>, vector<128x32xbf16>, vector<128x32xf32> -> vector<128x32xf32>
    %119 = arith.addf %106, %118 : vector<128x32xf32>
    %c0_57 = arith.constant 0 : index
    %c9 = arith.constant 9 : index
    %120 = memref.load %arg5[%c0_57, %c9] : memref<1x16xf32, #tpu.memory_space<smem>>
    %121 = arith.truncf %120 : f32 to bf16
    %c0_58 = arith.constant 0 : index
    %c9_59 = arith.constant 9 : index
    %122 = memref.load %arg6[%c0_58, %c9_59] : memref<1x16xf32, #tpu.memory_space<smem>>
    %123 = arith.truncf %122 : f32 to bf16
    %124 = vector.broadcast %121 : bf16 to vector<128x128xbf16>
    %125 = arith.mulf %1, %124 : vector<128x128xbf16>
    %126 = vector.broadcast %123 : bf16 to vector<128x128xbf16>
    %127 = arith.addf %125, %126 : vector<128x128xbf16>
    %cst_60 = arith.constant 0.000000e+00 : bf16
    %128 = vector.broadcast %cst_60 : bf16 to vector<128x128xbf16>
    %129 = arith.maximumf %127, %128 : vector<128x128xbf16>
    %c1152 = arith.constant 1152 : index
    %c0_61 = arith.constant 0 : index
    %130 = vector.load %arg2[%c1152, %c0_61] : memref<2048x32xbf16, #tpu.memory_space<vmem>>, vector<128x32xbf16>
    %cst_62 = arith.constant dense<0.000000e+00> : vector<128x32xf32>
    %131 = tpu.matmul %129, %130, %cst_62 {dimension_numbers = #tpu.dot_dimension_numbers<[1], [0], [0], [1], [0, 0, 1, 1], [], []>} : vector<128x128xbf16>, vector<128x32xbf16>, vector<128x32xf32> -> vector<128x32xf32>
    %132 = arith.addf %119, %131 : vector<128x32xf32>
    %c0_63 = arith.constant 0 : index
    %c10 = arith.constant 10 : index
    %133 = memref.load %arg5[%c0_63, %c10] : memref<1x16xf32, #tpu.memory_space<smem>>
    %134 = arith.truncf %133 : f32 to bf16
    %c0_64 = arith.constant 0 : index
    %c10_65 = arith.constant 10 : index
    %135 = memref.load %arg6[%c0_64, %c10_65] : memref<1x16xf32, #tpu.memory_space<smem>>
    %136 = arith.truncf %135 : f32 to bf16
    %137 = vector.broadcast %134 : bf16 to vector<128x128xbf16>
    %138 = arith.mulf %1, %137 : vector<128x128xbf16>
    %139 = vector.broadcast %136 : bf16 to vector<128x128xbf16>
    %140 = arith.addf %138, %139 : vector<128x128xbf16>
    %cst_66 = arith.constant 0.000000e+00 : bf16
    %141 = vector.broadcast %cst_66 : bf16 to vector<128x128xbf16>
    %142 = arith.maximumf %140, %141 : vector<128x128xbf16>
    %c1280 = arith.constant 1280 : index
    %c0_67 = arith.constant 0 : index
    %143 = vector.load %arg2[%c1280, %c0_67] : memref<2048x32xbf16, #tpu.memory_space<vmem>>, vector<128x32xbf16>
    %cst_68 = arith.constant dense<0.000000e+00> : vector<128x32xf32>
    %144 = tpu.matmul %142, %143, %cst_68 {dimension_numbers = #tpu.dot_dimension_numbers<[1], [0], [0], [1], [0, 0, 1, 1], [], []>} : vector<128x128xbf16>, vector<128x32xbf16>, vector<128x32xf32> -> vector<128x32xf32>
    %145 = arith.addf %132, %144 : vector<128x32xf32>
    %c0_69 = arith.constant 0 : index
    %c11 = arith.constant 11 : index
    %146 = memref.load %arg5[%c0_69, %c11] : memref<1x16xf32, #tpu.memory_space<smem>>
    %147 = arith.truncf %146 : f32 to bf16
    %c0_70 = arith.constant 0 : index
    %c11_71 = arith.constant 11 : index
    %148 = memref.load %arg6[%c0_70, %c11_71] : memref<1x16xf32, #tpu.memory_space<smem>>
    %149 = arith.truncf %148 : f32 to bf16
    %150 = vector.broadcast %147 : bf16 to vector<128x128xbf16>
    %151 = arith.mulf %1, %150 : vector<128x128xbf16>
    %152 = vector.broadcast %149 : bf16 to vector<128x128xbf16>
    %153 = arith.addf %151, %152 : vector<128x128xbf16>
    %cst_72 = arith.constant 0.000000e+00 : bf16
    %154 = vector.broadcast %cst_72 : bf16 to vector<128x128xbf16>
    %155 = arith.maximumf %153, %154 : vector<128x128xbf16>
    %c1408 = arith.constant 1408 : index
    %c0_73 = arith.constant 0 : index
    %156 = vector.load %arg2[%c1408, %c0_73] : memref<2048x32xbf16, #tpu.memory_space<vmem>>, vector<128x32xbf16>
    %cst_74 = arith.constant dense<0.000000e+00> : vector<128x32xf32>
    %157 = tpu.matmul %155, %156, %cst_74 {dimension_numbers = #tpu.dot_dimension_numbers<[1], [0], [0], [1], [0, 0, 1, 1], [], []>} : vector<128x128xbf16>, vector<128x32xbf16>, vector<128x32xf32> -> vector<128x32xf32>
    %158 = arith.addf %145, %157 : vector<128x32xf32>
    %c0_75 = arith.constant 0 : index
    %c12 = arith.constant 12 : index
    %159 = memref.load %arg5[%c0_75, %c12] : memref<1x16xf32, #tpu.memory_space<smem>>
    %160 = arith.truncf %159 : f32 to bf16
    %c0_76 = arith.constant 0 : index
    %c12_77 = arith.constant 12 : index
    %161 = memref.load %arg6[%c0_76, %c12_77] : memref<1x16xf32, #tpu.memory_space<smem>>
    %162 = arith.truncf %161 : f32 to bf16
    %163 = vector.broadcast %160 : bf16 to vector<128x128xbf16>
    %164 = arith.mulf %1, %163 : vector<128x128xbf16>
    %165 = vector.broadcast %162 : bf16 to vector<128x128xbf16>
    %166 = arith.addf %164, %165 : vector<128x128xbf16>
    %cst_78 = arith.constant 0.000000e+00 : bf16
    %167 = vector.broadcast %cst_78 : bf16 to vector<128x128xbf16>
    %168 = arith.maximumf %166, %167 : vector<128x128xbf16>
    %c1536 = arith.constant 1536 : index
    %c0_79 = arith.constant 0 : index
    %169 = vector.load %arg2[%c1536, %c0_79] : memref<2048x32xbf16, #tpu.memory_space<vmem>>, vector<128x32xbf16>
    %cst_80 = arith.constant dense<0.000000e+00> : vector<128x32xf32>
    %170 = tpu.matmul %168, %169, %cst_80 {dimension_numbers = #tpu.dot_dimension_numbers<[1], [0], [0], [1], [0, 0, 1, 1], [], []>} : vector<128x128xbf16>, vector<128x32xbf16>, vector<128x32xf32> -> vector<128x32xf32>
    %171 = arith.addf %158, %170 : vector<128x32xf32>
    %c0_81 = arith.constant 0 : index
    %c13 = arith.constant 13 : index
    %172 = memref.load %arg5[%c0_81, %c13] : memref<1x16xf32, #tpu.memory_space<smem>>
    %173 = arith.truncf %172 : f32 to bf16
    %c0_82 = arith.constant 0 : index
    %c13_83 = arith.constant 13 : index
    %174 = memref.load %arg6[%c0_82, %c13_83] : memref<1x16xf32, #tpu.memory_space<smem>>
    %175 = arith.truncf %174 : f32 to bf16
    %176 = vector.broadcast %173 : bf16 to vector<128x128xbf16>
    %177 = arith.mulf %1, %176 : vector<128x128xbf16>
    %178 = vector.broadcast %175 : bf16 to vector<128x128xbf16>
    %179 = arith.addf %177, %178 : vector<128x128xbf16>
    %cst_84 = arith.constant 0.000000e+00 : bf16
    %180 = vector.broadcast %cst_84 : bf16 to vector<128x128xbf16>
    %181 = arith.maximumf %179, %180 : vector<128x128xbf16>
    %c1664 = arith.constant 1664 : index
    %c0_85 = arith.constant 0 : index
    %182 = vector.load %arg2[%c1664, %c0_85] : memref<2048x32xbf16, #tpu.memory_space<vmem>>, vector<128x32xbf16>
    %cst_86 = arith.constant dense<0.000000e+00> : vector<128x32xf32>
    %183 = tpu.matmul %181, %182, %cst_86 {dimension_numbers = #tpu.dot_dimension_numbers<[1], [0], [0], [1], [0, 0, 1, 1], [], []>} : vector<128x128xbf16>, vector<128x32xbf16>, vector<128x32xf32> -> vector<128x32xf32>
    %184 = arith.addf %171, %183 : vector<128x32xf32>
    %c0_87 = arith.constant 0 : index
    %c14 = arith.constant 14 : index
    %185 = memref.load %arg5[%c0_87, %c14] : memref<1x16xf32, #tpu.memory_space<smem>>
    %186 = arith.truncf %185 : f32 to bf16
    %c0_88 = arith.constant 0 : index
    %c14_89 = arith.constant 14 : index
    %187 = memref.load %arg6[%c0_88, %c14_89] : memref<1x16xf32, #tpu.memory_space<smem>>
    %188 = arith.truncf %187 : f32 to bf16
    %189 = vector.broadcast %186 : bf16 to vector<128x128xbf16>
    %190 = arith.mulf %1, %189 : vector<128x128xbf16>
    %191 = vector.broadcast %188 : bf16 to vector<128x128xbf16>
    %192 = arith.addf %190, %191 : vector<128x128xbf16>
    %cst_90 = arith.constant 0.000000e+00 : bf16
    %193 = vector.broadcast %cst_90 : bf16 to vector<128x128xbf16>
    %194 = arith.maximumf %192, %193 : vector<128x128xbf16>
    %c1792 = arith.constant 1792 : index
    %c0_91 = arith.constant 0 : index
    %195 = vector.load %arg2[%c1792, %c0_91] : memref<2048x32xbf16, #tpu.memory_space<vmem>>, vector<128x32xbf16>
    %cst_92 = arith.constant dense<0.000000e+00> : vector<128x32xf32>
    %196 = tpu.matmul %194, %195, %cst_92 {dimension_numbers = #tpu.dot_dimension_numbers<[1], [0], [0], [1], [0, 0, 1, 1], [], []>} : vector<128x128xbf16>, vector<128x32xbf16>, vector<128x32xf32> -> vector<128x32xf32>
    %197 = arith.addf %184, %196 : vector<128x32xf32>
    %c0_93 = arith.constant 0 : index
    %c15 = arith.constant 15 : index
    %198 = memref.load %arg5[%c0_93, %c15] : memref<1x16xf32, #tpu.memory_space<smem>>
    %199 = arith.truncf %198 : f32 to bf16
    %c0_94 = arith.constant 0 : index
    %c15_95 = arith.constant 15 : index
    %200 = memref.load %arg6[%c0_94, %c15_95] : memref<1x16xf32, #tpu.memory_space<smem>>
    %201 = arith.truncf %200 : f32 to bf16
    %202 = vector.broadcast %199 : bf16 to vector<128x128xbf16>
    %203 = arith.mulf %1, %202 : vector<128x128xbf16>
    %204 = vector.broadcast %201 : bf16 to vector<128x128xbf16>
    %205 = arith.addf %203, %204 : vector<128x128xbf16>
    %cst_96 = arith.constant 0.000000e+00 : bf16
    %206 = vector.broadcast %cst_96 : bf16 to vector<128x128xbf16>
    %207 = arith.maximumf %205, %206 : vector<128x128xbf16>
    %c1920 = arith.constant 1920 : index
    %c0_97 = arith.constant 0 : index
    %208 = vector.load %arg2[%c1920, %c0_97] : memref<2048x32xbf16, #tpu.memory_space<vmem>>, vector<128x32xbf16>
    %cst_98 = arith.constant dense<0.000000e+00> : vector<128x32xf32>
    %209 = tpu.matmul %207, %208, %cst_98 {dimension_numbers = #tpu.dot_dimension_numbers<[1], [0], [0], [1], [0, 0, 1, 1], [], []>} : vector<128x128xbf16>, vector<128x32xbf16>, vector<128x32xf32> -> vector<128x32xf32>
    %210 = arith.addf %197, %209 : vector<128x32xf32>
    %c0_99 = arith.constant 0 : index
    %c0_100 = arith.constant 0 : index
    %211 = vector.load %arg3[%c0_99, %c0_100] : memref<1x32xf32, #tpu.memory_space<vmem>>, vector<1x32xf32>
    %212 = vector.broadcast %211 : vector<1x32xf32> to vector<128x32xf32>
    %213 = arith.addf %210, %212 : vector<128x32xf32>
    %cst_101 = arith.constant 0.000000e+00 : f32
    %214 = vector.broadcast %cst_101 : f32 to vector<128x32xf32>
    %215 = arith.maximumf %213, %214 : vector<128x32xf32>
    %c0_102 = arith.constant 0 : index
    %c0_103 = arith.constant 0 : index
    %216 = vector.load %arg4[%c0_102, %c0_103] : memref<1x32xf32, #tpu.memory_space<vmem>>, vector<1x32xf32>
    %cst_104 = arith.constant dense<0.000000e+00> : vector<1x128xf32>
    %217 = tpu.matmul %216, %215, %cst_104 {dimension_numbers = #tpu.dot_dimension_numbers<[1], [1], [0], [0], [0, 0, 1, 0], [], []>} : vector<1x32xf32>, vector<128x32xf32>, vector<1x128xf32> -> vector<1x128xf32>
    %c0_105 = arith.constant 0 : index
    %c0_106 = arith.constant 0 : index
    %218 = memref.load %arg7[%c0_105, %c0_106] : memref<1x1xf32, #tpu.memory_space<smem>>
    %219 = vector.broadcast %218 : f32 to vector<1x128xf32>
    %220 = arith.addf %217, %219 : vector<1x128xf32>
    %c0_107 = arith.constant 0 : index
    %c0_108 = arith.constant 0 : index
    %221 = vector.load %arg8[%c0_107, %c0_108] : memref<1x128xf32, #tpu.memory_space<vmem>>, vector<1x128xf32>
    tpu.vector_store %arg8[%c0_107, %c0_108], %220 {strides = array<i32>} : memref<1x128xf32, #tpu.memory_space<vmem>>, vector<1x128xf32>,
    return
  }
  func.func @transform_0(%arg0: i32) -> (i32, i32) {
    %c0_i32 = arith.constant 0 : i32
    %c0_i32_0 = arith.constant 0 : i32
    return %arg0, %c0_i32 : i32, i32
  }
  func.func @transform_1(%arg0: i32) -> (i32, i32) {
    %c0_i32 = arith.constant 0 : i32
    %c0_i32_0 = arith.constant 0 : i32
    %c0_i32_1 = arith.constant 0 : i32
    return %c0_i32, %c0_i32_0 : i32, i32
  }
  func.func @transform_2(%arg0: i32) -> (i32, i32) {
    %c0_i32 = arith.constant 0 : i32
    %c0_i32_0 = arith.constant 0 : i32
    %c0_i32_1 = arith.constant 0 : i32
    return %c0_i32, %c0_i32_0 : i32, i32
  }
  func.func @transform_3(%arg0: i32) -> (i32, i32) {
    %c0_i32 = arith.constant 0 : i32
    %c0_i32_0 = arith.constant 0 : i32
    %c0_i32_1 = arith.constant 0 : i32
    return %c0_i32, %c0_i32_0 : i32, i32
  }
  func.func @transform_4(%arg0: i32) -> (i32, i32) {
    %c0_i32 = arith.constant 0 : i32
    %c0_i32_0 = arith.constant 0 : i32
    %c0_i32_1 = arith.constant 0 : i32
    return %c0_i32, %c0_i32_0 : i32, i32
  }
  func.func @transform_5(%arg0: i32) -> (i32, i32) {
    %c0_i32 = arith.constant 0 : i32
    %c0_i32_0 = arith.constant 0 : i32
    %c0_i32_1 = arith.constant 0 : i32
    return %c0_i32, %c0_i32_0 : i32, i32
  }
  func.func @transform_6(%arg0: i32) -> (i32, i32) {
    %c0_i32 = arith.constant 0 : i32
    %c0_i32_0 = arith.constant 0 : i32
    %c0_i32_1 = arith.constant 0 : i32
    return %c0_i32, %c0_i32_0 : i32, i32
  }
  func.func @transform_7(%arg0: i32) -> (i32, i32) {
    %c0_i32 = arith.constant 0 : i32
    %c0_i32_0 = arith.constant 0 : i32
    return %c0_i32, %arg0 : i32, i32
  }
}

module attributes {stable_mosaic.version = 11 : i64} {
  func.func @kernel(%arg0: i32, %arg1: memref<128x128xf32, #tpu.memory_space<vmem>>, %arg2: memref<2048x32xbf16, #tpu.memory_space<vmem>>, %arg3: memref<1x32xf32, #tpu.memory_space<vmem>>, %arg4: memref<1x32xf32, #tpu.memory_space<vmem>>, %arg5: memref<1x16xf32, #tpu.memory_space<smem>>, %arg6: memref<1x16xf32, #tpu.memory_space<smem>>, %arg7: memref<1x1xf32, #tpu.memory_space<smem>>, %arg8: memref<1x128xf32, #tpu.memory_space<vmem>>) attributes {dimension_semantics = [#tpu.dimension_semantics<parallel>], iteration_bounds = array<i64: 1>, scalar_prefetch = 0 : i64, scratch_operands = 0 : i64, tpu.core_type = #tpu.core_type<tc>, window_params = [{transform_indices = @transform_0, window_bounds = array<i64: 128, 128>}, {pipeline_mode = #tpu.pipeline_mode<synchronous>, transform_indices = @transform_1, window_bounds = array<i64: 2048, 32>}, {pipeline_mode = #tpu.pipeline_mode<synchronous>, transform_indices = @transform_2, window_bounds = array<i64: 1, 32>}, {pipeline_mode = #tpu.pipeline_mode<synchronous>, transform_indices = @transform_3, window_bounds = array<i64: 1, 32>}, {transform_indices = @transform_4, window_bounds = array<i64: 1, 16>}, {transform_indices = @transform_5, window_bounds = array<i64: 1, 16>}, {transform_indices = @transform_6, window_bounds = array<i64: 1, 1>}, {transform_indices = @transform_7, window_bounds = array<i64: 1, 128>}]} {
    %c0 = arith.constant 0 : index
    %c0_0 = arith.constant 0 : index
    %0 = vector.load %arg1[%c0, %c0_0] : memref<128x128xf32, #tpu.memory_space<vmem>>, vector<128x128xf32>
    %1 = arith.truncf %0 : vector<128x128xf32> to vector<128x128xbf16>
    %cst = arith.constant 0.000000e+00 : f32
    %2 = vector.broadcast %cst : f32 to vector<128x32xf32>
    %c0_1 = arith.constant 0 : index
    %c0_2 = arith.constant 0 : index
    %3 = memref.load %arg5[%c0_1, %c0_2] : memref<1x16xf32, #tpu.memory_space<smem>>
    %4 = arith.truncf %3 : f32 to bf16
    %c0_3 = arith.constant 0 : index
    %c0_4 = arith.constant 0 : index
    %5 = memref.load %arg6[%c0_3, %c0_4] : memref<1x16xf32, #tpu.memory_space<smem>>
    %6 = arith.truncf %5 : f32 to bf16
    %7 = vector.broadcast %4 : bf16 to vector<128x128xbf16>
    %8 = arith.mulf %1, %7 : vector<128x128xbf16>
    %9 = vector.broadcast %6 : bf16 to vector<128x128xbf16>
    %10 = arith.addf %8, %9 : vector<128x128xbf16>
    %cst_5 = arith.constant 0.000000e+00 : bf16
    %11 = vector.broadcast %cst_5 : bf16 to vector<128x128xbf16>
    %12 = arith.maximumf %10, %11 : vector<128x128xbf16>
    %c0_6 = arith.constant 0 : index
    %c0_7 = arith.constant 0 : index
    %13 = vector.load %arg2[%c0_6, %c0_7] : memref<2048x32xbf16, #tpu.memory_space<vmem>>, vector<128x32xbf16>
    %cst_8 = arith.constant dense<0.000000e+00> : vector<128x32xf32>
    %14 = tpu.matmul %12, %13, %cst_8 {dimension_numbers = #tpu.dot_dimension_numbers<[1], [0], [0], [1], [0, 0, 1, 1], [], []>} : vector<128x128xbf16>, vector<128x32xbf16>, vector<128x32xf32> -> vector<128x32xf32>
    %15 = arith.addf %2, %14 : vector<128x32xf32>
    %c0_9 = arith.constant 0 : index
    %c1 = arith.constant 1 : index
    %16 = memref.load %arg5[%c0_9, %c1] : memref<1x16xf32, #tpu.memory_space<smem>>
    %17 = arith.truncf %16 : f32 to bf16
    %c0_10 = arith.constant 0 : index
    %c1_11 = arith.constant 1 : index
    %18 = memref.load %arg6[%c0_10, %c1_11] : memref<1x16xf32, #tpu.memory_space<smem>>
    %19 = arith.truncf %18 : f32 to bf16
    %20 = vector.broadcast %17 : bf16 to vector<128x128xbf16>
    %21 = arith.mulf %1, %20 : vector<128x128xbf16>
    %22 = vector.broadcast %19 : bf16 to vector<128x128xbf16>
    %23 = arith.addf %21, %22 : vector<128x128xbf16>
    %cst_12 = arith.constant 0.000000e+00 : bf16
    %24 = vector.broadcast %cst_12 : bf16 to vector<128x128xbf16>
    %25 = arith.maximumf %23, %24 : vector<128x128xbf16>
    %c128 = arith.constant 128 : index
    %c0_13 = arith.constant 0 : index
    %26 = vector.load %arg2[%c128, %c0_13] : memref<2048x32xbf16, #tpu.memory_space<vmem>>, vector<128x32xbf16>
    %cst_14 = arith.constant dense<0.000000e+00> : vector<128x32xf32>
    %27 = tpu.matmul %25, %26, %cst_14 {dimension_numbers = #tpu.dot_dimension_numbers<[1], [0], [0], [1], [0, 0, 1, 1], [], []>} : vector<128x128xbf16>, vector<128x32xbf16>, vector<128x32xf32> -> vector<128x32xf32>
    %28 = arith.addf %15, %27 : vector<128x32xf32>
    %c0_15 = arith.constant 0 : index
    %c2 = arith.constant 2 : index
    %29 = memref.load %arg5[%c0_15, %c2] : memref<1x16xf32, #tpu.memory_space<smem>>
    %30 = arith.truncf %29 : f32 to bf16
    %c0_16 = arith.constant 0 : index
    %c2_17 = arith.constant 2 : index
    %31 = memref.load %arg6[%c0_16, %c2_17] : memref<1x16xf32, #tpu.memory_space<smem>>
    %32 = arith.truncf %31 : f32 to bf16
    %33 = vector.broadcast %30 : bf16 to vector<128x128xbf16>
    %34 = arith.mulf %1, %33 : vector<128x128xbf16>
    %35 = vector.broadcast %32 : bf16 to vector<128x128xbf16>
    %36 = arith.addf %34, %35 : vector<128x128xbf16>
    %cst_18 = arith.constant 0.000000e+00 : bf16
    %37 = vector.broadcast %cst_18 : bf16 to vector<128x128xbf16>
    %38 = arith.maximumf %36, %37 : vector<128x128xbf16>
    %c256 = arith.constant 256 : index
    %c0_19 = arith.constant 0 : index
    %39 = vector.load %arg2[%c256, %c0_19] : memref<2048x32xbf16, #tpu.memory_space<vmem>>, vector<128x32xbf16>
    %cst_20 = arith.constant dense<0.000000e+00> : vector<128x32xf32>
    %40 = tpu.matmul %38, %39, %cst_20 {dimension_numbers = #tpu.dot_dimension_numbers<[1], [0], [0], [1], [0, 0, 1, 1], [], []>} : vector<128x128xbf16>, vector<128x32xbf16>, vector<128x32xf32> -> vector<128x32xf32>
    %41 = arith.addf %28, %40 : vector<128x32xf32>
    %c0_21 = arith.constant 0 : index
    %c3 = arith.constant 3 : index
    %42 = memref.load %arg5[%c0_21, %c3] : memref<1x16xf32, #tpu.memory_space<smem>>
    %43 = arith.truncf %42 : f32 to bf16
    %c0_22 = arith.constant 0 : index
    %c3_23 = arith.constant 3 : index
    %44 = memref.load %arg6[%c0_22, %c3_23] : memref<1x16xf32, #tpu.memory_space<smem>>
    %45 = arith.truncf %44 : f32 to bf16
    %46 = vector.broadcast %43 : bf16 to vector<128x128xbf16>
    %47 = arith.mulf %1, %46 : vector<128x128xbf16>
    %48 = vector.broadcast %45 : bf16 to vector<128x128xbf16>
    %49 = arith.addf %47, %48 : vector<128x128xbf16>
    %cst_24 = arith.constant 0.000000e+00 : bf16
    %50 = vector.broadcast %cst_24 : bf16 to vector<128x128xbf16>
    %51 = arith.maximumf %49, %50 : vector<128x128xbf16>
    %c384 = arith.constant 384 : index
    %c0_25 = arith.constant 0 : index
    %52 = vector.load %arg2[%c384, %c0_25] : memref<2048x32xbf16, #tpu.memory_space<vmem>>, vector<128x32xbf16>
    %cst_26 = arith.constant dense<0.000000e+00> : vector<128x32xf32>
    %53 = tpu.matmul %51, %52, %cst_26 {dimension_numbers = #tpu.dot_dimension_numbers<[1], [0], [0], [1], [0, 0, 1, 1], [], []>} : vector<128x128xbf16>, vector<128x32xbf16>, vector<128x32xf32> -> vector<128x32xf32>
    %54 = arith.addf %41, %53 : vector<128x32xf32>
    %c0_27 = arith.constant 0 : index
    %c4 = arith.constant 4 : index
    %55 = memref.load %arg5[%c0_27, %c4] : memref<1x16xf32, #tpu.memory_space<smem>>
    %56 = arith.truncf %55 : f32 to bf16
    %c0_28 = arith.constant 0 : index
    %c4_29 = arith.constant 4 : index
    %57 = memref.load %arg6[%c0_28, %c4_29] : memref<1x16xf32, #tpu.memory_space<smem>>
    %58 = arith.truncf %57 : f32 to bf16
    %59 = vector.broadcast %56 : bf16 to vector<128x128xbf16>
    %60 = arith.mulf %1, %59 : vector<128x128xbf16>
    %61 = vector.broadcast %58 : bf16 to vector<128x128xbf16>
    %62 = arith.addf %60, %61 : vector<128x128xbf16>
    %cst_30 = arith.constant 0.000000e+00 : bf16
    %63 = vector.broadcast %cst_30 : bf16 to vector<128x128xbf16>
    %64 = arith.maximumf %62, %63 : vector<128x128xbf16>
    %c512 = arith.constant 512 : index
    %c0_31 = arith.constant 0 : index
    %65 = vector.load %arg2[%c512, %c0_31] : memref<2048x32xbf16, #tpu.memory_space<vmem>>, vector<128x32xbf16>
    %cst_32 = arith.constant dense<0.000000e+00> : vector<128x32xf32>
    %66 = tpu.matmul %64, %65, %cst_32 {dimension_numbers = #tpu.dot_dimension_numbers<[1], [0], [0], [1], [0, 0, 1, 1], [], []>} : vector<128x128xbf16>, vector<128x32xbf16>, vector<128x32xf32> -> vector<128x32xf32>
    %67 = arith.addf %54, %66 : vector<128x32xf32>
    %c0_33 = arith.constant 0 : index
    %c5 = arith.constant 5 : index
    %68 = memref.load %arg5[%c0_33, %c5] : memref<1x16xf32, #tpu.memory_space<smem>>
    %69 = arith.truncf %68 : f32 to bf16
    %c0_34 = arith.constant 0 : index
    %c5_35 = arith.constant 5 : index
    %70 = memref.load %arg6[%c0_34, %c5_35] : memref<1x16xf32, #tpu.memory_space<smem>>
    %71 = arith.truncf %70 : f32 to bf16
    %72 = vector.broadcast %69 : bf16 to vector<128x128xbf16>
    %73 = arith.mulf %1, %72 : vector<128x128xbf16>
    %74 = vector.broadcast %71 : bf16 to vector<128x128xbf16>
    %75 = arith.addf %73, %74 : vector<128x128xbf16>
    %cst_36 = arith.constant 0.000000e+00 : bf16
    %76 = vector.broadcast %cst_36 : bf16 to vector<128x128xbf16>
    %77 = arith.maximumf %75, %76 : vector<128x128xbf16>
    %c640 = arith.constant 640 : index
    %c0_37 = arith.constant 0 : index
    %78 = vector.load %arg2[%c640, %c0_37] : memref<2048x32xbf16, #tpu.memory_space<vmem>>, vector<128x32xbf16>
    %cst_38 = arith.constant dense<0.000000e+00> : vector<128x32xf32>
    %79 = tpu.matmul %77, %78, %cst_38 {dimension_numbers = #tpu.dot_dimension_numbers<[1], [0], [0], [1], [0, 0, 1, 1], [], []>} : vector<128x128xbf16>, vector<128x32xbf16>, vector<128x32xf32> -> vector<128x32xf32>
    %80 = arith.addf %67, %79 : vector<128x32xf32>
    %c0_39 = arith.constant 0 : index
    %c6 = arith.constant 6 : index
    %81 = memref.load %arg5[%c0_39, %c6] : memref<1x16xf32, #tpu.memory_space<smem>>
    %82 = arith.truncf %81 : f32 to bf16
    %c0_40 = arith.constant 0 : index
    %c6_41 = arith.constant 6 : index
    %83 = memref.load %arg6[%c0_40, %c6_41] : memref<1x16xf32, #tpu.memory_space<smem>>
    %84 = arith.truncf %83 : f32 to bf16
    %85 = vector.broadcast %82 : bf16 to vector<128x128xbf16>
    %86 = arith.mulf %1, %85 : vector<128x128xbf16>
    %87 = vector.broadcast %84 : bf16 to vector<128x128xbf16>
    %88 = arith.addf %86, %87 : vector<128x128xbf16>
    %cst_42 = arith.constant 0.000000e+00 : bf16
    %89 = vector.broadcast %cst_42 : bf16 to vector<128x128xbf16>
    %90 = arith.maximumf %88, %89 : vector<128x128xbf16>
    %c768 = arith.constant 768 : index
    %c0_43 = arith.constant 0 : index
    %91 = vector.load %arg2[%c768, %c0_43] : memref<2048x32xbf16, #tpu.memory_space<vmem>>, vector<128x32xbf16>
    %cst_44 = arith.constant dense<0.000000e+00> : vector<128x32xf32>
    %92 = tpu.matmul %90, %91, %cst_44 {dimension_numbers = #tpu.dot_dimension_numbers<[1], [0], [0], [1], [0, 0, 1, 1], [], []>} : vector<128x128xbf16>, vector<128x32xbf16>, vector<128x32xf32> -> vector<128x32xf32>
    %93 = arith.addf %80, %92 : vector<128x32xf32>
    %c0_45 = arith.constant 0 : index
    %c7 = arith.constant 7 : index
    %94 = memref.load %arg5[%c0_45, %c7] : memref<1x16xf32, #tpu.memory_space<smem>>
    %95 = arith.truncf %94 : f32 to bf16
    %c0_46 = arith.constant 0 : index
    %c7_47 = arith.constant 7 : index
    %96 = memref.load %arg6[%c0_46, %c7_47] : memref<1x16xf32, #tpu.memory_space<smem>>
    %97 = arith.truncf %96 : f32 to bf16
    %98 = vector.broadcast %95 : bf16 to vector<128x128xbf16>
    %99 = arith.mulf %1, %98 : vector<128x128xbf16>
    %100 = vector.broadcast %97 : bf16 to vector<128x128xbf16>
    %101 = arith.addf %99, %100 : vector<128x128xbf16>
    %cst_48 = arith.constant 0.000000e+00 : bf16
    %102 = vector.broadcast %cst_48 : bf16 to vector<128x128xbf16>
    %103 = arith.maximumf %101, %102 : vector<128x128xbf16>
    %c896 = arith.constant 896 : index
    %c0_49 = arith.constant 0 : index
    %104 = vector.load %arg2[%c896, %c0_49] : memref<2048x32xbf16, #tpu.memory_space<vmem>>, vector<128x32xbf16>
    %cst_50 = arith.constant dense<0.000000e+00> : vector<128x32xf32>
    %105 = tpu.matmul %103, %104, %cst_50 {dimension_numbers = #tpu.dot_dimension_numbers<[1], [0], [0], [1], [0, 0, 1, 1], [], []>} : vector<128x128xbf16>, vector<128x32xbf16>, vector<128x32xf32> -> vector<128x32xf32>
    %106 = arith.addf %93, %105 : vector<128x32xf32>
    %c0_51 = arith.constant 0 : index
    %c8 = arith.constant 8 : index
    %107 = memref.load %arg5[%c0_51, %c8] : memref<1x16xf32, #tpu.memory_space<smem>>
    %108 = arith.truncf %107 : f32 to bf16
    %c0_52 = arith.constant 0 : index
    %c8_53 = arith.constant 8 : index
    %109 = memref.load %arg6[%c0_52, %c8_53] : memref<1x16xf32, #tpu.memory_space<smem>>
    %110 = arith.truncf %109 : f32 to bf16
    %111 = vector.broadcast %108 : bf16 to vector<128x128xbf16>
    %112 = arith.mulf %1, %111 : vector<128x128xbf16>
    %113 = vector.broadcast %110 : bf16 to vector<128x128xbf16>
    %114 = arith.addf %112, %113 : vector<128x128xbf16>
    %cst_54 = arith.constant 0.000000e+00 : bf16
    %115 = vector.broadcast %cst_54 : bf16 to vector<128x128xbf16>
    %116 = arith.maximumf %114, %115 : vector<128x128xbf16>
    %c1024 = arith.constant 1024 : index
    %c0_55 = arith.constant 0 : index
    %117 = vector.load %arg2[%c1024, %c0_55] : memref<2048x32xbf16, #tpu.memory_space<vmem>>, vector<128x32xbf16>
    %cst_56 = arith.constant dense<0.000000e+00> : vector<128x32xf32>
    %118 = tpu.matmul %116, %117, %cst_56 {dimension_numbers = #tpu.dot_dimension_numbers<[1], [0], [0], [1], [0, 0, 1, 1], [], []>} : vector<128x128xbf16>, vector<128x32xbf16>, vector<128x32xf32> -> vector<128x32xf32>
    %119 = arith.addf %106, %118 : vector<128x32xf32>
    %c0_57 = arith.constant 0 : index
    %c9 = arith.constant 9 : index
    %120 = memref.load %arg5[%c0_57, %c9] : memref<1x16xf32, #tpu.memory_space<smem>>
    %121 = arith.truncf %120 : f32 to bf16
    %c0_58 = arith.constant 0 : index
    %c9_59 = arith.constant 9 : index
    %122 = memref.load %arg6[%c0_58, %c9_59] : memref<1x16xf32, #tpu.memory_space<smem>>
    %123 = arith.truncf %122 : f32 to bf16
    %124 = vector.broadcast %121 : bf16 to vector<128x128xbf16>
    %125 = arith.mulf %1, %124 : vector<128x128xbf16>
    %126 = vector.broadcast %123 : bf16 to vector<128x128xbf16>
    %127 = arith.addf %125, %126 : vector<128x128xbf16>
    %cst_60 = arith.constant 0.000000e+00 : bf16
    %128 = vector.broadcast %cst_60 : bf16 to vector<128x128xbf16>
    %129 = arith.maximumf %127, %128 : vector<128x128xbf16>
    %c1152 = arith.constant 1152 : index
    %c0_61 = arith.constant 0 : index
    %130 = vector.load %arg2[%c1152, %c0_61] : memref<2048x32xbf16, #tpu.memory_space<vmem>>, vector<128x32xbf16>
    %cst_62 = arith.constant dense<0.000000e+00> : vector<128x32xf32>
    %131 = tpu.matmul %129, %130, %cst_62 {dimension_numbers = #tpu.dot_dimension_numbers<[1], [0], [0], [1], [0, 0, 1, 1], [], []>} : vector<128x128xbf16>, vector<128x32xbf16>, vector<128x32xf32> -> vector<128x32xf32>
    %132 = arith.addf %119, %131 : vector<128x32xf32>
    %c0_63 = arith.constant 0 : index
    %c10 = arith.constant 10 : index
    %133 = memref.load %arg5[%c0_63, %c10] : memref<1x16xf32, #tpu.memory_space<smem>>
    %134 = arith.truncf %133 : f32 to bf16
    %c0_64 = arith.constant 0 : index
    %c10_65 = arith.constant 10 : index
    %135 = memref.load %arg6[%c0_64, %c10_65] : memref<1x16xf32, #tpu.memory_space<smem>>
    %136 = arith.truncf %135 : f32 to bf16
    %137 = vector.broadcast %134 : bf16 to vector<128x128xbf16>
    %138 = arith.mulf %1, %137 : vector<128x128xbf16>
    %139 = vector.broadcast %136 : bf16 to vector<128x128xbf16>
    %140 = arith.addf %138, %139 : vector<128x128xbf16>
    %cst_66 = arith.constant 0.000000e+00 : bf16
    %141 = vector.broadcast %cst_66 : bf16 to vector<128x128xbf16>
    %142 = arith.maximumf %140, %141 : vector<128x128xbf16>
    %c1280 = arith.constant 1280 : index
    %c0_67 = arith.constant 0 : index
    %143 = vector.load %arg2[%c1280, %c0_67] : memref<2048x32xbf16, #tpu.memory_space<vmem>>, vector<128x32xbf16>
    %cst_68 = arith.constant dense<0.000000e+00> : vector<128x32xf32>
    %144 = tpu.matmul %142, %143, %cst_68 {dimension_numbers = #tpu.dot_dimension_numbers<[1], [0], [0], [1], [0, 0, 1, 1], [], []>} : vector<128x128xbf16>, vector<128x32xbf16>, vector<128x32xf32> -> vector<128x32xf32>
    %145 = arith.addf %132, %144 : vector<128x32xf32>
    %c0_69 = arith.constant 0 : index
    %c11 = arith.constant 11 : index
    %146 = memref.load %arg5[%c0_69, %c11] : memref<1x16xf32, #tpu.memory_space<smem>>
    %147 = arith.truncf %146 : f32 to bf16
    %c0_70 = arith.constant 0 : index
    %c11_71 = arith.constant 11 : index
    %148 = memref.load %arg6[%c0_70, %c11_71] : memref<1x16xf32, #tpu.memory_space<smem>>
    %149 = arith.truncf %148 : f32 to bf16
    %150 = vector.broadcast %147 : bf16 to vector<128x128xbf16>
    %151 = arith.mulf %1, %150 : vector<128x128xbf16>
    %152 = vector.broadcast %149 : bf16 to vector<128x128xbf16>
    %153 = arith.addf %151, %152 : vector<128x128xbf16>
    %cst_72 = arith.constant 0.000000e+00 : bf16
    %154 = vector.broadcast %cst_72 : bf16 to vector<128x128xbf16>
    %155 = arith.maximumf %153, %154 : vector<128x128xbf16>
    %c1408 = arith.constant 1408 : index
    %c0_73 = arith.constant 0 : index
    %156 = vector.load %arg2[%c1408, %c0_73] : memref<2048x32xbf16, #tpu.memory_space<vmem>>, vector<128x32xbf16>
    %cst_74 = arith.constant dense<0.000000e+00> : vector<128x32xf32>
    %157 = tpu.matmul %155, %156, %cst_74 {dimension_numbers = #tpu.dot_dimension_numbers<[1], [0], [0], [1], [0, 0, 1, 1], [], []>} : vector<128x128xbf16>, vector<128x32xbf16>, vector<128x32xf32> -> vector<128x32xf32>
    %158 = arith.addf %145, %157 : vector<128x32xf32>
    %c0_75 = arith.constant 0 : index
    %c12 = arith.constant 12 : index
    %159 = memref.load %arg5[%c0_75, %c12] : memref<1x16xf32, #tpu.memory_space<smem>>
    %160 = arith.truncf %159 : f32 to bf16
    %c0_76 = arith.constant 0 : index
    %c12_77 = arith.constant 12 : index
    %161 = memref.load %arg6[%c0_76, %c12_77] : memref<1x16xf32, #tpu.memory_space<smem>>
    %162 = arith.truncf %161 : f32 to bf16
    %163 = vector.broadcast %160 : bf16 to vector<128x128xbf16>
    %164 = arith.mulf %1, %163 : vector<128x128xbf16>
    %165 = vector.broadcast %162 : bf16 to vector<128x128xbf16>
    %166 = arith.addf %164, %165 : vector<128x128xbf16>
    %cst_78 = arith.constant 0.000000e+00 : bf16
    %167 = vector.broadcast %cst_78 : bf16 to vector<128x128xbf16>
    %168 = arith.maximumf %166, %167 : vector<128x128xbf16>
    %c1536 = arith.constant 1536 : index
    %c0_79 = arith.constant 0 : index
    %169 = vector.load %arg2[%c1536, %c0_79] : memref<2048x32xbf16, #tpu.memory_space<vmem>>, vector<128x32xbf16>
    %cst_80 = arith.constant dense<0.000000e+00> : vector<128x32xf32>
    %170 = tpu.matmul %168, %169, %cst_80 {dimension_numbers = #tpu.dot_dimension_numbers<[1], [0], [0], [1], [0, 0, 1, 1], [], []>} : vector<128x128xbf16>, vector<128x32xbf16>, vector<128x32xf32> -> vector<128x32xf32>
    %171 = arith.addf %158, %170 : vector<128x32xf32>
    %c0_81 = arith.constant 0 : index
    %c13 = arith.constant 13 : index
    %172 = memref.load %arg5[%c0_81, %c13] : memref<1x16xf32, #tpu.memory_space<smem>>
    %173 = arith.truncf %172 : f32 to bf16
    %c0_82 = arith.constant 0 : index
    %c13_83 = arith.constant 13 : index
    %174 = memref.load %arg6[%c0_82, %c13_83] : memref<1x16xf32, #tpu.memory_space<smem>>
    %175 = arith.truncf %174 : f32 to bf16
    %176 = vector.broadcast %173 : bf16 to vector<128x128xbf16>
    %177 = arith.mulf %1, %176 : vector<128x128xbf16>
    %178 = vector.broadcast %175 : bf16 to vector<128x128xbf16>
    %179 = arith.addf %177, %178 : vector<128x128xbf16>
    %cst_84 = arith.constant 0.000000e+00 : bf16
    %180 = vector.broadcast %cst_84 : bf16 to vector<128x128xbf16>
    %181 = arith.maximumf %179, %180 : vector<128x128xbf16>
    %c1664 = arith.constant 1664 : index
    %c0_85 = arith.constant 0 : index
    %182 = vector.load %arg2[%c1664, %c0_85] : memref<2048x32xbf16, #tpu.memory_space<vmem>>, vector<128x32xbf16>
    %cst_86 = arith.constant dense<0.000000e+00> : vector<128x32xf32>
    %183 = tpu.matmul %181, %182, %cst_86 {dimension_numbers = #tpu.dot_dimension_numbers<[1], [0], [0], [1], [0, 0, 1, 1], [], []>} : vector<128x128xbf16>, vector<128x32xbf16>, vector<128x32xf32> -> vector<128x32xf32>
    %184 = arith.addf %171, %183 : vector<128x32xf32>
    %c0_87 = arith.constant 0 : index
    %c14 = arith.constant 14 : index
    %185 = memref.load %arg5[%c0_87, %c14] : memref<1x16xf32, #tpu.memory_space<smem>>
    %186 = arith.truncf %185 : f32 to bf16
    %c0_88 = arith.constant 0 : index
    %c14_89 = arith.constant 14 : index
    %187 = memref.load %arg6[%c0_88, %c14_89] : memref<1x16xf32, #tpu.memory_space<smem>>
    %188 = arith.truncf %187 : f32 to bf16
    %189 = vector.broadcast %186 : bf16 to vector<128x128xbf16>
    %190 = arith.mulf %1, %189 : vector<128x128xbf16>
    %191 = vector.broadcast %188 : bf16 to vector<128x128xbf16>
    %192 = arith.addf %190, %191 : vector<128x128xbf16>
    %cst_90 = arith.constant 0.000000e+00 : bf16
    %193 = vector.broadcast %cst_90 : bf16 to vector<128x128xbf16>
    %194 = arith.maximumf %192, %193 : vector<128x128xbf16>
    %c1792 = arith.constant 1792 : index
    %c0_91 = arith.constant 0 : index
    %195 = vector.load %arg2[%c1792, %c0_91] : memref<2048x32xbf16, #tpu.memory_space<vmem>>, vector<128x32xbf16>
    %cst_92 = arith.constant dense<0.000000e+00> : vector<128x32xf32>
    %196 = tpu.matmul %194, %195, %cst_92 {dimension_numbers = #tpu.dot_dimension_numbers<[1], [0], [0], [1], [0, 0, 1, 1], [], []>} : vector<128x128xbf16>, vector<128x32xbf16>, vector<128x32xf32> -> vector<128x32xf32>
    %197 = arith.addf %184, %196 : vector<128x32xf32>
    %c0_93 = arith.constant 0 : index
    %c15 = arith.constant 15 : index
    %198 = memref.load %arg5[%c0_93, %c15] : memref<1x16xf32, #tpu.memory_space<smem>>
    %199 = arith.truncf %198 : f32 to bf16
    %c0_94 = arith.constant 0 : index
    %c15_95 = arith.constant 15 : index
    %200 = memref.load %arg6[%c0_94, %c15_95] : memref<1x16xf32, #tpu.memory_space<smem>>
    %201 = arith.truncf %200 : f32 to bf16
    %202 = vector.broadcast %199 : bf16 to vector<128x128xbf16>
    %203 = arith.mulf %1, %202 : vector<128x128xbf16>
    %204 = vector.broadcast %201 : bf16 to vector<128x128xbf16>
    %205 = arith.addf %203, %204 : vector<128x128xbf16>
    %cst_96 = arith.constant 0.000000e+00 : bf16
    %206 = vector.broadcast %cst_96 : bf16 to vector<128x128xbf16>
    %207 = arith.maximumf %205, %206 : vector<128x128xbf16>
    %c1920 = arith.constant 1920 : index
    %c0_97 = arith.constant 0 : index
    %208 = vector.load %arg2[%c1920, %c0_97] : memref<2048x32xbf16, #tpu.memory_space<vmem>>, vector<128x32xbf16>
    %cst_98 = arith.constant dense<0.000000e+00> : vector<128x32xf32>
    %209 = tpu.matmul %207, %208, %cst_98 {dimension_numbers = #tpu.dot_dimension_numbers<[1], [0], [0], [1], [0, 0, 1, 1], [], []>} : vector<128x128xbf16>, vector<128x32xbf16>, vector<128x32xf32> -> vector<128x32xf32>
    %210 = arith.addf %197, %209 : vector<128x32xf32>
    %c0_99 = arith.constant 0 : index
    %c0_100 = arith.constant 0 : index
    %211 = vector.load %arg3[%c0_99, %c0_100] : memref<1x32xf32, #tpu.memory_space<vmem>>, vector<1x32xf32>
    %212 = vector.broadcast %211 : vector<1x32xf32> to vector<128x32xf32>
    %213 = arith.addf %210, %212 : vector<128x32xf32>
    %cst_101 = arith.constant 0.000000e+00 : f32
    %214 = vector.broadcast %cst_101 : f32 to vector<128x32xf32>
    %215 = arith.maximumf %213, %214 : vector<128x32xf32>
    %c0_102 = arith.constant 0 : index
    %c0_103 = arith.constant 0 : index
    %216 = vector.load %arg4[%c0_102, %c0_103] : memref<1x32xf32, #tpu.memory_space<vmem>>, vector<1x32xf32>
    %cst_104 = arith.constant dense<0.000000e+00> : vector<1x128xf32>
    %217 = tpu.matmul %216, %215, %cst_104 {dimension_numbers = #tpu.dot_dimension_numbers<[1], [1], [0], [0], [0, 0, 1, 0], [], []>} : vector<1x32xf32>, vector<128x32xf32>, vector<1x128xf32> -> vector<1x128xf32>
    %c0_105 = arith.constant 0 : index
    %c0_106 = arith.constant 0 : index
    %218 = memref.load %arg7[%c0_105, %c0_106] : memref<1x1xf32, #tpu.memory_space<smem>>
    %219 = vector.broadcast %218 : f32 to vector<1x128xf32>
    %220 = arith.addf %217, %219 : vector<1x128xf32>
    %c0_107 = arith.constant 0 : index
    %c0_108 = arith.constant 0 : index
    %221 = vector.load %arg8[%c0_107, %c0_108] : memref<1x128xf32, #tpu.memory_space<vmem>>, vector<1x128xf32>
    tpu.vector_store %arg8[%c0_107, %c0_108], %220 {strides = array<i32>} : memref<1x128xf32, #tpu.memory_space<vmem>>, vector<1x128xf32>,
    return
  }
  func.func @transform_0(%arg0: i32) -> (i32, i32) {
    %c0_i32 = arith.constant 0 : i32
    %c0_i32_0 = arith.constant 0 : i32
    return %arg0, %c0_i32 : i32, i32
  }
  func.func @transform_1(%arg0: i32) -> (i32, i32) {
    %c0_i32 = arith.constant 0 : i32
    %c0_i32_0 = arith.constant 0 : i32
    %c0_i32_1 = arith.constant 0 : i32
    return %c0_i32, %c0_i32_0 : i32, i32
  }
  func.func @transform_2(%arg0: i32) -> (i32, i32) {
    %c0_i32 = arith.constant 0 : i32
    %c0_i32_0 = arith.constant 0 : i32
    %c0_i32_1 = arith.constant 0 : i32
    return %c0_i32, %c0_i32_0 : i32, i32
  }
  func.func @transform_3(%arg0: i32) -> (i32, i32) {
    %c0_i32 = arith.constant 0 : i32
    %c0_i32_0 = arith.constant 0 : i32
    %c0_i32_1 = arith.constant 0 : i32
    return %c0_i32, %c0_i32_0 : i32, i32
  }
  func.func @transform_4(%arg0: i32) -> (i32, i32) {
    %c0_i32 = arith.constant 0 : i32
    %c0_i32_0 = arith.constant 0 : i32
    %c0_i32_1 = arith.constant 0 : i32
    return %c0_i32, %c0_i32_0 : i32, i32
  }
  func.func @transform_5(%arg0: i32) -> (i32, i32) {
    %c0_i32 = arith.constant 0 : i32
    %c0_i32_0 = arith.constant 0 : i32
    %c0_i32_1 = arith.constant 0 : i32
    return %c0_i32, %c0_i32_0 : i32, i32
  }
  func.func @transform_6(%arg0: i32) -> (i32, i32) {
    %c0_i32 = arith.constant 0 : i32
    %c0_i32_0 = arith.constant 0 : i32
    %c0_i32_1 = arith.constant 0 : i32
    return %c0_i32, %c0_i32_0 : i32, i32
  }
  func.func @transform_7(%arg0: i32) -> (i32, i32) {
    %c0_i32 = arith.constant 0 : i32
    %c0_i32_0 = arith.constant 0 : i32
    return %c0_i32, %arg0 : i32, i32
  }
}

</mosaic_0001>

<llo_original>
// kernel: tpu_custom_call.1
$region0: #{tpu_custom_call.1}
  #allocation0 [shape = 'u32[]', space=smem, size = 0x4, offset = 0x4, fixed_abs, tag = 'smem constant byte address 0x4 - core index']
  #allocation1 [shape = 'u32[144,128]{1,0:T(1,128)}', space=vmem, size = 0x12000, scoped, tag = 'internal scratch']
  #allocation2 [shape = 'f32[1,1]{1,0:T(1,128)S(6)}', space=smem, size = 0x200, scoped, tag = 'scoped memory for tpu_custom_call.1']
  %s0 = inlined_call_operand.vmem [shape: f32[128,128], index: 0, kind: input, shape index: {}]
  %s1 = inlined_call_operand.vmem [shape: bf16[2048,32], index: 1, kind: input, shape index: {}]
  %s2 = inlined_call_operand.vmem [shape: f32[1,32], index: 2, kind: input, shape index: {}]
  %s3 = inlined_call_operand.vmem [shape: f32[1,32], index: 3, kind: input, shape index: {}]
  %s4 = inlined_call_operand.vmem [shape: f32[1,16], index: 4, kind: input, shape index: {}]
  %s5 = inlined_call_operand.vmem [shape: f32[1,16], index: 5, kind: input, shape index: {}]
  %s6 = inlined_call_operand.<no memory space> [shape: f32[1,1], index: 6, kind: input, shape index: {}]
  %s7 = inlined_call_operand.hbm [shape: f32[1,128], index: 7, kind: output, shape index: {}]
  %s8 = sld [smem:[#allocation0]]
  $region46: #{tpu_custom_call.1} parent=0
    _
  %s10 = ssub.s32 1, %s8
  %s11 = scalar_select 0, %s10, %s8
  %12 = sst [smem:[#allocation2]] %s6
  $region1: #{tpu_custom_call.1} parent=0
    #allocation3 [shape = 'u8[512]{0}', space=smem, size = 0x200, scoped, tag = 'input window, operand 4, single buffered']
    #allocation4 [shape = 's32[1]{0}', space=sflag, size = 0x4, scoped, tag = 'scoped memory for tpu_custom_call.1']
    #allocation5 [shape = 's32[1]{0}', space=sflag, size = 0x4, scoped, tag = 'scoped memory for tpu_custom_call.1']
    #allocation6 [shape = 'u8[512]{0}', space=smem, size = 0x200, scoped, tag = 'input window, operand 5, single buffered']
    #allocation7 [shape = 's32[1]{0}', space=sflag, size = 0x4, scoped, tag = 'scoped memory for tpu_custom_call.1']
    #allocation8 [shape = 'u8[512]{0}', space=vmem, size = 0x400, scoped, tag = 'output window, operand 0, single buffered']
    %13 = vsyncpa [#allocation5], 0
    %14 = vsyncpa [#allocation7], 0
    %15 = vsyncpa [#allocation4], 0
    // Predicated region
    $region2: #{tpu_custom_call.1} parent=1 // pred_check
      _
    $region3: #{tpu_custom_call.1} parent=1 // pred_check_branch
      %17 = sbr.rel (0) target = $region5
    $region4: #{tpu_custom_call.1} parent=1 // pred_region
      _
    $region5: #{tpu_custom_call.1} parent=1 // pred_fallthru
      _
    // Predicated region
    $region6: #{tpu_custom_call.1} parent=1 // pred_check
      _
    $region7: #{tpu_custom_call.1} parent=1 // pred_check_branch
      %19 = sbr.rel (0) target = $region9
    $region8: #{tpu_custom_call.1} parent=1 // pred_region
      _
    $region9: #{tpu_custom_call.1} parent=1 // pred_fallthru
      _
    // Predicated region
    $region10: #{tpu_custom_call.1} parent=1 // pred_check
      _
    $region11: #{tpu_custom_call.1} parent=1 // pred_check_branch
      %21 = sbr.rel (0) target = $region13
    $region12: #{tpu_custom_call.1} parent=1 // pred_region
      _
    $region13: #{tpu_custom_call.1} parent=1 // pred_fallthru
      _
    // Predicated region
    $region14: #{tpu_custom_call.1} parent=1 // pred_check
      _
    $region15: #{tpu_custom_call.1} parent=1 // pred_check_branch
      %23 = sbr.rel (0) target = $region17
    $region16: #{tpu_custom_call.1} parent=1 // pred_region
      _
    $region17: #{tpu_custom_call.1} parent=1 // pred_fallthru
      _
    // Predicated region
    $region18: #{tpu_custom_call.1} parent=1 // pred_check
      _
    $region19: #{tpu_custom_call.1} parent=1 // pred_check_branch
      %25 = sbr.rel (0) target = $region21
    $region20: #{tpu_custom_call.1} parent=1 // pred_region
      %s27 = ssub.s32 16, 16
      %28 = vsyncadd [#allocation5], %s27
      %s30 = sshll.u32 %s4, 4
      %s31 = int_to_ptr.vmem [resolvable:$true] %s30
      %33 = dma.vmem_to_smem %s31, 16, [#allocation3], [#allocation5]
    $region21: #{tpu_custom_call.1} parent=1 // pred_fallthru
      _
    // Predicated region
    $region22: #{tpu_custom_call.1} parent=1 // pred_check
      _
    $region23: #{tpu_custom_call.1} parent=1 // pred_check_branch
      %35 = sbr.rel (0) target = $region25
    $region24: #{tpu_custom_call.1} parent=1 // pred_region
      %s37 = ssub.s32 16, 16
      %38 = vsyncadd [#allocation7], %s37
      %s40 = sshll.u32 %s5, 4
      %s41 = int_to_ptr.vmem [resolvable:$true] %s40
      %43 = dma.vmem_to_smem %s41, 16, [#allocation6], [#allocation7]
    $region25: #{tpu_custom_call.1} parent=1 // pred_fallthru
      _
    // Predicated region
    $region26: #{tpu_custom_call.1} parent=1 // pred_check
      _
    $region27: #{tpu_custom_call.1} parent=1 // pred_check_branch
      %45 = sbr.rel (0) target = $region29
    $region28: #{tpu_custom_call.1} parent=1 // pred_region
      _
    $region29: #{tpu_custom_call.1} parent=1 // pred_fallthru
      _
    // Predicated region
    $region30: #{tpu_custom_call.1} parent=1 // pred_check
      _
    $region31: #{tpu_custom_call.1} parent=1 // pred_check_branch
      %47 = sbr.rel (0) target = $region33
    $region32: #{tpu_custom_call.1} parent=1 // pred_region
      %48 = dma.done [#allocation5], 16
    $region33: #{tpu_custom_call.1} parent=1 // pred_fallthru
      _
    // Predicated region
    $region34: #{tpu_custom_call.1} parent=1 // pred_check
      _
    $region35: #{tpu_custom_call.1} parent=1 // pred_check_branch
      %50 = sbr.rel (0) target = $region37
    $region36: #{tpu_custom_call.1} parent=1 // pred_region
      %51 = dma.done [#allocation7], 16
    $region37: #{tpu_custom_call.1} parent=1 // pred_fallthru
      _
    %52 = sfence
    %v54 = vld [vmem:[%s0] sm:$0xff]
    %v55 = vld [vmem:[%s0 + $0x8] sm:$0xff]
    %v56 = vld [vmem:[%s0 + $0x10] sm:$0xff]
    %v57 = vld [vmem:[%s0 + $0x18] sm:$0xff]
    %v58 = vld [vmem:[%s0 + $0x20] sm:$0xff]
    %v59 = vld [vmem:[%s0 + $0x28] sm:$0xff]
    %v60 = vld [vmem:[%s0 + $0x30] sm:$0xff]
    %v61 = vld [vmem:[%s0 + $0x38] sm:$0xff]
    %v62 = vld [vmem:[%s0 + $0x40] sm:$0xff]
    %v63 = vld [vmem:[%s0 + $0x48] sm:$0xff]
    %v64 = vld [vmem:[%s0 + $0x50] sm:$0xff]
    %v65 = vld [vmem:[%s0 + $0x58] sm:$0xff]
    %v66 = vld [vmem:[%s0 + $0x60] sm:$0xff]
    %v67 = vld [vmem:[%s0 + $0x68] sm:$0xff]
    %v68 = vld [vmem:[%s0 + $0x70] sm:$0xff]
    %v69 = vld [vmem:[%s0 + $0x78] sm:$0xff]
    %v70 = vpack.c.bf16 %v55, %v54
    %v71 = vpack.c.bf16 %v57, %v56
    %v72 = vpack.c.bf16 %v59, %v58
    %v73 = vpack.c.bf16 %v61, %v60
    %v74 = vpack.c.bf16 %v63, %v62
    %v75 = vpack.c.bf16 %v65, %v64
    %v76 = vpack.c.bf16 %v67, %v66
    %v77 = vpack.c.bf16 %v69, %v68
    %s78 = sld [smem:[#allocation3]]
    %p80 = scmp.ne.f32.partialorder %s78, %s78
    %s81 = sshrl.u32 %s78, 16
    %s82 = sand.u32 %s81, 1
    %s83 = sadd.s32 32767, %s82
    %s84 = sadd.s32 %s78, %s83
    %s85 = sand.u32 %s84, 4294901760
    %s86 = scalar_select %p80, 2143289344, %s85
    %s88 = sshrl.u32 %s86, 16
    %s89 = sld [smem:[#allocation6]]
    %p91 = scmp.ne.f32.partialorder %s89, %s89
    %s92 = sshrl.u32 %s89, 16
    %s93 = sand.u32 %s92, 1
    %s94 = sadd.s32 32767, %s93
    %s95 = sadd.s32 %s89, %s94
    %s96 = sand.u32 %s95, 4294901760
    %s97 = scalar_select %p91, 2143289344, %s96
    %s99 = sshrl.u32 %s97, 16
    %s100 = sshll.u32 %s88, 16
    %s101 = sor.u32 %s88, %s100
    %v102 = vstv %s101
    %v104 = vmul.bf16 %v70, %v102
    %v105 = vmul.bf16 %v71, %v102
    %v106 = vmul.bf16 %v72, %v102
    %v107 = vmul.bf16 %v73, %v102
    %v108 = vmul.bf16 %v74, %v102
    %v109 = vmul.bf16 %v75, %v102
    %v110 = vmul.bf16 %v76, %v102
    %v111 = vmul.bf16 %v77, %v102
    %s112 = sshll.u32 %s99, 16
    %s113 = sor.u32 %s99, %s112
    %v114 = vstv %s113
    %v116 = vadd.bf16 %v104, %v114
    %v117 = vadd.bf16 %v105, %v114
    %v118 = vadd.bf16 %v106, %v114
    %v119 = vadd.bf16 %v107, %v114
    %v120 = vadd.bf16 %v108, %v114
    %v121 = vadd.bf16 %v109, %v114
    %v122 = vadd.bf16 %v110, %v114
    %v123 = vadd.bf16 %v111, %v114
    %v124 = vmax.bf16 %v116, 0
    %v125 = vmax.bf16 %v117, 0
    %v126 = vmax.bf16 %v118, 0
    %v127 = vmax.bf16 %v119, 0
    %v128 = vmax.bf16 %v120, 0
    %v129 = vmax.bf16 %v121, 0
    %v130 = vmax.bf16 %v122, 0
    %v131 = vmax.bf16 %v123, 0
    %v132 = vld [vmem:[%s1] sm:$0xf]
    %v133 = vld [vmem:[%s1 + $0x4] sm:$0xf]
    %v134 = vld [vmem:[%s1 + $0x8] sm:$0xf]
    %v135 = vld [vmem:[%s1 + $0xc] sm:$0xf]
    %v136 = vld [vmem:[%s1 + $0x10] sm:$0xf]
    %v137 = vld [vmem:[%s1 + $0x14] sm:$0xf]
    %v138 = vld [vmem:[%s1 + $0x18] sm:$0xf]
    %v139 = vld [vmem:[%s1 + $0x1c] sm:$0xf]
    %v140 = vld [vmem:[%s1 + $0x20] sm:$0xf]
    %v141 = vld [vmem:[%s1 + $0x24] sm:$0xf]
    %v142 = vld [vmem:[%s1 + $0x28] sm:$0xf]
    %v143 = vld [vmem:[%s1 + $0x2c] sm:$0xf]
    %v144 = vld [vmem:[%s1 + $0x30] sm:$0xf]
    %v145 = vld [vmem:[%s1 + $0x34] sm:$0xf]
    %v146 = vld [vmem:[%s1 + $0x38] sm:$0xf]
    %v147 = vld [vmem:[%s1 + $0x3c] sm:$0xf]
    %s148 = sld [smem:[#allocation3 + $0x1]]
    %p150 = scmp.ne.f32.partialorder %s148, %s148
    %s151 = sshrl.u32 %s148, 16
    %s152 = sand.u32 %s151, 1
    %s153 = sadd.s32 32767, %s152
    %s154 = sadd.s32 %s148, %s153
    %s155 = sand.u32 %s154, 4294901760
    %s156 = scalar_select %p150, 2143289344, %s155
    %s158 = sshrl.u32 %s156, 16
    %s159 = sld [smem:[#allocation6 + $0x1]]
    %p161 = scmp.ne.f32.partialorder %s159, %s159
    %s162 = sshrl.u32 %s159, 16
    %s163 = sand.u32 %s162, 1
    %s164 = sadd.s32 32767, %s163
    %s165 = sadd.s32 %s159, %s164
    %s166 = sand.u32 %s165, 4294901760
    %s167 = scalar_select %p161, 2143289344, %s166
    %s169 = sshrl.u32 %s167, 16
    %s170 = sshll.u32 %s158, 16
    %s171 = sor.u32 %s158, %s170
    %v172 = vstv %s171
    %v174 = vmul.bf16 %v70, %v172
    %v175 = vmul.bf16 %v71, %v172
    %v176 = vmul.bf16 %v72, %v172
    %v177 = vmul.bf16 %v73, %v172
    %v178 = vmul.bf16 %v74, %v172
    %v179 = vmul.bf16 %v75, %v172
    %v180 = vmul.bf16 %v76, %v172
    %v181 = vmul.bf16 %v77, %v172
    %s182 = sshll.u32 %s169, 16
    %s183 = sor.u32 %s169, %s182
    %v184 = vstv %s183
    %v186 = vadd.bf16 %v174, %v184
    %v187 = vadd.bf16 %v175, %v184
    %v188 = vadd.bf16 %v176, %v184
    %v189 = vadd.bf16 %v177, %v184
    %v190 = vadd.bf16 %v178, %v184
    %v191 = vadd.bf16 %v179, %v184
    %v192 = vadd.bf16 %v180, %v184
    %v193 = vadd.bf16 %v181, %v184
    %v194 = vmax.bf16 %v186, 0
    %v195 = vmax.bf16 %v187, 0
    %v196 = vmax.bf16 %v188, 0
    %v197 = vmax.bf16 %v189, 0
    %v198 = vmax.bf16 %v190, 0
    %v199 = vmax.bf16 %v191, 0
    %v200 = vmax.bf16 %v192, 0
    %v201 = vmax.bf16 %v193, 0
    %v202 = vld [vmem:[%s1 + $0x40] sm:$0xf]
    %v203 = vld [vmem:[%s1 + $0x44] sm:$0xf]
    %v204 = vld [vmem:[%s1 + $0x48] sm:$0xf]
    %v205 = vld [vmem:[%s1 + $0x4c] sm:$0xf]
    %v206 = vld [vmem:[%s1 + $0x50] sm:$0xf]
    %v207 = vld [vmem:[%s1 + $0x54] sm:$0xf]
    %v208 = vld [vmem:[%s1 + $0x58] sm:$0xf]
    %v209 = vld [vmem:[%s1 + $0x5c] sm:$0xf]
    %v210 = vld [vmem:[%s1 + $0x60] sm:$0xf]
    %v211 = vld [vmem:[%s1 + $0x64] sm:$0xf]
    %v212 = vld [vmem:[%s1 + $0x68] sm:$0xf]
    %v213 = vld [vmem:[%s1 + $0x6c] sm:$0xf]
    %v214 = vld [vmem:[%s1 + $0x70] sm:$0xf]
    %v215 = vld [vmem:[%s1 + $0x74] sm:$0xf]
    %v216 = vld [vmem:[%s1 + $0x78] sm:$0xf]
    %v217 = vld [vmem:[%s1 + $0x7c] sm:$0xf]
    %v234 = vunpack.c.l.b16 %v202
    %v235 = vunpack.c.l.b16 %v203
    %v236 = vunpack.c.l.b16 %v204
    %v237 = vunpack.c.l.b16 %v205
    %v238 = vunpack.c.l.b16 %v206
    %v239 = vunpack.c.l.b16 %v207
    %v240 = vunpack.c.l.b16 %v208
    %v241 = vunpack.c.l.b16 %v209
    %v242 = vunpack.c.l.b16 %v210
    %v243 = vunpack.c.l.b16 %v211
    %v244 = vunpack.c.l.b16 %v212
    %v245 = vunpack.c.l.b16 %v213
    %v246 = vunpack.c.l.b16 %v214
    %v247 = vunpack.c.l.b16 %v215
    %v248 = vunpack.c.l.b16 %v216
    %v249 = vunpack.c.l.b16 %v217
    %v250 = vpack.c.b16 %v235, %v234
    %v251 = vpack.c.b16 %v237, %v236
    %v252 = vpack.c.b16 %v239, %v238
    %v253 = vpack.c.b16 %v241, %v240
    %v254 = vpack.c.b16 %v243, %v242
    %v255 = vpack.c.b16 %v245, %v244
    %v256 = vpack.c.b16 %v247, %v246
    %v257 = vpack.c.b16 %v249, %v248
    %266 = vmatprep.subr.bf16.mxu0 0
    %267 = vmatpush1.bf16.msra.mxu0 %v257
    %268 = vmatprep.subr.bf16.mxu0 0
    %269 = vmatpush1.bf16.msra.mxu0 %v256
    %270 = vmatprep.subr.bf16.mxu0 0
    %271 = vmatpush1.bf16.msra.mxu0 %v255
    %272 = vmatprep.subr.bf16.mxu0 0
    %273 = vmatpush1.bf16.msra.mxu0 %v254
    %274 = vmatprep.subr.bf16.mxu0 0
    %275 = vmatpush1.bf16.msra.mxu0 %v253
    %276 = vmatprep.subr.bf16.mxu0 0
    %277 = vmatpush1.bf16.msra.mxu0 %v252
    %278 = vmatprep.subr.bf16.mxu0 0
    %279 = vmatpush1.bf16.msra.mxu0 %v251
    %280 = vmatprep.subr.bf16.mxu0 0
    %281 = vmatpush1.bf16.msra.mxu0 %v250
    %282 = vmatprep.subr.bf16.mxu0 0
    %283 = vmatpush2.bf16.msra.mxu0 0
    %284 = vmatprep.subr.bf16.mxu0 0
    %285 = vmatpush2.bf16.msra.mxu0 0
    %286 = vmatprep.subr.bf16.mxu0 0
    %287 = vmatpush2.bf16.msra.mxu0 0
    %288 = vmatprep.subr.bf16.mxu0 0
    %289 = vmatpush2.bf16.msra.mxu0 0
    %290 = vmatprep.subr.bf16.mxu0 0
    %291 = vmatpush2.bf16.msra.mxu0 0
    %292 = vmatprep.subr.bf16.mxu0 0
    %293 = vmatpush2.bf16.msra.mxu0 0
    %294 = vmatprep.subr.bf16.mxu0 0
    %295 = vmatpush2.bf16.msra.mxu0 0
    %296 = vmatprep.subr.bf16.mxu0 0
    %297 = vmatpush2.bf16.msra.mxu0 0
    %298 = vmatprep.mubr.bf16.mxu0 0
    %299 = vmatmul.mubr.bf16.gmra.mxu0 %v194
    %v300 = vpop.f32.mrf.mxu0
    %v301 = vadd.f32 0.0, %v300
    %v302 = vpop.f32.mrf.mxu0
    %v303 = vpop.f32.mrf.mxu0
    %v304 = vadd.f32 0.0, %v303
    %v305 = vpop.f32.mrf.mxu0
    %306 = vmatprep.mubr.bf16.mxu0 0
    %307 = vmatmul.mubr.bf16.gmra.mxu0 %v195
    %v308 = vpop.f32.mrf.mxu0
    %v309 = vadd.f32 0.0, %v308
    %v310 = vpop.f32.mrf.mxu0
    %v311 = vpop.f32.mrf.mxu0
    %v312 = vadd.f32 0.0, %v311
    %v313 = vpop.f32.mrf.mxu0
    %314 = vmatprep.mubr.bf16.mxu0 0
    %315 = vmatmul.mubr.bf16.gmra.mxu0 %v196
    %v316 = vpop.f32.mrf.mxu0
    %v317 = vadd.f32 0.0, %v316
    %v318 = vpop.f32.mrf.mxu0
    %v319 = vpop.f32.mrf.mxu0
    %v320 = vadd.f32 0.0, %v319
    %v321 = vpop.f32.mrf.mxu0
    %322 = vmatprep.mubr.bf16.mxu0 0
    %323 = vmatmul.mubr.bf16.gmra.mxu0 %v197
    %v324 = vpop.f32.mrf.mxu0
    %v325 = vadd.f32 0.0, %v324
    %v326 = vpop.f32.mrf.mxu0
    %v327 = vpop.f32.mrf.mxu0
    %v328 = vadd.f32 0.0, %v327
    %v329 = vpop.f32.mrf.mxu0
    %330 = vmatprep.mubr.bf16.mxu0 0
    %331 = vmatmul.mubr.bf16.gmra.mxu0 %v198
    %v332 = vpop.f32.mrf.mxu0
    %v333 = vadd.f32 0.0, %v332
    %v334 = vpop.f32.mrf.mxu0
    %v335 = vpop.f32.mrf.mxu0
    %v336 = vadd.f32 0.0, %v335
    %v337 = vpop.f32.mrf.mxu0
    %338 = vmatprep.mubr.bf16.mxu0 0
    %339 = vmatmul.mubr.bf16.gmra.mxu0 %v199
    %v340 = vpop.f32.mrf.mxu0
    %v341 = vadd.f32 0.0, %v340
    %v342 = vpop.f32.mrf.mxu0
    %v343 = vpop.f32.mrf.mxu0
    %v344 = vadd.f32 0.0, %v343
    %v345 = vpop.f32.mrf.mxu0
    %346 = vmatprep.mubr.bf16.mxu0 0
    %347 = vmatmul.mubr.bf16.gmra.mxu0 %v200
    %v348 = vpop.f32.mrf.mxu0
    %v349 = vadd.f32 0.0, %v348
    %v350 = vpop.f32.mrf.mxu0
    %v351 = vpop.f32.mrf.mxu0
    %v352 = vadd.f32 0.0, %v351
    %v353 = vpop.f32.mrf.mxu0
    %354 = vmatprep.mubr.bf16.mxu0 0
    %355 = vmatmul.mubr.bf16.gmra.mxu0 %v201
    %v356 = vpop.f32.mrf.mxu0
    %v357 = vadd.f32 0.0, %v356
    %v358 = vpop.f32.mrf.mxu0
    %v359 = vpop.f32.mrf.mxu0
    %v360 = vadd.f32 0.0, %v359
    %v361 = vpop.f32.mrf.mxu0
    %362 = vdwg.mxu0
    %v379 = vunpack.c.l.b16 %v132
    %v380 = vunpack.c.l.b16 %v133
    %v381 = vunpack.c.l.b16 %v134
    %v382 = vunpack.c.l.b16 %v135
    %v383 = vunpack.c.l.b16 %v136
    %v384 = vunpack.c.l.b16 %v137
    %v385 = vunpack.c.l.b16 %v138
    %v386 = vunpack.c.l.b16 %v139
    %v387 = vunpack.c.l.b16 %v140
    %v388 = vunpack.c.l.b16 %v141
    %v389 = vunpack.c.l.b16 %v142
    %v390 = vunpack.c.l.b16 %v143
    %v391 = vunpack.c.l.b16 %v144
    %v392 = vunpack.c.l.b16 %v145
    %v393 = vunpack.c.l.b16 %v146
    %v394 = vunpack.c.l.b16 %v147
    %v395 = vpack.c.b16 %v380, %v379
    %v396 = vpack.c.b16 %v382, %v381
    %v397 = vpack.c.b16 %v384, %v383
    %v398 = vpack.c.b16 %v386, %v385
    %v399 = vpack.c.b16 %v388, %v387
    %v400 = vpack.c.b16 %v390, %v389
    %v401 = vpack.c.b16 %v392, %v391
    %v402 = vpack.c.b16 %v394, %v393
    %411 = vmatprep.subr.bf16.mxu0 0
    %412 = vmatpush1.bf16.msra.mxu0 %v402
    %413 = vmatprep.subr.bf16.mxu0 0
    %414 = vmatpush1.bf16.msra.mxu0 %v401
    %415 = vmatprep.subr.bf16.mxu0 0
    %416 = vmatpush1.bf16.msra.mxu0 %v400
    %417 = vmatprep.subr.bf16.mxu0 0
    %418 = vmatpush1.bf16.msra.mxu0 %v399
    %419 = vmatprep.subr.bf16.mxu0 0
    %420 = vmatpush1.bf16.msra.mxu0 %v398
    %421 = vmatprep.subr.bf16.mxu0 0
    %422 = vmatpush1.bf16.msra.mxu0 %v397
    %423 = vmatprep.subr.bf16.mxu0 0
    %424 = vmatpush1.bf16.msra.mxu0 %v396
    %425 = vmatprep.subr.bf16.mxu0 0
    %426 = vmatpush1.bf16.msra.mxu0 %v395
    %427 = vmatprep.subr.bf16.mxu0 0
    %428 = vmatpush2.bf16.msra.mxu0 0
    %429 = vmatprep.subr.bf16.mxu0 0
    %430 = vmatpush2.bf16.msra.mxu0 0
    %431 = vmatprep.subr.bf16.mxu0 0
    %432 = vmatpush2.bf16.msra.mxu0 0
    %433 = vmatprep.subr.bf16.mxu0 0
    %434 = vmatpush2.bf16.msra.mxu0 0
    %435 = vmatprep.subr.bf16.mxu0 0
    %436 = vmatpush2.bf16.msra.mxu0 0
    %437 = vmatprep.subr.bf16.mxu0 0
    %438 = vmatpush2.bf16.msra.mxu0 0
    %439 = vmatprep.subr.bf16.mxu0 0
    %440 = vmatpush2.bf16.msra.mxu0 0
    %441 = vmatprep.subr.bf16.mxu0 0
    %442 = vmatpush2.bf16.msra.mxu0 0
    %443 = vmatprep.mubr.bf16.mxu0 0
    %444 = vmatmul.mubr.bf16.gmra.mxu0 %v124
    %v445 = vpop.f32.mrf.mxu0
    %v446 = vadd.f32 %v301, %v445
    %v447 = vpop.f32.mrf.mxu0
    %v448 = vpop.f32.mrf.mxu0
    %v449 = vadd.f32 %v304, %v448
    %v450 = vpop.f32.mrf.mxu0
    %451 = vmatprep.mubr.bf16.mxu0 0
    %452 = vmatmul.mubr.bf16.gmra.mxu0 %v125
    %v453 = vpop.f32.mrf.mxu0
    %v454 = vadd.f32 %v309, %v453
    %v455 = vpop.f32.mrf.mxu0
    %v456 = vpop.f32.mrf.mxu0
    %v457 = vadd.f32 %v312, %v456
    %v458 = vpop.f32.mrf.mxu0
    %459 = vmatprep.mubr.bf16.mxu0 0
    %460 = vmatmul.mubr.bf16.gmra.mxu0 %v126
    %v461 = vpop.f32.mrf.mxu0
    %v462 = vadd.f32 %v317, %v461
    %v463 = vpop.f32.mrf.mxu0
    %v464 = vpop.f32.mrf.mxu0
    %v465 = vadd.f32 %v320, %v464
    %v466 = vpop.f32.mrf.mxu0
    %467 = vmatprep.mubr.bf16.mxu0 0
    %468 = vmatmul.mubr.bf16.gmra.mxu0 %v127
    %v469 = vpop.f32.mrf.mxu0
    %v470 = vadd.f32 %v325, %v469
    %v471 = vpop.f32.mrf.mxu0
    %v472 = vpop.f32.mrf.mxu0
    %v473 = vadd.f32 %v328, %v472
    %v474 = vpop.f32.mrf.mxu0
    %475 = vmatprep.mubr.bf16.mxu0 0
    %476 = vmatmul.mubr.bf16.gmra.mxu0 %v128
    %v477 = vpop.f32.mrf.mxu0
    %v478 = vadd.f32 %v333, %v477
    %v479 = vpop.f32.mrf.mxu0
    %v480 = vpop.f32.mrf.mxu0
    %v481 = vadd.f32 %v336, %v480
    %v482 = vpop.f32.mrf.mxu0
    %483 = vmatprep.mubr.bf16.mxu0 0
    %484 = vmatmul.mubr.bf16.gmra.mxu0 %v129
    %v485 = vpop.f32.mrf.mxu0
    %v486 = vadd.f32 %v341, %v485
    %v487 = vpop.f32.mrf.mxu0
    %v488 = vpop.f32.mrf.mxu0
    %v489 = vadd.f32 %v344, %v488
    %v490 = vpop.f32.mrf.mxu0
    %491 = vmatprep.mubr.bf16.mxu0 0
    %492 = vmatmul.mubr.bf16.gmra.mxu0 %v130
    %v493 = vpop.f32.mrf.mxu0
    %v494 = vadd.f32 %v349, %v493
    %v495 = vpop.f32.mrf.mxu0
    %v496 = vpop.f32.mrf.mxu0
    %v497 = vadd.f32 %v352, %v496
    %v498 = vpop.f32.mrf.mxu0
    %499 = vmatprep.mubr.bf16.mxu0 0
    %500 = vmatmul.mubr.bf16.gmra.mxu0 %v131
    %v501 = vpop.f32.mrf.mxu0
    %v502 = vadd.f32 %v357, %v501
    %v503 = vpop.f32.mrf.mxu0
    %v504 = vpop.f32.mrf.mxu0
    %v505 = vadd.f32 %v360, %v504
    %v506 = vpop.f32.mrf.mxu0
    %507 = vdwg.mxu0
    %s508 = sld [smem:[#allocation3 + $0x2]]
    %p510 = scmp.ne.f32.partialorder %s508, %s508
    %s511 = sshrl.u32 %s508, 16
    %s512 = sand.u32 %s511, 1
    %s513 = sadd.s32 32767, %s512
    %s514 = sadd.s32 %s508, %s513
    %s515 = sand.u32 %s514, 4294901760
    %s516 = scalar_select %p510, 2143289344, %s515
    %s518 = sshrl.u32 %s516, 16
    %s519 = sld [smem:[#allocation6 + $0x2]]
    %p521 = scmp.ne.f32.partialorder %s519, %s519
    %s522 = sshrl.u32 %s519, 16
    %s523 = sand.u32 %s522, 1
    %s524 = sadd.s32 32767, %s523
    %s525 = sadd.s32 %s519, %s524
    %s526 = sand.u32 %s525, 4294901760
    %s527 = scalar_select %p521, 2143289344, %s526
    %s529 = sshrl.u32 %s527, 16
    %s530 = sshll.u32 %s518, 16
    %s531 = sor.u32 %s518, %s530
    %v532 = vstv %s531
    %v534 = vmul.bf16 %v70, %v532
    %v535 = vmul.bf16 %v71, %v532
    %v536 = vmul.bf16 %v72, %v532
    %v537 = vmul.bf16 %v73, %v532
    %v538 = vmul.bf16 %v74, %v532
    %v539 = vmul.bf16 %v75, %v532
    %v540 = vmul.bf16 %v76, %v532
    %v541 = vmul.bf16 %v77, %v532
    %s542 = sshll.u32 %s529, 16
    %s543 = sor.u32 %s529, %s542
    %v544 = vstv %s543
    %v546 = vadd.bf16 %v534, %v544
    %v547 = vadd.bf16 %v535, %v544
    %v548 = vadd.bf16 %v536, %v544
    %v549 = vadd.bf16 %v537, %v544
    %v550 = vadd.bf16 %v538, %v544
    %v551 = vadd.bf16 %v539, %v544
    %v552 = vadd.bf16 %v540, %v544
    %v553 = vadd.bf16 %v541, %v544
    %v554 = vmax.bf16 %v546, 0
    %v555 = vmax.bf16 %v547, 0
    %v556 = vmax.bf16 %v548, 0
    %v557 = vmax.bf16 %v549, 0
    %v558 = vmax.bf16 %v550, 0
    %v559 = vmax.bf16 %v551, 0
    %v560 = vmax.bf16 %v552, 0
    %v561 = vmax.bf16 %v553, 0
    %v562 = vld [vmem:[%s1 + $0x80] sm:$0xf]
    %v563 = vld [vmem:[%s1 + $0x84] sm:$0xf]
    %v564 = vld [vmem:[%s1 + $0x88] sm:$0xf]
    %v565 = vld [vmem:[%s1 + $0x8c] sm:$0xf]
    %v566 = vld [vmem:[%s1 + $0x90] sm:$0xf]
    %v567 = vld [vmem:[%s1 + $0x94] sm:$0xf]
    %v568 = vld [vmem:[%s1 + $0x98] sm:$0xf]
    %v569 = vld [vmem:[%s1 + $0x9c] sm:$0xf]
    %v570 = vld [vmem:[%s1 + $0xa0] sm:$0xf]
    %v571 = vld [vmem:[%s1 + $0xa4] sm:$0xf]
    %v572 = vld [vmem:[%s1 + $0xa8] sm:$0xf]
    %v573 = vld [vmem:[%s1 + $0xac] sm:$0xf]
    %v574 = vld [vmem:[%s1 + $0xb0] sm:$0xf]
    %v575 = vld [vmem:[%s1 + $0xb4] sm:$0xf]
    %v576 = vld [vmem:[%s1 + $0xb8] sm:$0xf]
    %v577 = vld [vmem:[%s1 + $0xbc] sm:$0xf]
    %v594 = vunpack.c.l.b16 %v562
    %v595 = vunpack.c.l.b16 %v563
    %v596 = vunpack.c.l.b16 %v564
    %v597 = vunpack.c.l.b16 %v565
    %v598 = vunpack.c.l.b16 %v566
    %v599 = vunpack.c.l.b16 %v567
    %v600 = vunpack.c.l.b16 %v568
    %v601 = vunpack.c.l.b16 %v569
    %v602 = vunpack.c.l.b16 %v570
    %v603 = vunpack.c.l.b16 %v571
    %v604 = vunpack.c.l.b16 %v572
    %v605 = vunpack.c.l.b16 %v573
    %v606 = vunpack.c.l.b16 %v574
    %v607 = vunpack.c.l.b16 %v575
    %v608 = vunpack.c.l.b16 %v576
    %v609 = vunpack.c.l.b16 %v577
    %v610 = vpack.c.b16 %v595, %v594
    %v611 = vpack.c.b16 %v597, %v596
    %v612 = vpack.c.b16 %v599, %v598
    %v613 = vpack.c.b16 %v601, %v600
    %v614 = vpack.c.b16 %v603, %v602
    %v615 = vpack.c.b16 %v605, %v604
    %v616 = vpack.c.b16 %v607, %v606
    %v617 = vpack.c.b16 %v609, %v608
    %626 = vmatprep.subr.bf16.mxu0 0
    %627 = vmatpush1.bf16.msra.mxu0 %v617
    %628 = vmatprep.subr.bf16.mxu0 0
    %629 = vmatpush1.bf16.msra.mxu0 %v616
    %630 = vmatprep.subr.bf16.mxu0 0
    %631 = vmatpush1.bf16.msra.mxu0 %v615
    %632 = vmatprep.subr.bf16.mxu0 0
    %633 = vmatpush1.bf16.msra.mxu0 %v614
    %634 = vmatprep.subr.bf16.mxu0 0
    %635 = vmatpush1.bf16.msra.mxu0 %v613
    %636 = vmatprep.subr.bf16.mxu0 0
    %637 = vmatpush1.bf16.msra.mxu0 %v612
    %638 = vmatprep.subr.bf16.mxu0 0
    %639 = vmatpush1.bf16.msra.mxu0 %v611
    %640 = vmatprep.subr.bf16.mxu0 0
    %641 = vmatpush1.bf16.msra.mxu0 %v610
    %642 = vmatprep.subr.bf16.mxu0 0
    %643 = vmatpush2.bf16.msra.mxu0 0
    %644 = vmatprep.subr.bf16.mxu0 0
    %645 = vmatpush2.bf16.msra.mxu0 0
    %646 = vmatprep.subr.bf16.mxu0 0
    %647 = vmatpush2.bf16.msra.mxu0 0
    %648 = vmatprep.subr.bf16.mxu0 0
    %649 = vmatpush2.bf16.msra.mxu0 0
    %650 = vmatprep.subr.bf16.mxu0 0
    %651 = vmatpush2.bf16.msra.mxu0 0
    %652 = vmatprep.subr.bf16.mxu0 0
    %653 = vmatpush2.bf16.msra.mxu0 0
    %654 = vmatprep.subr.bf16.mxu0 0
    %655 = vmatpush2.bf16.msra.mxu0 0
    %656 = vmatprep.subr.bf16.mxu0 0
    %657 = vmatpush2.bf16.msra.mxu0 0
    %658 = vmatprep.mubr.bf16.mxu0 0
    %659 = vmatmul.mubr.bf16.gmra.mxu0 %v554
    %v660 = vpop.f32.mrf.mxu0
    %v661 = vadd.f32 0.0, %v660
    %v662 = vpop.f32.mrf.mxu0
    %v663 = vpop.f32.mrf.mxu0
    %v664 = vadd.f32 0.0, %v663
    %v665 = vpop.f32.mrf.mxu0
    %666 = vmatprep.mubr.bf16.mxu0 0
    %667 = vmatmul.mubr.bf16.gmra.mxu0 %v555
    %v668 = vpop.f32.mrf.mxu0
    %v669 = vadd.f32 0.0, %v668
    %v670 = vpop.f32.mrf.mxu0
    %v671 = vpop.f32.mrf.mxu0
    %v672 = vadd.f32 0.0, %v671
    %v673 = vpop.f32.mrf.mxu0
    %674 = vmatprep.mubr.bf16.mxu0 0
    %675 = vmatmul.mubr.bf16.gmra.mxu0 %v556
    %v676 = vpop.f32.mrf.mxu0
    %v677 = vadd.f32 0.0, %v676
    %v678 = vpop.f32.mrf.mxu0
    %v679 = vpop.f32.mrf.mxu0
    %v680 = vadd.f32 0.0, %v679
    %v681 = vpop.f32.mrf.mxu0
    %682 = vmatprep.mubr.bf16.mxu0 0
    %683 = vmatmul.mubr.bf16.gmra.mxu0 %v557
    %v684 = vpop.f32.mrf.mxu0
    %v685 = vadd.f32 0.0, %v684
    %v686 = vpop.f32.mrf.mxu0
    %v687 = vpop.f32.mrf.mxu0
    %v688 = vadd.f32 0.0, %v687
    %v689 = vpop.f32.mrf.mxu0
    %690 = vmatprep.mubr.bf16.mxu0 0
    %691 = vmatmul.mubr.bf16.gmra.mxu0 %v558
    %v692 = vpop.f32.mrf.mxu0
    %v693 = vadd.f32 0.0, %v692
    %v694 = vpop.f32.mrf.mxu0
    %v695 = vpop.f32.mrf.mxu0
    %v696 = vadd.f32 0.0, %v695
    %v697 = vpop.f32.mrf.mxu0
    %698 = vmatprep.mubr.bf16.mxu0 0
    %699 = vmatmul.mubr.bf16.gmra.mxu0 %v559
    %v700 = vpop.f32.mrf.mxu0
    %v701 = vadd.f32 0.0, %v700
    %v702 = vpop.f32.mrf.mxu0
    %v703 = vpop.f32.mrf.mxu0
    %v704 = vadd.f32 0.0, %v703
    %v705 = vpop.f32.mrf.mxu0
    %706 = vmatprep.mubr.bf16.mxu0 0
    %707 = vmatmul.mubr.bf16.gmra.mxu0 %v560
    %v708 = vpop.f32.mrf.mxu0
    %v709 = vadd.f32 0.0, %v708
    %v710 = vpop.f32.mrf.mxu0
    %v711 = vpop.f32.mrf.mxu0
    %v712 = vadd.f32 0.0, %v711
    %v713 = vpop.f32.mrf.mxu0
    %714 = vmatprep.mubr.bf16.mxu0 0
    %715 = vmatmul.mubr.bf16.gmra.mxu0 %v561
    %v716 = vpop.f32.mrf.mxu0
    %v717 = vadd.f32 0.0, %v716
    %v718 = vpop.f32.mrf.mxu0
    %v719 = vpop.f32.mrf.mxu0
    %v720 = vadd.f32 0.0, %v719
    %v721 = vpop.f32.mrf.mxu0
    %722 = vdwg.mxu0
    %v723 = vadd.f32 %v446, %v661
    %v724 = vadd.f32 %v449, %v664
    %v725 = vadd.f32 %v454, %v669
    %v726 = vadd.f32 %v457, %v672
    %v727 = vadd.f32 %v462, %v677
    %v728 = vadd.f32 %v465, %v680
    %v729 = vadd.f32 %v470, %v685
    %v730 = vadd.f32 %v473, %v688
    %v731 = vadd.f32 %v478, %v693
    %v732 = vadd.f32 %v481, %v696
    %v733 = vadd.f32 %v486, %v701
    %v734 = vadd.f32 %v489, %v704
    %v735 = vadd.f32 %v494, %v709
    %v736 = vadd.f32 %v497, %v712
    %v737 = vadd.f32 %v502, %v717
    %v738 = vadd.f32 %v505, %v720
    %s739 = sld [smem:[#allocation3 + $0x3]]
    %p741 = scmp.ne.f32.partialorder %s739, %s739
    %s742 = sshrl.u32 %s739, 16
    %s743 = sand.u32 %s742, 1
    %s744 = sadd.s32 32767, %s743
    %s745 = sadd.s32 %s739, %s744
    %s746 = sand.u32 %s745, 4294901760
    %s747 = scalar_select %p741, 2143289344, %s746
    %s749 = sshrl.u32 %s747, 16
    %s750 = sld [smem:[#allocation6 + $0x3]]
    %p752 = scmp.ne.f32.partialorder %s750, %s750
    %s753 = sshrl.u32 %s750, 16
    %s754 = sand.u32 %s753, 1
    %s755 = sadd.s32 32767, %s754
    %s756 = sadd.s32 %s750, %s755
    %s757 = sand.u32 %s756, 4294901760
    %s758 = scalar_select %p752, 2143289344, %s757
    %s760 = sshrl.u32 %s758, 16
    %s761 = sshll.u32 %s749, 16
    %s762 = sor.u32 %s749, %s761
    %v763 = vstv %s762
    %v765 = vmul.bf16 %v70, %v763
    %v766 = vmul.bf16 %v71, %v763
    %v767 = vmul.bf16 %v72, %v763
    %v768 = vmul.bf16 %v73, %v763
    %v769 = vmul.bf16 %v74, %v763
    %v770 = vmul.bf16 %v75, %v763
    %v771 = vmul.bf16 %v76, %v763
    %v772 = vmul.bf16 %v77, %v763
    %s773 = sshll.u32 %s760, 16
    %s774 = sor.u32 %s760, %s773
    %v775 = vstv %s774
    %v777 = vadd.bf16 %v765, %v775
    %v778 = vadd.bf16 %v766, %v775
    %v779 = vadd.bf16 %v767, %v775
    %v780 = vadd.bf16 %v768, %v775
    %v781 = vadd.bf16 %v769, %v775
    %v782 = vadd.bf16 %v770, %v775
    %v783 = vadd.bf16 %v771, %v775
    %v784 = vadd.bf16 %v772, %v775
    %v785 = vmax.bf16 %v777, 0
    %v786 = vmax.bf16 %v778, 0
    %v787 = vmax.bf16 %v779, 0
    %v788 = vmax.bf16 %v780, 0
    %v789 = vmax.bf16 %v781, 0
    %v790 = vmax.bf16 %v782, 0
    %v791 = vmax.bf16 %v783, 0
    %v792 = vmax.bf16 %v784, 0
    %v793 = vld [vmem:[%s1 + $0xc0] sm:$0xf]
    %v794 = vld [vmem:[%s1 + $0xc4] sm:$0xf]
    %v795 = vld [vmem:[%s1 + $0xc8] sm:$0xf]
    %v796 = vld [vmem:[%s1 + $0xcc] sm:$0xf]
    %v797 = vld [vmem:[%s1 + $0xd0] sm:$0xf]
    %v798 = vld [vmem:[%s1 + $0xd4] sm:$0xf]
    %v799 = vld [vmem:[%s1 + $0xd8] sm:$0xf]
    %v800 = vld [vmem:[%s1 + $0xdc] sm:$0xf]
    %v801 = vld [vmem:[%s1 + $0xe0] sm:$0xf]
    %v802 = vld [vmem:[%s1 + $0xe4] sm:$0xf]
    %v803 = vld [vmem:[%s1 + $0xe8] sm:$0xf]
    %v804 = vld [vmem:[%s1 + $0xec] sm:$0xf]
    %v805 = vld [vmem:[%s1 + $0xf0] sm:$0xf]
    %v806 = vld [vmem:[%s1 + $0xf4] sm:$0xf]
    %v807 = vld [vmem:[%s1 + $0xf8] sm:$0xf]
    %v808 = vld [vmem:[%s1 + $0xfc] sm:$0xf]
    %v825 = vunpack.c.l.b16 %v793
    %v826 = vunpack.c.l.b16 %v794
    %v827 = vunpack.c.l.b16 %v795
    %v828 = vunpack.c.l.b16 %v796
    %v829 = vunpack.c.l.b16 %v797
    %v830 = vunpack.c.l.b16 %v798
    %v831 = vunpack.c.l.b16 %v799
    %v832 = vunpack.c.l.b16 %v800
    %v833 = vunpack.c.l.b16 %v801
    %v834 = vunpack.c.l.b16 %v802
    %v835 = vunpack.c.l.b16 %v803
    %v836 = vunpack.c.l.b16 %v804
    %v837 = vunpack.c.l.b16 %v805
    %v838 = vunpack.c.l.b16 %v806
    %v839 = vunpack.c.l.b16 %v807
    %v840 = vunpack.c.l.b16 %v808
    %v841 = vpack.c.b16 %v826, %v825
    %v842 = vpack.c.b16 %v828, %v827
    %v843 = vpack.c.b16 %v830, %v829
    %v844 = vpack.c.b16 %v832, %v831
    %v845 = vpack.c.b16 %v834, %v833
    %v846 = vpack.c.b16 %v836, %v835
    %v847 = vpack.c.b16 %v838, %v837
    %v848 = vpack.c.b16 %v840, %v839
    %857 = vmatprep.subr.bf16.mxu0 0
    %858 = vmatpush1.bf16.msra.mxu0 %v848
    %859 = vmatprep.subr.bf16.mxu0 0
    %860 = vmatpush1.bf16.msra.mxu0 %v847
    %861 = vmatprep.subr.bf16.mxu0 0
    %862 = vmatpush1.bf16.msra.mxu0 %v846
    %863 = vmatprep.subr.bf16.mxu0 0
    %864 = vmatpush1.bf16.msra.mxu0 %v845
    %865 = vmatprep.subr.bf16.mxu0 0
    %866 = vmatpush1.bf16.msra.mxu0 %v844
    %867 = vmatprep.subr.bf16.mxu0 0
    %868 = vmatpush1.bf16.msra.mxu0 %v843
    %869 = vmatprep.subr.bf16.mxu0 0
    %870 = vmatpush1.bf16.msra.mxu0 %v842
    %871 = vmatprep.subr.bf16.mxu0 0
    %872 = vmatpush1.bf16.msra.mxu0 %v841
    %873 = vmatprep.subr.bf16.mxu0 0
    %874 = vmatpush2.bf16.msra.mxu0 0
    %875 = vmatprep.subr.bf16.mxu0 0
    %876 = vmatpush2.bf16.msra.mxu0 0
    %877 = vmatprep.subr.bf16.mxu0 0
    %878 = vmatpush2.bf16.msra.mxu0 0
    %879 = vmatprep.subr.bf16.mxu0 0
    %880 = vmatpush2.bf16.msra.mxu0 0
    %881 = vmatprep.subr.bf16.mxu0 0
    %882 = vmatpush2.bf16.msra.mxu0 0
    %883 = vmatprep.subr.bf16.mxu0 0
    %884 = vmatpush2.bf16.msra.mxu0 0
    %885 = vmatprep.subr.bf16.mxu0 0
    %886 = vmatpush2.bf16.msra.mxu0 0
    %887 = vmatprep.subr.bf16.mxu0 0
    %888 = vmatpush2.bf16.msra.mxu0 0
    %889 = vmatprep.mubr.bf16.mxu0 0
    %890 = vmatmul.mubr.bf16.gmra.mxu0 %v785
    %v891 = vpop.f32.mrf.mxu0
    %v892 = vadd.f32 0.0, %v891
    %v893 = vpop.f32.mrf.mxu0
    %v894 = vpop.f32.mrf.mxu0
    %v895 = vadd.f32 0.0, %v894
    %v896 = vpop.f32.mrf.mxu0
    %897 = vmatprep.mubr.bf16.mxu0 0
    %898 = vmatmul.mubr.bf16.gmra.mxu0 %v786
    %v899 = vpop.f32.mrf.mxu0
    %v900 = vadd.f32 0.0, %v899
    %v901 = vpop.f32.mrf.mxu0
    %v902 = vpop.f32.mrf.mxu0
    %v903 = vadd.f32 0.0, %v902
    %v904 = vpop.f32.mrf.mxu0
    %905 = vmatprep.mubr.bf16.mxu0 0
    %906 = vmatmul.mubr.bf16.gmra.mxu0 %v787
    %v907 = vpop.f32.mrf.mxu0
    %v908 = vadd.f32 0.0, %v907
    %v909 = vpop.f32.mrf.mxu0
    %v910 = vpop.f32.mrf.mxu0
    %v911 = vadd.f32 0.0, %v910
    %v912 = vpop.f32.mrf.mxu0
    %913 = vmatprep.mubr.bf16.mxu0 0
    %914 = vmatmul.mubr.bf16.gmra.mxu0 %v788
    %v915 = vpop.f32.mrf.mxu0
    %v916 = vadd.f32 0.0, %v915
    %v917 = vpop.f32.mrf.mxu0
    %v918 = vpop.f32.mrf.mxu0
    %v919 = vadd.f32 0.0, %v918
    %v920 = vpop.f32.mrf.mxu0
    %921 = vmatprep.mubr.bf16.mxu0 0
    %922 = vmatmul.mubr.bf16.gmra.mxu0 %v789
    %v923 = vpop.f32.mrf.mxu0
    %v924 = vadd.f32 0.0, %v923
    %v925 = vpop.f32.mrf.mxu0
    %v926 = vpop.f32.mrf.mxu0
    %v927 = vadd.f32 0.0, %v926
    %v928 = vpop.f32.mrf.mxu0
    %929 = vmatprep.mubr.bf16.mxu0 0
    %930 = vmatmul.mubr.bf16.gmra.mxu0 %v790
    %v931 = vpop.f32.mrf.mxu0
    %v932 = vadd.f32 0.0, %v931
    %v933 = vpop.f32.mrf.mxu0
    %v934 = vpop.f32.mrf.mxu0
    %v935 = vadd.f32 0.0, %v934
    %v936 = vpop.f32.mrf.mxu0
    %937 = vmatprep.mubr.bf16.mxu0 0
    %938 = vmatmul.mubr.bf16.gmra.mxu0 %v791
    %v939 = vpop.f32.mrf.mxu0
    %v940 = vadd.f32 0.0, %v939
    %v941 = vpop.f32.mrf.mxu0
    %v942 = vpop.f32.mrf.mxu0
    %v943 = vadd.f32 0.0, %v942
    %v944 = vpop.f32.mrf.mxu0
    %945 = vmatprep.mubr.bf16.mxu0 0
    %946 = vmatmul.mubr.bf16.gmra.mxu0 %v792
    %v947 = vpop.f32.mrf.mxu0
    %v948 = vadd.f32 0.0, %v947
    %v949 = vpop.f32.mrf.mxu0
    %v950 = vpop.f32.mrf.mxu0
    %v951 = vadd.f32 0.0, %v950
    %v952 = vpop.f32.mrf.mxu0
    %953 = vdwg.mxu0
    %v954 = vadd.f32 %v723, %v892
    %v955 = vadd.f32 %v724, %v895
    %v956 = vadd.f32 %v725, %v900
    %v957 = vadd.f32 %v726, %v903
    %v958 = vadd.f32 %v727, %v908
    %v959 = vadd.f32 %v728, %v911
    %v960 = vadd.f32 %v729, %v916
    %v961 = vadd.f32 %v730, %v919
    %v962 = vadd.f32 %v731, %v924
    %v963 = vadd.f32 %v732, %v927
    %v964 = vadd.f32 %v733, %v932
    %v965 = vadd.f32 %v734, %v935
    %v966 = vadd.f32 %v735, %v940
    %v967 = vadd.f32 %v736, %v943
    %v968 = vadd.f32 %v737, %v948
    %v969 = vadd.f32 %v738, %v951
    %s970 = sld [smem:[#allocation3 + $0x4]]
    %p972 = scmp.ne.f32.partialorder %s970, %s970
    %s973 = sshrl.u32 %s970, 16
    %s974 = sand.u32 %s973, 1
    %s975 = sadd.s32 32767, %s974
    %s976 = sadd.s32 %s970, %s975
    %s977 = sand.u32 %s976, 4294901760
    %s978 = scalar_select %p972, 2143289344, %s977
    %s980 = sshrl.u32 %s978, 16
    %s981 = sld [smem:[#allocation6 + $0x4]]
    %p983 = scmp.ne.f32.partialorder %s981, %s981
    %s984 = sshrl.u32 %s981, 16
    %s985 = sand.u32 %s984, 1
    %s986 = sadd.s32 32767, %s985
    %s987 = sadd.s32 %s981, %s986
    %s988 = sand.u32 %s987, 4294901760
    %s989 = scalar_select %p983, 2143289344, %s988
    %s991 = sshrl.u32 %s989, 16
    %s992 = sshll.u32 %s980, 16
    %s993 = sor.u32 %s980, %s992
    %v994 = vstv %s993
    %v996 = vmul.bf16 %v70, %v994
    %v997 = vmul.bf16 %v71, %v994
    %v998 = vmul.bf16 %v72, %v994
    %v999 = vmul.bf16 %v73, %v994
    %v1000 = vmul.bf16 %v74, %v994
    %v1001 = vmul.bf16 %v75, %v994
    %v1002 = vmul.bf16 %v76, %v994
    %v1003 = vmul.bf16 %v77, %v994
    %s1004 = sshll.u32 %s991, 16
    %s1005 = sor.u32 %s991, %s1004
    %v1006 = vstv %s1005
    %v1008 = vadd.bf16 %v996, %v1006
    %v1009 = vadd.bf16 %v997, %v1006
    %v1010 = vadd.bf16 %v998, %v1006
    %v1011 = vadd.bf16 %v999, %v1006
    %v1012 = vadd.bf16 %v1000, %v1006
    %v1013 = vadd.bf16 %v1001, %v1006
    %v1014 = vadd.bf16 %v1002, %v1006
    %v1015 = vadd.bf16 %v1003, %v1006
    %v1016 = vmax.bf16 %v1008, 0
    %v1017 = vmax.bf16 %v1009, 0
    %v1018 = vmax.bf16 %v1010, 0
    %v1019 = vmax.bf16 %v1011, 0
    %v1020 = vmax.bf16 %v1012, 0
    %v1021 = vmax.bf16 %v1013, 0
    %v1022 = vmax.bf16 %v1014, 0
    %v1023 = vmax.bf16 %v1015, 0
    %v1024 = vld [vmem:[%s1 + $0x100] sm:$0xf]
    %v1025 = vld [vmem:[%s1 + $0x104] sm:$0xf]
    %v1026 = vld [vmem:[%s1 + $0x108] sm:$0xf]
    %v1027 = vld [vmem:[%s1 + $0x10c] sm:$0xf]
    %v1028 = vld [vmem:[%s1 + $0x110] sm:$0xf]
    %v1029 = vld [vmem:[%s1 + $0x114] sm:$0xf]
    %v1030 = vld [vmem:[%s1 + $0x118] sm:$0xf]
    %v1031 = vld [vmem:[%s1 + $0x11c] sm:$0xf]
    %v1032 = vld [vmem:[%s1 + $0x120] sm:$0xf]
    %v1033 = vld [vmem:[%s1 + $0x124] sm:$0xf]
    %v1034 = vld [vmem:[%s1 + $0x128] sm:$0xf]
    %v1035 = vld [vmem:[%s1 + $0x12c] sm:$0xf]
    %v1036 = vld [vmem:[%s1 + $0x130] sm:$0xf]
    %v1037 = vld [vmem:[%s1 + $0x134] sm:$0xf]
    %v1038 = vld [vmem:[%s1 + $0x138] sm:$0xf]
    %v1039 = vld [vmem:[%s1 + $0x13c] sm:$0xf]
    %v1056 = vunpack.c.l.b16 %v1024
    %v1057 = vunpack.c.l.b16 %v1025
    %v1058 = vunpack.c.l.b16 %v1026
    %v1059 = vunpack.c.l.b16 %v1027
    %v1060 = vunpack.c.l.b16 %v1028
    %v1061 = vunpack.c.l.b16 %v1029
    %v1062 = vunpack.c.l.b16 %v1030
    %v1063 = vunpack.c.l.b16 %v1031
    %v1064 = vunpack.c.l.b16 %v1032
    %v1065 = vunpack.c.l.b16 %v1033
    %v1066 = vunpack.c.l.b16 %v1034
    %v1067 = vunpack.c.l.b16 %v1035
    %v1068 = vunpack.c.l.b16 %v1036
    %v1069 = vunpack.c.l.b16 %v1037
    %v1070 = vunpack.c.l.b16 %v1038
    %v1071 = vunpack.c.l.b16 %v1039
    %v1072 = vpack.c.b16 %v1057, %v1056
    %v1073 = vpack.c.b16 %v1059, %v1058
    %v1074 = vpack.c.b16 %v1061, %v1060
    %v1075 = vpack.c.b16 %v1063, %v1062
    %v1076 = vpack.c.b16 %v1065, %v1064
    %v1077 = vpack.c.b16 %v1067, %v1066
    %v1078 = vpack.c.b16 %v1069, %v1068
    %v1079 = vpack.c.b16 %v1071, %v1070
    %1088 = vmatprep.subr.bf16.mxu0 0
    %1089 = vmatpush1.bf16.msra.mxu0 %v1079
    %1090 = vmatprep.subr.bf16.mxu0 0
    %1091 = vmatpush1.bf16.msra.mxu0 %v1078
    %1092 = vmatprep.subr.bf16.mxu0 0
    %1093 = vmatpush1.bf16.msra.mxu0 %v1077
    %1094 = vmatprep.subr.bf16.mxu0 0
    %1095 = vmatpush1.bf16.msra.mxu0 %v1076
    %1096 = vmatprep.subr.bf16.mxu0 0
    %1097 = vmatpush1.bf16.msra.mxu0 %v1075
    %1098 = vmatprep.subr.bf16.mxu0 0
    %1099 = vmatpush1.bf16.msra.mxu0 %v1074
    %1100 = vmatprep.subr.bf16.mxu0 0
    %1101 = vmatpush1.bf16.msra.mxu0 %v1073
    %1102 = vmatprep.subr.bf16.mxu0 0
    %1103 = vmatpush1.bf16.msra.mxu0 %v1072
    %1104 = vmatprep.subr.bf16.mxu0 0
    %1105 = vmatpush2.bf16.msra.mxu0 0
    %1106 = vmatprep.subr.bf16.mxu0 0
    %1107 = vmatpush2.bf16.msra.mxu0 0
    %1108 = vmatprep.subr.bf16.mxu0 0
    %1109 = vmatpush2.bf16.msra.mxu0 0
    %1110 = vmatprep.subr.bf16.mxu0 0
    %1111 = vmatpush2.bf16.msra.mxu0 0
    %1112 = vmatprep.subr.bf16.mxu0 0
    %1113 = vmatpush2.bf16.msra.mxu0 0
    %1114 = vmatprep.subr.bf16.mxu0 0
    %1115 = vmatpush2.bf16.msra.mxu0 0
    %1116 = vmatprep.subr.bf16.mxu0 0
    %1117 = vmatpush2.bf16.msra.mxu0 0
    %1118 = vmatprep.subr.bf16.mxu0 0
    %1119 = vmatpush2.bf16.msra.mxu0 0
    %1120 = vmatprep.mubr.bf16.mxu0 0
    %1121 = vmatmul.mubr.bf16.gmra.mxu0 %v1016
    %v1122 = vpop.f32.mrf.mxu0
    %v1123 = vadd.f32 0.0, %v1122
    %v1124 = vpop.f32.mrf.mxu0
    %v1125 = vpop.f32.mrf.mxu0
    %v1126 = vadd.f32 0.0, %v1125
    %v1127 = vpop.f32.mrf.mxu0
    %1128 = vmatprep.mubr.bf16.mxu0 0
    %1129 = vmatmul.mubr.bf16.gmra.mxu0 %v1017
    %v1130 = vpop.f32.mrf.mxu0
    %v1131 = vadd.f32 0.0, %v1130
    %v1132 = vpop.f32.mrf.mxu0
    %v1133 = vpop.f32.mrf.mxu0
    %v1134 = vadd.f32 0.0, %v1133
    %v1135 = vpop.f32.mrf.mxu0
    %1136 = vmatprep.mubr.bf16.mxu0 0
    %1137 = vmatmul.mubr.bf16.gmra.mxu0 %v1018
    %v1138 = vpop.f32.mrf.mxu0
    %v1139 = vadd.f32 0.0, %v1138
    %v1140 = vpop.f32.mrf.mxu0
    %v1141 = vpop.f32.mrf.mxu0
    %v1142 = vadd.f32 0.0, %v1141
    %v1143 = vpop.f32.mrf.mxu0
    %1144 = vmatprep.mubr.bf16.mxu0 0
    %1145 = vmatmul.mubr.bf16.gmra.mxu0 %v1019
    %v1146 = vpop.f32.mrf.mxu0
    %v1147 = vadd.f32 0.0, %v1146
    %v1148 = vpop.f32.mrf.mxu0
    %v1149 = vpop.f32.mrf.mxu0
    %v1150 = vadd.f32 0.0, %v1149
    %v1151 = vpop.f32.mrf.mxu0
    %1152 = vmatprep.mubr.bf16.mxu0 0
    %1153 = vmatmul.mubr.bf16.gmra.mxu0 %v1020
    %v1154 = vpop.f32.mrf.mxu0
    %v1155 = vadd.f32 0.0, %v1154
    %v1156 = vpop.f32.mrf.mxu0
    %v1157 = vpop.f32.mrf.mxu0
    %v1158 = vadd.f32 0.0, %v1157
    %v1159 = vpop.f32.mrf.mxu0
    %1160 = vmatprep.mubr.bf16.mxu0 0
    %1161 = vmatmul.mubr.bf16.gmra.mxu0 %v1021
    %v1162 = vpop.f32.mrf.mxu0
    %v1163 = vadd.f32 0.0, %v1162
    %v1164 = vpop.f32.mrf.mxu0
    %v1165 = vpop.f32.mrf.mxu0
    %v1166 = vadd.f32 0.0, %v1165
    %v1167 = vpop.f32.mrf.mxu0
    %1168 = vmatprep.mubr.bf16.mxu0 0
    %1169 = vmatmul.mubr.bf16.gmra.mxu0 %v1022
    %v1170 = vpop.f32.mrf.mxu0
    %v1171 = vadd.f32 0.0, %v1170
    %v1172 = vpop.f32.mrf.mxu0
    %v1173 = vpop.f32.mrf.mxu0
    %v1174 = vadd.f32 0.0, %v1173
    %v1175 = vpop.f32.mrf.mxu0
    %1176 = vmatprep.mubr.bf16.mxu0 0
    %1177 = vmatmul.mubr.bf16.gmra.mxu0 %v1023
    %v1178 = vpop.f32.mrf.mxu0
    %v1179 = vadd.f32 0.0, %v1178
    %v1180 = vpop.f32.mrf.mxu0
    %v1181 = vpop.f32.mrf.mxu0
    %v1182 = vadd.f32 0.0, %v1181
    %v1183 = vpop.f32.mrf.mxu0
    %1184 = vdwg.mxu0
    %v1185 = vadd.f32 %v954, %v1123
    %v1186 = vadd.f32 %v955, %v1126
    %v1187 = vadd.f32 %v956, %v1131
    %v1188 = vadd.f32 %v957, %v1134
    %v1189 = vadd.f32 %v958, %v1139
    %v1190 = vadd.f32 %v959, %v1142
    %v1191 = vadd.f32 %v960, %v1147
    %v1192 = vadd.f32 %v961, %v1150
    %v1193 = vadd.f32 %v962, %v1155
    %v1194 = vadd.f32 %v963, %v1158
    %v1195 = vadd.f32 %v964, %v1163
    %v1196 = vadd.f32 %v965, %v1166
    %v1197 = vadd.f32 %v966, %v1171
    %v1198 = vadd.f32 %v967, %v1174
    %v1199 = vadd.f32 %v968, %v1179
    %v1200 = vadd.f32 %v969, %v1182
    %s1201 = sld [smem:[#allocation3 + $0x5]]
    %p1203 = scmp.ne.f32.partialorder %s1201, %s1201
    %s1204 = sshrl.u32 %s1201, 16
    %s1205 = sand.u32 %s1204, 1
    %s1206 = sadd.s32 32767, %s1205
    %s1207 = sadd.s32 %s1201, %s1206
    %s1208 = sand.u32 %s1207, 4294901760
    %s1209 = scalar_select %p1203, 2143289344, %s1208
    %s1211 = sshrl.u32 %s1209, 16
    %s1212 = sld [smem:[#allocation6 + $0x5]]
    %p1214 = scmp.ne.f32.partialorder %s1212, %s1212
    %s1215 = sshrl.u32 %s1212, 16
    %s1216 = sand.u32 %s1215, 1
    %s1217 = sadd.s32 32767, %s1216
    %s1218 = sadd.s32 %s1212, %s1217
    %s1219 = sand.u32 %s1218, 4294901760
    %s1220 = scalar_select %p1214, 2143289344, %s1219
    %s1222 = sshrl.u32 %s1220, 16
    %s1223 = sshll.u32 %s1211, 16
    %s1224 = sor.u32 %s1211, %s1223
    %v1225 = vstv %s1224
    %v1227 = vmul.bf16 %v70, %v1225
    %v1228 = vmul.bf16 %v71, %v1225
    %v1229 = vmul.bf16 %v72, %v1225
    %v1230 = vmul.bf16 %v73, %v1225
    %v1231 = vmul.bf16 %v74, %v1225
    %v1232 = vmul.bf16 %v75, %v1225
    %v1233 = vmul.bf16 %v76, %v1225
    %v1234 = vmul.bf16 %v77, %v1225
    %s1235 = sshll.u32 %s1222, 16
    %s1236 = sor.u32 %s1222, %s1235
    %v1237 = vstv %s1236
    %v1239 = vadd.bf16 %v1227, %v1237
    %v1240 = vadd.bf16 %v1228, %v1237
    %v1241 = vadd.bf16 %v1229, %v1237
    %v1242 = vadd.bf16 %v1230, %v1237
    %v1243 = vadd.bf16 %v1231, %v1237
    %v1244 = vadd.bf16 %v1232, %v1237
    %v1245 = vadd.bf16 %v1233, %v1237
    %v1246 = vadd.bf16 %v1234, %v1237
    %v1247 = vmax.bf16 %v1239, 0
    %v1248 = vmax.bf16 %v1240, 0
    %v1249 = vmax.bf16 %v1241, 0
    %v1250 = vmax.bf16 %v1242, 0
    %v1251 = vmax.bf16 %v1243, 0
    %v1252 = vmax.bf16 %v1244, 0
    %v1253 = vmax.bf16 %v1245, 0
    %v1254 = vmax.bf16 %v1246, 0
    %v1255 = vld [vmem:[%s1 + $0x140] sm:$0xf]
    %v1256 = vld [vmem:[%s1 + $0x144] sm:$0xf]
    %v1257 = vld [vmem:[%s1 + $0x148] sm:$0xf]
    %v1258 = vld [vmem:[%s1 + $0x14c] sm:$0xf]
    %v1259 = vld [vmem:[%s1 + $0x150] sm:$0xf]
    %v1260 = vld [vmem:[%s1 + $0x154] sm:$0xf]
    %v1261 = vld [vmem:[%s1 + $0x158] sm:$0xf]
    %v1262 = vld [vmem:[%s1 + $0x15c] sm:$0xf]
    %v1263 = vld [vmem:[%s1 + $0x160] sm:$0xf]
    %v1264 = vld [vmem:[%s1 + $0x164] sm:$0xf]
    %v1265 = vld [vmem:[%s1 + $0x168] sm:$0xf]
    %v1266 = vld [vmem:[%s1 + $0x16c] sm:$0xf]
    %v1267 = vld [vmem:[%s1 + $0x170] sm:$0xf]
    %v1268 = vld [vmem:[%s1 + $0x174] sm:$0xf]
    %v1269 = vld [vmem:[%s1 + $0x178] sm:$0xf]
    %v1270 = vld [vmem:[%s1 + $0x17c] sm:$0xf]
    %v1287 = vunpack.c.l.b16 %v1255
    %v1288 = vunpack.c.l.b16 %v1256
    %v1289 = vunpack.c.l.b16 %v1257
    %v1290 = vunpack.c.l.b16 %v1258
    %v1291 = vunpack.c.l.b16 %v1259
    %v1292 = vunpack.c.l.b16 %v1260
    %v1293 = vunpack.c.l.b16 %v1261
    %v1294 = vunpack.c.l.b16 %v1262
    %v1295 = vunpack.c.l.b16 %v1263
    %v1296 = vunpack.c.l.b16 %v1264
    %v1297 = vunpack.c.l.b16 %v1265
    %v1298 = vunpack.c.l.b16 %v1266
    %v1299 = vunpack.c.l.b16 %v1267
    %v1300 = vunpack.c.l.b16 %v1268
    %v1301 = vunpack.c.l.b16 %v1269
    %v1302 = vunpack.c.l.b16 %v1270
    %v1303 = vpack.c.b16 %v1288, %v1287
    %v1304 = vpack.c.b16 %v1290, %v1289
    %v1305 = vpack.c.b16 %v1292, %v1291
    %v1306 = vpack.c.b16 %v1294, %v1293
    %v1307 = vpack.c.b16 %v1296, %v1295
    %v1308 = vpack.c.b16 %v1298, %v1297
    %v1309 = vpack.c.b16 %v1300, %v1299
    %v1310 = vpack.c.b16 %v1302, %v1301
    %1319 = vmatprep.subr.bf16.mxu0 0
    %1320 = vmatpush1.bf16.msra.mxu0 %v1310
    %1321 = vmatprep.subr.bf16.mxu0 0
    %1322 = vmatpush1.bf16.msra.mxu0 %v1309
    %1323 = vmatprep.subr.bf16.mxu0 0
    %1324 = vmatpush1.bf16.msra.mxu0 %v1308
    %1325 = vmatprep.subr.bf16.mxu0 0
    %1326 = vmatpush1.bf16.msra.mxu0 %v1307
    %1327 = vmatprep.subr.bf16.mxu0 0
    %1328 = vmatpush1.bf16.msra.mxu0 %v1306
    %1329 = vmatprep.subr.bf16.mxu0 0
    %1330 = vmatpush1.bf16.msra.mxu0 %v1305
    %1331 = vmatprep.subr.bf16.mxu0 0
    %1332 = vmatpush1.bf16.msra.mxu0 %v1304
    %1333 = vmatprep.subr.bf16.mxu0 0
    %1334 = vmatpush1.bf16.msra.mxu0 %v1303
    %1335 = vmatprep.subr.bf16.mxu0 0
    %1336 = vmatpush2.bf16.msra.mxu0 0
    %1337 = vmatprep.subr.bf16.mxu0 0
    %1338 = vmatpush2.bf16.msra.mxu0 0
    %1339 = vmatprep.subr.bf16.mxu0 0
    %1340 = vmatpush2.bf16.msra.mxu0 0
    %1341 = vmatprep.subr.bf16.mxu0 0
    %1342 = vmatpush2.bf16.msra.mxu0 0
    %1343 = vmatprep.subr.bf16.mxu0 0
    %1344 = vmatpush2.bf16.msra.mxu0 0
    %1345 = vmatprep.subr.bf16.mxu0 0
    %1346 = vmatpush2.bf16.msra.mxu0 0
    %1347 = vmatprep.subr.bf16.mxu0 0
    %1348 = vmatpush2.bf16.msra.mxu0 0
    %1349 = vmatprep.subr.bf16.mxu0 0
    %1350 = vmatpush2.bf16.msra.mxu0 0
    %1351 = vmatprep.mubr.bf16.mxu0 0
    %1352 = vmatmul.mubr.bf16.gmra.mxu0 %v1247
    %v1353 = vpop.f32.mrf.mxu0
    %v1354 = vadd.f32 0.0, %v1353
    %v1355 = vpop.f32.mrf.mxu0
    %v1356 = vpop.f32.mrf.mxu0
    %v1357 = vadd.f32 0.0, %v1356
    %v1358 = vpop.f32.mrf.mxu0
    %1359 = vmatprep.mubr.bf16.mxu0 0
    %1360 = vmatmul.mubr.bf16.gmra.mxu0 %v1248
    %v1361 = vpop.f32.mrf.mxu0
    %v1362 = vadd.f32 0.0, %v1361
    %v1363 = vpop.f32.mrf.mxu0
    %v1364 = vpop.f32.mrf.mxu0
    %v1365 = vadd.f32 0.0, %v1364
    %v1366 = vpop.f32.mrf.mxu0
    %1367 = vmatprep.mubr.bf16.mxu0 0
    %1368 = vmatmul.mubr.bf16.gmra.mxu0 %v1249
    %v1369 = vpop.f32.mrf.mxu0
    %v1370 = vadd.f32 0.0, %v1369
    %v1371 = vpop.f32.mrf.mxu0
    %v1372 = vpop.f32.mrf.mxu0
    %v1373 = vadd.f32 0.0, %v1372
    %v1374 = vpop.f32.mrf.mxu0
    %1375 = vmatprep.mubr.bf16.mxu0 0
    %1376 = vmatmul.mubr.bf16.gmra.mxu0 %v1250
    %v1377 = vpop.f32.mrf.mxu0
    %v1378 = vadd.f32 0.0, %v1377
    %v1379 = vpop.f32.mrf.mxu0
    %v1380 = vpop.f32.mrf.mxu0
    %v1381 = vadd.f32 0.0, %v1380
    %v1382 = vpop.f32.mrf.mxu0
    %1383 = vmatprep.mubr.bf16.mxu0 0
    %1384 = vmatmul.mubr.bf16.gmra.mxu0 %v1251
    %v1385 = vpop.f32.mrf.mxu0
    %v1386 = vadd.f32 0.0, %v1385
    %v1387 = vpop.f32.mrf.mxu0
    %v1388 = vpop.f32.mrf.mxu0
    %v1389 = vadd.f32 0.0, %v1388
    %v1390 = vpop.f32.mrf.mxu0
    %1391 = vmatprep.mubr.bf16.mxu0 0
    %1392 = vmatmul.mubr.bf16.gmra.mxu0 %v1252
    %v1393 = vpop.f32.mrf.mxu0
    %v1394 = vadd.f32 0.0, %v1393
    %v1395 = vpop.f32.mrf.mxu0
    %v1396 = vpop.f32.mrf.mxu0
    %v1397 = vadd.f32 0.0, %v1396
    %v1398 = vpop.f32.mrf.mxu0
    %1399 = vmatprep.mubr.bf16.mxu0 0
    %1400 = vmatmul.mubr.bf16.gmra.mxu0 %v1253
    %v1401 = vpop.f32.mrf.mxu0
    %v1402 = vadd.f32 0.0, %v1401
    %v1403 = vpop.f32.mrf.mxu0
    %v1404 = vpop.f32.mrf.mxu0
    %v1405 = vadd.f32 0.0, %v1404
    %v1406 = vpop.f32.mrf.mxu0
    %1407 = vmatprep.mubr.bf16.mxu0 0
    %1408 = vmatmul.mubr.bf16.gmra.mxu0 %v1254
    %v1409 = vpop.f32.mrf.mxu0
    %v1410 = vadd.f32 0.0, %v1409
    %v1411 = vpop.f32.mrf.mxu0
    %v1412 = vpop.f32.mrf.mxu0
    %v1413 = vadd.f32 0.0, %v1412
    %v1414 = vpop.f32.mrf.mxu0
    %1415 = vdwg.mxu0
    %v1416 = vadd.f32 %v1185, %v1354
    %v1417 = vadd.f32 %v1186, %v1357
    %v1418 = vadd.f32 %v1187, %v1362
    %v1419 = vadd.f32 %v1188, %v1365
    %v1420 = vadd.f32 %v1189, %v1370
    %v1421 = vadd.f32 %v1190, %v1373
    %v1422 = vadd.f32 %v1191, %v1378
    %v1423 = vadd.f32 %v1192, %v1381
    %v1424 = vadd.f32 %v1193, %v1386
    %v1425 = vadd.f32 %v1194, %v1389
    %v1426 = vadd.f32 %v1195, %v1394
    %v1427 = vadd.f32 %v1196, %v1397
    %v1428 = vadd.f32 %v1197, %v1402
    %v1429 = vadd.f32 %v1198, %v1405
    %v1430 = vadd.f32 %v1199, %v1410
    %v1431 = vadd.f32 %v1200, %v1413
    %s1432 = sld [smem:[#allocation3 + $0x6]]
    %p1434 = scmp.ne.f32.partialorder %s1432, %s1432
    %s1435 = sshrl.u32 %s1432, 16
    %s1436 = sand.u32 %s1435, 1
    %s1437 = sadd.s32 32767, %s1436
    %s1438 = sadd.s32 %s1432, %s1437
    %s1439 = sand.u32 %s1438, 4294901760
    %s1440 = scalar_select %p1434, 2143289344, %s1439
    %s1442 = sshrl.u32 %s1440, 16
    %s1443 = sld [smem:[#allocation6 + $0x6]]
    %p1445 = scmp.ne.f32.partialorder %s1443, %s1443
    %s1446 = sshrl.u32 %s1443, 16
    %s1447 = sand.u32 %s1446, 1
    %s1448 = sadd.s32 32767, %s1447
    %s1449 = sadd.s32 %s1443, %s1448
    %s1450 = sand.u32 %s1449, 4294901760
    %s1451 = scalar_select %p1445, 2143289344, %s1450
    %s1453 = sshrl.u32 %s1451, 16
    %s1454 = sshll.u32 %s1442, 16
    %s1455 = sor.u32 %s1442, %s1454
    %v1456 = vstv %s1455
    %v1458 = vmul.bf16 %v70, %v1456
    %v1459 = vmul.bf16 %v71, %v1456
    %v1460 = vmul.bf16 %v72, %v1456
    %v1461 = vmul.bf16 %v73, %v1456
    %v1462 = vmul.bf16 %v74, %v1456
    %v1463 = vmul.bf16 %v75, %v1456
    %v1464 = vmul.bf16 %v76, %v1456
    %v1465 = vmul.bf16 %v77, %v1456
    %s1466 = sshll.u32 %s1453, 16
    %s1467 = sor.u32 %s1453, %s1466
    %v1468 = vstv %s1467
    %v1470 = vadd.bf16 %v1458, %v1468
    %v1471 = vadd.bf16 %v1459, %v1468
    %v1472 = vadd.bf16 %v1460, %v1468
    %v1473 = vadd.bf16 %v1461, %v1468
    %v1474 = vadd.bf16 %v1462, %v1468
    %v1475 = vadd.bf16 %v1463, %v1468
    %v1476 = vadd.bf16 %v1464, %v1468
    %v1477 = vadd.bf16 %v1465, %v1468
    %v1478 = vmax.bf16 %v1470, 0
    %v1479 = vmax.bf16 %v1471, 0
    %v1480 = vmax.bf16 %v1472, 0
    %v1481 = vmax.bf16 %v1473, 0
    %v1482 = vmax.bf16 %v1474, 0
    %v1483 = vmax.bf16 %v1475, 0
    %v1484 = vmax.bf16 %v1476, 0
    %v1485 = vmax.bf16 %v1477, 0
    %v1486 = vld [vmem:[%s1 + $0x180] sm:$0xf]
    %v1487 = vld [vmem:[%s1 + $0x184] sm:$0xf]
    %v1488 = vld [vmem:[%s1 + $0x188] sm:$0xf]
    %v1489 = vld [vmem:[%s1 + $0x18c] sm:$0xf]
    %v1490 = vld [vmem:[%s1 + $0x190] sm:$0xf]
    %v1491 = vld [vmem:[%s1 + $0x194] sm:$0xf]
    %v1492 = vld [vmem:[%s1 + $0x198] sm:$0xf]
    %v1493 = vld [vmem:[%s1 + $0x19c] sm:$0xf]
    %v1494 = vld [vmem:[%s1 + $0x1a0] sm:$0xf]
    %v1495 = vld [vmem:[%s1 + $0x1a4] sm:$0xf]
    %v1496 = vld [vmem:[%s1 + $0x1a8] sm:$0xf]
    %v1497 = vld [vmem:[%s1 + $0x1ac] sm:$0xf]
    %v1498 = vld [vmem:[%s1 + $0x1b0] sm:$0xf]
    %v1499 = vld [vmem:[%s1 + $0x1b4] sm:$0xf]
    %v1500 = vld [vmem:[%s1 + $0x1b8] sm:$0xf]
    %v1501 = vld [vmem:[%s1 + $0x1bc] sm:$0xf]
    %v1518 = vunpack.c.l.b16 %v1486
    %v1519 = vunpack.c.l.b16 %v1487
    %v1520 = vunpack.c.l.b16 %v1488
    %v1521 = vunpack.c.l.b16 %v1489
    %v1522 = vunpack.c.l.b16 %v1490
    %v1523 = vunpack.c.l.b16 %v1491
    %v1524 = vunpack.c.l.b16 %v1492
    %v1525 = vunpack.c.l.b16 %v1493
    %v1526 = vunpack.c.l.b16 %v1494
    %v1527 = vunpack.c.l.b16 %v1495
    %v1528 = vunpack.c.l.b16 %v1496
    %v1529 = vunpack.c.l.b16 %v1497
    %v1530 = vunpack.c.l.b16 %v1498
    %v1531 = vunpack.c.l.b16 %v1499
    %v1532 = vunpack.c.l.b16 %v1500
    %v1533 = vunpack.c.l.b16 %v1501
    %v1534 = vpack.c.b16 %v1519, %v1518
    %v1535 = vpack.c.b16 %v1521, %v1520
    %v1536 = vpack.c.b16 %v1523, %v1522
    %v1537 = vpack.c.b16 %v1525, %v1524
    %v1538 = vpack.c.b16 %v1527, %v1526
    %v1539 = vpack.c.b16 %v1529, %v1528
    %v1540 = vpack.c.b16 %v1531, %v1530
    %v1541 = vpack.c.b16 %v1533, %v1532
    %1550 = vmatprep.subr.bf16.mxu0 0
    %1551 = vmatpush1.bf16.msra.mxu0 %v1541
    %1552 = vmatprep.subr.bf16.mxu0 0
    %1553 = vmatpush1.bf16.msra.mxu0 %v1540
    %1554 = vmatprep.subr.bf16.mxu0 0
    %1555 = vmatpush1.bf16.msra.mxu0 %v1539
    %1556 = vmatprep.subr.bf16.mxu0 0
    %1557 = vmatpush1.bf16.msra.mxu0 %v1538
    %1558 = vmatprep.subr.bf16.mxu0 0
    %1559 = vmatpush1.bf16.msra.mxu0 %v1537
    %1560 = vmatprep.subr.bf16.mxu0 0
    %1561 = vmatpush1.bf16.msra.mxu0 %v1536
    %1562 = vmatprep.subr.bf16.mxu0 0
    %1563 = vmatpush1.bf16.msra.mxu0 %v1535
    %1564 = vmatprep.subr.bf16.mxu0 0
    %1565 = vmatpush1.bf16.msra.mxu0 %v1534
    %1566 = vmatprep.subr.bf16.mxu0 0
    %1567 = vmatpush2.bf16.msra.mxu0 0
    %1568 = vmatprep.subr.bf16.mxu0 0
    %1569 = vmatpush2.bf16.msra.mxu0 0
    %1570 = vmatprep.subr.bf16.mxu0 0
    %1571 = vmatpush2.bf16.msra.mxu0 0
    %1572 = vmatprep.subr.bf16.mxu0 0
    %1573 = vmatpush2.bf16.msra.mxu0 0
    %1574 = vmatprep.subr.bf16.mxu0 0
    %1575 = vmatpush2.bf16.msra.mxu0 0
    %1576 = vmatprep.subr.bf16.mxu0 0
    %1577 = vmatpush2.bf16.msra.mxu0 0
    %1578 = vmatprep.subr.bf16.mxu0 0
    %1579 = vmatpush2.bf16.msra.mxu0 0
    %1580 = vmatprep.subr.bf16.mxu0 0
    %1581 = vmatpush2.bf16.msra.mxu0 0
    %1582 = vmatprep.mubr.bf16.mxu0 0
    %1583 = vmatmul.mubr.bf16.gmra.mxu0 %v1478
    %v1584 = vpop.f32.mrf.mxu0
    %v1585 = vadd.f32 0.0, %v1584
    %v1586 = vpop.f32.mrf.mxu0
    %v1587 = vpop.f32.mrf.mxu0
    %v1588 = vadd.f32 0.0, %v1587
    %v1589 = vpop.f32.mrf.mxu0
    %1590 = vmatprep.mubr.bf16.mxu0 0
    %1591 = vmatmul.mubr.bf16.gmra.mxu0 %v1479
    %v1592 = vpop.f32.mrf.mxu0
    %v1593 = vadd.f32 0.0, %v1592
    %v1594 = vpop.f32.mrf.mxu0
    %v1595 = vpop.f32.mrf.mxu0
    %v1596 = vadd.f32 0.0, %v1595
    %v1597 = vpop.f32.mrf.mxu0
    %1598 = vmatprep.mubr.bf16.mxu0 0
    %1599 = vmatmul.mubr.bf16.gmra.mxu0 %v1480
    %v1600 = vpop.f32.mrf.mxu0
    %v1601 = vadd.f32 0.0, %v1600
    %v1602 = vpop.f32.mrf.mxu0
    %v1603 = vpop.f32.mrf.mxu0
    %v1604 = vadd.f32 0.0, %v1603
    %v1605 = vpop.f32.mrf.mxu0
    %1606 = vmatprep.mubr.bf16.mxu0 0
    %1607 = vmatmul.mubr.bf16.gmra.mxu0 %v1481
    %v1608 = vpop.f32.mrf.mxu0
    %v1609 = vadd.f32 0.0, %v1608
    %v1610 = vpop.f32.mrf.mxu0
    %v1611 = vpop.f32.mrf.mxu0
    %v1612 = vadd.f32 0.0, %v1611
    %v1613 = vpop.f32.mrf.mxu0
    %1614 = vmatprep.mubr.bf16.mxu0 0
    %1615 = vmatmul.mubr.bf16.gmra.mxu0 %v1482
    %v1616 = vpop.f32.mrf.mxu0
    %v1617 = vadd.f32 0.0, %v1616
    %v1618 = vpop.f32.mrf.mxu0
    %v1619 = vpop.f32.mrf.mxu0
    %v1620 = vadd.f32 0.0, %v1619
    %v1621 = vpop.f32.mrf.mxu0
    %1622 = vmatprep.mubr.bf16.mxu0 0
    %1623 = vmatmul.mubr.bf16.gmra.mxu0 %v1483
    %v1624 = vpop.f32.mrf.mxu0
    %v1625 = vadd.f32 0.0, %v1624
    %v1626 = vpop.f32.mrf.mxu0
    %v1627 = vpop.f32.mrf.mxu0
    %v1628 = vadd.f32 0.0, %v1627
    %v1629 = vpop.f32.mrf.mxu0
    %1630 = vmatprep.mubr.bf16.mxu0 0
    %1631 = vmatmul.mubr.bf16.gmra.mxu0 %v1484
    %v1632 = vpop.f32.mrf.mxu0
    %v1633 = vadd.f32 0.0, %v1632
    %v1634 = vpop.f32.mrf.mxu0
    %v1635 = vpop.f32.mrf.mxu0
    %v1636 = vadd.f32 0.0, %v1635
    %v1637 = vpop.f32.mrf.mxu0
    %1638 = vmatprep.mubr.bf16.mxu0 0
    %1639 = vmatmul.mubr.bf16.gmra.mxu0 %v1485
    %v1640 = vpop.f32.mrf.mxu0
    %v1641 = vadd.f32 0.0, %v1640
    %v1642 = vpop.f32.mrf.mxu0
    %v1643 = vpop.f32.mrf.mxu0
    %v1644 = vadd.f32 0.0, %v1643
    %v1645 = vpop.f32.mrf.mxu0
    %1646 = vdwg.mxu0
    %v1647 = vadd.f32 %v1416, %v1585
    %v1648 = vadd.f32 %v1417, %v1588
    %v1649 = vadd.f32 %v1418, %v1593
    %v1650 = vadd.f32 %v1419, %v1596
    %v1651 = vadd.f32 %v1420, %v1601
    %v1652 = vadd.f32 %v1421, %v1604
    %v1653 = vadd.f32 %v1422, %v1609
    %v1654 = vadd.f32 %v1423, %v1612
    %v1655 = vadd.f32 %v1424, %v1617
    %v1656 = vadd.f32 %v1425, %v1620
    %v1657 = vadd.f32 %v1426, %v1625
    %v1658 = vadd.f32 %v1427, %v1628
    %v1659 = vadd.f32 %v1428, %v1633
    %v1660 = vadd.f32 %v1429, %v1636
    %v1661 = vadd.f32 %v1430, %v1641
    %v1662 = vadd.f32 %v1431, %v1644
    %s1663 = sld [smem:[#allocation3 + $0x7]]
    %p1665 = scmp.ne.f32.partialorder %s1663, %s1663
    %s1666 = sshrl.u32 %s1663, 16
    %s1667 = sand.u32 %s1666, 1
    %s1668 = sadd.s32 32767, %s1667
    %s1669 = sadd.s32 %s1663, %s1668
    %s1670 = sand.u32 %s1669, 4294901760
    %s1671 = scalar_select %p1665, 2143289344, %s1670
    %s1673 = sshrl.u32 %s1671, 16
    %s1674 = sld [smem:[#allocation6 + $0x7]]
    %p1676 = scmp.ne.f32.partialorder %s1674, %s1674
    %s1677 = sshrl.u32 %s1674, 16
    %s1678 = sand.u32 %s1677, 1
    %s1679 = sadd.s32 32767, %s1678
    %s1680 = sadd.s32 %s1674, %s1679
    %s1681 = sand.u32 %s1680, 4294901760
    %s1682 = scalar_select %p1676, 2143289344, %s1681
    %s1684 = sshrl.u32 %s1682, 16
    %s1685 = sshll.u32 %s1673, 16
    %s1686 = sor.u32 %s1673, %s1685
    %v1687 = vstv %s1686
    %v1689 = vmul.bf16 %v70, %v1687
    %v1690 = vmul.bf16 %v71, %v1687
    %v1691 = vmul.bf16 %v72, %v1687
    %v1692 = vmul.bf16 %v73, %v1687
    %v1693 = vmul.bf16 %v74, %v1687
    %v1694 = vmul.bf16 %v75, %v1687
    %v1695 = vmul.bf16 %v76, %v1687
    %v1696 = vmul.bf16 %v77, %v1687
    %s1697 = sshll.u32 %s1684, 16
    %s1698 = sor.u32 %s1684, %s1697
    %v1699 = vstv %s1698
    %v1701 = vadd.bf16 %v1689, %v1699
    %v1702 = vadd.bf16 %v1690, %v1699
    %v1703 = vadd.bf16 %v1691, %v1699
    %v1704 = vadd.bf16 %v1692, %v1699
    %v1705 = vadd.bf16 %v1693, %v1699
    %v1706 = vadd.bf16 %v1694, %v1699
    %v1707 = vadd.bf16 %v1695, %v1699
    %v1708 = vadd.bf16 %v1696, %v1699
    %v1709 = vmax.bf16 %v1701, 0
    %v1710 = vmax.bf16 %v1702, 0
    %v1711 = vmax.bf16 %v1703, 0
    %v1712 = vmax.bf16 %v1704, 0
    %v1713 = vmax.bf16 %v1705, 0
    %v1714 = vmax.bf16 %v1706, 0
    %v1715 = vmax.bf16 %v1707, 0
    %v1716 = vmax.bf16 %v1708, 0
    %v1717 = vld [vmem:[%s1 + $0x1c0] sm:$0xf]
    %v1718 = vld [vmem:[%s1 + $0x1c4] sm:$0xf]
    %v1719 = vld [vmem:[%s1 + $0x1c8] sm:$0xf]
    %v1720 = vld [vmem:[%s1 + $0x1cc] sm:$0xf]
    %v1721 = vld [vmem:[%s1 + $0x1d0] sm:$0xf]
    %v1722 = vld [vmem:[%s1 + $0x1d4] sm:$0xf]
    %v1723 = vld [vmem:[%s1 + $0x1d8] sm:$0xf]
    %v1724 = vld [vmem:[%s1 + $0x1dc] sm:$0xf]
    %v1725 = vld [vmem:[%s1 + $0x1e0] sm:$0xf]
    %v1726 = vld [vmem:[%s1 + $0x1e4] sm:$0xf]
    %v1727 = vld [vmem:[%s1 + $0x1e8] sm:$0xf]
    %v1728 = vld [vmem:[%s1 + $0x1ec] sm:$0xf]
    %v1729 = vld [vmem:[%s1 + $0x1f0] sm:$0xf]
    %v1730 = vld [vmem:[%s1 + $0x1f4] sm:$0xf]
    %v1731 = vld [vmem:[%s1 + $0x1f8] sm:$0xf]
    %v1732 = vld [vmem:[%s1 + $0x1fc] sm:$0xf]
    %v1749 = vunpack.c.l.b16 %v1717
    %v1750 = vunpack.c.l.b16 %v1718
    %v1751 = vunpack.c.l.b16 %v1719
    %v1752 = vunpack.c.l.b16 %v1720
    %v1753 = vunpack.c.l.b16 %v1721
    %v1754 = vunpack.c.l.b16 %v1722
    %v1755 = vunpack.c.l.b16 %v1723
    %v1756 = vunpack.c.l.b16 %v1724
    %v1757 = vunpack.c.l.b16 %v1725
    %v1758 = vunpack.c.l.b16 %v1726
    %v1759 = vunpack.c.l.b16 %v1727
    %v1760 = vunpack.c.l.b16 %v1728
    %v1761 = vunpack.c.l.b16 %v1729
    %v1762 = vunpack.c.l.b16 %v1730
    %v1763 = vunpack.c.l.b16 %v1731
    %v1764 = vunpack.c.l.b16 %v1732
    %v1765 = vpack.c.b16 %v1750, %v1749
    %v1766 = vpack.c.b16 %v1752, %v1751
    %v1767 = vpack.c.b16 %v1754, %v1753
    %v1768 = vpack.c.b16 %v1756, %v1755
    %v1769 = vpack.c.b16 %v1758, %v1757
    %v1770 = vpack.c.b16 %v1760, %v1759
    %v1771 = vpack.c.b16 %v1762, %v1761
    %v1772 = vpack.c.b16 %v1764, %v1763
    %1781 = vmatprep.subr.bf16.mxu0 0
    %1782 = vmatpush1.bf16.msra.mxu0 %v1772
    %1783 = vmatprep.subr.bf16.mxu0 0
    %1784 = vmatpush1.bf16.msra.mxu0 %v1771
    %1785 = vmatprep.subr.bf16.mxu0 0
    %1786 = vmatpush1.bf16.msra.mxu0 %v1770
    %1787 = vmatprep.subr.bf16.mxu0 0
    %1788 = vmatpush1.bf16.msra.mxu0 %v1769
    %1789 = vmatprep.subr.bf16.mxu0 0
    %1790 = vmatpush1.bf16.msra.mxu0 %v1768
    %1791 = vmatprep.subr.bf16.mxu0 0
    %1792 = vmatpush1.bf16.msra.mxu0 %v1767
    %1793 = vmatprep.subr.bf16.mxu0 0
    %1794 = vmatpush1.bf16.msra.mxu0 %v1766
    %1795 = vmatprep.subr.bf16.mxu0 0
    %1796 = vmatpush1.bf16.msra.mxu0 %v1765
    %1797 = vmatprep.subr.bf16.mxu0 0
    %1798 = vmatpush2.bf16.msra.mxu0 0
    %1799 = vmatprep.subr.bf16.mxu0 0
    %1800 = vmatpush2.bf16.msra.mxu0 0
    %1801 = vmatprep.subr.bf16.mxu0 0
    %1802 = vmatpush2.bf16.msra.mxu0 0
    %1803 = vmatprep.subr.bf16.mxu0 0
    %1804 = vmatpush2.bf16.msra.mxu0 0
    %1805 = vmatprep.subr.bf16.mxu0 0
    %1806 = vmatpush2.bf16.msra.mxu0 0
    %1807 = vmatprep.subr.bf16.mxu0 0
    %1808 = vmatpush2.bf16.msra.mxu0 0
    %1809 = vmatprep.subr.bf16.mxu0 0
    %1810 = vmatpush2.bf16.msra.mxu0 0
    %1811 = vmatprep.subr.bf16.mxu0 0
    %1812 = vmatpush2.bf16.msra.mxu0 0
    %1813 = vmatprep.mubr.bf16.mxu0 0
    %1814 = vmatmul.mubr.bf16.gmra.mxu0 %v1709
    %v1815 = vpop.f32.mrf.mxu0
    %v1816 = vadd.f32 0.0, %v1815
    %v1817 = vpop.f32.mrf.mxu0
    %v1818 = vpop.f32.mrf.mxu0
    %v1819 = vadd.f32 0.0, %v1818
    %v1820 = vpop.f32.mrf.mxu0
    %1821 = vmatprep.mubr.bf16.mxu0 0
    %1822 = vmatmul.mubr.bf16.gmra.mxu0 %v1710
    %v1823 = vpop.f32.mrf.mxu0
    %v1824 = vadd.f32 0.0, %v1823
    %v1825 = vpop.f32.mrf.mxu0
    %v1826 = vpop.f32.mrf.mxu0
    %v1827 = vadd.f32 0.0, %v1826
    %v1828 = vpop.f32.mrf.mxu0
    %1829 = vmatprep.mubr.bf16.mxu0 0
    %1830 = vmatmul.mubr.bf16.gmra.mxu0 %v1711
    %v1831 = vpop.f32.mrf.mxu0
    %v1832 = vadd.f32 0.0, %v1831
    %v1833 = vpop.f32.mrf.mxu0
    %v1834 = vpop.f32.mrf.mxu0
    %v1835 = vadd.f32 0.0, %v1834
    %v1836 = vpop.f32.mrf.mxu0
    %1837 = vmatprep.mubr.bf16.mxu0 0
    %1838 = vmatmul.mubr.bf16.gmra.mxu0 %v1712
    %v1839 = vpop.f32.mrf.mxu0
    %v1840 = vadd.f32 0.0, %v1839
    %v1841 = vpop.f32.mrf.mxu0
    %v1842 = vpop.f32.mrf.mxu0
    %v1843 = vadd.f32 0.0, %v1842
    %v1844 = vpop.f32.mrf.mxu0
    %1845 = vmatprep.mubr.bf16.mxu0 0
    %1846 = vmatmul.mubr.bf16.gmra.mxu0 %v1713
    %v1847 = vpop.f32.mrf.mxu0
    %v1848 = vadd.f32 0.0, %v1847
    %v1849 = vpop.f32.mrf.mxu0
    %v1850 = vpop.f32.mrf.mxu0
    %v1851 = vadd.f32 0.0, %v1850
    %v1852 = vpop.f32.mrf.mxu0
    %1853 = vmatprep.mubr.bf16.mxu0 0
    %1854 = vmatmul.mubr.bf16.gmra.mxu0 %v1714
    %v1855 = vpop.f32.mrf.mxu0
    %v1856 = vadd.f32 0.0, %v1855
    %v1857 = vpop.f32.mrf.mxu0
    %v1858 = vpop.f32.mrf.mxu0
    %v1859 = vadd.f32 0.0, %v1858
    %v1860 = vpop.f32.mrf.mxu0
    %1861 = vmatprep.mubr.bf16.mxu0 0
    %1862 = vmatmul.mubr.bf16.gmra.mxu0 %v1715
    %v1863 = vpop.f32.mrf.mxu0
    %v1864 = vadd.f32 0.0, %v1863
    %v1865 = vpop.f32.mrf.mxu0
    %v1866 = vpop.f32.mrf.mxu0
    %v1867 = vadd.f32 0.0, %v1866
    %v1868 = vpop.f32.mrf.mxu0
    %1869 = vmatprep.mubr.bf16.mxu0 0
    %1870 = vmatmul.mubr.bf16.gmra.mxu0 %v1716
    %v1871 = vpop.f32.mrf.mxu0
    %v1872 = vadd.f32 0.0, %v1871
    %v1873 = vpop.f32.mrf.mxu0
    %v1874 = vpop.f32.mrf.mxu0
    %v1875 = vadd.f32 0.0, %v1874
    %v1876 = vpop.f32.mrf.mxu0
    %1877 = vdwg.mxu0
    %v1878 = vadd.f32 %v1647, %v1816
    %v1879 = vadd.f32 %v1648, %v1819
    %v1880 = vadd.f32 %v1649, %v1824
    %v1881 = vadd.f32 %v1650, %v1827
    %v1882 = vadd.f32 %v1651, %v1832
    %v1883 = vadd.f32 %v1652, %v1835
    %v1884 = vadd.f32 %v1653, %v1840
    %v1885 = vadd.f32 %v1654, %v1843
    %v1886 = vadd.f32 %v1655, %v1848
    %v1887 = vadd.f32 %v1656, %v1851
    %v1888 = vadd.f32 %v1657, %v1856
    %v1889 = vadd.f32 %v1658, %v1859
    %v1890 = vadd.f32 %v1659, %v1864
    %v1891 = vadd.f32 %v1660, %v1867
    %v1892 = vadd.f32 %v1661, %v1872
    %v1893 = vadd.f32 %v1662, %v1875
    %s1894 = sld [smem:[#allocation3 + $0x8]]
    %p1896 = scmp.ne.f32.partialorder %s1894, %s1894
    %s1897 = sshrl.u32 %s1894, 16
    %s1898 = sand.u32 %s1897, 1
    %s1899 = sadd.s32 32767, %s1898
    %s1900 = sadd.s32 %s1894, %s1899
    %s1901 = sand.u32 %s1900, 4294901760
    %s1902 = scalar_select %p1896, 2143289344, %s1901
    %s1904 = sshrl.u32 %s1902, 16
    %s1905 = sld [smem:[#allocation6 + $0x8]]
    %p1907 = scmp.ne.f32.partialorder %s1905, %s1905
    %s1908 = sshrl.u32 %s1905, 16
    %s1909 = sand.u32 %s1908, 1
    %s1910 = sadd.s32 32767, %s1909
    %s1911 = sadd.s32 %s1905, %s1910
    %s1912 = sand.u32 %s1911, 4294901760
    %s1913 = scalar_select %p1907, 2143289344, %s1912
    %s1915 = sshrl.u32 %s1913, 16
    %s1916 = sshll.u32 %s1904, 16
    %s1917 = sor.u32 %s1904, %s1916
    %v1918 = vstv %s1917
    %v1920 = vmul.bf16 %v70, %v1918
    %v1921 = vmul.bf16 %v71, %v1918
    %v1922 = vmul.bf16 %v72, %v1918
    %v1923 = vmul.bf16 %v73, %v1918
    %v1924 = vmul.bf16 %v74, %v1918
    %v1925 = vmul.bf16 %v75, %v1918
    %v1926 = vmul.bf16 %v76, %v1918
    %v1927 = vmul.bf16 %v77, %v1918
    %s1928 = sshll.u32 %s1915, 16
    %s1929 = sor.u32 %s1915, %s1928
    %v1930 = vstv %s1929
    %v1932 = vadd.bf16 %v1920, %v1930
    %v1933 = vadd.bf16 %v1921, %v1930
    %v1934 = vadd.bf16 %v1922, %v1930
    %v1935 = vadd.bf16 %v1923, %v1930
    %v1936 = vadd.bf16 %v1924, %v1930
    %v1937 = vadd.bf16 %v1925, %v1930
    %v1938 = vadd.bf16 %v1926, %v1930
    %v1939 = vadd.bf16 %v1927, %v1930
    %v1940 = vmax.bf16 %v1932, 0
    %v1941 = vmax.bf16 %v1933, 0
    %v1942 = vmax.bf16 %v1934, 0
    %v1943 = vmax.bf16 %v1935, 0
    %v1944 = vmax.bf16 %v1936, 0
    %v1945 = vmax.bf16 %v1937, 0
    %v1946 = vmax.bf16 %v1938, 0
    %v1947 = vmax.bf16 %v1939, 0
    %v1948 = vld [vmem:[%s1 + $0x200] sm:$0xf]
    %v1949 = vld [vmem:[%s1 + $0x204] sm:$0xf]
    %v1950 = vld [vmem:[%s1 + $0x208] sm:$0xf]
    %v1951 = vld [vmem:[%s1 + $0x20c] sm:$0xf]
    %v1952 = vld [vmem:[%s1 + $0x210] sm:$0xf]
    %v1953 = vld [vmem:[%s1 + $0x214] sm:$0xf]
    %v1954 = vld [vmem:[%s1 + $0x218] sm:$0xf]
    %v1955 = vld [vmem:[%s1 + $0x21c] sm:$0xf]
    %v1956 = vld [vmem:[%s1 + $0x220] sm:$0xf]
    %v1957 = vld [vmem:[%s1 + $0x224] sm:$0xf]
    %v1958 = vld [vmem:[%s1 + $0x228] sm:$0xf]
    %v1959 = vld [vmem:[%s1 + $0x22c] sm:$0xf]
    %v1960 = vld [vmem:[%s1 + $0x230] sm:$0xf]
    %v1961 = vld [vmem:[%s1 + $0x234] sm:$0xf]
    %v1962 = vld [vmem:[%s1 + $0x238] sm:$0xf]
    %v1963 = vld [vmem:[%s1 + $0x23c] sm:$0xf]
    %v1980 = vunpack.c.l.b16 %v1948
    %v1981 = vunpack.c.l.b16 %v1949
    %v1982 = vunpack.c.l.b16 %v1950
    %v1983 = vunpack.c.l.b16 %v1951
    %v1984 = vunpack.c.l.b16 %v1952
    %v1985 = vunpack.c.l.b16 %v1953
    %v1986 = vunpack.c.l.b16 %v1954
    %v1987 = vunpack.c.l.b16 %v1955
    %v1988 = vunpack.c.l.b16 %v1956
    %v1989 = vunpack.c.l.b16 %v1957
    %v1990 = vunpack.c.l.b16 %v1958
    %v1991 = vunpack.c.l.b16 %v1959
    %v1992 = vunpack.c.l.b16 %v1960
    %v1993 = vunpack.c.l.b16 %v1961
    %v1994 = vunpack.c.l.b16 %v1962
    %v1995 = vunpack.c.l.b16 %v1963
    %v1996 = vpack.c.b16 %v1981, %v1980
    %v1997 = vpack.c.b16 %v1983, %v1982
    %v1998 = vpack.c.b16 %v1985, %v1984
    %v1999 = vpack.c.b16 %v1987, %v1986
    %v2000 = vpack.c.b16 %v1989, %v1988
    %v2001 = vpack.c.b16 %v1991, %v1990
    %v2002 = vpack.c.b16 %v1993, %v1992
    %v2003 = vpack.c.b16 %v1995, %v1994
    %2012 = vmatprep.subr.bf16.mxu0 0
    %2013 = vmatpush1.bf16.msra.mxu0 %v2003
    %2014 = vmatprep.subr.bf16.mxu0 0
    %2015 = vmatpush1.bf16.msra.mxu0 %v2002
    %2016 = vmatprep.subr.bf16.mxu0 0
    %2017 = vmatpush1.bf16.msra.mxu0 %v2001
    %2018 = vmatprep.subr.bf16.mxu0 0
    %2019 = vmatpush1.bf16.msra.mxu0 %v2000
    %2020 = vmatprep.subr.bf16.mxu0 0
    %2021 = vmatpush1.bf16.msra.mxu0 %v1999
    %2022 = vmatprep.subr.bf16.mxu0 0
    %2023 = vmatpush1.bf16.msra.mxu0 %v1998
    %2024 = vmatprep.subr.bf16.mxu0 0
    %2025 = vmatpush1.bf16.msra.mxu0 %v1997
    %2026 = vmatprep.subr.bf16.mxu0 0
    %2027 = vmatpush1.bf16.msra.mxu0 %v1996
    %2028 = vmatprep.subr.bf16.mxu0 0
    %2029 = vmatpush2.bf16.msra.mxu0 0
    %2030 = vmatprep.subr.bf16.mxu0 0
    %2031 = vmatpush2.bf16.msra.mxu0 0
    %2032 = vmatprep.subr.bf16.mxu0 0
    %2033 = vmatpush2.bf16.msra.mxu0 0
    %2034 = vmatprep.subr.bf16.mxu0 0
    %2035 = vmatpush2.bf16.msra.mxu0 0
    %2036 = vmatprep.subr.bf16.mxu0 0
    %2037 = vmatpush2.bf16.msra.mxu0 0
    %2038 = vmatprep.subr.bf16.mxu0 0
    %2039 = vmatpush2.bf16.msra.mxu0 0
    %2040 = vmatprep.subr.bf16.mxu0 0
    %2041 = vmatpush2.bf16.msra.mxu0 0
    %2042 = vmatprep.subr.bf16.mxu0 0
    %2043 = vmatpush2.bf16.msra.mxu0 0
    %2044 = vmatprep.mubr.bf16.mxu0 0
    %2045 = vmatmul.mubr.bf16.gmra.mxu0 %v1940
    %v2046 = vpop.f32.mrf.mxu0
    %v2047 = vadd.f32 0.0, %v2046
    %v2048 = vpop.f32.mrf.mxu0
    %v2049 = vpop.f32.mrf.mxu0
    %v2050 = vadd.f32 0.0, %v2049
    %v2051 = vpop.f32.mrf.mxu0
    %2052 = vmatprep.mubr.bf16.mxu0 0
    %2053 = vmatmul.mubr.bf16.gmra.mxu0 %v1941
    %v2054 = vpop.f32.mrf.mxu0
    %v2055 = vadd.f32 0.0, %v2054
    %v2056 = vpop.f32.mrf.mxu0
    %v2057 = vpop.f32.mrf.mxu0
    %v2058 = vadd.f32 0.0, %v2057
    %v2059 = vpop.f32.mrf.mxu0
    %2060 = vmatprep.mubr.bf16.mxu0 0
    %2061 = vmatmul.mubr.bf16.gmra.mxu0 %v1942
    %v2062 = vpop.f32.mrf.mxu0
    %v2063 = vadd.f32 0.0, %v2062
    %v2064 = vpop.f32.mrf.mxu0
    %v2065 = vpop.f32.mrf.mxu0
    %v2066 = vadd.f32 0.0, %v2065
    %v2067 = vpop.f32.mrf.mxu0
    %2068 = vmatprep.mubr.bf16.mxu0 0
    %2069 = vmatmul.mubr.bf16.gmra.mxu0 %v1943
    %v2070 = vpop.f32.mrf.mxu0
    %v2071 = vadd.f32 0.0, %v2070
    %v2072 = vpop.f32.mrf.mxu0
    %v2073 = vpop.f32.mrf.mxu0
    %v2074 = vadd.f32 0.0, %v2073
    %v2075 = vpop.f32.mrf.mxu0
    %2076 = vmatprep.mubr.bf16.mxu0 0
    %2077 = vmatmul.mubr.bf16.gmra.mxu0 %v1944
    %v2078 = vpop.f32.mrf.mxu0
    %v2079 = vadd.f32 0.0, %v2078
    %v2080 = vpop.f32.mrf.mxu0
    %v2081 = vpop.f32.mrf.mxu0
    %v2082 = vadd.f32 0.0, %v2081
    %v2083 = vpop.f32.mrf.mxu0
    %2084 = vmatprep.mubr.bf16.mxu0 0
    %2085 = vmatmul.mubr.bf16.gmra.mxu0 %v1945
    %v2086 = vpop.f32.mrf.mxu0
    %v2087 = vadd.f32 0.0, %v2086
    %v2088 = vpop.f32.mrf.mxu0
    %v2089 = vpop.f32.mrf.mxu0
    %v2090 = vadd.f32 0.0, %v2089
    %v2091 = vpop.f32.mrf.mxu0
    %2092 = vmatprep.mubr.bf16.mxu0 0
    %2093 = vmatmul.mubr.bf16.gmra.mxu0 %v1946
    %v2094 = vpop.f32.mrf.mxu0
    %v2095 = vadd.f32 0.0, %v2094
    %v2096 = vpop.f32.mrf.mxu0
    %v2097 = vpop.f32.mrf.mxu0
    %v2098 = vadd.f32 0.0, %v2097
    %v2099 = vpop.f32.mrf.mxu0
    %2100 = vmatprep.mubr.bf16.mxu0 0
    %2101 = vmatmul.mubr.bf16.gmra.mxu0 %v1947
    %v2102 = vpop.f32.mrf.mxu0
    %v2103 = vadd.f32 0.0, %v2102
    %v2104 = vpop.f32.mrf.mxu0
    %v2105 = vpop.f32.mrf.mxu0
    %v2106 = vadd.f32 0.0, %v2105
    %v2107 = vpop.f32.mrf.mxu0
    %2108 = vdwg.mxu0
    %v2109 = vadd.f32 %v1878, %v2047
    %v2110 = vadd.f32 %v1879, %v2050
    %v2111 = vadd.f32 %v1880, %v2055
    %v2112 = vadd.f32 %v1881, %v2058
    %v2113 = vadd.f32 %v1882, %v2063
    %v2114 = vadd.f32 %v1883, %v2066
    %v2115 = vadd.f32 %v1884, %v2071
    %v2116 = vadd.f32 %v1885, %v2074
    %v2117 = vadd.f32 %v1886, %v2079
    %v2118 = vadd.f32 %v1887, %v2082
    %v2119 = vadd.f32 %v1888, %v2087
    %v2120 = vadd.f32 %v1889, %v2090
    %v2121 = vadd.f32 %v1890, %v2095
    %v2122 = vadd.f32 %v1891, %v2098
    %v2123 = vadd.f32 %v1892, %v2103
    %v2124 = vadd.f32 %v1893, %v2106
    %s2125 = sld [smem:[#allocation3 + $0x9]]
    %p2127 = scmp.ne.f32.partialorder %s2125, %s2125
    %s2128 = sshrl.u32 %s2125, 16
    %s2129 = sand.u32 %s2128, 1
    %s2130 = sadd.s32 32767, %s2129
    %s2131 = sadd.s32 %s2125, %s2130
    %s2132 = sand.u32 %s2131, 4294901760
    %s2133 = scalar_select %p2127, 2143289344, %s2132
    %s2135 = sshrl.u32 %s2133, 16
    %s2136 = sld [smem:[#allocation6 + $0x9]]
    %p2138 = scmp.ne.f32.partialorder %s2136, %s2136
    %s2139 = sshrl.u32 %s2136, 16
    %s2140 = sand.u32 %s2139, 1
    %s2141 = sadd.s32 32767, %s2140
    %s2142 = sadd.s32 %s2136, %s2141
    %s2143 = sand.u32 %s2142, 4294901760
    %s2144 = scalar_select %p2138, 2143289344, %s2143
    %s2146 = sshrl.u32 %s2144, 16
    %s2147 = sshll.u32 %s2135, 16
    %s2148 = sor.u32 %s2135, %s2147
    %v2149 = vstv %s2148
    %v2151 = vmul.bf16 %v70, %v2149
    %v2152 = vmul.bf16 %v71, %v2149
    %v2153 = vmul.bf16 %v72, %v2149
    %v2154 = vmul.bf16 %v73, %v2149
    %v2155 = vmul.bf16 %v74, %v2149
    %v2156 = vmul.bf16 %v75, %v2149
    %v2157 = vmul.bf16 %v76, %v2149
    %v2158 = vmul.bf16 %v77, %v2149
    %s2159 = sshll.u32 %s2146, 16
    %s2160 = sor.u32 %s2146, %s2159
    %v2161 = vstv %s2160
    %v2163 = vadd.bf16 %v2151, %v2161
    %v2164 = vadd.bf16 %v2152, %v2161
    %v2165 = vadd.bf16 %v2153, %v2161
    %v2166 = vadd.bf16 %v2154, %v2161
    %v2167 = vadd.bf16 %v2155, %v2161
    %v2168 = vadd.bf16 %v2156, %v2161
    %v2169 = vadd.bf16 %v2157, %v2161
    %v2170 = vadd.bf16 %v2158, %v2161
    %v2171 = vmax.bf16 %v2163, 0
    %v2172 = vmax.bf16 %v2164, 0
    %v2173 = vmax.bf16 %v2165, 0
    %v2174 = vmax.bf16 %v2166, 0
    %v2175 = vmax.bf16 %v2167, 0
    %v2176 = vmax.bf16 %v2168, 0
    %v2177 = vmax.bf16 %v2169, 0
    %v2178 = vmax.bf16 %v2170, 0
    %v2179 = vld [vmem:[%s1 + $0x240] sm:$0xf]
    %v2180 = vld [vmem:[%s1 + $0x244] sm:$0xf]
    %v2181 = vld [vmem:[%s1 + $0x248] sm:$0xf]
    %v2182 = vld [vmem:[%s1 + $0x24c] sm:$0xf]
    %v2183 = vld [vmem:[%s1 + $0x250] sm:$0xf]
    %v2184 = vld [vmem:[%s1 + $0x254] sm:$0xf]
    %v2185 = vld [vmem:[%s1 + $0x258] sm:$0xf]
    %v2186 = vld [vmem:[%s1 + $0x25c] sm:$0xf]
    %v2187 = vld [vmem:[%s1 + $0x260] sm:$0xf]
    %v2188 = vld [vmem:[%s1 + $0x264] sm:$0xf]
    %v2189 = vld [vmem:[%s1 + $0x268] sm:$0xf]
    %v2190 = vld [vmem:[%s1 + $0x26c] sm:$0xf]
    %v2191 = vld [vmem:[%s1 + $0x270] sm:$0xf]
    %v2192 = vld [vmem:[%s1 + $0x274] sm:$0xf]
    %v2193 = vld [vmem:[%s1 + $0x278] sm:$0xf]
    %v2194 = vld [vmem:[%s1 + $0x27c] sm:$0xf]
    %v2211 = vunpack.c.l.b16 %v2179
    %v2212 = vunpack.c.l.b16 %v2180
    %v2213 = vunpack.c.l.b16 %v2181
    %v2214 = vunpack.c.l.b16 %v2182
    %v2215 = vunpack.c.l.b16 %v2183
    %v2216 = vunpack.c.l.b16 %v2184
    %v2217 = vunpack.c.l.b16 %v2185
    %v2218 = vunpack.c.l.b16 %v2186
    %v2219 = vunpack.c.l.b16 %v2187
    %v2220 = vunpack.c.l.b16 %v2188
    %v2221 = vunpack.c.l.b16 %v2189
    %v2222 = vunpack.c.l.b16 %v2190
    %v2223 = vunpack.c.l.b16 %v2191
    %v2224 = vunpack.c.l.b16 %v2192
    %v2225 = vunpack.c.l.b16 %v2193
    %v2226 = vunpack.c.l.b16 %v2194
    %v2227 = vpack.c.b16 %v2212, %v2211
    %v2228 = vpack.c.b16 %v2214, %v2213
    %v2229 = vpack.c.b16 %v2216, %v2215
    %v2230 = vpack.c.b16 %v2218, %v2217
    %v2231 = vpack.c.b16 %v2220, %v2219
    %v2232 = vpack.c.b16 %v2222, %v2221
    %v2233 = vpack.c.b16 %v2224, %v2223
    %v2234 = vpack.c.b16 %v2226, %v2225
    %2243 = vmatprep.subr.bf16.mxu0 0
    %2244 = vmatpush1.bf16.msra.mxu0 %v2234
    %2245 = vmatprep.subr.bf16.mxu0 0
    %2246 = vmatpush1.bf16.msra.mxu0 %v2233
    %2247 = vmatprep.subr.bf16.mxu0 0
    %2248 = vmatpush1.bf16.msra.mxu0 %v2232
    %2249 = vmatprep.subr.bf16.mxu0 0
    %2250 = vmatpush1.bf16.msra.mxu0 %v2231
    %2251 = vmatprep.subr.bf16.mxu0 0
    %2252 = vmatpush1.bf16.msra.mxu0 %v2230
    %2253 = vmatprep.subr.bf16.mxu0 0
    %2254 = vmatpush1.bf16.msra.mxu0 %v2229
    %2255 = vmatprep.subr.bf16.mxu0 0
    %2256 = vmatpush1.bf16.msra.mxu0 %v2228
    %2257 = vmatprep.subr.bf16.mxu0 0
    %2258 = vmatpush1.bf16.msra.mxu0 %v2227
    %2259 = vmatprep.subr.bf16.mxu0 0
    %2260 = vmatpush2.bf16.msra.mxu0 0
    %2261 = vmatprep.subr.bf16.mxu0 0
    %2262 = vmatpush2.bf16.msra.mxu0 0
    %2263 = vmatprep.subr.bf16.mxu0 0
    %2264 = vmatpush2.bf16.msra.mxu0 0
    %2265 = vmatprep.subr.bf16.mxu0 0
    %2266 = vmatpush2.bf16.msra.mxu0 0
    %2267 = vmatprep.subr.bf16.mxu0 0
    %2268 = vmatpush2.bf16.msra.mxu0 0
    %2269 = vmatprep.subr.bf16.mxu0 0
    %2270 = vmatpush2.bf16.msra.mxu0 0
    %2271 = vmatprep.subr.bf16.mxu0 0
    %2272 = vmatpush2.bf16.msra.mxu0 0
    %2273 = vmatprep.subr.bf16.mxu0 0
    %2274 = vmatpush2.bf16.msra.mxu0 0
    %2275 = vmatprep.mubr.bf16.mxu0 0
    %2276 = vmatmul.mubr.bf16.gmra.mxu0 %v2171
    %v2277 = vpop.f32.mrf.mxu0
    %v2278 = vadd.f32 0.0, %v2277
    %v2279 = vpop.f32.mrf.mxu0
    %v2280 = vpop.f32.mrf.mxu0
    %v2281 = vadd.f32 0.0, %v2280
    %v2282 = vpop.f32.mrf.mxu0
    %2283 = vmatprep.mubr.bf16.mxu0 0
    %2284 = vmatmul.mubr.bf16.gmra.mxu0 %v2172
    %v2285 = vpop.f32.mrf.mxu0
    %v2286 = vadd.f32 0.0, %v2285
    %v2287 = vpop.f32.mrf.mxu0
    %v2288 = vpop.f32.mrf.mxu0
    %v2289 = vadd.f32 0.0, %v2288
    %v2290 = vpop.f32.mrf.mxu0
    %2291 = vmatprep.mubr.bf16.mxu0 0
    %2292 = vmatmul.mubr.bf16.gmra.mxu0 %v2173
    %v2293 = vpop.f32.mrf.mxu0
    %v2294 = vadd.f32 0.0, %v2293
    %v2295 = vpop.f32.mrf.mxu0
    %v2296 = vpop.f32.mrf.mxu0
    %v2297 = vadd.f32 0.0, %v2296
    %v2298 = vpop.f32.mrf.mxu0
    %2299 = vmatprep.mubr.bf16.mxu0 0
    %2300 = vmatmul.mubr.bf16.gmra.mxu0 %v2174
    %v2301 = vpop.f32.mrf.mxu0
    %v2302 = vadd.f32 0.0, %v2301
    %v2303 = vpop.f32.mrf.mxu0
    %v2304 = vpop.f32.mrf.mxu0
    %v2305 = vadd.f32 0.0, %v2304
    %v2306 = vpop.f32.mrf.mxu0
    %2307 = vmatprep.mubr.bf16.mxu0 0
    %2308 = vmatmul.mubr.bf16.gmra.mxu0 %v2175
    %v2309 = vpop.f32.mrf.mxu0
    %v2310 = vadd.f32 0.0, %v2309
    %v2311 = vpop.f32.mrf.mxu0
    %v2312 = vpop.f32.mrf.mxu0
    %v2313 = vadd.f32 0.0, %v2312
    %v2314 = vpop.f32.mrf.mxu0
    %2315 = vmatprep.mubr.bf16.mxu0 0
    %2316 = vmatmul.mubr.bf16.gmra.mxu0 %v2176
    %v2317 = vpop.f32.mrf.mxu0
    %v2318 = vadd.f32 0.0, %v2317
    %v2319 = vpop.f32.mrf.mxu0
    %v2320 = vpop.f32.mrf.mxu0
    %v2321 = vadd.f32 0.0, %v2320
    %v2322 = vpop.f32.mrf.mxu0
    %2323 = vmatprep.mubr.bf16.mxu0 0
    %2324 = vmatmul.mubr.bf16.gmra.mxu0 %v2177
    %v2325 = vpop.f32.mrf.mxu0
    %v2326 = vadd.f32 0.0, %v2325
    %v2327 = vpop.f32.mrf.mxu0
    %v2328 = vpop.f32.mrf.mxu0
    %v2329 = vadd.f32 0.0, %v2328
    %v2330 = vpop.f32.mrf.mxu0
    %2331 = vmatprep.mubr.bf16.mxu0 0
    %2332 = vmatmul.mubr.bf16.gmra.mxu0 %v2178
    %v2333 = vpop.f32.mrf.mxu0
    %v2334 = vadd.f32 0.0, %v2333
    %v2335 = vpop.f32.mrf.mxu0
    %v2336 = vpop.f32.mrf.mxu0
    %v2337 = vadd.f32 0.0, %v2336
    %v2338 = vpop.f32.mrf.mxu0
    %2339 = vdwg.mxu0
    %v2340 = vadd.f32 %v2109, %v2278
    %v2341 = vadd.f32 %v2110, %v2281
    %v2342 = vadd.f32 %v2111, %v2286
    %v2343 = vadd.f32 %v2112, %v2289
    %v2344 = vadd.f32 %v2113, %v2294
    %v2345 = vadd.f32 %v2114, %v2297
    %v2346 = vadd.f32 %v2115, %v2302
    %v2347 = vadd.f32 %v2116, %v2305
    %v2348 = vadd.f32 %v2117, %v2310
    %v2349 = vadd.f32 %v2118, %v2313
    %v2350 = vadd.f32 %v2119, %v2318
    %v2351 = vadd.f32 %v2120, %v2321
    %v2352 = vadd.f32 %v2121, %v2326
    %v2353 = vadd.f32 %v2122, %v2329
    %v2354 = vadd.f32 %v2123, %v2334
    %v2355 = vadd.f32 %v2124, %v2337
    %s2356 = sld [smem:[#allocation3 + $0xa]]
    %p2358 = scmp.ne.f32.partialorder %s2356, %s2356
    %s2359 = sshrl.u32 %s2356, 16
    %s2360 = sand.u32 %s2359, 1
    %s2361 = sadd.s32 32767, %s2360
    %s2362 = sadd.s32 %s2356, %s2361
    %s2363 = sand.u32 %s2362, 4294901760
    %s2364 = scalar_select %p2358, 2143289344, %s2363
    %s2366 = sshrl.u32 %s2364, 16
    %s2367 = sld [smem:[#allocation6 + $0xa]]
    %p2369 = scmp.ne.f32.partialorder %s2367, %s2367
    %s2370 = sshrl.u32 %s2367, 16
    %s2371 = sand.u32 %s2370, 1
    %s2372 = sadd.s32 32767, %s2371
    %s2373 = sadd.s32 %s2367, %s2372
    %s2374 = sand.u32 %s2373, 4294901760
    %s2375 = scalar_select %p2369, 2143289344, %s2374
    %s2377 = sshrl.u32 %s2375, 16
    %s2378 = sshll.u32 %s2366, 16
    %s2379 = sor.u32 %s2366, %s2378
    %v2380 = vstv %s2379
    %v2382 = vmul.bf16 %v70, %v2380
    %v2383 = vmul.bf16 %v71, %v2380
    %v2384 = vmul.bf16 %v72, %v2380
    %v2385 = vmul.bf16 %v73, %v2380
    %v2386 = vmul.bf16 %v74, %v2380
    %v2387 = vmul.bf16 %v75, %v2380
    %v2388 = vmul.bf16 %v76, %v2380
    %v2389 = vmul.bf16 %v77, %v2380
    %s2390 = sshll.u32 %s2377, 16
    %s2391 = sor.u32 %s2377, %s2390
    %v2392 = vstv %s2391
    %v2394 = vadd.bf16 %v2382, %v2392
    %v2395 = vadd.bf16 %v2383, %v2392
    %v2396 = vadd.bf16 %v2384, %v2392
    %v2397 = vadd.bf16 %v2385, %v2392
    %v2398 = vadd.bf16 %v2386, %v2392
    %v2399 = vadd.bf16 %v2387, %v2392
    %v2400 = vadd.bf16 %v2388, %v2392
    %v2401 = vadd.bf16 %v2389, %v2392
    %v2402 = vmax.bf16 %v2394, 0
    %v2403 = vmax.bf16 %v2395, 0
    %v2404 = vmax.bf16 %v2396, 0
    %v2405 = vmax.bf16 %v2397, 0
    %v2406 = vmax.bf16 %v2398, 0
    %v2407 = vmax.bf16 %v2399, 0
    %v2408 = vmax.bf16 %v2400, 0
    %v2409 = vmax.bf16 %v2401, 0
    %v2410 = vld [vmem:[%s1 + $0x280] sm:$0xf]
    %v2411 = vld [vmem:[%s1 + $0x284] sm:$0xf]
    %v2412 = vld [vmem:[%s1 + $0x288] sm:$0xf]
    %v2413 = vld [vmem:[%s1 + $0x28c] sm:$0xf]
    %v2414 = vld [vmem:[%s1 + $0x290] sm:$0xf]
    %v2415 = vld [vmem:[%s1 + $0x294] sm:$0xf]
    %v2416 = vld [vmem:[%s1 + $0x298] sm:$0xf]
    %v2417 = vld [vmem:[%s1 + $0x29c] sm:$0xf]
    %v2418 = vld [vmem:[%s1 + $0x2a0] sm:$0xf]
    %v2419 = vld [vmem:[%s1 + $0x2a4] sm:$0xf]
    %v2420 = vld [vmem:[%s1 + $0x2a8] sm:$0xf]
    %v2421 = vld [vmem:[%s1 + $0x2ac] sm:$0xf]
    %v2422 = vld [vmem:[%s1 + $0x2b0] sm:$0xf]
    %v2423 = vld [vmem:[%s1 + $0x2b4] sm:$0xf]
    %v2424 = vld [vmem:[%s1 + $0x2b8] sm:$0xf]
    %v2425 = vld [vmem:[%s1 + $0x2bc] sm:$0xf]
    %v2442 = vunpack.c.l.b16 %v2410
    %v2443 = vunpack.c.l.b16 %v2411
    %v2444 = vunpack.c.l.b16 %v2412
    %v2445 = vunpack.c.l.b16 %v2413
    %v2446 = vunpack.c.l.b16 %v2414
    %v2447 = vunpack.c.l.b16 %v2415
    %v2448 = vunpack.c.l.b16 %v2416
    %v2449 = vunpack.c.l.b16 %v2417
    %v2450 = vunpack.c.l.b16 %v2418
    %v2451 = vunpack.c.l.b16 %v2419
    %v2452 = vunpack.c.l.b16 %v2420
    %v2453 = vunpack.c.l.b16 %v2421
    %v2454 = vunpack.c.l.b16 %v2422
    %v2455 = vunpack.c.l.b16 %v2423
    %v2456 = vunpack.c.l.b16 %v2424
    %v2457 = vunpack.c.l.b16 %v2425
    %v2458 = vpack.c.b16 %v2443, %v2442
    %v2459 = vpack.c.b16 %v2445, %v2444
    %v2460 = vpack.c.b16 %v2447, %v2446
    %v2461 = vpack.c.b16 %v2449, %v2448
    %v2462 = vpack.c.b16 %v2451, %v2450
    %v2463 = vpack.c.b16 %v2453, %v2452
    %v2464 = vpack.c.b16 %v2455, %v2454
    %v2465 = vpack.c.b16 %v2457, %v2456
    %2474 = vmatprep.subr.bf16.mxu0 0
    %2475 = vmatpush1.bf16.msra.mxu0 %v2465
    %2476 = vmatprep.subr.bf16.mxu0 0
    %2477 = vmatpush1.bf16.msra.mxu0 %v2464
    %2478 = vmatprep.subr.bf16.mxu0 0
    %2479 = vmatpush1.bf16.msra.mxu0 %v2463
    %2480 = vmatprep.subr.bf16.mxu0 0
    %2481 = vmatpush1.bf16.msra.mxu0 %v2462
    %2482 = vmatprep.subr.bf16.mxu0 0
    %2483 = vmatpush1.bf16.msra.mxu0 %v2461
    %2484 = vmatprep.subr.bf16.mxu0 0
    %2485 = vmatpush1.bf16.msra.mxu0 %v2460
    %2486 = vmatprep.subr.bf16.mxu0 0
    %2487 = vmatpush1.bf16.msra.mxu0 %v2459
    %2488 = vmatprep.subr.bf16.mxu0 0
    %2489 = vmatpush1.bf16.msra.mxu0 %v2458
    %2490 = vmatprep.subr.bf16.mxu0 0
    %2491 = vmatpush2.bf16.msra.mxu0 0
    %2492 = vmatprep.subr.bf16.mxu0 0
    %2493 = vmatpush2.bf16.msra.mxu0 0
    %2494 = vmatprep.subr.bf16.mxu0 0
    %2495 = vmatpush2.bf16.msra.mxu0 0
    %2496 = vmatprep.subr.bf16.mxu0 0
    %2497 = vmatpush2.bf16.msra.mxu0 0
    %2498 = vmatprep.subr.bf16.mxu0 0
    %2499 = vmatpush2.bf16.msra.mxu0 0
    %2500 = vmatprep.subr.bf16.mxu0 0
    %2501 = vmatpush2.bf16.msra.mxu0 0
    %2502 = vmatprep.subr.bf16.mxu0 0
    %2503 = vmatpush2.bf16.msra.mxu0 0
    %2504 = vmatprep.subr.bf16.mxu0 0
    %2505 = vmatpush2.bf16.msra.mxu0 0
    %2506 = vmatprep.mubr.bf16.mxu0 0
    %2507 = vmatmul.mubr.bf16.gmra.mxu0 %v2402
    %v2508 = vpop.f32.mrf.mxu0
    %v2509 = vadd.f32 0.0, %v2508
    %v2510 = vpop.f32.mrf.mxu0
    %v2511 = vpop.f32.mrf.mxu0
    %v2512 = vadd.f32 0.0, %v2511
    %v2513 = vpop.f32.mrf.mxu0
    %2514 = vmatprep.mubr.bf16.mxu0 0
    %2515 = vmatmul.mubr.bf16.gmra.mxu0 %v2403
    %v2516 = vpop.f32.mrf.mxu0
    %v2517 = vadd.f32 0.0, %v2516
    %v2518 = vpop.f32.mrf.mxu0
    %v2519 = vpop.f32.mrf.mxu0
    %v2520 = vadd.f32 0.0, %v2519
    %v2521 = vpop.f32.mrf.mxu0
    %2522 = vmatprep.mubr.bf16.mxu0 0
    %2523 = vmatmul.mubr.bf16.gmra.mxu0 %v2404
    %v2524 = vpop.f32.mrf.mxu0
    %v2525 = vadd.f32 0.0, %v2524
    %v2526 = vpop.f32.mrf.mxu0
    %v2527 = vpop.f32.mrf.mxu0
    %v2528 = vadd.f32 0.0, %v2527
    %v2529 = vpop.f32.mrf.mxu0
    %2530 = vmatprep.mubr.bf16.mxu0 0
    %2531 = vmatmul.mubr.bf16.gmra.mxu0 %v2405
    %v2532 = vpop.f32.mrf.mxu0
    %v2533 = vadd.f32 0.0, %v2532
    %v2534 = vpop.f32.mrf.mxu0
    %v2535 = vpop.f32.mrf.mxu0
    %v2536 = vadd.f32 0.0, %v2535
    %v2537 = vpop.f32.mrf.mxu0
    %2538 = vmatprep.mubr.bf16.mxu0 0
    %2539 = vmatmul.mubr.bf16.gmra.mxu0 %v2406
    %v2540 = vpop.f32.mrf.mxu0
    %v2541 = vadd.f32 0.0, %v2540
    %v2542 = vpop.f32.mrf.mxu0
    %v2543 = vpop.f32.mrf.mxu0
    %v2544 = vadd.f32 0.0, %v2543
    %v2545 = vpop.f32.mrf.mxu0
    %2546 = vmatprep.mubr.bf16.mxu0 0
    %2547 = vmatmul.mubr.bf16.gmra.mxu0 %v2407
    %v2548 = vpop.f32.mrf.mxu0
    %v2549 = vadd.f32 0.0, %v2548
    %v2550 = vpop.f32.mrf.mxu0
    %v2551 = vpop.f32.mrf.mxu0
    %v2552 = vadd.f32 0.0, %v2551
    %v2553 = vpop.f32.mrf.mxu0
    %2554 = vmatprep.mubr.bf16.mxu0 0
    %2555 = vmatmul.mubr.bf16.gmra.mxu0 %v2408
    %v2556 = vpop.f32.mrf.mxu0
    %v2557 = vadd.f32 0.0, %v2556
    %v2558 = vpop.f32.mrf.mxu0
    %v2559 = vpop.f32.mrf.mxu0
    %v2560 = vadd.f32 0.0, %v2559
    %v2561 = vpop.f32.mrf.mxu0
    %2562 = vmatprep.mubr.bf16.mxu0 0
    %2563 = vmatmul.mubr.bf16.gmra.mxu0 %v2409
    %v2564 = vpop.f32.mrf.mxu0
    %v2565 = vadd.f32 0.0, %v2564
    %v2566 = vpop.f32.mrf.mxu0
    %v2567 = vpop.f32.mrf.mxu0
    %v2568 = vadd.f32 0.0, %v2567
    %v2569 = vpop.f32.mrf.mxu0
    %2570 = vdwg.mxu0
    %v2571 = vadd.f32 %v2340, %v2509
    %v2572 = vadd.f32 %v2341, %v2512
    %v2573 = vadd.f32 %v2342, %v2517
    %v2574 = vadd.f32 %v2343, %v2520
    %v2575 = vadd.f32 %v2344, %v2525
    %v2576 = vadd.f32 %v2345, %v2528
    %v2577 = vadd.f32 %v2346, %v2533
    %v2578 = vadd.f32 %v2347, %v2536
    %v2579 = vadd.f32 %v2348, %v2541
    %v2580 = vadd.f32 %v2349, %v2544
    %v2581 = vadd.f32 %v2350, %v2549
    %v2582 = vadd.f32 %v2351, %v2552
    %v2583 = vadd.f32 %v2352, %v2557
    %v2584 = vadd.f32 %v2353, %v2560
    %v2585 = vadd.f32 %v2354, %v2565
    %v2586 = vadd.f32 %v2355, %v2568
    %s2587 = sld [smem:[#allocation3 + $0xb]]
    %p2589 = scmp.ne.f32.partialorder %s2587, %s2587
    %s2590 = sshrl.u32 %s2587, 16
    %s2591 = sand.u32 %s2590, 1
    %s2592 = sadd.s32 32767, %s2591
    %s2593 = sadd.s32 %s2587, %s2592
    %s2594 = sand.u32 %s2593, 4294901760
    %s2595 = scalar_select %p2589, 2143289344, %s2594
    %s2597 = sshrl.u32 %s2595, 16
    %s2598 = sld [smem:[#allocation6 + $0xb]]
    %p2600 = scmp.ne.f32.partialorder %s2598, %s2598
    %s2601 = sshrl.u32 %s2598, 16
    %s2602 = sand.u32 %s2601, 1
    %s2603 = sadd.s32 32767, %s2602
    %s2604 = sadd.s32 %s2598, %s2603
    %s2605 = sand.u32 %s2604, 4294901760
    %s2606 = scalar_select %p2600, 2143289344, %s2605
    %s2608 = sshrl.u32 %s2606, 16
    %s2609 = sshll.u32 %s2597, 16
    %s2610 = sor.u32 %s2597, %s2609
    %v2611 = vstv %s2610
    %v2613 = vmul.bf16 %v70, %v2611
    %v2614 = vmul.bf16 %v71, %v2611
    %v2615 = vmul.bf16 %v72, %v2611
    %v2616 = vmul.bf16 %v73, %v2611
    %v2617 = vmul.bf16 %v74, %v2611
    %v2618 = vmul.bf16 %v75, %v2611
    %v2619 = vmul.bf16 %v76, %v2611
    %v2620 = vmul.bf16 %v77, %v2611
    %s2621 = sshll.u32 %s2608, 16
    %s2622 = sor.u32 %s2608, %s2621
    %v2623 = vstv %s2622
    %v2625 = vadd.bf16 %v2613, %v2623
    %v2626 = vadd.bf16 %v2614, %v2623
    %v2627 = vadd.bf16 %v2615, %v2623
    %v2628 = vadd.bf16 %v2616, %v2623
    %v2629 = vadd.bf16 %v2617, %v2623
    %v2630 = vadd.bf16 %v2618, %v2623
    %v2631 = vadd.bf16 %v2619, %v2623
    %v2632 = vadd.bf16 %v2620, %v2623
    %v2633 = vmax.bf16 %v2625, 0
    %v2634 = vmax.bf16 %v2626, 0
    %v2635 = vmax.bf16 %v2627, 0
    %v2636 = vmax.bf16 %v2628, 0
    %v2637 = vmax.bf16 %v2629, 0
    %v2638 = vmax.bf16 %v2630, 0
    %v2639 = vmax.bf16 %v2631, 0
    %v2640 = vmax.bf16 %v2632, 0
    %v2641 = vld [vmem:[%s1 + $0x2c0] sm:$0xf]
    %v2642 = vld [vmem:[%s1 + $0x2c4] sm:$0xf]
    %v2643 = vld [vmem:[%s1 + $0x2c8] sm:$0xf]
    %v2644 = vld [vmem:[%s1 + $0x2cc] sm:$0xf]
    %v2645 = vld [vmem:[%s1 + $0x2d0] sm:$0xf]
    %v2646 = vld [vmem:[%s1 + $0x2d4] sm:$0xf]
    %v2647 = vld [vmem:[%s1 + $0x2d8] sm:$0xf]
    %v2648 = vld [vmem:[%s1 + $0x2dc] sm:$0xf]
    %v2649 = vld [vmem:[%s1 + $0x2e0] sm:$0xf]
    %v2650 = vld [vmem:[%s1 + $0x2e4] sm:$0xf]
    %v2651 = vld [vmem:[%s1 + $0x2e8] sm:$0xf]
    %v2652 = vld [vmem:[%s1 + $0x2ec] sm:$0xf]
    %v2653 = vld [vmem:[%s1 + $0x2f0] sm:$0xf]
    %v2654 = vld [vmem:[%s1 + $0x2f4] sm:$0xf]
    %v2655 = vld [vmem:[%s1 + $0x2f8] sm:$0xf]
    %v2656 = vld [vmem:[%s1 + $0x2fc] sm:$0xf]
    %v2673 = vunpack.c.l.b16 %v2641
    %v2674 = vunpack.c.l.b16 %v2642
    %v2675 = vunpack.c.l.b16 %v2643
    %v2676 = vunpack.c.l.b16 %v2644
    %v2677 = vunpack.c.l.b16 %v2645
    %v2678 = vunpack.c.l.b16 %v2646
    %v2679 = vunpack.c.l.b16 %v2647
    %v2680 = vunpack.c.l.b16 %v2648
    %v2681 = vunpack.c.l.b16 %v2649
    %v2682 = vunpack.c.l.b16 %v2650
    %v2683 = vunpack.c.l.b16 %v2651
    %v2684 = vunpack.c.l.b16 %v2652
    %v2685 = vunpack.c.l.b16 %v2653
    %v2686 = vunpack.c.l.b16 %v2654
    %v2687 = vunpack.c.l.b16 %v2655
    %v2688 = vunpack.c.l.b16 %v2656
    %v2689 = vpack.c.b16 %v2674, %v2673
    %v2690 = vpack.c.b16 %v2676, %v2675
    %v2691 = vpack.c.b16 %v2678, %v2677
    %v2692 = vpack.c.b16 %v2680, %v2679
    %v2693 = vpack.c.b16 %v2682, %v2681
    %v2694 = vpack.c.b16 %v2684, %v2683
    %v2695 = vpack.c.b16 %v2686, %v2685
    %v2696 = vpack.c.b16 %v2688, %v2687
    %2705 = vmatprep.subr.bf16.mxu0 0
    %2706 = vmatpush1.bf16.msra.mxu0 %v2696
    %2707 = vmatprep.subr.bf16.mxu0 0
    %2708 = vmatpush1.bf16.msra.mxu0 %v2695
    %2709 = vmatprep.subr.bf16.mxu0 0
    %2710 = vmatpush1.bf16.msra.mxu0 %v2694
    %2711 = vmatprep.subr.bf16.mxu0 0
    %2712 = vmatpush1.bf16.msra.mxu0 %v2693
    %2713 = vmatprep.subr.bf16.mxu0 0
    %2714 = vmatpush1.bf16.msra.mxu0 %v2692
    %2715 = vmatprep.subr.bf16.mxu0 0
    %2716 = vmatpush1.bf16.msra.mxu0 %v2691
    %2717 = vmatprep.subr.bf16.mxu0 0
    %2718 = vmatpush1.bf16.msra.mxu0 %v2690
    %2719 = vmatprep.subr.bf16.mxu0 0
    %2720 = vmatpush1.bf16.msra.mxu0 %v2689
    %2721 = vmatprep.subr.bf16.mxu0 0
    %2722 = vmatpush2.bf16.msra.mxu0 0
    %2723 = vmatprep.subr.bf16.mxu0 0
    %2724 = vmatpush2.bf16.msra.mxu0 0
    %2725 = vmatprep.subr.bf16.mxu0 0
    %2726 = vmatpush2.bf16.msra.mxu0 0
    %2727 = vmatprep.subr.bf16.mxu0 0
    %2728 = vmatpush2.bf16.msra.mxu0 0
    %2729 = vmatprep.subr.bf16.mxu0 0
    %2730 = vmatpush2.bf16.msra.mxu0 0
    %2731 = vmatprep.subr.bf16.mxu0 0
    %2732 = vmatpush2.bf16.msra.mxu0 0
    %2733 = vmatprep.subr.bf16.mxu0 0
    %2734 = vmatpush2.bf16.msra.mxu0 0
    %2735 = vmatprep.subr.bf16.mxu0 0
    %2736 = vmatpush2.bf16.msra.mxu0 0
    %2737 = vmatprep.mubr.bf16.mxu0 0
    %2738 = vmatmul.mubr.bf16.gmra.mxu0 %v2633
    %v2739 = vpop.f32.mrf.mxu0
    %v2740 = vadd.f32 0.0, %v2739
    %v2741 = vpop.f32.mrf.mxu0
    %v2742 = vpop.f32.mrf.mxu0
    %v2743 = vadd.f32 0.0, %v2742
    %v2744 = vpop.f32.mrf.mxu0
    %2745 = vmatprep.mubr.bf16.mxu0 0
    %2746 = vmatmul.mubr.bf16.gmra.mxu0 %v2634
    %v2747 = vpop.f32.mrf.mxu0
    %v2748 = vadd.f32 0.0, %v2747
    %v2749 = vpop.f32.mrf.mxu0
    %v2750 = vpop.f32.mrf.mxu0
    %v2751 = vadd.f32 0.0, %v2750
    %v2752 = vpop.f32.mrf.mxu0
    %2753 = vmatprep.mubr.bf16.mxu0 0
    %2754 = vmatmul.mubr.bf16.gmra.mxu0 %v2635
    %v2755 = vpop.f32.mrf.mxu0
    %v2756 = vadd.f32 0.0, %v2755
    %v2757 = vpop.f32.mrf.mxu0
    %v2758 = vpop.f32.mrf.mxu0
    %v2759 = vadd.f32 0.0, %v2758
    %v2760 = vpop.f32.mrf.mxu0
    %2761 = vmatprep.mubr.bf16.mxu0 0
    %2762 = vmatmul.mubr.bf16.gmra.mxu0 %v2636
    %v2763 = vpop.f32.mrf.mxu0
    %v2764 = vadd.f32 0.0, %v2763
    %v2765 = vpop.f32.mrf.mxu0
    %v2766 = vpop.f32.mrf.mxu0
    %v2767 = vadd.f32 0.0, %v2766
    %v2768 = vpop.f32.mrf.mxu0
    %2769 = vmatprep.mubr.bf16.mxu0 0
    %2770 = vmatmul.mubr.bf16.gmra.mxu0 %v2637
    %v2771 = vpop.f32.mrf.mxu0
    %v2772 = vadd.f32 0.0, %v2771
    %v2773 = vpop.f32.mrf.mxu0
    %v2774 = vpop.f32.mrf.mxu0
    %v2775 = vadd.f32 0.0, %v2774
    %v2776 = vpop.f32.mrf.mxu0
    %2777 = vmatprep.mubr.bf16.mxu0 0
    %2778 = vmatmul.mubr.bf16.gmra.mxu0 %v2638
    %v2779 = vpop.f32.mrf.mxu0
    %v2780 = vadd.f32 0.0, %v2779
    %v2781 = vpop.f32.mrf.mxu0
    %v2782 = vpop.f32.mrf.mxu0
    %v2783 = vadd.f32 0.0, %v2782
    %v2784 = vpop.f32.mrf.mxu0
    %2785 = vmatprep.mubr.bf16.mxu0 0
    %2786 = vmatmul.mubr.bf16.gmra.mxu0 %v2639
    %v2787 = vpop.f32.mrf.mxu0
    %v2788 = vadd.f32 0.0, %v2787
    %v2789 = vpop.f32.mrf.mxu0
    %v2790 = vpop.f32.mrf.mxu0
    %v2791 = vadd.f32 0.0, %v2790
    %v2792 = vpop.f32.mrf.mxu0
    %2793 = vmatprep.mubr.bf16.mxu0 0
    %2794 = vmatmul.mubr.bf16.gmra.mxu0 %v2640
    %v2795 = vpop.f32.mrf.mxu0
    %v2796 = vadd.f32 0.0, %v2795
    %v2797 = vpop.f32.mrf.mxu0
    %v2798 = vpop.f32.mrf.mxu0
    %v2799 = vadd.f32 0.0, %v2798
    %v2800 = vpop.f32.mrf.mxu0
    %2801 = vdwg.mxu0
    %v2802 = vadd.f32 %v2571, %v2740
    %v2803 = vadd.f32 %v2572, %v2743
    %v2804 = vadd.f32 %v2573, %v2748
    %v2805 = vadd.f32 %v2574, %v2751
    %v2806 = vadd.f32 %v2575, %v2756
    %v2807 = vadd.f32 %v2576, %v2759
    %v2808 = vadd.f32 %v2577, %v2764
    %v2809 = vadd.f32 %v2578, %v2767
    %v2810 = vadd.f32 %v2579, %v2772
    %v2811 = vadd.f32 %v2580, %v2775
    %v2812 = vadd.f32 %v2581, %v2780
    %v2813 = vadd.f32 %v2582, %v2783
    %v2814 = vadd.f32 %v2583, %v2788
    %v2815 = vadd.f32 %v2584, %v2791
    %v2816 = vadd.f32 %v2585, %v2796
    %v2817 = vadd.f32 %v2586, %v2799
    %s2818 = sld [smem:[#allocation3 + $0xc]]
    %p2820 = scmp.ne.f32.partialorder %s2818, %s2818
    %s2821 = sshrl.u32 %s2818, 16
    %s2822 = sand.u32 %s2821, 1
    %s2823 = sadd.s32 32767, %s2822
    %s2824 = sadd.s32 %s2818, %s2823
    %s2825 = sand.u32 %s2824, 4294901760
    %s2826 = scalar_select %p2820, 2143289344, %s2825
    %s2828 = sshrl.u32 %s2826, 16
    %s2829 = sld [smem:[#allocation6 + $0xc]]
    %p2831 = scmp.ne.f32.partialorder %s2829, %s2829
    %s2832 = sshrl.u32 %s2829, 16
    %s2833 = sand.u32 %s2832, 1
    %s2834 = sadd.s32 32767, %s2833
    %s2835 = sadd.s32 %s2829, %s2834
    %s2836 = sand.u32 %s2835, 4294901760
    %s2837 = scalar_select %p2831, 2143289344, %s2836
    %s2839 = sshrl.u32 %s2837, 16
    %s2840 = sshll.u32 %s2828, 16
    %s2841 = sor.u32 %s2828, %s2840
    %v2842 = vstv %s2841
    %v2844 = vmul.bf16 %v70, %v2842
    %v2845 = vmul.bf16 %v71, %v2842
    %v2846 = vmul.bf16 %v72, %v2842
    %v2847 = vmul.bf16 %v73, %v2842
    %v2848 = vmul.bf16 %v74, %v2842
    %v2849 = vmul.bf16 %v75, %v2842
    %v2850 = vmul.bf16 %v76, %v2842
    %v2851 = vmul.bf16 %v77, %v2842
    %s2852 = sshll.u32 %s2839, 16
    %s2853 = sor.u32 %s2839, %s2852
    %v2854 = vstv %s2853
    %v2856 = vadd.bf16 %v2844, %v2854
    %v2857 = vadd.bf16 %v2845, %v2854
    %v2858 = vadd.bf16 %v2846, %v2854
    %v2859 = vadd.bf16 %v2847, %v2854
    %v2860 = vadd.bf16 %v2848, %v2854
    %v2861 = vadd.bf16 %v2849, %v2854
    %v2862 = vadd.bf16 %v2850, %v2854
    %v2863 = vadd.bf16 %v2851, %v2854
    %v2864 = vmax.bf16 %v2856, 0
    %v2865 = vmax.bf16 %v2857, 0
    %v2866 = vmax.bf16 %v2858, 0
    %v2867 = vmax.bf16 %v2859, 0
    %v2868 = vmax.bf16 %v2860, 0
    %v2869 = vmax.bf16 %v2861, 0
    %v2870 = vmax.bf16 %v2862, 0
    %v2871 = vmax.bf16 %v2863, 0
    %v2872 = vld [vmem:[%s1 + $0x300] sm:$0xf]
    %v2873 = vld [vmem:[%s1 + $0x304] sm:$0xf]
    %v2874 = vld [vmem:[%s1 + $0x308] sm:$0xf]
    %v2875 = vld [vmem:[%s1 + $0x30c] sm:$0xf]
    %v2876 = vld [vmem:[%s1 + $0x310] sm:$0xf]
    %v2877 = vld [vmem:[%s1 + $0x314] sm:$0xf]
    %v2878 = vld [vmem:[%s1 + $0x318] sm:$0xf]
    %v2879 = vld [vmem:[%s1 + $0x31c] sm:$0xf]
    %v2880 = vld [vmem:[%s1 + $0x320] sm:$0xf]
    %v2881 = vld [vmem:[%s1 + $0x324] sm:$0xf]
    %v2882 = vld [vmem:[%s1 + $0x328] sm:$0xf]
    %v2883 = vld [vmem:[%s1 + $0x32c] sm:$0xf]
    %v2884 = vld [vmem:[%s1 + $0x330] sm:$0xf]
    %v2885 = vld [vmem:[%s1 + $0x334] sm:$0xf]
    %v2886 = vld [vmem:[%s1 + $0x338] sm:$0xf]
    %v2887 = vld [vmem:[%s1 + $0x33c] sm:$0xf]
    %v2904 = vunpack.c.l.b16 %v2872
    %v2905 = vunpack.c.l.b16 %v2873
    %v2906 = vunpack.c.l.b16 %v2874
    %v2907 = vunpack.c.l.b16 %v2875
    %v2908 = vunpack.c.l.b16 %v2876
    %v2909 = vunpack.c.l.b16 %v2877
    %v2910 = vunpack.c.l.b16 %v2878
    %v2911 = vunpack.c.l.b16 %v2879
    %v2912 = vunpack.c.l.b16 %v2880
    %v2913 = vunpack.c.l.b16 %v2881
    %v2914 = vunpack.c.l.b16 %v2882
    %v2915 = vunpack.c.l.b16 %v2883
    %v2916 = vunpack.c.l.b16 %v2884
    %v2917 = vunpack.c.l.b16 %v2885
    %v2918 = vunpack.c.l.b16 %v2886
    %v2919 = vunpack.c.l.b16 %v2887
    %v2920 = vpack.c.b16 %v2905, %v2904
    %v2921 = vpack.c.b16 %v2907, %v2906
    %v2922 = vpack.c.b16 %v2909, %v2908
    %v2923 = vpack.c.b16 %v2911, %v2910
    %v2924 = vpack.c.b16 %v2913, %v2912
    %v2925 = vpack.c.b16 %v2915, %v2914
    %v2926 = vpack.c.b16 %v2917, %v2916
    %v2927 = vpack.c.b16 %v2919, %v2918
    %2936 = vmatprep.subr.bf16.mxu0 0
    %2937 = vmatpush1.bf16.msra.mxu0 %v2927
    %2938 = vmatprep.subr.bf16.mxu0 0
    %2939 = vmatpush1.bf16.msra.mxu0 %v2926
    %2940 = vmatprep.subr.bf16.mxu0 0
    %2941 = vmatpush1.bf16.msra.mxu0 %v2925
    %2942 = vmatprep.subr.bf16.mxu0 0
    %2943 = vmatpush1.bf16.msra.mxu0 %v2924
    %2944 = vmatprep.subr.bf16.mxu0 0
    %2945 = vmatpush1.bf16.msra.mxu0 %v2923
    %2946 = vmatprep.subr.bf16.mxu0 0
    %2947 = vmatpush1.bf16.msra.mxu0 %v2922
    %2948 = vmatprep.subr.bf16.mxu0 0
    %2949 = vmatpush1.bf16.msra.mxu0 %v2921
    %2950 = vmatprep.subr.bf16.mxu0 0
    %2951 = vmatpush1.bf16.msra.mxu0 %v2920
    %2952 = vmatprep.subr.bf16.mxu0 0
    %2953 = vmatpush2.bf16.msra.mxu0 0
    %2954 = vmatprep.subr.bf16.mxu0 0
    %2955 = vmatpush2.bf16.msra.mxu0 0
    %2956 = vmatprep.subr.bf16.mxu0 0
    %2957 = vmatpush2.bf16.msra.mxu0 0
    %2958 = vmatprep.subr.bf16.mxu0 0
    %2959 = vmatpush2.bf16.msra.mxu0 0
    %2960 = vmatprep.subr.bf16.mxu0 0
    %2961 = vmatpush2.bf16.msra.mxu0 0
    %2962 = vmatprep.subr.bf16.mxu0 0
    %2963 = vmatpush2.bf16.msra.mxu0 0
    %2964 = vmatprep.subr.bf16.mxu0 0
    %2965 = vmatpush2.bf16.msra.mxu0 0
    %2966 = vmatprep.subr.bf16.mxu0 0
    %2967 = vmatpush2.bf16.msra.mxu0 0
    %2968 = vmatprep.mubr.bf16.mxu0 0
    %2969 = vmatmul.mubr.bf16.gmra.mxu0 %v2864
    %v2970 = vpop.f32.mrf.mxu0
    %v2971 = vadd.f32 0.0, %v2970
    %v2972 = vpop.f32.mrf.mxu0
    %v2973 = vpop.f32.mrf.mxu0
    %v2974 = vadd.f32 0.0, %v2973
    %v2975 = vpop.f32.mrf.mxu0
    %2976 = vmatprep.mubr.bf16.mxu0 0
    %2977 = vmatmul.mubr.bf16.gmra.mxu0 %v2865
    %v2978 = vpop.f32.mrf.mxu0
    %v2979 = vadd.f32 0.0, %v2978
    %v2980 = vpop.f32.mrf.mxu0
    %v2981 = vpop.f32.mrf.mxu0
    %v2982 = vadd.f32 0.0, %v2981
    %v2983 = vpop.f32.mrf.mxu0
    %2984 = vmatprep.mubr.bf16.mxu0 0
    %2985 = vmatmul.mubr.bf16.gmra.mxu0 %v2866
    %v2986 = vpop.f32.mrf.mxu0
    %v2987 = vadd.f32 0.0, %v2986
    %v2988 = vpop.f32.mrf.mxu0
    %v2989 = vpop.f32.mrf.mxu0
    %v2990 = vadd.f32 0.0, %v2989
    %v2991 = vpop.f32.mrf.mxu0
    %2992 = vmatprep.mubr.bf16.mxu0 0
    %2993 = vmatmul.mubr.bf16.gmra.mxu0 %v2867
    %v2994 = vpop.f32.mrf.mxu0
    %v2995 = vadd.f32 0.0, %v2994
    %v2996 = vpop.f32.mrf.mxu0
    %v2997 = vpop.f32.mrf.mxu0
    %v2998 = vadd.f32 0.0, %v2997
    %v2999 = vpop.f32.mrf.mxu0
    %3000 = vmatprep.mubr.bf16.mxu0 0
    %3001 = vmatmul.mubr.bf16.gmra.mxu0 %v2868
    %v3002 = vpop.f32.mrf.mxu0
    %v3003 = vadd.f32 0.0, %v3002
    %v3004 = vpop.f32.mrf.mxu0
    %v3005 = vpop.f32.mrf.mxu0
    %v3006 = vadd.f32 0.0, %v3005
    %v3007 = vpop.f32.mrf.mxu0
    %3008 = vmatprep.mubr.bf16.mxu0 0
    %3009 = vmatmul.mubr.bf16.gmra.mxu0 %v2869
    %v3010 = vpop.f32.mrf.mxu0
    %v3011 = vadd.f32 0.0, %v3010
    %v3012 = vpop.f32.mrf.mxu0
    %v3013 = vpop.f32.mrf.mxu0
    %v3014 = vadd.f32 0.0, %v3013
    %v3015 = vpop.f32.mrf.mxu0
    %3016 = vmatprep.mubr.bf16.mxu0 0
    %3017 = vmatmul.mubr.bf16.gmra.mxu0 %v2870
    %v3018 = vpop.f32.mrf.mxu0
    %v3019 = vadd.f32 0.0, %v3018
    %v3020 = vpop.f32.mrf.mxu0
    %v3021 = vpop.f32.mrf.mxu0
    %v3022 = vadd.f32 0.0, %v3021
    %v3023 = vpop.f32.mrf.mxu0
    %3024 = vmatprep.mubr.bf16.mxu0 0
    %3025 = vmatmul.mubr.bf16.gmra.mxu0 %v2871
    %v3026 = vpop.f32.mrf.mxu0
    %v3027 = vadd.f32 0.0, %v3026
    %v3028 = vpop.f32.mrf.mxu0
    %v3029 = vpop.f32.mrf.mxu0
    %v3030 = vadd.f32 0.0, %v3029
    %v3031 = vpop.f32.mrf.mxu0
    %3032 = vdwg.mxu0
    %v3033 = vadd.f32 %v2802, %v2971
    %v3034 = vadd.f32 %v2803, %v2974
    %v3035 = vadd.f32 %v2804, %v2979
    %v3036 = vadd.f32 %v2805, %v2982
    %v3037 = vadd.f32 %v2806, %v2987
    %v3038 = vadd.f32 %v2807, %v2990
    %v3039 = vadd.f32 %v2808, %v2995
    %v3040 = vadd.f32 %v2809, %v2998
    %v3041 = vadd.f32 %v2810, %v3003
    %v3042 = vadd.f32 %v2811, %v3006
    %v3043 = vadd.f32 %v2812, %v3011
    %v3044 = vadd.f32 %v2813, %v3014
    %v3045 = vadd.f32 %v2814, %v3019
    %v3046 = vadd.f32 %v2815, %v3022
    %v3047 = vadd.f32 %v2816, %v3027
    %v3048 = vadd.f32 %v2817, %v3030
    %s3049 = sld [smem:[#allocation3 + $0xd]]
    %p3051 = scmp.ne.f32.partialorder %s3049, %s3049
    %s3052 = sshrl.u32 %s3049, 16
    %s3053 = sand.u32 %s3052, 1
    %s3054 = sadd.s32 32767, %s3053
    %s3055 = sadd.s32 %s3049, %s3054
    %s3056 = sand.u32 %s3055, 4294901760
    %s3057 = scalar_select %p3051, 2143289344, %s3056
    %s3059 = sshrl.u32 %s3057, 16
    %s3060 = sld [smem:[#allocation6 + $0xd]]
    %p3062 = scmp.ne.f32.partialorder %s3060, %s3060
    %s3063 = sshrl.u32 %s3060, 16
    %s3064 = sand.u32 %s3063, 1
    %s3065 = sadd.s32 32767, %s3064
    %s3066 = sadd.s32 %s3060, %s3065
    %s3067 = sand.u32 %s3066, 4294901760
    %s3068 = scalar_select %p3062, 2143289344, %s3067
    %s3070 = sshrl.u32 %s3068, 16
    %s3071 = sshll.u32 %s3059, 16
    %s3072 = sor.u32 %s3059, %s3071
    %v3073 = vstv %s3072
    %v3075 = vmul.bf16 %v70, %v3073
    %v3076 = vmul.bf16 %v71, %v3073
    %v3077 = vmul.bf16 %v72, %v3073
    %v3078 = vmul.bf16 %v73, %v3073
    %v3079 = vmul.bf16 %v74, %v3073
    %v3080 = vmul.bf16 %v75, %v3073
    %v3081 = vmul.bf16 %v76, %v3073
    %v3082 = vmul.bf16 %v77, %v3073
    %s3083 = sshll.u32 %s3070, 16
    %s3084 = sor.u32 %s3070, %s3083
    %v3085 = vstv %s3084
    %v3087 = vadd.bf16 %v3075, %v3085
    %v3088 = vadd.bf16 %v3076, %v3085
    %v3089 = vadd.bf16 %v3077, %v3085
    %v3090 = vadd.bf16 %v3078, %v3085
    %v3091 = vadd.bf16 %v3079, %v3085
    %v3092 = vadd.bf16 %v3080, %v3085
    %v3093 = vadd.bf16 %v3081, %v3085
    %v3094 = vadd.bf16 %v3082, %v3085
    %v3095 = vmax.bf16 %v3087, 0
    %v3096 = vmax.bf16 %v3088, 0
    %v3097 = vmax.bf16 %v3089, 0
    %v3098 = vmax.bf16 %v3090, 0
    %v3099 = vmax.bf16 %v3091, 0
    %v3100 = vmax.bf16 %v3092, 0
    %v3101 = vmax.bf16 %v3093, 0
    %v3102 = vmax.bf16 %v3094, 0
    %v3103 = vld [vmem:[%s1 + $0x340] sm:$0xf]
    %v3104 = vld [vmem:[%s1 + $0x344] sm:$0xf]
    %v3105 = vld [vmem:[%s1 + $0x348] sm:$0xf]
    %v3106 = vld [vmem:[%s1 + $0x34c] sm:$0xf]
    %v3107 = vld [vmem:[%s1 + $0x350] sm:$0xf]
    %v3108 = vld [vmem:[%s1 + $0x354] sm:$0xf]
    %v3109 = vld [vmem:[%s1 + $0x358] sm:$0xf]
    %v3110 = vld [vmem:[%s1 + $0x35c] sm:$0xf]
    %v3111 = vld [vmem:[%s1 + $0x360] sm:$0xf]
    %v3112 = vld [vmem:[%s1 + $0x364] sm:$0xf]
    %v3113 = vld [vmem:[%s1 + $0x368] sm:$0xf]
    %v3114 = vld [vmem:[%s1 + $0x36c] sm:$0xf]
    %v3115 = vld [vmem:[%s1 + $0x370] sm:$0xf]
    %v3116 = vld [vmem:[%s1 + $0x374] sm:$0xf]
    %v3117 = vld [vmem:[%s1 + $0x378] sm:$0xf]
    %v3118 = vld [vmem:[%s1 + $0x37c] sm:$0xf]
    %v3135 = vunpack.c.l.b16 %v3103
    %v3136 = vunpack.c.l.b16 %v3104
    %v3137 = vunpack.c.l.b16 %v3105
    %v3138 = vunpack.c.l.b16 %v3106
    %v3139 = vunpack.c.l.b16 %v3107
    %v3140 = vunpack.c.l.b16 %v3108
    %v3141 = vunpack.c.l.b16 %v3109
    %v3142 = vunpack.c.l.b16 %v3110
    %v3143 = vunpack.c.l.b16 %v3111
    %v3144 = vunpack.c.l.b16 %v3112
    %v3145 = vunpack.c.l.b16 %v3113
    %v3146 = vunpack.c.l.b16 %v3114
    %v3147 = vunpack.c.l.b16 %v3115
    %v3148 = vunpack.c.l.b16 %v3116
    %v3149 = vunpack.c.l.b16 %v3117
    %v3150 = vunpack.c.l.b16 %v3118
    %v3151 = vpack.c.b16 %v3136, %v3135
    %v3152 = vpack.c.b16 %v3138, %v3137
    %v3153 = vpack.c.b16 %v3140, %v3139
    %v3154 = vpack.c.b16 %v3142, %v3141
    %v3155 = vpack.c.b16 %v3144, %v3143
    %v3156 = vpack.c.b16 %v3146, %v3145
    %v3157 = vpack.c.b16 %v3148, %v3147
    %v3158 = vpack.c.b16 %v3150, %v3149
    %3167 = vmatprep.subr.bf16.mxu0 0
    %3168 = vmatpush1.bf16.msra.mxu0 %v3158
    %3169 = vmatprep.subr.bf16.mxu0 0
    %3170 = vmatpush1.bf16.msra.mxu0 %v3157
    %3171 = vmatprep.subr.bf16.mxu0 0
    %3172 = vmatpush1.bf16.msra.mxu0 %v3156
    %3173 = vmatprep.subr.bf16.mxu0 0
    %3174 = vmatpush1.bf16.msra.mxu0 %v3155
    %3175 = vmatprep.subr.bf16.mxu0 0
    %3176 = vmatpush1.bf16.msra.mxu0 %v3154
    %3177 = vmatprep.subr.bf16.mxu0 0
    %3178 = vmatpush1.bf16.msra.mxu0 %v3153
    %3179 = vmatprep.subr.bf16.mxu0 0
    %3180 = vmatpush1.bf16.msra.mxu0 %v3152
    %3181 = vmatprep.subr.bf16.mxu0 0
    %3182 = vmatpush1.bf16.msra.mxu0 %v3151
    %3183 = vmatprep.subr.bf16.mxu0 0
    %3184 = vmatpush2.bf16.msra.mxu0 0
    %3185 = vmatprep.subr.bf16.mxu0 0
    %3186 = vmatpush2.bf16.msra.mxu0 0
    %3187 = vmatprep.subr.bf16.mxu0 0
    %3188 = vmatpush2.bf16.msra.mxu0 0
    %3189 = vmatprep.subr.bf16.mxu0 0
    %3190 = vmatpush2.bf16.msra.mxu0 0
    %3191 = vmatprep.subr.bf16.mxu0 0
    %3192 = vmatpush2.bf16.msra.mxu0 0
    %3193 = vmatprep.subr.bf16.mxu0 0
    %3194 = vmatpush2.bf16.msra.mxu0 0
    %3195 = vmatprep.subr.bf16.mxu0 0
    %3196 = vmatpush2.bf16.msra.mxu0 0
    %3197 = vmatprep.subr.bf16.mxu0 0
    %3198 = vmatpush2.bf16.msra.mxu0 0
    %3199 = vmatprep.mubr.bf16.mxu0 0
    %3200 = vmatmul.mubr.bf16.gmra.mxu0 %v3095
    %v3201 = vpop.f32.mrf.mxu0
    %v3202 = vadd.f32 0.0, %v3201
    %v3203 = vpop.f32.mrf.mxu0
    %v3204 = vpop.f32.mrf.mxu0
    %v3205 = vadd.f32 0.0, %v3204
    %v3206 = vpop.f32.mrf.mxu0
    %3207 = vmatprep.mubr.bf16.mxu0 0
    %3208 = vmatmul.mubr.bf16.gmra.mxu0 %v3096
    %v3209 = vpop.f32.mrf.mxu0
    %v3210 = vadd.f32 0.0, %v3209
    %v3211 = vpop.f32.mrf.mxu0
    %v3212 = vpop.f32.mrf.mxu0
    %v3213 = vadd.f32 0.0, %v3212
    %v3214 = vpop.f32.mrf.mxu0
    %3215 = vmatprep.mubr.bf16.mxu0 0
    %3216 = vmatmul.mubr.bf16.gmra.mxu0 %v3097
    %v3217 = vpop.f32.mrf.mxu0
    %v3218 = vadd.f32 0.0, %v3217
    %v3219 = vpop.f32.mrf.mxu0
    %v3220 = vpop.f32.mrf.mxu0
    %v3221 = vadd.f32 0.0, %v3220
    %v3222 = vpop.f32.mrf.mxu0
    %3223 = vmatprep.mubr.bf16.mxu0 0
    %3224 = vmatmul.mubr.bf16.gmra.mxu0 %v3098
    %v3225 = vpop.f32.mrf.mxu0
    %v3226 = vadd.f32 0.0, %v3225
    %v3227 = vpop.f32.mrf.mxu0
    %v3228 = vpop.f32.mrf.mxu0
    %v3229 = vadd.f32 0.0, %v3228
    %v3230 = vpop.f32.mrf.mxu0
    %3231 = vmatprep.mubr.bf16.mxu0 0
    %3232 = vmatmul.mubr.bf16.gmra.mxu0 %v3099
    %v3233 = vpop.f32.mrf.mxu0
    %v3234 = vadd.f32 0.0, %v3233
    %v3235 = vpop.f32.mrf.mxu0
    %v3236 = vpop.f32.mrf.mxu0
    %v3237 = vadd.f32 0.0, %v3236
    %v3238 = vpop.f32.mrf.mxu0
    %3239 = vmatprep.mubr.bf16.mxu0 0
    %3240 = vmatmul.mubr.bf16.gmra.mxu0 %v3100
    %v3241 = vpop.f32.mrf.mxu0
    %v3242 = vadd.f32 0.0, %v3241
    %v3243 = vpop.f32.mrf.mxu0
    %v3244 = vpop.f32.mrf.mxu0
    %v3245 = vadd.f32 0.0, %v3244
    %v3246 = vpop.f32.mrf.mxu0
    %3247 = vmatprep.mubr.bf16.mxu0 0
    %3248 = vmatmul.mubr.bf16.gmra.mxu0 %v3101
    %v3249 = vpop.f32.mrf.mxu0
    %v3250 = vadd.f32 0.0, %v3249
    %v3251 = vpop.f32.mrf.mxu0
    %v3252 = vpop.f32.mrf.mxu0
    %v3253 = vadd.f32 0.0, %v3252
    %v3254 = vpop.f32.mrf.mxu0
    %3255 = vmatprep.mubr.bf16.mxu0 0
    %3256 = vmatmul.mubr.bf16.gmra.mxu0 %v3102
    %v3257 = vpop.f32.mrf.mxu0
    %v3258 = vadd.f32 0.0, %v3257
    %v3259 = vpop.f32.mrf.mxu0
    %v3260 = vpop.f32.mrf.mxu0
    %v3261 = vadd.f32 0.0, %v3260
    %v3262 = vpop.f32.mrf.mxu0
    %3263 = vdwg.mxu0
    %v3264 = vadd.f32 %v3033, %v3202
    %v3265 = vadd.f32 %v3034, %v3205
    %v3266 = vadd.f32 %v3035, %v3210
    %v3267 = vadd.f32 %v3036, %v3213
    %v3268 = vadd.f32 %v3037, %v3218
    %v3269 = vadd.f32 %v3038, %v3221
    %v3270 = vadd.f32 %v3039, %v3226
    %v3271 = vadd.f32 %v3040, %v3229
    %v3272 = vadd.f32 %v3041, %v3234
    %v3273 = vadd.f32 %v3042, %v3237
    %v3274 = vadd.f32 %v3043, %v3242
    %v3275 = vadd.f32 %v3044, %v3245
    %v3276 = vadd.f32 %v3045, %v3250
    %v3277 = vadd.f32 %v3046, %v3253
    %v3278 = vadd.f32 %v3047, %v3258
    %v3279 = vadd.f32 %v3048, %v3261
    %s3280 = sld [smem:[#allocation3 + $0xe]]
    %p3282 = scmp.ne.f32.partialorder %s3280, %s3280
    %s3283 = sshrl.u32 %s3280, 16
    %s3284 = sand.u32 %s3283, 1
    %s3285 = sadd.s32 32767, %s3284
    %s3286 = sadd.s32 %s3280, %s3285
    %s3287 = sand.u32 %s3286, 4294901760
    %s3288 = scalar_select %p3282, 2143289344, %s3287
    %s3290 = sshrl.u32 %s3288, 16
    %s3291 = sld [smem:[#allocation6 + $0xe]]
    %p3293 = scmp.ne.f32.partialorder %s3291, %s3291
    %s3294 = sshrl.u32 %s3291, 16
    %s3295 = sand.u32 %s3294, 1
    %s3296 = sadd.s32 32767, %s3295
    %s3297 = sadd.s32 %s3291, %s3296
    %s3298 = sand.u32 %s3297, 4294901760
    %s3299 = scalar_select %p3293, 2143289344, %s3298
    %s3301 = sshrl.u32 %s3299, 16
    %s3302 = sshll.u32 %s3290, 16
    %s3303 = sor.u32 %s3290, %s3302
    %v3304 = vstv %s3303
    %v3306 = vmul.bf16 %v70, %v3304
    %v3307 = vmul.bf16 %v71, %v3304
    %v3308 = vmul.bf16 %v72, %v3304
    %v3309 = vmul.bf16 %v73, %v3304
    %v3310 = vmul.bf16 %v74, %v3304
    %v3311 = vmul.bf16 %v75, %v3304
    %v3312 = vmul.bf16 %v76, %v3304
    %v3313 = vmul.bf16 %v77, %v3304
    %s3314 = sshll.u32 %s3301, 16
    %s3315 = sor.u32 %s3301, %s3314
    %v3316 = vstv %s3315
    %v3318 = vadd.bf16 %v3306, %v3316
    %v3319 = vadd.bf16 %v3307, %v3316
    %v3320 = vadd.bf16 %v3308, %v3316
    %v3321 = vadd.bf16 %v3309, %v3316
    %v3322 = vadd.bf16 %v3310, %v3316
    %v3323 = vadd.bf16 %v3311, %v3316
    %v3324 = vadd.bf16 %v3312, %v3316
    %v3325 = vadd.bf16 %v3313, %v3316
    %v3326 = vmax.bf16 %v3318, 0
    %v3327 = vmax.bf16 %v3319, 0
    %v3328 = vmax.bf16 %v3320, 0
    %v3329 = vmax.bf16 %v3321, 0
    %v3330 = vmax.bf16 %v3322, 0
    %v3331 = vmax.bf16 %v3323, 0
    %v3332 = vmax.bf16 %v3324, 0
    %v3333 = vmax.bf16 %v3325, 0
    %v3334 = vld [vmem:[%s1 + $0x380] sm:$0xf]
    %v3335 = vld [vmem:[%s1 + $0x384] sm:$0xf]
    %v3336 = vld [vmem:[%s1 + $0x388] sm:$0xf]
    %v3337 = vld [vmem:[%s1 + $0x38c] sm:$0xf]
    %v3338 = vld [vmem:[%s1 + $0x390] sm:$0xf]
    %v3339 = vld [vmem:[%s1 + $0x394] sm:$0xf]
    %v3340 = vld [vmem:[%s1 + $0x398] sm:$0xf]
    %v3341 = vld [vmem:[%s1 + $0x39c] sm:$0xf]
    %v3342 = vld [vmem:[%s1 + $0x3a0] sm:$0xf]
    %v3343 = vld [vmem:[%s1 + $0x3a4] sm:$0xf]
    %v3344 = vld [vmem:[%s1 + $0x3a8] sm:$0xf]
    %v3345 = vld [vmem:[%s1 + $0x3ac] sm:$0xf]
    %v3346 = vld [vmem:[%s1 + $0x3b0] sm:$0xf]
    %v3347 = vld [vmem:[%s1 + $0x3b4] sm:$0xf]
    %v3348 = vld [vmem:[%s1 + $0x3b8] sm:$0xf]
    %v3349 = vld [vmem:[%s1 + $0x3bc] sm:$0xf]
    %v3366 = vunpack.c.l.b16 %v3334
    %v3367 = vunpack.c.l.b16 %v3335
    %v3368 = vunpack.c.l.b16 %v3336
    %v3369 = vunpack.c.l.b16 %v3337
    %v3370 = vunpack.c.l.b16 %v3338
    %v3371 = vunpack.c.l.b16 %v3339
    %v3372 = vunpack.c.l.b16 %v3340
    %v3373 = vunpack.c.l.b16 %v3341
    %v3374 = vunpack.c.l.b16 %v3342
    %v3375 = vunpack.c.l.b16 %v3343
    %v3376 = vunpack.c.l.b16 %v3344
    %v3377 = vunpack.c.l.b16 %v3345
    %v3378 = vunpack.c.l.b16 %v3346
    %v3379 = vunpack.c.l.b16 %v3347
    %v3380 = vunpack.c.l.b16 %v3348
    %v3381 = vunpack.c.l.b16 %v3349
    %v3382 = vpack.c.b16 %v3367, %v3366
    %v3383 = vpack.c.b16 %v3369, %v3368
    %v3384 = vpack.c.b16 %v3371, %v3370
    %v3385 = vpack.c.b16 %v3373, %v3372
    %v3386 = vpack.c.b16 %v3375, %v3374
    %v3387 = vpack.c.b16 %v3377, %v3376
    %v3388 = vpack.c.b16 %v3379, %v3378
    %v3389 = vpack.c.b16 %v3381, %v3380
    %3398 = vmatprep.subr.bf16.mxu0 0
    %3399 = vmatpush1.bf16.msra.mxu0 %v3389
    %3400 = vmatprep.subr.bf16.mxu0 0
    %3401 = vmatpush1.bf16.msra.mxu0 %v3388
    %3402 = vmatprep.subr.bf16.mxu0 0
    %3403 = vmatpush1.bf16.msra.mxu0 %v3387
    %3404 = vmatprep.subr.bf16.mxu0 0
    %3405 = vmatpush1.bf16.msra.mxu0 %v3386
    %3406 = vmatprep.subr.bf16.mxu0 0
    %3407 = vmatpush1.bf16.msra.mxu0 %v3385
    %3408 = vmatprep.subr.bf16.mxu0 0
    %3409 = vmatpush1.bf16.msra.mxu0 %v3384
    %3410 = vmatprep.subr.bf16.mxu0 0
    %3411 = vmatpush1.bf16.msra.mxu0 %v3383
    %3412 = vmatprep.subr.bf16.mxu0 0
    %3413 = vmatpush1.bf16.msra.mxu0 %v3382
    %3414 = vmatprep.subr.bf16.mxu0 0
    %3415 = vmatpush2.bf16.msra.mxu0 0
    %3416 = vmatprep.subr.bf16.mxu0 0
    %3417 = vmatpush2.bf16.msra.mxu0 0
    %3418 = vmatprep.subr.bf16.mxu0 0
    %3419 = vmatpush2.bf16.msra.mxu0 0
    %3420 = vmatprep.subr.bf16.mxu0 0
    %3421 = vmatpush2.bf16.msra.mxu0 0
    %3422 = vmatprep.subr.bf16.mxu0 0
    %3423 = vmatpush2.bf16.msra.mxu0 0
    %3424 = vmatprep.subr.bf16.mxu0 0
    %3425 = vmatpush2.bf16.msra.mxu0 0
    %3426 = vmatprep.subr.bf16.mxu0 0
    %3427 = vmatpush2.bf16.msra.mxu0 0
    %3428 = vmatprep.subr.bf16.mxu0 0
    %3429 = vmatpush2.bf16.msra.mxu0 0
    %3430 = vmatprep.mubr.bf16.mxu0 0
    %3431 = vmatmul.mubr.bf16.gmra.mxu0 %v3326
    %v3432 = vpop.f32.mrf.mxu0
    %v3433 = vadd.f32 0.0, %v3432
    %v3434 = vpop.f32.mrf.mxu0
    %v3435 = vpop.f32.mrf.mxu0
    %v3436 = vadd.f32 0.0, %v3435
    %v3437 = vpop.f32.mrf.mxu0
    %3438 = vmatprep.mubr.bf16.mxu0 0
    %3439 = vmatmul.mubr.bf16.gmra.mxu0 %v3327
    %v3440 = vpop.f32.mrf.mxu0
    %v3441 = vadd.f32 0.0, %v3440
    %v3442 = vpop.f32.mrf.mxu0
    %v3443 = vpop.f32.mrf.mxu0
    %v3444 = vadd.f32 0.0, %v3443
    %v3445 = vpop.f32.mrf.mxu0
    %3446 = vmatprep.mubr.bf16.mxu0 0
    %3447 = vmatmul.mubr.bf16.gmra.mxu0 %v3328
    %v3448 = vpop.f32.mrf.mxu0
    %v3449 = vadd.f32 0.0, %v3448
    %v3450 = vpop.f32.mrf.mxu0
    %v3451 = vpop.f32.mrf.mxu0
    %v3452 = vadd.f32 0.0, %v3451
    %v3453 = vpop.f32.mrf.mxu0
    %3454 = vmatprep.mubr.bf16.mxu0 0
    %3455 = vmatmul.mubr.bf16.gmra.mxu0 %v3329
    %v3456 = vpop.f32.mrf.mxu0
    %v3457 = vadd.f32 0.0, %v3456
    %v3458 = vpop.f32.mrf.mxu0
    %v3459 = vpop.f32.mrf.mxu0
    %v3460 = vadd.f32 0.0, %v3459
    %v3461 = vpop.f32.mrf.mxu0
    %3462 = vmatprep.mubr.bf16.mxu0 0
    %3463 = vmatmul.mubr.bf16.gmra.mxu0 %v3330
    %v3464 = vpop.f32.mrf.mxu0
    %v3465 = vadd.f32 0.0, %v3464
    %v3466 = vpop.f32.mrf.mxu0
    %v3467 = vpop.f32.mrf.mxu0
    %v3468 = vadd.f32 0.0, %v3467
    %v3469 = vpop.f32.mrf.mxu0
    %3470 = vmatprep.mubr.bf16.mxu0 0
    %3471 = vmatmul.mubr.bf16.gmra.mxu0 %v3331
    %v3472 = vpop.f32.mrf.mxu0
    %v3473 = vadd.f32 0.0, %v3472
    %v3474 = vpop.f32.mrf.mxu0
    %v3475 = vpop.f32.mrf.mxu0
    %v3476 = vadd.f32 0.0, %v3475
    %v3477 = vpop.f32.mrf.mxu0
    %3478 = vmatprep.mubr.bf16.mxu0 0
    %3479 = vmatmul.mubr.bf16.gmra.mxu0 %v3332
    %v3480 = vpop.f32.mrf.mxu0
    %v3481 = vadd.f32 0.0, %v3480
    %v3482 = vpop.f32.mrf.mxu0
    %v3483 = vpop.f32.mrf.mxu0
    %v3484 = vadd.f32 0.0, %v3483
    %v3485 = vpop.f32.mrf.mxu0
    %3486 = vmatprep.mubr.bf16.mxu0 0
    %3487 = vmatmul.mubr.bf16.gmra.mxu0 %v3333
    %v3488 = vpop.f32.mrf.mxu0
    %v3489 = vadd.f32 0.0, %v3488
    %v3490 = vpop.f32.mrf.mxu0
    %v3491 = vpop.f32.mrf.mxu0
    %v3492 = vadd.f32 0.0, %v3491
    %v3493 = vpop.f32.mrf.mxu0
    %3494 = vdwg.mxu0
    %v3495 = vadd.f32 %v3264, %v3433
    %v3496 = vadd.f32 %v3265, %v3436
    %v3497 = vadd.f32 %v3266, %v3441
    %v3498 = vadd.f32 %v3267, %v3444
    %v3499 = vadd.f32 %v3268, %v3449
    %v3500 = vadd.f32 %v3269, %v3452
    %v3501 = vadd.f32 %v3270, %v3457
    %v3502 = vadd.f32 %v3271, %v3460
    %v3503 = vadd.f32 %v3272, %v3465
    %v3504 = vadd.f32 %v3273, %v3468
    %v3505 = vadd.f32 %v3274, %v3473
    %v3506 = vadd.f32 %v3275, %v3476
    %v3507 = vadd.f32 %v3276, %v3481
    %v3508 = vadd.f32 %v3277, %v3484
    %v3509 = vadd.f32 %v3278, %v3489
    %v3510 = vadd.f32 %v3279, %v3492
    %s3511 = sld [smem:[#allocation3 + $0xf]]
    %p3513 = scmp.ne.f32.partialorder %s3511, %s3511
    %s3514 = sshrl.u32 %s3511, 16
    %s3515 = sand.u32 %s3514, 1
    %s3516 = sadd.s32 32767, %s3515
    %s3517 = sadd.s32 %s3511, %s3516
    %s3518 = sand.u32 %s3517, 4294901760
    %s3519 = scalar_select %p3513, 2143289344, %s3518
    %s3521 = sshrl.u32 %s3519, 16
    %s3522 = sld [smem:[#allocation6 + $0xf]]
    %p3524 = scmp.ne.f32.partialorder %s3522, %s3522
    %s3525 = sshrl.u32 %s3522, 16
    %s3526 = sand.u32 %s3525, 1
    %s3527 = sadd.s32 32767, %s3526
    %s3528 = sadd.s32 %s3522, %s3527
    %s3529 = sand.u32 %s3528, 4294901760
    %s3530 = scalar_select %p3524, 2143289344, %s3529
    %s3532 = sshrl.u32 %s3530, 16
    %s3533 = sshll.u32 %s3521, 16
    %s3534 = sor.u32 %s3521, %s3533
    %v3535 = vstv %s3534
    %v3537 = vmul.bf16 %v70, %v3535
    %v3538 = vmul.bf16 %v71, %v3535
    %v3539 = vmul.bf16 %v72, %v3535
    %v3540 = vmul.bf16 %v73, %v3535
    %v3541 = vmul.bf16 %v74, %v3535
    %v3542 = vmul.bf16 %v75, %v3535
    %v3543 = vmul.bf16 %v76, %v3535
    %v3544 = vmul.bf16 %v77, %v3535
    %s3545 = sshll.u32 %s3532, 16
    %s3546 = sor.u32 %s3532, %s3545
    %v3547 = vstv %s3546
    %v3549 = vadd.bf16 %v3537, %v3547
    %v3550 = vadd.bf16 %v3538, %v3547
    %v3551 = vadd.bf16 %v3539, %v3547
    %v3552 = vadd.bf16 %v3540, %v3547
    %v3553 = vadd.bf16 %v3541, %v3547
    %v3554 = vadd.bf16 %v3542, %v3547
    %v3555 = vadd.bf16 %v3543, %v3547
    %v3556 = vadd.bf16 %v3544, %v3547
    %v3557 = vmax.bf16 %v3549, 0
    %v3558 = vmax.bf16 %v3550, 0
    %v3559 = vmax.bf16 %v3551, 0
    %v3560 = vmax.bf16 %v3552, 0
    %v3561 = vmax.bf16 %v3553, 0
    %v3562 = vmax.bf16 %v3554, 0
    %v3563 = vmax.bf16 %v3555, 0
    %v3564 = vmax.bf16 %v3556, 0
    %v3565 = vld [vmem:[%s1 + $0x3c0] sm:$0xf]
    %v3566 = vld [vmem:[%s1 + $0x3c4] sm:$0xf]
    %v3567 = vld [vmem:[%s1 + $0x3c8] sm:$0xf]
    %v3568 = vld [vmem:[%s1 + $0x3cc] sm:$0xf]
    %v3569 = vld [vmem:[%s1 + $0x3d0] sm:$0xf]
    %v3570 = vld [vmem:[%s1 + $0x3d4] sm:$0xf]
    %v3571 = vld [vmem:[%s1 + $0x3d8] sm:$0xf]
    %v3572 = vld [vmem:[%s1 + $0x3dc] sm:$0xf]
    %v3573 = vld [vmem:[%s1 + $0x3e0] sm:$0xf]
    %v3574 = vld [vmem:[%s1 + $0x3e4] sm:$0xf]
    %v3575 = vld [vmem:[%s1 + $0x3e8] sm:$0xf]
    %v3576 = vld [vmem:[%s1 + $0x3ec] sm:$0xf]
    %v3577 = vld [vmem:[%s1 + $0x3f0] sm:$0xf]
    %v3578 = vld [vmem:[%s1 + $0x3f4] sm:$0xf]
    %v3579 = vld [vmem:[%s1 + $0x3f8] sm:$0xf]
    %v3580 = vld [vmem:[%s1 + $0x3fc] sm:$0xf]
    %v3597 = vunpack.c.l.b16 %v3565
    %v3598 = vunpack.c.l.b16 %v3566
    %v3599 = vunpack.c.l.b16 %v3567
    %v3600 = vunpack.c.l.b16 %v3568
    %v3601 = vunpack.c.l.b16 %v3569
    %v3602 = vunpack.c.l.b16 %v3570
    %v3603 = vunpack.c.l.b16 %v3571
    %v3604 = vunpack.c.l.b16 %v3572
    %v3605 = vunpack.c.l.b16 %v3573
    %v3606 = vunpack.c.l.b16 %v3574
    %v3607 = vunpack.c.l.b16 %v3575
    %v3608 = vunpack.c.l.b16 %v3576
    %v3609 = vunpack.c.l.b16 %v3577
    %v3610 = vunpack.c.l.b16 %v3578
    %v3611 = vunpack.c.l.b16 %v3579
    %v3612 = vunpack.c.l.b16 %v3580
    %v3613 = vpack.c.b16 %v3598, %v3597
    %v3614 = vpack.c.b16 %v3600, %v3599
    %v3615 = vpack.c.b16 %v3602, %v3601
    %v3616 = vpack.c.b16 %v3604, %v3603
    %v3617 = vpack.c.b16 %v3606, %v3605
    %v3618 = vpack.c.b16 %v3608, %v3607
    %v3619 = vpack.c.b16 %v3610, %v3609
    %v3620 = vpack.c.b16 %v3612, %v3611
    %3629 = vmatprep.subr.bf16.mxu0 0
    %3630 = vmatpush1.bf16.msra.mxu0 %v3620
    %3631 = vmatprep.subr.bf16.mxu0 0
    %3632 = vmatpush1.bf16.msra.mxu0 %v3619
    %3633 = vmatprep.subr.bf16.mxu0 0
    %3634 = vmatpush1.bf16.msra.mxu0 %v3618
    %3635 = vmatprep.subr.bf16.mxu0 0
    %3636 = vmatpush1.bf16.msra.mxu0 %v3617
    %3637 = vmatprep.subr.bf16.mxu0 0
    %3638 = vmatpush1.bf16.msra.mxu0 %v3616
    %3639 = vmatprep.subr.bf16.mxu0 0
    %3640 = vmatpush1.bf16.msra.mxu0 %v3615
    %3641 = vmatprep.subr.bf16.mxu0 0
    %3642 = vmatpush1.bf16.msra.mxu0 %v3614
    %3643 = vmatprep.subr.bf16.mxu0 0
    %3644 = vmatpush1.bf16.msra.mxu0 %v3613
    %3645 = vmatprep.subr.bf16.mxu0 0
    %3646 = vmatpush2.bf16.msra.mxu0 0
    %3647 = vmatprep.subr.bf16.mxu0 0
    %3648 = vmatpush2.bf16.msra.mxu0 0
    %3649 = vmatprep.subr.bf16.mxu0 0
    %3650 = vmatpush2.bf16.msra.mxu0 0
    %3651 = vmatprep.subr.bf16.mxu0 0
    %3652 = vmatpush2.bf16.msra.mxu0 0
    %3653 = vmatprep.subr.bf16.mxu0 0
    %3654 = vmatpush2.bf16.msra.mxu0 0
    %3655 = vmatprep.subr.bf16.mxu0 0
    %3656 = vmatpush2.bf16.msra.mxu0 0
    %3657 = vmatprep.subr.bf16.mxu0 0
    %3658 = vmatpush2.bf16.msra.mxu0 0
    %3659 = vmatprep.subr.bf16.mxu0 0
    %3660 = vmatpush2.bf16.msra.mxu0 0
    %3661 = vmatprep.mubr.bf16.mxu0 0
    %3662 = vmatmul.mubr.bf16.gmra.mxu0 %v3557
    %v3663 = vpop.f32.mrf.mxu0
    %v3664 = vadd.f32 0.0, %v3663
    %v3665 = vpop.f32.mrf.mxu0
    %v3666 = vpop.f32.mrf.mxu0
    %v3667 = vadd.f32 0.0, %v3666
    %v3668 = vpop.f32.mrf.mxu0
    %3669 = vmatprep.mubr.bf16.mxu0 0
    %3670 = vmatmul.mubr.bf16.gmra.mxu0 %v3558
    %v3671 = vpop.f32.mrf.mxu0
    %v3672 = vadd.f32 0.0, %v3671
    %v3673 = vpop.f32.mrf.mxu0
    %v3674 = vpop.f32.mrf.mxu0
    %v3675 = vadd.f32 0.0, %v3674
    %v3676 = vpop.f32.mrf.mxu0
    %3677 = vmatprep.mubr.bf16.mxu0 0
    %3678 = vmatmul.mubr.bf16.gmra.mxu0 %v3559
    %v3679 = vpop.f32.mrf.mxu0
    %v3680 = vadd.f32 0.0, %v3679
    %v3681 = vpop.f32.mrf.mxu0
    %v3682 = vpop.f32.mrf.mxu0
    %v3683 = vadd.f32 0.0, %v3682
    %v3684 = vpop.f32.mrf.mxu0
    %3685 = vmatprep.mubr.bf16.mxu0 0
    %3686 = vmatmul.mubr.bf16.gmra.mxu0 %v3560
    %v3687 = vpop.f32.mrf.mxu0
    %v3688 = vadd.f32 0.0, %v3687
    %v3689 = vpop.f32.mrf.mxu0
    %v3690 = vpop.f32.mrf.mxu0
    %v3691 = vadd.f32 0.0, %v3690
    %v3692 = vpop.f32.mrf.mxu0
    %3693 = vmatprep.mubr.bf16.mxu0 0
    %3694 = vmatmul.mubr.bf16.gmra.mxu0 %v3561
    %v3695 = vpop.f32.mrf.mxu0
    %v3696 = vadd.f32 0.0, %v3695
    %v3697 = vpop.f32.mrf.mxu0
    %v3698 = vpop.f32.mrf.mxu0
    %v3699 = vadd.f32 0.0, %v3698
    %v3700 = vpop.f32.mrf.mxu0
    %3701 = vmatprep.mubr.bf16.mxu0 0
    %3702 = vmatmul.mubr.bf16.gmra.mxu0 %v3562
    %v3703 = vpop.f32.mrf.mxu0
    %v3704 = vadd.f32 0.0, %v3703
    %v3705 = vpop.f32.mrf.mxu0
    %v3706 = vpop.f32.mrf.mxu0
    %v3707 = vadd.f32 0.0, %v3706
    %v3708 = vpop.f32.mrf.mxu0
    %3709 = vmatprep.mubr.bf16.mxu0 0
    %3710 = vmatmul.mubr.bf16.gmra.mxu0 %v3563
    %v3711 = vpop.f32.mrf.mxu0
    %v3712 = vadd.f32 0.0, %v3711
    %v3713 = vpop.f32.mrf.mxu0
    %v3714 = vpop.f32.mrf.mxu0
    %v3715 = vadd.f32 0.0, %v3714
    %v3716 = vpop.f32.mrf.mxu0
    %3717 = vmatprep.mubr.bf16.mxu0 0
    %3718 = vmatmul.mubr.bf16.gmra.mxu0 %v3564
    %v3719 = vpop.f32.mrf.mxu0
    %v3720 = vadd.f32 0.0, %v3719
    %v3721 = vpop.f32.mrf.mxu0
    %v3722 = vpop.f32.mrf.mxu0
    %v3723 = vadd.f32 0.0, %v3722
    %v3724 = vpop.f32.mrf.mxu0
    %3725 = vdwg.mxu0
    %v3726 = vadd.f32 %v3495, %v3664
    %v3727 = vadd.f32 %v3496, %v3667
    %v3728 = vadd.f32 %v3497, %v3672
    %v3729 = vadd.f32 %v3498, %v3675
    %v3730 = vadd.f32 %v3499, %v3680
    %v3731 = vadd.f32 %v3500, %v3683
    %v3732 = vadd.f32 %v3501, %v3688
    %v3733 = vadd.f32 %v3502, %v3691
    %v3734 = vadd.f32 %v3503, %v3696
    %v3735 = vadd.f32 %v3504, %v3699
    %v3736 = vadd.f32 %v3505, %v3704
    %v3737 = vadd.f32 %v3506, %v3707
    %v3738 = vadd.f32 %v3507, %v3712
    %v3739 = vadd.f32 %v3508, %v3715
    %v3740 = vadd.f32 %v3509, %v3720
    %v3741 = vadd.f32 %v3510, %v3723
    %v3742 = vld [vmem:[%s2] sm:$0x1]
    %v3744 = vlaneseq
    %v3745 = vshrl.u32 %v3744, 7
    %v3746 = vsub.s32 0, %v3745
    %v3747 = vrot.slane %v3742, %v3746
    %v3749 = vadd.f32 %v3726, %v3747
    %v3750 = vadd.f32 %v3727, %v3747
    %v3751 = vadd.f32 %v3728, %v3747
    %v3752 = vadd.f32 %v3729, %v3747
    %v3753 = vadd.f32 %v3730, %v3747
    %v3754 = vadd.f32 %v3731, %v3747
    %v3755 = vadd.f32 %v3732, %v3747
    %v3756 = vadd.f32 %v3733, %v3747
    %v3757 = vadd.f32 %v3734, %v3747
    %v3758 = vadd.f32 %v3735, %v3747
    %v3759 = vadd.f32 %v3736, %v3747
    %v3760 = vadd.f32 %v3737, %v3747
    %v3761 = vadd.f32 %v3738, %v3747
    %v3762 = vadd.f32 %v3739, %v3747
    %v3763 = vadd.f32 %v3740, %v3747
    %v3764 = vadd.f32 %v3741, %v3747
    %v3765 = vmax.f32 %v3749, 0.0
    %v3766 = vmax.f32 %v3750, 0.0
    %v3767 = vmax.f32 %v3751, 0.0
    %v3768 = vmax.f32 %v3752, 0.0
    %v3769 = vmax.f32 %v3753, 0.0
    %v3770 = vmax.f32 %v3754, 0.0
    %v3771 = vmax.f32 %v3755, 0.0
    %v3772 = vmax.f32 %v3756, 0.0
    %v3773 = vmax.f32 %v3757, 0.0
    %v3774 = vmax.f32 %v3758, 0.0
    %v3775 = vmax.f32 %v3759, 0.0
    %v3776 = vmax.f32 %v3760, 0.0
    %v3777 = vmax.f32 %v3761, 0.0
    %v3778 = vmax.f32 %v3762, 0.0
    %v3779 = vmax.f32 %v3763, 0.0
    %v3780 = vmax.f32 %v3764, 0.0
    %v3781 = vld [vmem:[%s3] sm:$0x1]
    %s3782 = sld [smem:[#allocation2]]
    %v3783 = vstv %s3782
    %vm3784 = vcmask 261120
    %v3786 = vsel %vm3784, %v3781, 0
    %v3789 = vsel %vm3784, %v3765, 0
    %v3792 = vsel %vm3784, %v3766, 0
    %v3795 = vsel %vm3784, %v3767, 0
    %v3798 = vsel %vm3784, %v3768, 0
    %v3801 = vsel %vm3784, %v3769, 0
    %v3804 = vsel %vm3784, %v3770, 0
    %v3807 = vsel %vm3784, %v3771, 0
    %v3810 = vsel %vm3784, %v3772, 0
    %v3813 = vsel %vm3784, %v3773, 0
    %v3816 = vsel %vm3784, %v3774, 0
    %v3819 = vsel %vm3784, %v3775, 0
    %v3822 = vsel %vm3784, %v3776, 0
    %v3825 = vsel %vm3784, %v3777, 0
    %v3828 = vsel %vm3784, %v3778, 0
    %v3831 = vsel %vm3784, %v3779, 0
    %v3834 = vsel %vm3784, %v3780, 0
    %3836 = vmatprep.subr.mxu0 0.0
    %3837 = vmatpush1.xpose.msra.mxu0 %v3834
    %3838 = vmatprep.subr.mxu0 0.0
    %3839 = vmatpush1.xpose.msra.mxu0 %v3831
    %3840 = vmatprep.subr.mxu0 0.0
    %3841 = vmatpush1.xpose.msra.mxu0 %v3828
    %3842 = vmatprep.subr.mxu0 0.0
    %3843 = vmatpush1.xpose.msra.mxu0 %v3825
    %3844 = vmatprep.subr.mxu0 0.0
    %3845 = vmatpush1.xpose.msra.mxu0 %v3822
    %3846 = vmatprep.subr.mxu0 0.0
    %3847 = vmatpush1.xpose.msra.mxu0 %v3819
    %3848 = vmatprep.subr.mxu0 0.0
    %3849 = vmatpush1.xpose.msra.mxu0 %v3816
    %3850 = vmatprep.subr.mxu0 0.0
    %3851 = vmatpush1.xpose.msra.mxu0 %v3813
    %3852 = vmatprep.subr.mxu0 0.0
    %3853 = vmatpush1.xpose.msra.mxu0 %v3810
    %3854 = vmatprep.subr.mxu0 0.0
    %3855 = vmatpush1.xpose.msra.mxu0 %v3807
    %3856 = vmatprep.subr.mxu0 0.0
    %3857 = vmatpush1.xpose.msra.mxu0 %v3804
    %3858 = vmatprep.subr.mxu0 0.0
    %3859 = vmatpush1.xpose.msra.mxu0 %v3801
    %3860 = vmatprep.subr.mxu0 0.0
    %3861 = vmatpush1.xpose.msra.mxu0 %v3798
    %3862 = vmatprep.subr.mxu0 0.0
    %3863 = vmatpush1.xpose.msra.mxu0 %v3795
    %3864 = vmatprep.subr.mxu0 0.0
    %3865 = vmatpush1.xpose.msra.mxu0 %v3792
    %3866 = vmatprep.subr.mxu0 0.0
    %3867 = vmatpush1.xpose.msra.mxu0 %v3789
    %3868 = vmatprep.subr.mxu0 0.0
    %3869 = vmatpush2.xpose.msra.mxu0 0.0
    %3870 = vmatprep.subr.mxu0 0.0
    %3871 = vmatpush2.xpose.msra.mxu0 0.0
    %3872 = vmatprep.subr.mxu0 0.0
    %3873 = vmatpush2.xpose.msra.mxu0 0.0
    %3874 = vmatprep.subr.mxu0 0.0
    %3875 = vmatpush2.xpose.msra.mxu0 0.0
    %3876 = vmatprep.subr.mxu0 0.0
    %3877 = vmatpush2.xpose.msra.mxu0 0.0
    %3878 = vmatprep.subr.mxu0 0.0
    %3879 = vmatpush2.xpose.msra.mxu0 0.0
    %3880 = vmatprep.subr.mxu0 0.0
    %3881 = vmatpush2.xpose.msra.mxu0 0.0
    %3882 = vmatprep.subr.mxu0 0.0
    %3883 = vmatpush2.xpose.msra.mxu0 0.0
    %3884 = vmatprep.subr.mxu0 0.0
    %3885 = vmatpush2.xpose.msra.mxu0 0.0
    %3886 = vmatprep.subr.mxu0 0.0
    %3887 = vmatpush2.xpose.msra.mxu0 0.0
    %3888 = vmatprep.subr.mxu0 0.0
    %3889 = vmatpush2.xpose.msra.mxu0 0.0
    %3890 = vmatprep.subr.mxu0 0.0
    %3891 = vmatpush2.xpose.msra.mxu0 0.0
    %3892 = vmatprep.subr.mxu0 0.0
    %3893 = vmatpush2.xpose.msra.mxu0 0.0
    %3894 = vmatprep.subr.mxu0 0.0
    %3895 = vmatpush2.xpose.msra.mxu0 0.0
    %3896 = vmatprep.subr.mxu0 0.0
    %3897 = vmatpush2.xpose.msra.mxu0 0.0
    %3898 = vmatprep.subr.mxu0 0.0
    %3899 = vmatpush2.xpose.msra.mxu0 0.0
    %3900 = vmatprep.mubr.f32.mxu0 0.0
    %3901 = vmatmul.mubr.f32.gmra.mxu0 %v3786
    %v3902 = vpop.f32.mrf.mxu0
    %v3903 = vadd.f32 %v3783, %v3902
    %v3904 = vpop.f32.mrf.mxu0
    %3905 = vdwg.mxu0
    %3906 = vst [vmem:[#allocation8] sm:$0x1] %v3903
    // Predicated region
    $region38: #{tpu_custom_call.1} parent=1 // pred_check
      _
    $region39: #{tpu_custom_call.1} parent=1 // pred_check_branch
      %3908 = sbr.rel (0) target = $region41
    $region40: #{tpu_custom_call.1} parent=1 // pred_region
      %s3910 = ssub.s32 16, 16
      %3911 = vsyncadd [#allocation4], %s3910
      %s3913 = sshll.u32 [#allocation8], 4
      %s3914 = int_to_ptr.vmem [resolvable:$true] %s3913
      %3916 = dma.vmem_to_hbm [thread:$0]  %s3914, 16, %s7, [#allocation4]
    $region41: #{tpu_custom_call.1} parent=1 // pred_fallthru
      _
    // Predicated region
    $region42: #{tpu_custom_call.1} parent=1 // pred_check
      _
    $region43: #{tpu_custom_call.1} parent=1 // pred_check_branch
      %3918 = sbr.rel (0) target = $region45
    $region44: #{tpu_custom_call.1} parent=1 // pred_region
      %3919 = dma.done [#allocation4], 16
    $region45: #{tpu_custom_call.1} parent=1 // pred_fallthru
      _
    %3920 = vsyncpa [#allocation4], 1
    %3921 = vsyncpa [#allocation5], 1
    %3922 = vsyncpa [#allocation7], 1

// kernel: tpu_custom_call.1
$region0: #{tpu_custom_call.1}
  #allocation0 [shape = 'u32[]', space=smem, size = 0x4, offset = 0x4, fixed_abs, tag = 'smem constant byte address 0x4 - core index']
  #allocation1 [shape = 'u32[144,128]{1,0:T(1,128)}', space=vmem, size = 0x12000, scoped, tag = 'internal scratch']
  #allocation2 [shape = 'f32[1,1]{1,0:T(1,128)S(6)}', space=smem, size = 0x200, scoped, tag = 'scoped memory for tpu_custom_call.1']
  %s0 = inlined_call_operand.vmem [shape: f32[128,128], index: 0, kind: input, shape index: {}]
  %s1 = inlined_call_operand.vmem [shape: bf16[2048,32], index: 1, kind: input, shape index: {}]
  %s2 = inlined_call_operand.vmem [shape: f32[1,32], index: 2, kind: input, shape index: {}]
  %s3 = inlined_call_operand.vmem [shape: f32[1,32], index: 3, kind: input, shape index: {}]
  %s4 = inlined_call_operand.vmem [shape: f32[1,16], index: 4, kind: input, shape index: {}]
  %s5 = inlined_call_operand.vmem [shape: f32[1,16], index: 5, kind: input, shape index: {}]
  %s6 = inlined_call_operand.<no memory space> [shape: f32[1,1], index: 6, kind: input, shape index: {}]
  %s7 = inlined_call_operand.hbm [shape: f32[1,128], index: 7, kind: output, shape index: {}]
  %s8 = sld [smem:[#allocation0]]
  $region46: #{tpu_custom_call.1} parent=0
    _
  %s10 = ssub.s32 1, %s8
  %s11 = scalar_select 0, %s10, %s8
  %12 = sst [smem:[#allocation2]] %s6
  $region1: #{tpu_custom_call.1} parent=0
    #allocation3 [shape = 'u8[512]{0}', space=smem, size = 0x200, scoped, tag = 'input window, operand 4, single buffered']
    #allocation4 [shape = 's32[1]{0}', space=sflag, size = 0x4, scoped, tag = 'scoped memory for tpu_custom_call.1']
    #allocation5 [shape = 's32[1]{0}', space=sflag, size = 0x4, scoped, tag = 'scoped memory for tpu_custom_call.1']
    #allocation6 [shape = 'u8[512]{0}', space=smem, size = 0x200, scoped, tag = 'input window, operand 5, single buffered']
    #allocation7 [shape = 's32[1]{0}', space=sflag, size = 0x4, scoped, tag = 'scoped memory for tpu_custom_call.1']
    #allocation8 [shape = 'u8[512]{0}', space=vmem, size = 0x400, scoped, tag = 'output window, operand 0, single buffered']
    %13 = vsyncpa [#allocation5], 0
    %14 = vsyncpa [#allocation7], 0
    %15 = vsyncpa [#allocation4], 0
    // Predicated region
    $region2: #{tpu_custom_call.1} parent=1 // pred_check
      _
    $region3: #{tpu_custom_call.1} parent=1 // pred_check_branch
      %17 = sbr.rel (0) target = $region5
    $region4: #{tpu_custom_call.1} parent=1 // pred_region
      _
    $region5: #{tpu_custom_call.1} parent=1 // pred_fallthru
      _
    // Predicated region
    $region6: #{tpu_custom_call.1} parent=1 // pred_check
      _
    $region7: #{tpu_custom_call.1} parent=1 // pred_check_branch
      %19 = sbr.rel (0) target = $region9
    $region8: #{tpu_custom_call.1} parent=1 // pred_region
      _
    $region9: #{tpu_custom_call.1} parent=1 // pred_fallthru
      _
    // Predicated region
    $region10: #{tpu_custom_call.1} parent=1 // pred_check
      _
    $region11: #{tpu_custom_call.1} parent=1 // pred_check_branch
      %21 = sbr.rel (0) target = $region13
    $region12: #{tpu_custom_call.1} parent=1 // pred_region
      _
    $region13: #{tpu_custom_call.1} parent=1 // pred_fallthru
      _
    // Predicated region
    $region14: #{tpu_custom_call.1} parent=1 // pred_check
      _
    $region15: #{tpu_custom_call.1} parent=1 // pred_check_branch
      %23 = sbr.rel (0) target = $region17
    $region16: #{tpu_custom_call.1} parent=1 // pred_region
      _
    $region17: #{tpu_custom_call.1} parent=1 // pred_fallthru
      _
    // Predicated region
    $region18: #{tpu_custom_call.1} parent=1 // pred_check
      _
    $region19: #{tpu_custom_call.1} parent=1 // pred_check_branch
      %25 = sbr.rel (0) target = $region21
    $region20: #{tpu_custom_call.1} parent=1 // pred_region
      %s27 = ssub.s32 16, 16
      %28 = vsyncadd [#allocation5], %s27
      %s30 = sshll.u32 %s4, 4
      %s31 = int_to_ptr.vmem [resolvable:$true] %s30
      %33 = dma.vmem_to_smem %s31, 16, [#allocation3], [#allocation5]
    $region21: #{tpu_custom_call.1} parent=1 // pred_fallthru
      _
    // Predicated region
    $region22: #{tpu_custom_call.1} parent=1 // pred_check
      _
    $region23: #{tpu_custom_call.1} parent=1 // pred_check_branch
      %35 = sbr.rel (0) target = $region25
    $region24: #{tpu_custom_call.1} parent=1 // pred_region
      %s37 = ssub.s32 16, 16
      %38 = vsyncadd [#allocation7], %s37
      %s40 = sshll.u32 %s5, 4
      %s41 = int_to_ptr.vmem [resolvable:$true] %s40
      %43 = dma.vmem_to_smem %s41, 16, [#allocation6], [#allocation7]
    $region25: #{tpu_custom_call.1} parent=1 // pred_fallthru
      _
    // Predicated region
    $region26: #{tpu_custom_call.1} parent=1 // pred_check
      _
    $region27: #{tpu_custom_call.1} parent=1 // pred_check_branch
      %45 = sbr.rel (0) target = $region29
    $region28: #{tpu_custom_call.1} parent=1 // pred_region
      _
    $region29: #{tpu_custom_call.1} parent=1 // pred_fallthru
      _
    // Predicated region
    $region30: #{tpu_custom_call.1} parent=1 // pred_check
      _
    $region31: #{tpu_custom_call.1} parent=1 // pred_check_branch
      %47 = sbr.rel (0) target = $region33
    $region32: #{tpu_custom_call.1} parent=1 // pred_region
      %48 = dma.done [#allocation5], 16
    $region33: #{tpu_custom_call.1} parent=1 // pred_fallthru
      _
    // Predicated region
    $region34: #{tpu_custom_call.1} parent=1 // pred_check
      _
    $region35: #{tpu_custom_call.1} parent=1 // pred_check_branch
      %50 = sbr.rel (0) target = $region37
    $region36: #{tpu_custom_call.1} parent=1 // pred_region
      %51 = dma.done [#allocation7], 16
    $region37: #{tpu_custom_call.1} parent=1 // pred_fallthru
      _
    %52 = sfence
    %v54 = vld [vmem:[%s0] sm:$0xff]
    %v55 = vld [vmem:[%s0 + $0x8] sm:$0xff]
    %v56 = vld [vmem:[%s0 + $0x10] sm:$0xff]
    %v57 = vld [vmem:[%s0 + $0x18] sm:$0xff]
    %v58 = vld [vmem:[%s0 + $0x20] sm:$0xff]
    %v59 = vld [vmem:[%s0 + $0x28] sm:$0xff]
    %v60 = vld [vmem:[%s0 + $0x30] sm:$0xff]
    %v61 = vld [vmem:[%s0 + $0x38] sm:$0xff]
    %v62 = vld [vmem:[%s0 + $0x40] sm:$0xff]
    %v63 = vld [vmem:[%s0 + $0x48] sm:$0xff]
    %v64 = vld [vmem:[%s0 + $0x50] sm:$0xff]
    %v65 = vld [vmem:[%s0 + $0x58] sm:$0xff]
    %v66 = vld [vmem:[%s0 + $0x60] sm:$0xff]
    %v67 = vld [vmem:[%s0 + $0x68] sm:$0xff]
    %v68 = vld [vmem:[%s0 + $0x70] sm:$0xff]
    %v69 = vld [vmem:[%s0 + $0x78] sm:$0xff]
    %v70 = vpack.c.bf16 %v55, %v54
    %v71 = vpack.c.bf16 %v57, %v56
    %v72 = vpack.c.bf16 %v59, %v58
    %v73 = vpack.c.bf16 %v61, %v60
    %v74 = vpack.c.bf16 %v63, %v62
    %v75 = vpack.c.bf16 %v65, %v64
    %v76 = vpack.c.bf16 %v67, %v66
    %v77 = vpack.c.bf16 %v69, %v68
    %s78 = sld [smem:[#allocation3]]
    %p80 = scmp.ne.f32.partialorder %s78, %s78
    %s81 = sshrl.u32 %s78, 16
    %s82 = sand.u32 %s81, 1
    %s83 = sadd.s32 32767, %s82
    %s84 = sadd.s32 %s78, %s83
    %s85 = sand.u32 %s84, 4294901760
    %s86 = scalar_select %p80, 2143289344, %s85
    %s88 = sshrl.u32 %s86, 16
    %s89 = sld [smem:[#allocation6]]
    %p91 = scmp.ne.f32.partialorder %s89, %s89
    %s92 = sshrl.u32 %s89, 16
    %s93 = sand.u32 %s92, 1
    %s94 = sadd.s32 32767, %s93
    %s95 = sadd.s32 %s89, %s94
    %s96 = sand.u32 %s95, 4294901760
    %s97 = scalar_select %p91, 2143289344, %s96
    %s99 = sshrl.u32 %s97, 16
    %s100 = sshll.u32 %s88, 16
    %s101 = sor.u32 %s88, %s100
    %v102 = vstv %s101
    %v104 = vmul.bf16 %v70, %v102
    %v105 = vmul.bf16 %v71, %v102
    %v106 = vmul.bf16 %v72, %v102
    %v107 = vmul.bf16 %v73, %v102
    %v108 = vmul.bf16 %v74, %v102
    %v109 = vmul.bf16 %v75, %v102
    %v110 = vmul.bf16 %v76, %v102
    %v111 = vmul.bf16 %v77, %v102
    %s112 = sshll.u32 %s99, 16
    %s113 = sor.u32 %s99, %s112
    %v114 = vstv %s113
    %v116 = vadd.bf16 %v104, %v114
    %v117 = vadd.bf16 %v105, %v114
    %v118 = vadd.bf16 %v106, %v114
    %v119 = vadd.bf16 %v107, %v114
    %v120 = vadd.bf16 %v108, %v114
    %v121 = vadd.bf16 %v109, %v114
    %v122 = vadd.bf16 %v110, %v114
    %v123 = vadd.bf16 %v111, %v114
    %v124 = vmax.bf16 %v116, 0
    %v125 = vmax.bf16 %v117, 0
    %v126 = vmax.bf16 %v118, 0
    %v127 = vmax.bf16 %v119, 0
    %v128 = vmax.bf16 %v120, 0
    %v129 = vmax.bf16 %v121, 0
    %v130 = vmax.bf16 %v122, 0
    %v131 = vmax.bf16 %v123, 0
    %v132 = vld [vmem:[%s1] sm:$0xf]
    %v133 = vld [vmem:[%s1 + $0x4] sm:$0xf]
    %v134 = vld [vmem:[%s1 + $0x8] sm:$0xf]
    %v135 = vld [vmem:[%s1 + $0xc] sm:$0xf]
    %v136 = vld [vmem:[%s1 + $0x10] sm:$0xf]
    %v137 = vld [vmem:[%s1 + $0x14] sm:$0xf]
    %v138 = vld [vmem:[%s1 + $0x18] sm:$0xf]
    %v139 = vld [vmem:[%s1 + $0x1c] sm:$0xf]
    %v140 = vld [vmem:[%s1 + $0x20] sm:$0xf]
    %v141 = vld [vmem:[%s1 + $0x24] sm:$0xf]
    %v142 = vld [vmem:[%s1 + $0x28] sm:$0xf]
    %v143 = vld [vmem:[%s1 + $0x2c] sm:$0xf]
    %v144 = vld [vmem:[%s1 + $0x30] sm:$0xf]
    %v145 = vld [vmem:[%s1 + $0x34] sm:$0xf]
    %v146 = vld [vmem:[%s1 + $0x38] sm:$0xf]
    %v147 = vld [vmem:[%s1 + $0x3c] sm:$0xf]
    %s148 = sld [smem:[#allocation3 + $0x1]]
    %p150 = scmp.ne.f32.partialorder %s148, %s148
    %s151 = sshrl.u32 %s148, 16
    %s152 = sand.u32 %s151, 1
    %s153 = sadd.s32 32767, %s152
    %s154 = sadd.s32 %s148, %s153
    %s155 = sand.u32 %s154, 4294901760
    %s156 = scalar_select %p150, 2143289344, %s155
    %s158 = sshrl.u32 %s156, 16
    %s159 = sld [smem:[#allocation6 + $0x1]]
    %p161 = scmp.ne.f32.partialorder %s159, %s159
    %s162 = sshrl.u32 %s159, 16
    %s163 = sand.u32 %s162, 1
    %s164 = sadd.s32 32767, %s163
    %s165 = sadd.s32 %s159, %s164
    %s166 = sand.u32 %s165, 4294901760
    %s167 = scalar_select %p161, 2143289344, %s166
    %s169 = sshrl.u32 %s167, 16
    %s170 = sshll.u32 %s158, 16
    %s171 = sor.u32 %s158, %s170
    %v172 = vstv %s171
    %v174 = vmul.bf16 %v70, %v172
    %v175 = vmul.bf16 %v71, %v172
    %v176 = vmul.bf16 %v72, %v172
    %v177 = vmul.bf16 %v73, %v172
    %v178 = vmul.bf16 %v74, %v172
    %v179 = vmul.bf16 %v75, %v172
    %v180 = vmul.bf16 %v76, %v172
    %v181 = vmul.bf16 %v77, %v172
    %s182 = sshll.u32 %s169, 16
    %s183 = sor.u32 %s169, %s182
    %v184 = vstv %s183
    %v186 = vadd.bf16 %v174, %v184
    %v187 = vadd.bf16 %v175, %v184
    %v188 = vadd.bf16 %v176, %v184
    %v189 = vadd.bf16 %v177, %v184
    %v190 = vadd.bf16 %v178, %v184
    %v191 = vadd.bf16 %v179, %v184
    %v192 = vadd.bf16 %v180, %v184
    %v193 = vadd.bf16 %v181, %v184
    %v194 = vmax.bf16 %v186, 0
    %v195 = vmax.bf16 %v187, 0
    %v196 = vmax.bf16 %v188, 0
    %v197 = vmax.bf16 %v189, 0
    %v198 = vmax.bf16 %v190, 0
    %v199 = vmax.bf16 %v191, 0
    %v200 = vmax.bf16 %v192, 0
    %v201 = vmax.bf16 %v193, 0
    %v202 = vld [vmem:[%s1 + $0x40] sm:$0xf]
    %v203 = vld [vmem:[%s1 + $0x44] sm:$0xf]
    %v204 = vld [vmem:[%s1 + $0x48] sm:$0xf]
    %v205 = vld [vmem:[%s1 + $0x4c] sm:$0xf]
    %v206 = vld [vmem:[%s1 + $0x50] sm:$0xf]
    %v207 = vld [vmem:[%s1 + $0x54] sm:$0xf]
    %v208 = vld [vmem:[%s1 + $0x58] sm:$0xf]
    %v209 = vld [vmem:[%s1 + $0x5c] sm:$0xf]
    %v210 = vld [vmem:[%s1 + $0x60] sm:$0xf]
    %v211 = vld [vmem:[%s1 + $0x64] sm:$0xf]
    %v212 = vld [vmem:[%s1 + $0x68] sm:$0xf]
    %v213 = vld [vmem:[%s1 + $0x6c] sm:$0xf]
    %v214 = vld [vmem:[%s1 + $0x70] sm:$0xf]
    %v215 = vld [vmem:[%s1 + $0x74] sm:$0xf]
    %v216 = vld [vmem:[%s1 + $0x78] sm:$0xf]
    %v217 = vld [vmem:[%s1 + $0x7c] sm:$0xf]
    %v234 = vunpack.c.l.b16 %v202
    %v235 = vunpack.c.l.b16 %v203
    %v236 = vunpack.c.l.b16 %v204
    %v237 = vunpack.c.l.b16 %v205
    %v238 = vunpack.c.l.b16 %v206
    %v239 = vunpack.c.l.b16 %v207
    %v240 = vunpack.c.l.b16 %v208
    %v241 = vunpack.c.l.b16 %v209
    %v242 = vunpack.c.l.b16 %v210
    %v243 = vunpack.c.l.b16 %v211
    %v244 = vunpack.c.l.b16 %v212
    %v245 = vunpack.c.l.b16 %v213
    %v246 = vunpack.c.l.b16 %v214
    %v247 = vunpack.c.l.b16 %v215
    %v248 = vunpack.c.l.b16 %v216
    %v249 = vunpack.c.l.b16 %v217
    %v250 = vpack.c.b16 %v235, %v234
    %v251 = vpack.c.b16 %v237, %v236
    %v252 = vpack.c.b16 %v239, %v238
    %v253 = vpack.c.b16 %v241, %v240
    %v254 = vpack.c.b16 %v243, %v242
    %v255 = vpack.c.b16 %v245, %v244
    %v256 = vpack.c.b16 %v247, %v246
    %v257 = vpack.c.b16 %v249, %v248
    %266 = vmatprep.subr.bf16.mxu0 0
    %267 = vmatpush1.bf16.msra.mxu0 %v257
    %268 = vmatprep.subr.bf16.mxu0 0
    %269 = vmatpush1.bf16.msra.mxu0 %v256
    %270 = vmatprep.subr.bf16.mxu0 0
    %271 = vmatpush1.bf16.msra.mxu0 %v255
    %272 = vmatprep.subr.bf16.mxu0 0
    %273 = vmatpush1.bf16.msra.mxu0 %v254
    %274 = vmatprep.subr.bf16.mxu0 0
    %275 = vmatpush1.bf16.msra.mxu0 %v253
    %276 = vmatprep.subr.bf16.mxu0 0
    %277 = vmatpush1.bf16.msra.mxu0 %v252
    %278 = vmatprep.subr.bf16.mxu0 0
    %279 = vmatpush1.bf16.msra.mxu0 %v251
    %280 = vmatprep.subr.bf16.mxu0 0
    %281 = vmatpush1.bf16.msra.mxu0 %v250
    %282 = vmatprep.subr.bf16.mxu0 0
    %283 = vmatpush2.bf16.msra.mxu0 0
    %284 = vmatprep.subr.bf16.mxu0 0
    %285 = vmatpush2.bf16.msra.mxu0 0
    %286 = vmatprep.subr.bf16.mxu0 0
    %287 = vmatpush2.bf16.msra.mxu0 0
    %288 = vmatprep.subr.bf16.mxu0 0
    %289 = vmatpush2.bf16.msra.mxu0 0
    %290 = vmatprep.subr.bf16.mxu0 0
    %291 = vmatpush2.bf16.msra.mxu0 0
    %292 = vmatprep.subr.bf16.mxu0 0
    %293 = vmatpush2.bf16.msra.mxu0 0
    %294 = vmatprep.subr.bf16.mxu0 0
    %295 = vmatpush2.bf16.msra.mxu0 0
    %296 = vmatprep.subr.bf16.mxu0 0
    %297 = vmatpush2.bf16.msra.mxu0 0
    %298 = vmatprep.mubr.bf16.mxu0 0
    %299 = vmatmul.mubr.bf16.gmra.mxu0 %v194
    %v300 = vpop.f32.mrf.mxu0
    %v301 = vadd.f32 0.0, %v300
    %v302 = vpop.f32.mrf.mxu0
    %v303 = vpop.f32.mrf.mxu0
    %v304 = vadd.f32 0.0, %v303
    %v305 = vpop.f32.mrf.mxu0
    %306 = vmatprep.mubr.bf16.mxu0 0
    %307 = vmatmul.mubr.bf16.gmra.mxu0 %v195
    %v308 = vpop.f32.mrf.mxu0
    %v309 = vadd.f32 0.0, %v308
    %v310 = vpop.f32.mrf.mxu0
    %v311 = vpop.f32.mrf.mxu0
    %v312 = vadd.f32 0.0, %v311
    %v313 = vpop.f32.mrf.mxu0
    %314 = vmatprep.mubr.bf16.mxu0 0
    %315 = vmatmul.mubr.bf16.gmra.mxu0 %v196
    %v316 = vpop.f32.mrf.mxu0
    %v317 = vadd.f32 0.0, %v316
    %v318 = vpop.f32.mrf.mxu0
    %v319 = vpop.f32.mrf.mxu0
    %v320 = vadd.f32 0.0, %v319
    %v321 = vpop.f32.mrf.mxu0
    %322 = vmatprep.mubr.bf16.mxu0 0
    %323 = vmatmul.mubr.bf16.gmra.mxu0 %v197
    %v324 = vpop.f32.mrf.mxu0
    %v325 = vadd.f32 0.0, %v324
    %v326 = vpop.f32.mrf.mxu0
    %v327 = vpop.f32.mrf.mxu0
    %v328 = vadd.f32 0.0, %v327
    %v329 = vpop.f32.mrf.mxu0
    %330 = vmatprep.mubr.bf16.mxu0 0
    %331 = vmatmul.mubr.bf16.gmra.mxu0 %v198
    %v332 = vpop.f32.mrf.mxu0
    %v333 = vadd.f32 0.0, %v332
    %v334 = vpop.f32.mrf.mxu0
    %v335 = vpop.f32.mrf.mxu0
    %v336 = vadd.f32 0.0, %v335
    %v337 = vpop.f32.mrf.mxu0
    %338 = vmatprep.mubr.bf16.mxu0 0
    %339 = vmatmul.mubr.bf16.gmra.mxu0 %v199
    %v340 = vpop.f32.mrf.mxu0
    %v341 = vadd.f32 0.0, %v340
    %v342 = vpop.f32.mrf.mxu0
    %v343 = vpop.f32.mrf.mxu0
    %v344 = vadd.f32 0.0, %v343
    %v345 = vpop.f32.mrf.mxu0
    %346 = vmatprep.mubr.bf16.mxu0 0
    %347 = vmatmul.mubr.bf16.gmra.mxu0 %v200
    %v348 = vpop.f32.mrf.mxu0
    %v349 = vadd.f32 0.0, %v348
    %v350 = vpop.f32.mrf.mxu0
    %v351 = vpop.f32.mrf.mxu0
    %v352 = vadd.f32 0.0, %v351
    %v353 = vpop.f32.mrf.mxu0
    %354 = vmatprep.mubr.bf16.mxu0 0
    %355 = vmatmul.mubr.bf16.gmra.mxu0 %v201
    %v356 = vpop.f32.mrf.mxu0
    %v357 = vadd.f32 0.0, %v356
    %v358 = vpop.f32.mrf.mxu0
    %v359 = vpop.f32.mrf.mxu0
    %v360 = vadd.f32 0.0, %v359
    %v361 = vpop.f32.mrf.mxu0
    %362 = vdwg.mxu0
    %v379 = vunpack.c.l.b16 %v132
    %v380 = vunpack.c.l.b16 %v133
    %v381 = vunpack.c.l.b16 %v134
    %v382 = vunpack.c.l.b16 %v135
    %v383 = vunpack.c.l.b16 %v136
    %v384 = vunpack.c.l.b16 %v137
    %v385 = vunpack.c.l.b16 %v138
    %v386 = vunpack.c.l.b16 %v139
    %v387 = vunpack.c.l.b16 %v140
    %v388 = vunpack.c.l.b16 %v141
    %v389 = vunpack.c.l.b16 %v142
    %v390 = vunpack.c.l.b16 %v143
    %v391 = vunpack.c.l.b16 %v144
    %v392 = vunpack.c.l.b16 %v145
    %v393 = vunpack.c.l.b16 %v146
    %v394 = vunpack.c.l.b16 %v147
    %v395 = vpack.c.b16 %v380, %v379
    %v396 = vpack.c.b16 %v382, %v381
    %v397 = vpack.c.b16 %v384, %v383
    %v398 = vpack.c.b16 %v386, %v385
    %v399 = vpack.c.b16 %v388, %v387
    %v400 = vpack.c.b16 %v390, %v389
    %v401 = vpack.c.b16 %v392, %v391
    %v402 = vpack.c.b16 %v394, %v393
    %411 = vmatprep.subr.bf16.mxu0 0
    %412 = vmatpush1.bf16.msra.mxu0 %v402
    %413 = vmatprep.subr.bf16.mxu0 0
    %414 = vmatpush1.bf16.msra.mxu0 %v401
    %415 = vmatprep.subr.bf16.mxu0 0
    %416 = vmatpush1.bf16.msra.mxu0 %v400
    %417 = vmatprep.subr.bf16.mxu0 0
    %418 = vmatpush1.bf16.msra.mxu0 %v399
    %419 = vmatprep.subr.bf16.mxu0 0
    %420 = vmatpush1.bf16.msra.mxu0 %v398
    %421 = vmatprep.subr.bf16.mxu0 0
    %422 = vmatpush1.bf16.msra.mxu0 %v397
    %423 = vmatprep.subr.bf16.mxu0 0
    %424 = vmatpush1.bf16.msra.mxu0 %v396
    %425 = vmatprep.subr.bf16.mxu0 0
    %426 = vmatpush1.bf16.msra.mxu0 %v395
    %427 = vmatprep.subr.bf16.mxu0 0
    %428 = vmatpush2.bf16.msra.mxu0 0
    %429 = vmatprep.subr.bf16.mxu0 0
    %430 = vmatpush2.bf16.msra.mxu0 0
    %431 = vmatprep.subr.bf16.mxu0 0
    %432 = vmatpush2.bf16.msra.mxu0 0
    %433 = vmatprep.subr.bf16.mxu0 0
    %434 = vmatpush2.bf16.msra.mxu0 0
    %435 = vmatprep.subr.bf16.mxu0 0
    %436 = vmatpush2.bf16.msra.mxu0 0
    %437 = vmatprep.subr.bf16.mxu0 0
    %438 = vmatpush2.bf16.msra.mxu0 0
    %439 = vmatprep.subr.bf16.mxu0 0
    %440 = vmatpush2.bf16.msra.mxu0 0
    %441 = vmatprep.subr.bf16.mxu0 0
    %442 = vmatpush2.bf16.msra.mxu0 0
    %443 = vmatprep.mubr.bf16.mxu0 0
    %444 = vmatmul.mubr.bf16.gmra.mxu0 %v124
    %v445 = vpop.f32.mrf.mxu0
    %v446 = vadd.f32 %v301, %v445
    %v447 = vpop.f32.mrf.mxu0
    %v448 = vpop.f32.mrf.mxu0
    %v449 = vadd.f32 %v304, %v448
    %v450 = vpop.f32.mrf.mxu0
    %451 = vmatprep.mubr.bf16.mxu0 0
    %452 = vmatmul.mubr.bf16.gmra.mxu0 %v125
    %v453 = vpop.f32.mrf.mxu0
    %v454 = vadd.f32 %v309, %v453
    %v455 = vpop.f32.mrf.mxu0
    %v456 = vpop.f32.mrf.mxu0
    %v457 = vadd.f32 %v312, %v456
    %v458 = vpop.f32.mrf.mxu0
    %459 = vmatprep.mubr.bf16.mxu0 0
    %460 = vmatmul.mubr.bf16.gmra.mxu0 %v126
    %v461 = vpop.f32.mrf.mxu0
    %v462 = vadd.f32 %v317, %v461
    %v463 = vpop.f32.mrf.mxu0
    %v464 = vpop.f32.mrf.mxu0
    %v465 = vadd.f32 %v320, %v464
    %v466 = vpop.f32.mrf.mxu0
    %467 = vmatprep.mubr.bf16.mxu0 0
    %468 = vmatmul.mubr.bf16.gmra.mxu0 %v127
    %v469 = vpop.f32.mrf.mxu0
    %v470 = vadd.f32 %v325, %v469
    %v471 = vpop.f32.mrf.mxu0
    %v472 = vpop.f32.mrf.mxu0
    %v473 = vadd.f32 %v328, %v472
    %v474 = vpop.f32.mrf.mxu0
    %475 = vmatprep.mubr.bf16.mxu0 0
    %476 = vmatmul.mubr.bf16.gmra.mxu0 %v128
    %v477 = vpop.f32.mrf.mxu0
    %v478 = vadd.f32 %v333, %v477
    %v479 = vpop.f32.mrf.mxu0
    %v480 = vpop.f32.mrf.mxu0
    %v481 = vadd.f32 %v336, %v480
    %v482 = vpop.f32.mrf.mxu0
    %483 = vmatprep.mubr.bf16.mxu0 0
    %484 = vmatmul.mubr.bf16.gmra.mxu0 %v129
    %v485 = vpop.f32.mrf.mxu0
    %v486 = vadd.f32 %v341, %v485
    %v487 = vpop.f32.mrf.mxu0
    %v488 = vpop.f32.mrf.mxu0
    %v489 = vadd.f32 %v344, %v488
    %v490 = vpop.f32.mrf.mxu0
    %491 = vmatprep.mubr.bf16.mxu0 0
    %492 = vmatmul.mubr.bf16.gmra.mxu0 %v130
    %v493 = vpop.f32.mrf.mxu0
    %v494 = vadd.f32 %v349, %v493
    %v495 = vpop.f32.mrf.mxu0
    %v496 = vpop.f32.mrf.mxu0
    %v497 = vadd.f32 %v352, %v496
    %v498 = vpop.f32.mrf.mxu0
    %499 = vmatprep.mubr.bf16.mxu0 0
    %500 = vmatmul.mubr.bf16.gmra.mxu0 %v131
    %v501 = vpop.f32.mrf.mxu0
    %v502 = vadd.f32 %v357, %v501
    %v503 = vpop.f32.mrf.mxu0
    %v504 = vpop.f32.mrf.mxu0
    %v505 = vadd.f32 %v360, %v504
    %v506 = vpop.f32.mrf.mxu0
    %507 = vdwg.mxu0
    %s508 = sld [smem:[#allocation3 + $0x2]]
    %p510 = scmp.ne.f32.partialorder %s508, %s508
    %s511 = sshrl.u32 %s508, 16
    %s512 = sand.u32 %s511, 1
    %s513 = sadd.s32 32767, %s512
    %s514 = sadd.s32 %s508, %s513
    %s515 = sand.u32 %s514, 4294901760
    %s516 = scalar_select %p510, 2143289344, %s515
    %s518 = sshrl.u32 %s516, 16
    %s519 = sld [smem:[#allocation6 + $0x2]]
    %p521 = scmp.ne.f32.partialorder %s519, %s519
    %s522 = sshrl.u32 %s519, 16
    %s523 = sand.u32 %s522, 1
    %s524 = sadd.s32 32767, %s523
    %s525 = sadd.s32 %s519, %s524
    %s526 = sand.u32 %s525, 4294901760
    %s527 = scalar_select %p521, 2143289344, %s526
    %s529 = sshrl.u32 %s527, 16
    %s530 = sshll.u32 %s518, 16
    %s531 = sor.u32 %s518, %s530
    %v532 = vstv %s531
    %v534 = vmul.bf16 %v70, %v532
    %v535 = vmul.bf16 %v71, %v532
    %v536 = vmul.bf16 %v72, %v532
    %v537 = vmul.bf16 %v73, %v532
    %v538 = vmul.bf16 %v74, %v532
    %v539 = vmul.bf16 %v75, %v532
    %v540 = vmul.bf16 %v76, %v532
    %v541 = vmul.bf16 %v77, %v532
    %s542 = sshll.u32 %s529, 16
    %s543 = sor.u32 %s529, %s542
    %v544 = vstv %s543
    %v546 = vadd.bf16 %v534, %v544
    %v547 = vadd.bf16 %v535, %v544
    %v548 = vadd.bf16 %v536, %v544
    %v549 = vadd.bf16 %v537, %v544
    %v550 = vadd.bf16 %v538, %v544
    %v551 = vadd.bf16 %v539, %v544
    %v552 = vadd.bf16 %v540, %v544
    %v553 = vadd.bf16 %v541, %v544
    %v554 = vmax.bf16 %v546, 0
    %v555 = vmax.bf16 %v547, 0
    %v556 = vmax.bf16 %v548, 0
    %v557 = vmax.bf16 %v549, 0
    %v558 = vmax.bf16 %v550, 0
    %v559 = vmax.bf16 %v551, 0
    %v560 = vmax.bf16 %v552, 0
    %v561 = vmax.bf16 %v553, 0
    %v562 = vld [vmem:[%s1 + $0x80] sm:$0xf]
    %v563 = vld [vmem:[%s1 + $0x84] sm:$0xf]
    %v564 = vld [vmem:[%s1 + $0x88] sm:$0xf]
    %v565 = vld [vmem:[%s1 + $0x8c] sm:$0xf]
    %v566 = vld [vmem:[%s1 + $0x90] sm:$0xf]
    %v567 = vld [vmem:[%s1 + $0x94] sm:$0xf]
    %v568 = vld [vmem:[%s1 + $0x98] sm:$0xf]
    %v569 = vld [vmem:[%s1 + $0x9c] sm:$0xf]
    %v570 = vld [vmem:[%s1 + $0xa0] sm:$0xf]
    %v571 = vld [vmem:[%s1 + $0xa4] sm:$0xf]
    %v572 = vld [vmem:[%s1 + $0xa8] sm:$0xf]
    %v573 = vld [vmem:[%s1 + $0xac] sm:$0xf]
    %v574 = vld [vmem:[%s1 + $0xb0] sm:$0xf]
    %v575 = vld [vmem:[%s1 + $0xb4] sm:$0xf]
    %v576 = vld [vmem:[%s1 + $0xb8] sm:$0xf]
    %v577 = vld [vmem:[%s1 + $0xbc] sm:$0xf]
    %v594 = vunpack.c.l.b16 %v562
    %v595 = vunpack.c.l.b16 %v563
    %v596 = vunpack.c.l.b16 %v564
    %v597 = vunpack.c.l.b16 %v565
    %v598 = vunpack.c.l.b16 %v566
    %v599 = vunpack.c.l.b16 %v567
    %v600 = vunpack.c.l.b16 %v568
    %v601 = vunpack.c.l.b16 %v569
    %v602 = vunpack.c.l.b16 %v570
    %v603 = vunpack.c.l.b16 %v571
    %v604 = vunpack.c.l.b16 %v572
    %v605 = vunpack.c.l.b16 %v573
    %v606 = vunpack.c.l.b16 %v574
    %v607 = vunpack.c.l.b16 %v575
    %v608 = vunpack.c.l.b16 %v576
    %v609 = vunpack.c.l.b16 %v577
    %v610 = vpack.c.b16 %v595, %v594
    %v611 = vpack.c.b16 %v597, %v596
    %v612 = vpack.c.b16 %v599, %v598
    %v613 = vpack.c.b16 %v601, %v600
    %v614 = vpack.c.b16 %v603, %v602
    %v615 = vpack.c.b16 %v605, %v604
    %v616 = vpack.c.b16 %v607, %v606
    %v617 = vpack.c.b16 %v609, %v608
    %626 = vmatprep.subr.bf16.mxu0 0
    %627 = vmatpush1.bf16.msra.mxu0 %v617
    %628 = vmatprep.subr.bf16.mxu0 0
    %629 = vmatpush1.bf16.msra.mxu0 %v616
    %630 = vmatprep.subr.bf16.mxu0 0
    %631 = vmatpush1.bf16.msra.mxu0 %v615
    %632 = vmatprep.subr.bf16.mxu0 0
    %633 = vmatpush1.bf16.msra.mxu0 %v614
    %634 = vmatprep.subr.bf16.mxu0 0
    %635 = vmatpush1.bf16.msra.mxu0 %v613
    %636 = vmatprep.subr.bf16.mxu0 0
    %637 = vmatpush1.bf16.msra.mxu0 %v612
    %638 = vmatprep.subr.bf16.mxu0 0
    %639 = vmatpush1.bf16.msra.mxu0 %v611
    %640 = vmatprep.subr.bf16.mxu0 0
    %641 = vmatpush1.bf16.msra.mxu0 %v610
    %642 = vmatprep.subr.bf16.mxu0 0
    %643 = vmatpush2.bf16.msra.mxu0 0
    %644 = vmatprep.subr.bf16.mxu0 0
    %645 = vmatpush2.bf16.msra.mxu0 0
    %646 = vmatprep.subr.bf16.mxu0 0
    %647 = vmatpush2.bf16.msra.mxu0 0
    %648 = vmatprep.subr.bf16.mxu0 0
    %649 = vmatpush2.bf16.msra.mxu0 0
    %650 = vmatprep.subr.bf16.mxu0 0
    %651 = vmatpush2.bf16.msra.mxu0 0
    %652 = vmatprep.subr.bf16.mxu0 0
    %653 = vmatpush2.bf16.msra.mxu0 0
    %654 = vmatprep.subr.bf16.mxu0 0
    %655 = vmatpush2.bf16.msra.mxu0 0
    %656 = vmatprep.subr.bf16.mxu0 0
    %657 = vmatpush2.bf16.msra.mxu0 0
    %658 = vmatprep.mubr.bf16.mxu0 0
    %659 = vmatmul.mubr.bf16.gmra.mxu0 %v554
    %v660 = vpop.f32.mrf.mxu0
    %v661 = vadd.f32 0.0, %v660
    %v662 = vpop.f32.mrf.mxu0
    %v663 = vpop.f32.mrf.mxu0
    %v664 = vadd.f32 0.0, %v663
    %v665 = vpop.f32.mrf.mxu0
    %666 = vmatprep.mubr.bf16.mxu0 0
    %667 = vmatmul.mubr.bf16.gmra.mxu0 %v555
    %v668 = vpop.f32.mrf.mxu0
    %v669 = vadd.f32 0.0, %v668
    %v670 = vpop.f32.mrf.mxu0
    %v671 = vpop.f32.mrf.mxu0
    %v672 = vadd.f32 0.0, %v671
    %v673 = vpop.f32.mrf.mxu0
    %674 = vmatprep.mubr.bf16.mxu0 0
    %675 = vmatmul.mubr.bf16.gmra.mxu0 %v556
    %v676 = vpop.f32.mrf.mxu0
    %v677 = vadd.f32 0.0, %v676
    %v678 = vpop.f32.mrf.mxu0
    %v679 = vpop.f32.mrf.mxu0
    %v680 = vadd.f32 0.0, %v679
    %v681 = vpop.f32.mrf.mxu0
    %682 = vmatprep.mubr.bf16.mxu0 0
    %683 = vmatmul.mubr.bf16.gmra.mxu0 %v557
    %v684 = vpop.f32.mrf.mxu0
    %v685 = vadd.f32 0.0, %v684
    %v686 = vpop.f32.mrf.mxu0
    %v687 = vpop.f32.mrf.mxu0
    %v688 = vadd.f32 0.0, %v687
    %v689 = vpop.f32.mrf.mxu0
    %690 = vmatprep.mubr.bf16.mxu0 0
    %691 = vmatmul.mubr.bf16.gmra.mxu0 %v558
    %v692 = vpop.f32.mrf.mxu0
    %v693 = vadd.f32 0.0, %v692
    %v694 = vpop.f32.mrf.mxu0
    %v695 = vpop.f32.mrf.mxu0
    %v696 = vadd.f32 0.0, %v695
    %v697 = vpop.f32.mrf.mxu0
    %698 = vmatprep.mubr.bf16.mxu0 0
    %699 = vmatmul.mubr.bf16.gmra.mxu0 %v559
    %v700 = vpop.f32.mrf.mxu0
    %v701 = vadd.f32 0.0, %v700
    %v702 = vpop.f32.mrf.mxu0
    %v703 = vpop.f32.mrf.mxu0
    %v704 = vadd.f32 0.0, %v703
    %v705 = vpop.f32.mrf.mxu0
    %706 = vmatprep.mubr.bf16.mxu0 0
    %707 = vmatmul.mubr.bf16.gmra.mxu0 %v560
    %v708 = vpop.f32.mrf.mxu0
    %v709 = vadd.f32 0.0, %v708
    %v710 = vpop.f32.mrf.mxu0
    %v711 = vpop.f32.mrf.mxu0
    %v712 = vadd.f32 0.0, %v711
    %v713 = vpop.f32.mrf.mxu0
    %714 = vmatprep.mubr.bf16.mxu0 0
    %715 = vmatmul.mubr.bf16.gmra.mxu0 %v561
    %v716 = vpop.f32.mrf.mxu0
    %v717 = vadd.f32 0.0, %v716
    %v718 = vpop.f32.mrf.mxu0
    %v719 = vpop.f32.mrf.mxu0
    %v720 = vadd.f32 0.0, %v719
    %v721 = vpop.f32.mrf.mxu0
    %722 = vdwg.mxu0
    %v723 = vadd.f32 %v446, %v661
    %v724 = vadd.f32 %v449, %v664
    %v725 = vadd.f32 %v454, %v669
    %v726 = vadd.f32 %v457, %v672
    %v727 = vadd.f32 %v462, %v677
    %v728 = vadd.f32 %v465, %v680
    %v729 = vadd.f32 %v470, %v685
    %v730 = vadd.f32 %v473, %v688
    %v731 = vadd.f32 %v478, %v693
    %v732 = vadd.f32 %v481, %v696
    %v733 = vadd.f32 %v486, %v701
    %v734 = vadd.f32 %v489, %v704
    %v735 = vadd.f32 %v494, %v709
    %v736 = vadd.f32 %v497, %v712
    %v737 = vadd.f32 %v502, %v717
    %v738 = vadd.f32 %v505, %v720
    %s739 = sld [smem:[#allocation3 + $0x3]]
    %p741 = scmp.ne.f32.partialorder %s739, %s739
    %s742 = sshrl.u32 %s739, 16
    %s743 = sand.u32 %s742, 1
    %s744 = sadd.s32 32767, %s743
    %s745 = sadd.s32 %s739, %s744
    %s746 = sand.u32 %s745, 4294901760
    %s747 = scalar_select %p741, 2143289344, %s746
    %s749 = sshrl.u32 %s747, 16
    %s750 = sld [smem:[#allocation6 + $0x3]]
    %p752 = scmp.ne.f32.partialorder %s750, %s750
    %s753 = sshrl.u32 %s750, 16
    %s754 = sand.u32 %s753, 1
    %s755 = sadd.s32 32767, %s754
    %s756 = sadd.s32 %s750, %s755
    %s757 = sand.u32 %s756, 4294901760
    %s758 = scalar_select %p752, 2143289344, %s757
    %s760 = sshrl.u32 %s758, 16
    %s761 = sshll.u32 %s749, 16
    %s762 = sor.u32 %s749, %s761
    %v763 = vstv %s762
    %v765 = vmul.bf16 %v70, %v763
    %v766 = vmul.bf16 %v71, %v763
    %v767 = vmul.bf16 %v72, %v763
    %v768 = vmul.bf16 %v73, %v763
    %v769 = vmul.bf16 %v74, %v763
    %v770 = vmul.bf16 %v75, %v763
    %v771 = vmul.bf16 %v76, %v763
    %v772 = vmul.bf16 %v77, %v763
    %s773 = sshll.u32 %s760, 16
    %s774 = sor.u32 %s760, %s773
    %v775 = vstv %s774
    %v777 = vadd.bf16 %v765, %v775
    %v778 = vadd.bf16 %v766, %v775
    %v779 = vadd.bf16 %v767, %v775
    %v780 = vadd.bf16 %v768, %v775
    %v781 = vadd.bf16 %v769, %v775
    %v782 = vadd.bf16 %v770, %v775
    %v783 = vadd.bf16 %v771, %v775
    %v784 = vadd.bf16 %v772, %v775
    %v785 = vmax.bf16 %v777, 0
    %v786 = vmax.bf16 %v778, 0
    %v787 = vmax.bf16 %v779, 0
    %v788 = vmax.bf16 %v780, 0
    %v789 = vmax.bf16 %v781, 0
    %v790 = vmax.bf16 %v782, 0
    %v791 = vmax.bf16 %v783, 0
    %v792 = vmax.bf16 %v784, 0
    %v793 = vld [vmem:[%s1 + $0xc0] sm:$0xf]
    %v794 = vld [vmem:[%s1 + $0xc4] sm:$0xf]
    %v795 = vld [vmem:[%s1 + $0xc8] sm:$0xf]
    %v796 = vld [vmem:[%s1 + $0xcc] sm:$0xf]
    %v797 = vld [vmem:[%s1 + $0xd0] sm:$0xf]
    %v798 = vld [vmem:[%s1 + $0xd4] sm:$0xf]
    %v799 = vld [vmem:[%s1 + $0xd8] sm:$0xf]
    %v800 = vld [vmem:[%s1 + $0xdc] sm:$0xf]
    %v801 = vld [vmem:[%s1 + $0xe0] sm:$0xf]
    %v802 = vld [vmem:[%s1 + $0xe4] sm:$0xf]
    %v803 = vld [vmem:[%s1 + $0xe8] sm:$0xf]
    %v804 = vld [vmem:[%s1 + $0xec] sm:$0xf]
    %v805 = vld [vmem:[%s1 + $0xf0] sm:$0xf]
    %v806 = vld [vmem:[%s1 + $0xf4] sm:$0xf]
    %v807 = vld [vmem:[%s1 + $0xf8] sm:$0xf]
    %v808 = vld [vmem:[%s1 + $0xfc] sm:$0xf]
    %v825 = vunpack.c.l.b16 %v793
    %v826 = vunpack.c.l.b16 %v794
    %v827 = vunpack.c.l.b16 %v795
    %v828 = vunpack.c.l.b16 %v796
    %v829 = vunpack.c.l.b16 %v797
    %v830 = vunpack.c.l.b16 %v798
    %v831 = vunpack.c.l.b16 %v799
    %v832 = vunpack.c.l.b16 %v800
    %v833 = vunpack.c.l.b16 %v801
    %v834 = vunpack.c.l.b16 %v802
    %v835 = vunpack.c.l.b16 %v803
    %v836 = vunpack.c.l.b16 %v804
    %v837 = vunpack.c.l.b16 %v805
    %v838 = vunpack.c.l.b16 %v806
    %v839 = vunpack.c.l.b16 %v807
    %v840 = vunpack.c.l.b16 %v808
    %v841 = vpack.c.b16 %v826, %v825
    %v842 = vpack.c.b16 %v828, %v827
    %v843 = vpack.c.b16 %v830, %v829
    %v844 = vpack.c.b16 %v832, %v831
    %v845 = vpack.c.b16 %v834, %v833
    %v846 = vpack.c.b16 %v836, %v835
    %v847 = vpack.c.b16 %v838, %v837
    %v848 = vpack.c.b16 %v840, %v839
    %857 = vmatprep.subr.bf16.mxu0 0
    %858 = vmatpush1.bf16.msra.mxu0 %v848
    %859 = vmatprep.subr.bf16.mxu0 0
    %860 = vmatpush1.bf16.msra.mxu0 %v847
    %861 = vmatprep.subr.bf16.mxu0 0
    %862 = vmatpush1.bf16.msra.mxu0 %v846
    %863 = vmatprep.subr.bf16.mxu0 0
    %864 = vmatpush1.bf16.msra.mxu0 %v845
    %865 = vmatprep.subr.bf16.mxu0 0
    %866 = vmatpush1.bf16.msra.mxu0 %v844
    %867 = vmatprep.subr.bf16.mxu0 0
    %868 = vmatpush1.bf16.msra.mxu0 %v843
    %869 = vmatprep.subr.bf16.mxu0 0
    %870 = vmatpush1.bf16.msra.mxu0 %v842
    %871 = vmatprep.subr.bf16.mxu0 0
    %872 = vmatpush1.bf16.msra.mxu0 %v841
    %873 = vmatprep.subr.bf16.mxu0 0
    %874 = vmatpush2.bf16.msra.mxu0 0
    %875 = vmatprep.subr.bf16.mxu0 0
    %876 = vmatpush2.bf16.msra.mxu0 0
    %877 = vmatprep.subr.bf16.mxu0 0
    %878 = vmatpush2.bf16.msra.mxu0 0
    %879 = vmatprep.subr.bf16.mxu0 0
    %880 = vmatpush2.bf16.msra.mxu0 0
    %881 = vmatprep.subr.bf16.mxu0 0
    %882 = vmatpush2.bf16.msra.mxu0 0
    %883 = vmatprep.subr.bf16.mxu0 0
    %884 = vmatpush2.bf16.msra.mxu0 0
    %885 = vmatprep.subr.bf16.mxu0 0
    %886 = vmatpush2.bf16.msra.mxu0 0
    %887 = vmatprep.subr.bf16.mxu0 0
    %888 = vmatpush2.bf16.msra.mxu0 0
    %889 = vmatprep.mubr.bf16.mxu0 0
    %890 = vmatmul.mubr.bf16.gmra.mxu0 %v785
    %v891 = vpop.f32.mrf.mxu0
    %v892 = vadd.f32 0.0, %v891
    %v893 = vpop.f32.mrf.mxu0
    %v894 = vpop.f32.mrf.mxu0
    %v895 = vadd.f32 0.0, %v894
    %v896 = vpop.f32.mrf.mxu0
    %897 = vmatprep.mubr.bf16.mxu0 0
    %898 = vmatmul.mubr.bf16.gmra.mxu0 %v786
    %v899 = vpop.f32.mrf.mxu0
    %v900 = vadd.f32 0.0, %v899
    %v901 = vpop.f32.mrf.mxu0
    %v902 = vpop.f32.mrf.mxu0
    %v903 = vadd.f32 0.0, %v902
    %v904 = vpop.f32.mrf.mxu0
    %905 = vmatprep.mubr.bf16.mxu0 0
    %906 = vmatmul.mubr.bf16.gmra.mxu0 %v787
    %v907 = vpop.f32.mrf.mxu0
    %v908 = vadd.f32 0.0, %v907
    %v909 = vpop.f32.mrf.mxu0
    %v910 = vpop.f32.mrf.mxu0
    %v911 = vadd.f32 0.0, %v910
    %v912 = vpop.f32.mrf.mxu0
    %913 = vmatprep.mubr.bf16.mxu0 0
    %914 = vmatmul.mubr.bf16.gmra.mxu0 %v788
    %v915 = vpop.f32.mrf.mxu0
    %v916 = vadd.f32 0.0, %v915
    %v917 = vpop.f32.mrf.mxu0
    %v918 = vpop.f32.mrf.mxu0
    %v919 = vadd.f32 0.0, %v918
    %v920 = vpop.f32.mrf.mxu0
    %921 = vmatprep.mubr.bf16.mxu0 0
    %922 = vmatmul.mubr.bf16.gmra.mxu0 %v789
    %v923 = vpop.f32.mrf.mxu0
    %v924 = vadd.f32 0.0, %v923
    %v925 = vpop.f32.mrf.mxu0
    %v926 = vpop.f32.mrf.mxu0
    %v927 = vadd.f32 0.0, %v926
    %v928 = vpop.f32.mrf.mxu0
    %929 = vmatprep.mubr.bf16.mxu0 0
    %930 = vmatmul.mubr.bf16.gmra.mxu0 %v790
    %v931 = vpop.f32.mrf.mxu0
    %v932 = vadd.f32 0.0, %v931
    %v933 = vpop.f32.mrf.mxu0
    %v934 = vpop.f32.mrf.mxu0
    %v935 = vadd.f32 0.0, %v934
    %v936 = vpop.f32.mrf.mxu0
    %937 = vmatprep.mubr.bf16.mxu0 0
    %938 = vmatmul.mubr.bf16.gmra.mxu0 %v791
    %v939 = vpop.f32.mrf.mxu0
    %v940 = vadd.f32 0.0, %v939
    %v941 = vpop.f32.mrf.mxu0
    %v942 = vpop.f32.mrf.mxu0
    %v943 = vadd.f32 0.0, %v942
    %v944 = vpop.f32.mrf.mxu0
    %945 = vmatprep.mubr.bf16.mxu0 0
    %946 = vmatmul.mubr.bf16.gmra.mxu0 %v792
    %v947 = vpop.f32.mrf.mxu0
    %v948 = vadd.f32 0.0, %v947
    %v949 = vpop.f32.mrf.mxu0
    %v950 = vpop.f32.mrf.mxu0
    %v951 = vadd.f32 0.0, %v950
    %v952 = vpop.f32.mrf.mxu0
    %953 = vdwg.mxu0
    %v954 = vadd.f32 %v723, %v892
    %v955 = vadd.f32 %v724, %v895
    %v956 = vadd.f32 %v725, %v900
    %v957 = vadd.f32 %v726, %v903
    %v958 = vadd.f32 %v727, %v908
    %v959 = vadd.f32 %v728, %v911
    %v960 = vadd.f32 %v729, %v916
    %v961 = vadd.f32 %v730, %v919
    %v962 = vadd.f32 %v731, %v924
    %v963 = vadd.f32 %v732, %v927
    %v964 = vadd.f32 %v733, %v932
    %v965 = vadd.f32 %v734, %v935
    %v966 = vadd.f32 %v735, %v940
    %v967 = vadd.f32 %v736, %v943
    %v968 = vadd.f32 %v737, %v948
    %v969 = vadd.f32 %v738, %v951
    %s970 = sld [smem:[#allocation3 + $0x4]]
    %p972 = scmp.ne.f32.partialorder %s970, %s970
    %s973 = sshrl.u32 %s970, 16
    %s974 = sand.u32 %s973, 1
    %s975 = sadd.s32 32767, %s974
    %s976 = sadd.s32 %s970, %s975
    %s977 = sand.u32 %s976, 4294901760
    %s978 = scalar_select %p972, 2143289344, %s977
    %s980 = sshrl.u32 %s978, 16
    %s981 = sld [smem:[#allocation6 + $0x4]]
    %p983 = scmp.ne.f32.partialorder %s981, %s981
    %s984 = sshrl.u32 %s981, 16
    %s985 = sand.u32 %s984, 1
    %s986 = sadd.s32 32767, %s985
    %s987 = sadd.s32 %s981, %s986
    %s988 = sand.u32 %s987, 4294901760
    %s989 = scalar_select %p983, 2143289344, %s988
    %s991 = sshrl.u32 %s989, 16
    %s992 = sshll.u32 %s980, 16
    %s993 = sor.u32 %s980, %s992
    %v994 = vstv %s993
    %v996 = vmul.bf16 %v70, %v994
    %v997 = vmul.bf16 %v71, %v994
    %v998 = vmul.bf16 %v72, %v994
    %v999 = vmul.bf16 %v73, %v994
    %v1000 = vmul.bf16 %v74, %v994
    %v1001 = vmul.bf16 %v75, %v994
    %v1002 = vmul.bf16 %v76, %v994
    %v1003 = vmul.bf16 %v77, %v994
    %s1004 = sshll.u32 %s991, 16
    %s1005 = sor.u32 %s991, %s1004
    %v1006 = vstv %s1005
    %v1008 = vadd.bf16 %v996, %v1006
    %v1009 = vadd.bf16 %v997, %v1006
    %v1010 = vadd.bf16 %v998, %v1006
    %v1011 = vadd.bf16 %v999, %v1006
    %v1012 = vadd.bf16 %v1000, %v1006
    %v1013 = vadd.bf16 %v1001, %v1006
    %v1014 = vadd.bf16 %v1002, %v1006
    %v1015 = vadd.bf16 %v1003, %v1006
    %v1016 = vmax.bf16 %v1008, 0
    %v1017 = vmax.bf16 %v1009, 0
    %v1018 = vmax.bf16 %v1010, 0
    %v1019 = vmax.bf16 %v1011, 0
    %v1020 = vmax.bf16 %v1012, 0
    %v1021 = vmax.bf16 %v1013, 0
    %v1022 = vmax.bf16 %v1014, 0
    %v1023 = vmax.bf16 %v1015, 0
    %v1024 = vld [vmem:[%s1 + $0x100] sm:$0xf]
    %v1025 = vld [vmem:[%s1 + $0x104] sm:$0xf]
    %v1026 = vld [vmem:[%s1 + $0x108] sm:$0xf]
    %v1027 = vld [vmem:[%s1 + $0x10c] sm:$0xf]
    %v1028 = vld [vmem:[%s1 + $0x110] sm:$0xf]
    %v1029 = vld [vmem:[%s1 + $0x114] sm:$0xf]
    %v1030 = vld [vmem:[%s1 + $0x118] sm:$0xf]
    %v1031 = vld [vmem:[%s1 + $0x11c] sm:$0xf]
    %v1032 = vld [vmem:[%s1 + $0x120] sm:$0xf]
    %v1033 = vld [vmem:[%s1 + $0x124] sm:$0xf]
    %v1034 = vld [vmem:[%s1 + $0x128] sm:$0xf]
    %v1035 = vld [vmem:[%s1 + $0x12c] sm:$0xf]
    %v1036 = vld [vmem:[%s1 + $0x130] sm:$0xf]
    %v1037 = vld [vmem:[%s1 + $0x134] sm:$0xf]
    %v1038 = vld [vmem:[%s1 + $0x138] sm:$0xf]
    %v1039 = vld [vmem:[%s1 + $0x13c] sm:$0xf]
    %v1056 = vunpack.c.l.b16 %v1024
    %v1057 = vunpack.c.l.b16 %v1025
    %v1058 = vunpack.c.l.b16 %v1026
    %v1059 = vunpack.c.l.b16 %v1027
    %v1060 = vunpack.c.l.b16 %v1028
    %v1061 = vunpack.c.l.b16 %v1029
    %v1062 = vunpack.c.l.b16 %v1030
    %v1063 = vunpack.c.l.b16 %v1031
    %v1064 = vunpack.c.l.b16 %v1032
    %v1065 = vunpack.c.l.b16 %v1033
    %v1066 = vunpack.c.l.b16 %v1034
    %v1067 = vunpack.c.l.b16 %v1035
    %v1068 = vunpack.c.l.b16 %v1036
    %v1069 = vunpack.c.l.b16 %v1037
    %v1070 = vunpack.c.l.b16 %v1038
    %v1071 = vunpack.c.l.b16 %v1039
    %v1072 = vpack.c.b16 %v1057, %v1056
    %v1073 = vpack.c.b16 %v1059, %v1058
    %v1074 = vpack.c.b16 %v1061, %v1060
    %v1075 = vpack.c.b16 %v1063, %v1062
    %v1076 = vpack.c.b16 %v1065, %v1064
    %v1077 = vpack.c.b16 %v1067, %v1066
    %v1078 = vpack.c.b16 %v1069, %v1068
    %v1079 = vpack.c.b16 %v1071, %v1070
    %1088 = vmatprep.subr.bf16.mxu0 0
    %1089 = vmatpush1.bf16.msra.mxu0 %v1079
    %1090 = vmatprep.subr.bf16.mxu0 0
    %1091 = vmatpush1.bf16.msra.mxu0 %v1078
    %1092 = vmatprep.subr.bf16.mxu0 0
    %1093 = vmatpush1.bf16.msra.mxu0 %v1077
    %1094 = vmatprep.subr.bf16.mxu0 0
    %1095 = vmatpush1.bf16.msra.mxu0 %v1076
    %1096 = vmatprep.subr.bf16.mxu0 0
    %1097 = vmatpush1.bf16.msra.mxu0 %v1075
    %1098 = vmatprep.subr.bf16.mxu0 0
    %1099 = vmatpush1.bf16.msra.mxu0 %v1074
    %1100 = vmatprep.subr.bf16.mxu0 0
    %1101 = vmatpush1.bf16.msra.mxu0 %v1073
    %1102 = vmatprep.subr.bf16.mxu0 0
    %1103 = vmatpush1.bf16.msra.mxu0 %v1072
    %1104 = vmatprep.subr.bf16.mxu0 0
    %1105 = vmatpush2.bf16.msra.mxu0 0
    %1106 = vmatprep.subr.bf16.mxu0 0
    %1107 = vmatpush2.bf16.msra.mxu0 0
    %1108 = vmatprep.subr.bf16.mxu0 0
    %1109 = vmatpush2.bf16.msra.mxu0 0
    %1110 = vmatprep.subr.bf16.mxu0 0
    %1111 = vmatpush2.bf16.msra.mxu0 0
    %1112 = vmatprep.subr.bf16.mxu0 0
    %1113 = vmatpush2.bf16.msra.mxu0 0
    %1114 = vmatprep.subr.bf16.mxu0 0
    %1115 = vmatpush2.bf16.msra.mxu0 0
    %1116 = vmatprep.subr.bf16.mxu0 0
    %1117 = vmatpush2.bf16.msra.mxu0 0
    %1118 = vmatprep.subr.bf16.mxu0 0
    %1119 = vmatpush2.bf16.msra.mxu0 0
    %1120 = vmatprep.mubr.bf16.mxu0 0
    %1121 = vmatmul.mubr.bf16.gmra.mxu0 %v1016
    %v1122 = vpop.f32.mrf.mxu0
    %v1123 = vadd.f32 0.0, %v1122
    %v1124 = vpop.f32.mrf.mxu0
    %v1125 = vpop.f32.mrf.mxu0
    %v1126 = vadd.f32 0.0, %v1125
    %v1127 = vpop.f32.mrf.mxu0
    %1128 = vmatprep.mubr.bf16.mxu0 0
    %1129 = vmatmul.mubr.bf16.gmra.mxu0 %v1017
    %v1130 = vpop.f32.mrf.mxu0
    %v1131 = vadd.f32 0.0, %v1130
    %v1132 = vpop.f32.mrf.mxu0
    %v1133 = vpop.f32.mrf.mxu0
    %v1134 = vadd.f32 0.0, %v1133
    %v1135 = vpop.f32.mrf.mxu0
    %1136 = vmatprep.mubr.bf16.mxu0 0
    %1137 = vmatmul.mubr.bf16.gmra.mxu0 %v1018
    %v1138 = vpop.f32.mrf.mxu0
    %v1139 = vadd.f32 0.0, %v1138
    %v1140 = vpop.f32.mrf.mxu0
    %v1141 = vpop.f32.mrf.mxu0
    %v1142 = vadd.f32 0.0, %v1141
    %v1143 = vpop.f32.mrf.mxu0
    %1144 = vmatprep.mubr.bf16.mxu0 0
    %1145 = vmatmul.mubr.bf16.gmra.mxu0 %v1019
    %v1146 = vpop.f32.mrf.mxu0
    %v1147 = vadd.f32 0.0, %v1146
    %v1148 = vpop.f32.mrf.mxu0
    %v1149 = vpop.f32.mrf.mxu0
    %v1150 = vadd.f32 0.0, %v1149
    %v1151 = vpop.f32.mrf.mxu0
    %1152 = vmatprep.mubr.bf16.mxu0 0
    %1153 = vmatmul.mubr.bf16.gmra.mxu0 %v1020
    %v1154 = vpop.f32.mrf.mxu0
    %v1155 = vadd.f32 0.0, %v1154
    %v1156 = vpop.f32.mrf.mxu0
    %v1157 = vpop.f32.mrf.mxu0
    %v1158 = vadd.f32 0.0, %v1157
    %v1159 = vpop.f32.mrf.mxu0
    %1160 = vmatprep.mubr.bf16.mxu0 0
    %1161 = vmatmul.mubr.bf16.gmra.mxu0 %v1021
    %v1162 = vpop.f32.mrf.mxu0
    %v1163 = vadd.f32 0.0, %v1162
    %v1164 = vpop.f32.mrf.mxu0
    %v1165 = vpop.f32.mrf.mxu0
    %v1166 = vadd.f32 0.0, %v1165
    %v1167 = vpop.f32.mrf.mxu0
    %1168 = vmatprep.mubr.bf16.mxu0 0
    %1169 = vmatmul.mubr.bf16.gmra.mxu0 %v1022
    %v1170 = vpop.f32.mrf.mxu0
    %v1171 = vadd.f32 0.0, %v1170
    %v1172 = vpop.f32.mrf.mxu0
    %v1173 = vpop.f32.mrf.mxu0
    %v1174 = vadd.f32 0.0, %v1173
    %v1175 = vpop.f32.mrf.mxu0
    %1176 = vmatprep.mubr.bf16.mxu0 0
    %1177 = vmatmul.mubr.bf16.gmra.mxu0 %v1023
    %v1178 = vpop.f32.mrf.mxu0
    %v1179 = vadd.f32 0.0, %v1178
    %v1180 = vpop.f32.mrf.mxu0
    %v1181 = vpop.f32.mrf.mxu0
    %v1182 = vadd.f32 0.0, %v1181
    %v1183 = vpop.f32.mrf.mxu0
    %1184 = vdwg.mxu0
    %v1185 = vadd.f32 %v954, %v1123
    %v1186 = vadd.f32 %v955, %v1126
    %v1187 = vadd.f32 %v956, %v1131
    %v1188 = vadd.f32 %v957, %v1134
    %v1189 = vadd.f32 %v958, %v1139
    %v1190 = vadd.f32 %v959, %v1142
    %v1191 = vadd.f32 %v960, %v1147
    %v1192 = vadd.f32 %v961, %v1150
    %v1193 = vadd.f32 %v962, %v1155
    %v1194 = vadd.f32 %v963, %v1158
    %v1195 = vadd.f32 %v964, %v1163
    %v1196 = vadd.f32 %v965, %v1166
    %v1197 = vadd.f32 %v966, %v1171
    %v1198 = vadd.f32 %v967, %v1174
    %v1199 = vadd.f32 %v968, %v1179
    %v1200 = vadd.f32 %v969, %v1182
    %s1201 = sld [smem:[#allocation3 + $0x5]]
    %p1203 = scmp.ne.f32.partialorder %s1201, %s1201
    %s1204 = sshrl.u32 %s1201, 16
    %s1205 = sand.u32 %s1204, 1
    %s1206 = sadd.s32 32767, %s1205
    %s1207 = sadd.s32 %s1201, %s1206
    %s1208 = sand.u32 %s1207, 4294901760
    %s1209 = scalar_select %p1203, 2143289344, %s1208
    %s1211 = sshrl.u32 %s1209, 16
    %s1212 = sld [smem:[#allocation6 + $0x5]]
    %p1214 = scmp.ne.f32.partialorder %s1212, %s1212
    %s1215 = sshrl.u32 %s1212, 16
    %s1216 = sand.u32 %s1215, 1
    %s1217 = sadd.s32 32767, %s1216
    %s1218 = sadd.s32 %s1212, %s1217
    %s1219 = sand.u32 %s1218, 4294901760
    %s1220 = scalar_select %p1214, 2143289344, %s1219
    %s1222 = sshrl.u32 %s1220, 16
    %s1223 = sshll.u32 %s1211, 16
    %s1224 = sor.u32 %s1211, %s1223
    %v1225 = vstv %s1224
    %v1227 = vmul.bf16 %v70, %v1225
    %v1228 = vmul.bf16 %v71, %v1225
    %v1229 = vmul.bf16 %v72, %v1225
    %v1230 = vmul.bf16 %v73, %v1225
    %v1231 = vmul.bf16 %v74, %v1225
    %v1232 = vmul.bf16 %v75, %v1225
    %v1233 = vmul.bf16 %v76, %v1225
    %v1234 = vmul.bf16 %v77, %v1225
    %s1235 = sshll.u32 %s1222, 16
    %s1236 = sor.u32 %s1222, %s1235
    %v1237 = vstv %s1236
    %v1239 = vadd.bf16 %v1227, %v1237
    %v1240 = vadd.bf16 %v1228, %v1237
    %v1241 = vadd.bf16 %v1229, %v1237
    %v1242 = vadd.bf16 %v1230, %v1237
    %v1243 = vadd.bf16 %v1231, %v1237
    %v1244 = vadd.bf16 %v1232, %v1237
    %v1245 = vadd.bf16 %v1233, %v1237
    %v1246 = vadd.bf16 %v1234, %v1237
    %v1247 = vmax.bf16 %v1239, 0
    %v1248 = vmax.bf16 %v1240, 0
    %v1249 = vmax.bf16 %v1241, 0
    %v1250 = vmax.bf16 %v1242, 0
    %v1251 = vmax.bf16 %v1243, 0
    %v1252 = vmax.bf16 %v1244, 0
    %v1253 = vmax.bf16 %v1245, 0
    %v1254 = vmax.bf16 %v1246, 0
    %v1255 = vld [vmem:[%s1 + $0x140] sm:$0xf]
    %v1256 = vld [vmem:[%s1 + $0x144] sm:$0xf]
    %v1257 = vld [vmem:[%s1 + $0x148] sm:$0xf]
    %v1258 = vld [vmem:[%s1 + $0x14c] sm:$0xf]
    %v1259 = vld [vmem:[%s1 + $0x150] sm:$0xf]
    %v1260 = vld [vmem:[%s1 + $0x154] sm:$0xf]
    %v1261 = vld [vmem:[%s1 + $0x158] sm:$0xf]
    %v1262 = vld [vmem:[%s1 + $0x15c] sm:$0xf]
    %v1263 = vld [vmem:[%s1 + $0x160] sm:$0xf]
    %v1264 = vld [vmem:[%s1 + $0x164] sm:$0xf]
    %v1265 = vld [vmem:[%s1 + $0x168] sm:$0xf]
    %v1266 = vld [vmem:[%s1 + $0x16c] sm:$0xf]
    %v1267 = vld [vmem:[%s1 + $0x170] sm:$0xf]
    %v1268 = vld [vmem:[%s1 + $0x174] sm:$0xf]
    %v1269 = vld [vmem:[%s1 + $0x178] sm:$0xf]
    %v1270 = vld [vmem:[%s1 + $0x17c] sm:$0xf]
    %v1287 = vunpack.c.l.b16 %v1255
    %v1288 = vunpack.c.l.b16 %v1256
    %v1289 = vunpack.c.l.b16 %v1257
    %v1290 = vunpack.c.l.b16 %v1258
    %v1291 = vunpack.c.l.b16 %v1259
    %v1292 = vunpack.c.l.b16 %v1260
    %v1293 = vunpack.c.l.b16 %v1261
    %v1294 = vunpack.c.l.b16 %v1262
    %v1295 = vunpack.c.l.b16 %v1263
    %v1296 = vunpack.c.l.b16 %v1264
    %v1297 = vunpack.c.l.b16 %v1265
    %v1298 = vunpack.c.l.b16 %v1266
    %v1299 = vunpack.c.l.b16 %v1267
    %v1300 = vunpack.c.l.b16 %v1268
    %v1301 = vunpack.c.l.b16 %v1269
    %v1302 = vunpack.c.l.b16 %v1270
    %v1303 = vpack.c.b16 %v1288, %v1287
    %v1304 = vpack.c.b16 %v1290, %v1289
    %v1305 = vpack.c.b16 %v1292, %v1291
    %v1306 = vpack.c.b16 %v1294, %v1293
    %v1307 = vpack.c.b16 %v1296, %v1295
    %v1308 = vpack.c.b16 %v1298, %v1297
    %v1309 = vpack.c.b16 %v1300, %v1299
    %v1310 = vpack.c.b16 %v1302, %v1301
    %1319 = vmatprep.subr.bf16.mxu0 0
    %1320 = vmatpush1.bf16.msra.mxu0 %v1310
    %1321 = vmatprep.subr.bf16.mxu0 0
    %1322 = vmatpush1.bf16.msra.mxu0 %v1309
    %1323 = vmatprep.subr.bf16.mxu0 0
    %1324 = vmatpush1.bf16.msra.mxu0 %v1308
    %1325 = vmatprep.subr.bf16.mxu0 0
    %1326 = vmatpush1.bf16.msra.mxu0 %v1307
    %1327 = vmatprep.subr.bf16.mxu0 0
    %1328 = vmatpush1.bf16.msra.mxu0 %v1306
    %1329 = vmatprep.subr.bf16.mxu0 0
    %1330 = vmatpush1.bf16.msra.mxu0 %v1305
    %1331 = vmatprep.subr.bf16.mxu0 0
    %1332 = vmatpush1.bf16.msra.mxu0 %v1304
    %1333 = vmatprep.subr.bf16.mxu0 0
    %1334 = vmatpush1.bf16.msra.mxu0 %v1303
    %1335 = vmatprep.subr.bf16.mxu0 0
    %1336 = vmatpush2.bf16.msra.mxu0 0
    %1337 = vmatprep.subr.bf16.mxu0 0
    %1338 = vmatpush2.bf16.msra.mxu0 0
    %1339 = vmatprep.subr.bf16.mxu0 0
    %1340 = vmatpush2.bf16.msra.mxu0 0
    %1341 = vmatprep.subr.bf16.mxu0 0
    %1342 = vmatpush2.bf16.msra.mxu0 0
    %1343 = vmatprep.subr.bf16.mxu0 0
    %1344 = vmatpush2.bf16.msra.mxu0 0
    %1345 = vmatprep.subr.bf16.mxu0 0
    %1346 = vmatpush2.bf16.msra.mxu0 0
    %1347 = vmatprep.subr.bf16.mxu0 0
    %1348 = vmatpush2.bf16.msra.mxu0 0
    %1349 = vmatprep.subr.bf16.mxu0 0
    %1350 = vmatpush2.bf16.msra.mxu0 0
    %1351 = vmatprep.mubr.bf16.mxu0 0
    %1352 = vmatmul.mubr.bf16.gmra.mxu0 %v1247
    %v1353 = vpop.f32.mrf.mxu0
    %v1354 = vadd.f32 0.0, %v1353
    %v1355 = vpop.f32.mrf.mxu0
    %v1356 = vpop.f32.mrf.mxu0
    %v1357 = vadd.f32 0.0, %v1356
    %v1358 = vpop.f32.mrf.mxu0
    %1359 = vmatprep.mubr.bf16.mxu0 0
    %1360 = vmatmul.mubr.bf16.gmra.mxu0 %v1248
    %v1361 = vpop.f32.mrf.mxu0
    %v1362 = vadd.f32 0.0, %v1361
    %v1363 = vpop.f32.mrf.mxu0
    %v1364 = vpop.f32.mrf.mxu0
    %v1365 = vadd.f32 0.0, %v1364
    %v1366 = vpop.f32.mrf.mxu0
    %1367 = vmatprep.mubr.bf16.mxu0 0
    %1368 = vmatmul.mubr.bf16.gmra.mxu0 %v1249
    %v1369 = vpop.f32.mrf.mxu0
    %v1370 = vadd.f32 0.0, %v1369
    %v1371 = vpop.f32.mrf.mxu0
    %v1372 = vpop.f32.mrf.mxu0
    %v1373 = vadd.f32 0.0, %v1372
    %v1374 = vpop.f32.mrf.mxu0
    %1375 = vmatprep.mubr.bf16.mxu0 0
    %1376 = vmatmul.mubr.bf16.gmra.mxu0 %v1250
    %v1377 = vpop.f32.mrf.mxu0
    %v1378 = vadd.f32 0.0, %v1377
    %v1379 = vpop.f32.mrf.mxu0
    %v1380 = vpop.f32.mrf.mxu0
    %v1381 = vadd.f32 0.0, %v1380
    %v1382 = vpop.f32.mrf.mxu0
    %1383 = vmatprep.mubr.bf16.mxu0 0
    %1384 = vmatmul.mubr.bf16.gmra.mxu0 %v1251
    %v1385 = vpop.f32.mrf.mxu0
    %v1386 = vadd.f32 0.0, %v1385
    %v1387 = vpop.f32.mrf.mxu0
    %v1388 = vpop.f32.mrf.mxu0
    %v1389 = vadd.f32 0.0, %v1388
    %v1390 = vpop.f32.mrf.mxu0
    %1391 = vmatprep.mubr.bf16.mxu0 0
    %1392 = vmatmul.mubr.bf16.gmra.mxu0 %v1252
    %v1393 = vpop.f32.mrf.mxu0
    %v1394 = vadd.f32 0.0, %v1393
    %v1395 = vpop.f32.mrf.mxu0
    %v1396 = vpop.f32.mrf.mxu0
    %v1397 = vadd.f32 0.0, %v1396
    %v1398 = vpop.f32.mrf.mxu0
    %1399 = vmatprep.mubr.bf16.mxu0 0
    %1400 = vmatmul.mubr.bf16.gmra.mxu0 %v1253
    %v1401 = vpop.f32.mrf.mxu0
    %v1402 = vadd.f32 0.0, %v1401
    %v1403 = vpop.f32.mrf.mxu0
    %v1404 = vpop.f32.mrf.mxu0
    %v1405 = vadd.f32 0.0, %v1404
    %v1406 = vpop.f32.mrf.mxu0
    %1407 = vmatprep.mubr.bf16.mxu0 0
    %1408 = vmatmul.mubr.bf16.gmra.mxu0 %v1254
    %v1409 = vpop.f32.mrf.mxu0
    %v1410 = vadd.f32 0.0, %v1409
    %v1411 = vpop.f32.mrf.mxu0
    %v1412 = vpop.f32.mrf.mxu0
    %v1413 = vadd.f32 0.0, %v1412
    %v1414 = vpop.f32.mrf.mxu0
    %1415 = vdwg.mxu0
    %v1416 = vadd.f32 %v1185, %v1354
    %v1417 = vadd.f32 %v1186, %v1357
    %v1418 = vadd.f32 %v1187, %v1362
    %v1419 = vadd.f32 %v1188, %v1365
    %v1420 = vadd.f32 %v1189, %v1370
    %v1421 = vadd.f32 %v1190, %v1373
    %v1422 = vadd.f32 %v1191, %v1378
    %v1423 = vadd.f32 %v1192, %v1381
    %v1424 = vadd.f32 %v1193, %v1386
    %v1425 = vadd.f32 %v1194, %v1389
    %v1426 = vadd.f32 %v1195, %v1394
    %v1427 = vadd.f32 %v1196, %v1397
    %v1428 = vadd.f32 %v1197, %v1402
    %v1429 = vadd.f32 %v1198, %v1405
    %v1430 = vadd.f32 %v1199, %v1410
    %v1431 = vadd.f32 %v1200, %v1413
    %s1432 = sld [smem:[#allocation3 + $0x6]]
    %p1434 = scmp.ne.f32.partialorder %s1432, %s1432
    %s1435 = sshrl.u32 %s1432, 16
    %s1436 = sand.u32 %s1435, 1
    %s1437 = sadd.s32 32767, %s1436
    %s1438 = sadd.s32 %s1432, %s1437
    %s1439 = sand.u32 %s1438, 4294901760
    %s1440 = scalar_select %p1434, 2143289344, %s1439
    %s1442 = sshrl.u32 %s1440, 16
    %s1443 = sld [smem:[#allocation6 + $0x6]]
    %p1445 = scmp.ne.f32.partialorder %s1443, %s1443
    %s1446 = sshrl.u32 %s1443, 16
    %s1447 = sand.u32 %s1446, 1
    %s1448 = sadd.s32 32767, %s1447
    %s1449 = sadd.s32 %s1443, %s1448
    %s1450 = sand.u32 %s1449, 4294901760
    %s1451 = scalar_select %p1445, 2143289344, %s1450
    %s1453 = sshrl.u32 %s1451, 16
    %s1454 = sshll.u32 %s1442, 16
    %s1455 = sor.u32 %s1442, %s1454
    %v1456 = vstv %s1455
    %v1458 = vmul.bf16 %v70, %v1456
    %v1459 = vmul.bf16 %v71, %v1456
    %v1460 = vmul.bf16 %v72, %v1456
    %v1461 = vmul.bf16 %v73, %v1456
    %v1462 = vmul.bf16 %v74, %v1456
    %v1463 = vmul.bf16 %v75, %v1456
    %v1464 = vmul.bf16 %v76, %v1456
    %v1465 = vmul.bf16 %v77, %v1456
    %s1466 = sshll.u32 %s1453, 16
    %s1467 = sor.u32 %s1453, %s1466
    %v1468 = vstv %s1467
    %v1470 = vadd.bf16 %v1458, %v1468
    %v1471 = vadd.bf16 %v1459, %v1468
    %v1472 = vadd.bf16 %v1460, %v1468
    %v1473 = vadd.bf16 %v1461, %v1468
    %v1474 = vadd.bf16 %v1462, %v1468
    %v1475 = vadd.bf16 %v1463, %v1468
    %v1476 = vadd.bf16 %v1464, %v1468
    %v1477 = vadd.bf16 %v1465, %v1468
    %v1478 = vmax.bf16 %v1470, 0
    %v1479 = vmax.bf16 %v1471, 0
    %v1480 = vmax.bf16 %v1472, 0
    %v1481 = vmax.bf16 %v1473, 0
    %v1482 = vmax.bf16 %v1474, 0
    %v1483 = vmax.bf16 %v1475, 0
    %v1484 = vmax.bf16 %v1476, 0
    %v1485 = vmax.bf16 %v1477, 0
    %v1486 = vld [vmem:[%s1 + $0x180] sm:$0xf]
    %v1487 = vld [vmem:[%s1 + $0x184] sm:$0xf]
    %v1488 = vld [vmem:[%s1 + $0x188] sm:$0xf]
    %v1489 = vld [vmem:[%s1 + $0x18c] sm:$0xf]
    %v1490 = vld [vmem:[%s1 + $0x190] sm:$0xf]
    %v1491 = vld [vmem:[%s1 + $0x194] sm:$0xf]
    %v1492 = vld [vmem:[%s1 + $0x198] sm:$0xf]
    %v1493 = vld [vmem:[%s1 + $0x19c] sm:$0xf]
    %v1494 = vld [vmem:[%s1 + $0x1a0] sm:$0xf]
    %v1495 = vld [vmem:[%s1 + $0x1a4] sm:$0xf]
    %v1496 = vld [vmem:[%s1 + $0x1a8] sm:$0xf]
    %v1497 = vld [vmem:[%s1 + $0x1ac] sm:$0xf]
    %v1498 = vld [vmem:[%s1 + $0x1b0] sm:$0xf]
    %v1499 = vld [vmem:[%s1 + $0x1b4] sm:$0xf]
    %v1500 = vld [vmem:[%s1 + $0x1b8] sm:$0xf]
    %v1501 = vld [vmem:[%s1 + $0x1bc] sm:$0xf]
    %v1518 = vunpack.c.l.b16 %v1486
    %v1519 = vunpack.c.l.b16 %v1487
    %v1520 = vunpack.c.l.b16 %v1488
    %v1521 = vunpack.c.l.b16 %v1489
    %v1522 = vunpack.c.l.b16 %v1490
    %v1523 = vunpack.c.l.b16 %v1491
    %v1524 = vunpack.c.l.b16 %v1492
    %v1525 = vunpack.c.l.b16 %v1493
    %v1526 = vunpack.c.l.b16 %v1494
    %v1527 = vunpack.c.l.b16 %v1495
    %v1528 = vunpack.c.l.b16 %v1496
    %v1529 = vunpack.c.l.b16 %v1497
    %v1530 = vunpack.c.l.b16 %v1498
    %v1531 = vunpack.c.l.b16 %v1499
    %v1532 = vunpack.c.l.b16 %v1500
    %v1533 = vunpack.c.l.b16 %v1501
    %v1534 = vpack.c.b16 %v1519, %v1518
    %v1535 = vpack.c.b16 %v1521, %v1520
    %v1536 = vpack.c.b16 %v1523, %v1522
    %v1537 = vpack.c.b16 %v1525, %v1524
    %v1538 = vpack.c.b16 %v1527, %v1526
    %v1539 = vpack.c.b16 %v1529, %v1528
    %v1540 = vpack.c.b16 %v1531, %v1530
    %v1541 = vpack.c.b16 %v1533, %v1532
    %1550 = vmatprep.subr.bf16.mxu0 0
    %1551 = vmatpush1.bf16.msra.mxu0 %v1541
    %1552 = vmatprep.subr.bf16.mxu0 0
    %1553 = vmatpush1.bf16.msra.mxu0 %v1540
    %1554 = vmatprep.subr.bf16.mxu0 0
    %1555 = vmatpush1.bf16.msra.mxu0 %v1539
    %1556 = vmatprep.subr.bf16.mxu0 0
    %1557 = vmatpush1.bf16.msra.mxu0 %v1538
    %1558 = vmatprep.subr.bf16.mxu0 0
    %1559 = vmatpush1.bf16.msra.mxu0 %v1537
    %1560 = vmatprep.subr.bf16.mxu0 0
    %1561 = vmatpush1.bf16.msra.mxu0 %v1536
    %1562 = vmatprep.subr.bf16.mxu0 0
    %1563 = vmatpush1.bf16.msra.mxu0 %v1535
    %1564 = vmatprep.subr.bf16.mxu0 0
    %1565 = vmatpush1.bf16.msra.mxu0 %v1534
    %1566 = vmatprep.subr.bf16.mxu0 0
    %1567 = vmatpush2.bf16.msra.mxu0 0
    %1568 = vmatprep.subr.bf16.mxu0 0
    %1569 = vmatpush2.bf16.msra.mxu0 0
    %1570 = vmatprep.subr.bf16.mxu0 0
    %1571 = vmatpush2.bf16.msra.mxu0 0
    %1572 = vmatprep.subr.bf16.mxu0 0
    %1573 = vmatpush2.bf16.msra.mxu0 0
    %1574 = vmatprep.subr.bf16.mxu0 0
    %1575 = vmatpush2.bf16.msra.mxu0 0
    %1576 = vmatprep.subr.bf16.mxu0 0
    %1577 = vmatpush2.bf16.msra.mxu0 0
    %1578 = vmatprep.subr.bf16.mxu0 0
    %1579 = vmatpush2.bf16.msra.mxu0 0
    %1580 = vmatprep.subr.bf16.mxu0 0
    %1581 = vmatpush2.bf16.msra.mxu0 0
    %1582 = vmatprep.mubr.bf16.mxu0 0
    %1583 = vmatmul.mubr.bf16.gmra.mxu0 %v1478
    %v1584 = vpop.f32.mrf.mxu0
    %v1585 = vadd.f32 0.0, %v1584
    %v1586 = vpop.f32.mrf.mxu0
    %v1587 = vpop.f32.mrf.mxu0
    %v1588 = vadd.f32 0.0, %v1587
    %v1589 = vpop.f32.mrf.mxu0
    %1590 = vmatprep.mubr.bf16.mxu0 0
    %1591 = vmatmul.mubr.bf16.gmra.mxu0 %v1479
    %v1592 = vpop.f32.mrf.mxu0
    %v1593 = vadd.f32 0.0, %v1592
    %v1594 = vpop.f32.mrf.mxu0
    %v1595 = vpop.f32.mrf.mxu0
    %v1596 = vadd.f32 0.0, %v1595
    %v1597 = vpop.f32.mrf.mxu0
    %1598 = vmatprep.mubr.bf16.mxu0 0
    %1599 = vmatmul.mubr.bf16.gmra.mxu0 %v1480
    %v1600 = vpop.f32.mrf.mxu0
    %v1601 = vadd.f32 0.0, %v1600
    %v1602 = vpop.f32.mrf.mxu0
    %v1603 = vpop.f32.mrf.mxu0
    %v1604 = vadd.f32 0.0, %v1603
    %v1605 = vpop.f32.mrf.mxu0
    %1606 = vmatprep.mubr.bf16.mxu0 0
    %1607 = vmatmul.mubr.bf16.gmra.mxu0 %v1481
    %v1608 = vpop.f32.mrf.mxu0
    %v1609 = vadd.f32 0.0, %v1608
    %v1610 = vpop.f32.mrf.mxu0
    %v1611 = vpop.f32.mrf.mxu0
    %v1612 = vadd.f32 0.0, %v1611
    %v1613 = vpop.f32.mrf.mxu0
    %1614 = vmatprep.mubr.bf16.mxu0 0
    %1615 = vmatmul.mubr.bf16.gmra.mxu0 %v1482
    %v1616 = vpop.f32.mrf.mxu0
    %v1617 = vadd.f32 0.0, %v1616
    %v1618 = vpop.f32.mrf.mxu0
    %v1619 = vpop.f32.mrf.mxu0
    %v1620 = vadd.f32 0.0, %v1619
    %v1621 = vpop.f32.mrf.mxu0
    %1622 = vmatprep.mubr.bf16.mxu0 0
    %1623 = vmatmul.mubr.bf16.gmra.mxu0 %v1483
    %v1624 = vpop.f32.mrf.mxu0
    %v1625 = vadd.f32 0.0, %v1624
    %v1626 = vpop.f32.mrf.mxu0
    %v1627 = vpop.f32.mrf.mxu0
    %v1628 = vadd.f32 0.0, %v1627
    %v1629 = vpop.f32.mrf.mxu0
    %1630 = vmatprep.mubr.bf16.mxu0 0
    %1631 = vmatmul.mubr.bf16.gmra.mxu0 %v1484
    %v1632 = vpop.f32.mrf.mxu0
    %v1633 = vadd.f32 0.0, %v1632
    %v1634 = vpop.f32.mrf.mxu0
    %v1635 = vpop.f32.mrf.mxu0
    %v1636 = vadd.f32 0.0, %v1635
    %v1637 = vpop.f32.mrf.mxu0
    %1638 = vmatprep.mubr.bf16.mxu0 0
    %1639 = vmatmul.mubr.bf16.gmra.mxu0 %v1485
    %v1640 = vpop.f32.mrf.mxu0
    %v1641 = vadd.f32 0.0, %v1640
    %v1642 = vpop.f32.mrf.mxu0
    %v1643 = vpop.f32.mrf.mxu0
    %v1644 = vadd.f32 0.0, %v1643
    %v1645 = vpop.f32.mrf.mxu0
    %1646 = vdwg.mxu0
    %v1647 = vadd.f32 %v1416, %v1585
    %v1648 = vadd.f32 %v1417, %v1588
    %v1649 = vadd.f32 %v1418, %v1593
    %v1650 = vadd.f32 %v1419, %v1596
    %v1651 = vadd.f32 %v1420, %v1601
    %v1652 = vadd.f32 %v1421, %v1604
    %v1653 = vadd.f32 %v1422, %v1609
    %v1654 = vadd.f32 %v1423, %v1612
    %v1655 = vadd.f32 %v1424, %v1617
    %v1656 = vadd.f32 %v1425, %v1620
    %v1657 = vadd.f32 %v1426, %v1625
    %v1658 = vadd.f32 %v1427, %v1628
    %v1659 = vadd.f32 %v1428, %v1633
    %v1660 = vadd.f32 %v1429, %v1636
    %v1661 = vadd.f32 %v1430, %v1641
    %v1662 = vadd.f32 %v1431, %v1644
    %s1663 = sld [smem:[#allocation3 + $0x7]]
    %p1665 = scmp.ne.f32.partialorder %s1663, %s1663
    %s1666 = sshrl.u32 %s1663, 16
    %s1667 = sand.u32 %s1666, 1
    %s1668 = sadd.s32 32767, %s1667
    %s1669 = sadd.s32 %s1663, %s1668
    %s1670 = sand.u32 %s1669, 4294901760
    %s1671 = scalar_select %p1665, 2143289344, %s1670
    %s1673 = sshrl.u32 %s1671, 16
    %s1674 = sld [smem:[#allocation6 + $0x7]]
    %p1676 = scmp.ne.f32.partialorder %s1674, %s1674
    %s1677 = sshrl.u32 %s1674, 16
    %s1678 = sand.u32 %s1677, 1
    %s1679 = sadd.s32 32767, %s1678
    %s1680 = sadd.s32 %s1674, %s1679
    %s1681 = sand.u32 %s1680, 4294901760
    %s1682 = scalar_select %p1676, 2143289344, %s1681
    %s1684 = sshrl.u32 %s1682, 16
    %s1685 = sshll.u32 %s1673, 16
    %s1686 = sor.u32 %s1673, %s1685
    %v1687 = vstv %s1686
    %v1689 = vmul.bf16 %v70, %v1687
    %v1690 = vmul.bf16 %v71, %v1687
    %v1691 = vmul.bf16 %v72, %v1687
    %v1692 = vmul.bf16 %v73, %v1687
    %v1693 = vmul.bf16 %v74, %v1687
    %v1694 = vmul.bf16 %v75, %v1687
    %v1695 = vmul.bf16 %v76, %v1687
    %v1696 = vmul.bf16 %v77, %v1687
    %s1697 = sshll.u32 %s1684, 16
    %s1698 = sor.u32 %s1684, %s1697
    %v1699 = vstv %s1698
    %v1701 = vadd.bf16 %v1689, %v1699
    %v1702 = vadd.bf16 %v1690, %v1699
    %v1703 = vadd.bf16 %v1691, %v1699
    %v1704 = vadd.bf16 %v1692, %v1699
    %v1705 = vadd.bf16 %v1693, %v1699
    %v1706 = vadd.bf16 %v1694, %v1699
    %v1707 = vadd.bf16 %v1695, %v1699
    %v1708 = vadd.bf16 %v1696, %v1699
    %v1709 = vmax.bf16 %v1701, 0
    %v1710 = vmax.bf16 %v1702, 0
    %v1711 = vmax.bf16 %v1703, 0
    %v1712 = vmax.bf16 %v1704, 0
    %v1713 = vmax.bf16 %v1705, 0
    %v1714 = vmax.bf16 %v1706, 0
    %v1715 = vmax.bf16 %v1707, 0
    %v1716 = vmax.bf16 %v1708, 0
    %v1717 = vld [vmem:[%s1 + $0x1c0] sm:$0xf]
    %v1718 = vld [vmem:[%s1 + $0x1c4] sm:$0xf]
    %v1719 = vld [vmem:[%s1 + $0x1c8] sm:$0xf]
    %v1720 = vld [vmem:[%s1 + $0x1cc] sm:$0xf]
    %v1721 = vld [vmem:[%s1 + $0x1d0] sm:$0xf]
    %v1722 = vld [vmem:[%s1 + $0x1d4] sm:$0xf]
    %v1723 = vld [vmem:[%s1 + $0x1d8] sm:$0xf]
    %v1724 = vld [vmem:[%s1 + $0x1dc] sm:$0xf]
    %v1725 = vld [vmem:[%s1 + $0x1e0] sm:$0xf]
    %v1726 = vld [vmem:[%s1 + $0x1e4] sm:$0xf]
    %v1727 = vld [vmem:[%s1 + $0x1e8] sm:$0xf]
    %v1728 = vld [vmem:[%s1 + $0x1ec] sm:$0xf]
    %v1729 = vld [vmem:[%s1 + $0x1f0] sm:$0xf]
    %v1730 = vld [vmem:[%s1 + $0x1f4] sm:$0xf]
    %v1731 = vld [vmem:[%s1 + $0x1f8] sm:$0xf]
    %v1732 = vld [vmem:[%s1 + $0x1fc] sm:$0xf]
    %v1749 = vunpack.c.l.b16 %v1717
    %v1750 = vunpack.c.l.b16 %v1718
    %v1751 = vunpack.c.l.b16 %v1719
    %v1752 = vunpack.c.l.b16 %v1720
    %v1753 = vunpack.c.l.b16 %v1721
    %v1754 = vunpack.c.l.b16 %v1722
    %v1755 = vunpack.c.l.b16 %v1723
    %v1756 = vunpack.c.l.b16 %v1724
    %v1757 = vunpack.c.l.b16 %v1725
    %v1758 = vunpack.c.l.b16 %v1726
    %v1759 = vunpack.c.l.b16 %v1727
    %v1760 = vunpack.c.l.b16 %v1728
    %v1761 = vunpack.c.l.b16 %v1729
    %v1762 = vunpack.c.l.b16 %v1730
    %v1763 = vunpack.c.l.b16 %v1731
    %v1764 = vunpack.c.l.b16 %v1732
    %v1765 = vpack.c.b16 %v1750, %v1749
    %v1766 = vpack.c.b16 %v1752, %v1751
    %v1767 = vpack.c.b16 %v1754, %v1753
    %v1768 = vpack.c.b16 %v1756, %v1755
    %v1769 = vpack.c.b16 %v1758, %v1757
    %v1770 = vpack.c.b16 %v1760, %v1759
    %v1771 = vpack.c.b16 %v1762, %v1761
    %v1772 = vpack.c.b16 %v1764, %v1763
    %1781 = vmatprep.subr.bf16.mxu0 0
    %1782 = vmatpush1.bf16.msra.mxu0 %v1772
    %1783 = vmatprep.subr.bf16.mxu0 0
    %1784 = vmatpush1.bf16.msra.mxu0 %v1771
    %1785 = vmatprep.subr.bf16.mxu0 0
    %1786 = vmatpush1.bf16.msra.mxu0 %v1770
    %1787 = vmatprep.subr.bf16.mxu0 0
    %1788 = vmatpush1.bf16.msra.mxu0 %v1769
    %1789 = vmatprep.subr.bf16.mxu0 0
    %1790 = vmatpush1.bf16.msra.mxu0 %v1768
    %1791 = vmatprep.subr.bf16.mxu0 0
    %1792 = vmatpush1.bf16.msra.mxu0 %v1767
    %1793 = vmatprep.subr.bf16.mxu0 0
    %1794 = vmatpush1.bf16.msra.mxu0 %v1766
    %1795 = vmatprep.subr.bf16.mxu0 0
    %1796 = vmatpush1.bf16.msra.mxu0 %v1765
    %1797 = vmatprep.subr.bf16.mxu0 0
    %1798 = vmatpush2.bf16.msra.mxu0 0
    %1799 = vmatprep.subr.bf16.mxu0 0
    %1800 = vmatpush2.bf16.msra.mxu0 0
    %1801 = vmatprep.subr.bf16.mxu0 0
    %1802 = vmatpush2.bf16.msra.mxu0 0
    %1803 = vmatprep.subr.bf16.mxu0 0
    %1804 = vmatpush2.bf16.msra.mxu0 0
    %1805 = vmatprep.subr.bf16.mxu0 0
    %1806 = vmatpush2.bf16.msra.mxu0 0
    %1807 = vmatprep.subr.bf16.mxu0 0
    %1808 = vmatpush2.bf16.msra.mxu0 0
    %1809 = vmatprep.subr.bf16.mxu0 0
    %1810 = vmatpush2.bf16.msra.mxu0 0
    %1811 = vmatprep.subr.bf16.mxu0 0
    %1812 = vmatpush2.bf16.msra.mxu0 0
    %1813 = vmatprep.mubr.bf16.mxu0 0
    %1814 = vmatmul.mubr.bf16.gmra.mxu0 %v1709
    %v1815 = vpop.f32.mrf.mxu0
    %v1816 = vadd.f32 0.0, %v1815
    %v1817 = vpop.f32.mrf.mxu0
    %v1818 = vpop.f32.mrf.mxu0
    %v1819 = vadd.f32 0.0, %v1818
    %v1820 = vpop.f32.mrf.mxu0
    %1821 = vmatprep.mubr.bf16.mxu0 0
    %1822 = vmatmul.mubr.bf16.gmra.mxu0 %v1710
    %v1823 = vpop.f32.mrf.mxu0
    %v1824 = vadd.f32 0.0, %v1823
    %v1825 = vpop.f32.mrf.mxu0
    %v1826 = vpop.f32.mrf.mxu0
    %v1827 = vadd.f32 0.0, %v1826
    %v1828 = vpop.f32.mrf.mxu0
    %1829 = vmatprep.mubr.bf16.mxu0 0
    %1830 = vmatmul.mubr.bf16.gmra.mxu0 %v1711
    %v1831 = vpop.f32.mrf.mxu0
    %v1832 = vadd.f32 0.0, %v1831
    %v1833 = vpop.f32.mrf.mxu0
    %v1834 = vpop.f32.mrf.mxu0
    %v1835 = vadd.f32 0.0, %v1834
    %v1836 = vpop.f32.mrf.mxu0
    %1837 = vmatprep.mubr.bf16.mxu0 0
    %1838 = vmatmul.mubr.bf16.gmra.mxu0 %v1712
    %v1839 = vpop.f32.mrf.mxu0
    %v1840 = vadd.f32 0.0, %v1839
    %v1841 = vpop.f32.mrf.mxu0
    %v1842 = vpop.f32.mrf.mxu0
    %v1843 = vadd.f32 0.0, %v1842
    %v1844 = vpop.f32.mrf.mxu0
    %1845 = vmatprep.mubr.bf16.mxu0 0
    %1846 = vmatmul.mubr.bf16.gmra.mxu0 %v1713
    %v1847 = vpop.f32.mrf.mxu0
    %v1848 = vadd.f32 0.0, %v1847
    %v1849 = vpop.f32.mrf.mxu0
    %v1850 = vpop.f32.mrf.mxu0
    %v1851 = vadd.f32 0.0, %v1850
    %v1852 = vpop.f32.mrf.mxu0
    %1853 = vmatprep.mubr.bf16.mxu0 0
    %1854 = vmatmul.mubr.bf16.gmra.mxu0 %v1714
    %v1855 = vpop.f32.mrf.mxu0
    %v1856 = vadd.f32 0.0, %v1855
    %v1857 = vpop.f32.mrf.mxu0
    %v1858 = vpop.f32.mrf.mxu0
    %v1859 = vadd.f32 0.0, %v1858
    %v1860 = vpop.f32.mrf.mxu0
    %1861 = vmatprep.mubr.bf16.mxu0 0
    %1862 = vmatmul.mubr.bf16.gmra.mxu0 %v1715
    %v1863 = vpop.f32.mrf.mxu0
    %v1864 = vadd.f32 0.0, %v1863
    %v1865 = vpop.f32.mrf.mxu0
    %v1866 = vpop.f32.mrf.mxu0
    %v1867 = vadd.f32 0.0, %v1866
    %v1868 = vpop.f32.mrf.mxu0
    %1869 = vmatprep.mubr.bf16.mxu0 0
    %1870 = vmatmul.mubr.bf16.gmra.mxu0 %v1716
    %v1871 = vpop.f32.mrf.mxu0
    %v1872 = vadd.f32 0.0, %v1871
    %v1873 = vpop.f32.mrf.mxu0
    %v1874 = vpop.f32.mrf.mxu0
    %v1875 = vadd.f32 0.0, %v1874
    %v1876 = vpop.f32.mrf.mxu0
    %1877 = vdwg.mxu0
    %v1878 = vadd.f32 %v1647, %v1816
    %v1879 = vadd.f32 %v1648, %v1819
    %v1880 = vadd.f32 %v1649, %v1824
    %v1881 = vadd.f32 %v1650, %v1827
    %v1882 = vadd.f32 %v1651, %v1832
    %v1883 = vadd.f32 %v1652, %v1835
    %v1884 = vadd.f32 %v1653, %v1840
    %v1885 = vadd.f32 %v1654, %v1843
    %v1886 = vadd.f32 %v1655, %v1848
    %v1887 = vadd.f32 %v1656, %v1851
    %v1888 = vadd.f32 %v1657, %v1856
    %v1889 = vadd.f32 %v1658, %v1859
    %v1890 = vadd.f32 %v1659, %v1864
    %v1891 = vadd.f32 %v1660, %v1867
    %v1892 = vadd.f32 %v1661, %v1872
    %v1893 = vadd.f32 %v1662, %v1875
    %s1894 = sld [smem:[#allocation3 + $0x8]]
    %p1896 = scmp.ne.f32.partialorder %s1894, %s1894
    %s1897 = sshrl.u32 %s1894, 16
    %s1898 = sand.u32 %s1897, 1
    %s1899 = sadd.s32 32767, %s1898
    %s1900 = sadd.s32 %s1894, %s1899
    %s1901 = sand.u32 %s1900, 4294901760
    %s1902 = scalar_select %p1896, 2143289344, %s1901
    %s1904 = sshrl.u32 %s1902, 16
    %s1905 = sld [smem:[#allocation6 + $0x8]]
    %p1907 = scmp.ne.f32.partialorder %s1905, %s1905
    %s1908 = sshrl.u32 %s1905, 16
    %s1909 = sand.u32 %s1908, 1
    %s1910 = sadd.s32 32767, %s1909
    %s1911 = sadd.s32 %s1905, %s1910
    %s1912 = sand.u32 %s1911, 4294901760
    %s1913 = scalar_select %p1907, 2143289344, %s1912
    %s1915 = sshrl.u32 %s1913, 16
    %s1916 = sshll.u32 %s1904, 16
    %s1917 = sor.u32 %s1904, %s1916
    %v1918 = vstv %s1917
    %v1920 = vmul.bf16 %v70, %v1918
    %v1921 = vmul.bf16 %v71, %v1918
    %v1922 = vmul.bf16 %v72, %v1918
    %v1923 = vmul.bf16 %v73, %v1918
    %v1924 = vmul.bf16 %v74, %v1918
    %v1925 = vmul.bf16 %v75, %v1918
    %v1926 = vmul.bf16 %v76, %v1918
    %v1927 = vmul.bf16 %v77, %v1918
    %s1928 = sshll.u32 %s1915, 16
    %s1929 = sor.u32 %s1915, %s1928
    %v1930 = vstv %s1929
    %v1932 = vadd.bf16 %v1920, %v1930
    %v1933 = vadd.bf16 %v1921, %v1930
    %v1934 = vadd.bf16 %v1922, %v1930
    %v1935 = vadd.bf16 %v1923, %v1930
    %v1936 = vadd.bf16 %v1924, %v1930
    %v1937 = vadd.bf16 %v1925, %v1930
    %v1938 = vadd.bf16 %v1926, %v1930
    %v1939 = vadd.bf16 %v1927, %v1930
    %v1940 = vmax.bf16 %v1932, 0
    %v1941 = vmax.bf16 %v1933, 0
    %v1942 = vmax.bf16 %v1934, 0
    %v1943 = vmax.bf16 %v1935, 0
    %v1944 = vmax.bf16 %v1936, 0
    %v1945 = vmax.bf16 %v1937, 0
    %v1946 = vmax.bf16 %v1938, 0
    %v1947 = vmax.bf16 %v1939, 0
    %v1948 = vld [vmem:[%s1 + $0x200] sm:$0xf]
    %v1949 = vld [vmem:[%s1 + $0x204] sm:$0xf]
    %v1950 = vld [vmem:[%s1 + $0x208] sm:$0xf]
    %v1951 = vld [vmem:[%s1 + $0x20c] sm:$0xf]
    %v1952 = vld [vmem:[%s1 + $0x210] sm:$0xf]
    %v1953 = vld [vmem:[%s1 + $0x214] sm:$0xf]
    %v1954 = vld [vmem:[%s1 + $0x218] sm:$0xf]
    %v1955 = vld [vmem:[%s1 + $0x21c] sm:$0xf]
    %v1956 = vld [vmem:[%s1 + $0x220] sm:$0xf]
    %v1957 = vld [vmem:[%s1 + $0x224] sm:$0xf]
    %v1958 = vld [vmem:[%s1 + $0x228] sm:$0xf]
    %v1959 = vld [vmem:[%s1 + $0x22c] sm:$0xf]
    %v1960 = vld [vmem:[%s1 + $0x230] sm:$0xf]
    %v1961 = vld [vmem:[%s1 + $0x234] sm:$0xf]
    %v1962 = vld [vmem:[%s1 + $0x238] sm:$0xf]
    %v1963 = vld [vmem:[%s1 + $0x23c] sm:$0xf]
    %v1980 = vunpack.c.l.b16 %v1948
    %v1981 = vunpack.c.l.b16 %v1949
    %v1982 = vunpack.c.l.b16 %v1950
    %v1983 = vunpack.c.l.b16 %v1951
    %v1984 = vunpack.c.l.b16 %v1952
    %v1985 = vunpack.c.l.b16 %v1953
    %v1986 = vunpack.c.l.b16 %v1954
    %v1987 = vunpack.c.l.b16 %v1955
    %v1988 = vunpack.c.l.b16 %v1956
    %v1989 = vunpack.c.l.b16 %v1957
    %v1990 = vunpack.c.l.b16 %v1958
    %v1991 = vunpack.c.l.b16 %v1959
    %v1992 = vunpack.c.l.b16 %v1960
    %v1993 = vunpack.c.l.b16 %v1961
    %v1994 = vunpack.c.l.b16 %v1962
    %v1995 = vunpack.c.l.b16 %v1963
    %v1996 = vpack.c.b16 %v1981, %v1980
    %v1997 = vpack.c.b16 %v1983, %v1982
    %v1998 = vpack.c.b16 %v1985, %v1984
    %v1999 = vpack.c.b16 %v1987, %v1986
    %v2000 = vpack.c.b16 %v1989, %v1988
    %v2001 = vpack.c.b16 %v1991, %v1990
    %v2002 = vpack.c.b16 %v1993, %v1992
    %v2003 = vpack.c.b16 %v1995, %v1994
    %2012 = vmatprep.subr.bf16.mxu0 0
    %2013 = vmatpush1.bf16.msra.mxu0 %v2003
    %2014 = vmatprep.subr.bf16.mxu0 0
    %2015 = vmatpush1.bf16.msra.mxu0 %v2002
    %2016 = vmatprep.subr.bf16.mxu0 0
    %2017 = vmatpush1.bf16.msra.mxu0 %v2001
    %2018 = vmatprep.subr.bf16.mxu0 0
    %2019 = vmatpush1.bf16.msra.mxu0 %v2000
    %2020 = vmatprep.subr.bf16.mxu0 0
    %2021 = vmatpush1.bf16.msra.mxu0 %v1999
    %2022 = vmatprep.subr.bf16.mxu0 0
    %2023 = vmatpush1.bf16.msra.mxu0 %v1998
    %2024 = vmatprep.subr.bf16.mxu0 0
    %2025 = vmatpush1.bf16.msra.mxu0 %v1997
    %2026 = vmatprep.subr.bf16.mxu0 0
    %2027 = vmatpush1.bf16.msra.mxu0 %v1996
    %2028 = vmatprep.subr.bf16.mxu0 0
    %2029 = vmatpush2.bf16.msra.mxu0 0
    %2030 = vmatprep.subr.bf16.mxu0 0
    %2031 = vmatpush2.bf16.msra.mxu0 0
    %2032 = vmatprep.subr.bf16.mxu0 0
    %2033 = vmatpush2.bf16.msra.mxu0 0
    %2034 = vmatprep.subr.bf16.mxu0 0
    %2035 = vmatpush2.bf16.msra.mxu0 0
    %2036 = vmatprep.subr.bf16.mxu0 0
    %2037 = vmatpush2.bf16.msra.mxu0 0
    %2038 = vmatprep.subr.bf16.mxu0 0
    %2039 = vmatpush2.bf16.msra.mxu0 0
    %2040 = vmatprep.subr.bf16.mxu0 0
    %2041 = vmatpush2.bf16.msra.mxu0 0
    %2042 = vmatprep.subr.bf16.mxu0 0
    %2043 = vmatpush2.bf16.msra.mxu0 0
    %2044 = vmatprep.mubr.bf16.mxu0 0
    %2045 = vmatmul.mubr.bf16.gmra.mxu0 %v1940
    %v2046 = vpop.f32.mrf.mxu0
    %v2047 = vadd.f32 0.0, %v2046
    %v2048 = vpop.f32.mrf.mxu0
    %v2049 = vpop.f32.mrf.mxu0
    %v2050 = vadd.f32 0.0, %v2049
    %v2051 = vpop.f32.mrf.mxu0
    %2052 = vmatprep.mubr.bf16.mxu0 0
    %2053 = vmatmul.mubr.bf16.gmra.mxu0 %v1941
    %v2054 = vpop.f32.mrf.mxu0
    %v2055 = vadd.f32 0.0, %v2054
    %v2056 = vpop.f32.mrf.mxu0
    %v2057 = vpop.f32.mrf.mxu0
    %v2058 = vadd.f32 0.0, %v2057
    %v2059 = vpop.f32.mrf.mxu0
    %2060 = vmatprep.mubr.bf16.mxu0 0
    %2061 = vmatmul.mubr.bf16.gmra.mxu0 %v1942
    %v2062 = vpop.f32.mrf.mxu0
    %v2063 = vadd.f32 0.0, %v2062
    %v2064 = vpop.f32.mrf.mxu0
    %v2065 = vpop.f32.mrf.mxu0
    %v2066 = vadd.f32 0.0, %v2065
    %v2067 = vpop.f32.mrf.mxu0
    %2068 = vmatprep.mubr.bf16.mxu0 0
    %2069 = vmatmul.mubr.bf16.gmra.mxu0 %v1943
    %v2070 = vpop.f32.mrf.mxu0
    %v2071 = vadd.f32 0.0, %v2070
    %v2072 = vpop.f32.mrf.mxu0
    %v2073 = vpop.f32.mrf.mxu0
    %v2074 = vadd.f32 0.0, %v2073
    %v2075 = vpop.f32.mrf.mxu0
    %2076 = vmatprep.mubr.bf16.mxu0 0
    %2077 = vmatmul.mubr.bf16.gmra.mxu0 %v1944
    %v2078 = vpop.f32.mrf.mxu0
    %v2079 = vadd.f32 0.0, %v2078
    %v2080 = vpop.f32.mrf.mxu0
    %v2081 = vpop.f32.mrf.mxu0
    %v2082 = vadd.f32 0.0, %v2081
    %v2083 = vpop.f32.mrf.mxu0
    %2084 = vmatprep.mubr.bf16.mxu0 0
    %2085 = vmatmul.mubr.bf16.gmra.mxu0 %v1945
    %v2086 = vpop.f32.mrf.mxu0
    %v2087 = vadd.f32 0.0, %v2086
    %v2088 = vpop.f32.mrf.mxu0
    %v2089 = vpop.f32.mrf.mxu0
    %v2090 = vadd.f32 0.0, %v2089
    %v2091 = vpop.f32.mrf.mxu0
    %2092 = vmatprep.mubr.bf16.mxu0 0
    %2093 = vmatmul.mubr.bf16.gmra.mxu0 %v1946
    %v2094 = vpop.f32.mrf.mxu0
    %v2095 = vadd.f32 0.0, %v2094
    %v2096 = vpop.f32.mrf.mxu0
    %v2097 = vpop.f32.mrf.mxu0
    %v2098 = vadd.f32 0.0, %v2097
    %v2099 = vpop.f32.mrf.mxu0
    %2100 = vmatprep.mubr.bf16.mxu0 0
    %2101 = vmatmul.mubr.bf16.gmra.mxu0 %v1947
    %v2102 = vpop.f32.mrf.mxu0
    %v2103 = vadd.f32 0.0, %v2102
    %v2104 = vpop.f32.mrf.mxu0
    %v2105 = vpop.f32.mrf.mxu0
    %v2106 = vadd.f32 0.0, %v2105
    %v2107 = vpop.f32.mrf.mxu0
    %2108 = vdwg.mxu0
    %v2109 = vadd.f32 %v1878, %v2047
    %v2110 = vadd.f32 %v1879, %v2050
    %v2111 = vadd.f32 %v1880, %v2055
    %v2112 = vadd.f32 %v1881, %v2058
    %v2113 = vadd.f32 %v1882, %v2063
    %v2114 = vadd.f32 %v1883, %v2066
    %v2115 = vadd.f32 %v1884, %v2071
    %v2116 = vadd.f32 %v1885, %v2074
    %v2117 = vadd.f32 %v1886, %v2079
    %v2118 = vadd.f32 %v1887, %v2082
    %v2119 = vadd.f32 %v1888, %v2087
    %v2120 = vadd.f32 %v1889, %v2090
    %v2121 = vadd.f32 %v1890, %v2095
    %v2122 = vadd.f32 %v1891, %v2098
    %v2123 = vadd.f32 %v1892, %v2103
    %v2124 = vadd.f32 %v1893, %v2106
    %s2125 = sld [smem:[#allocation3 + $0x9]]
    %p2127 = scmp.ne.f32.partialorder %s2125, %s2125
    %s2128 = sshrl.u32 %s2125, 16
    %s2129 = sand.u32 %s2128, 1
    %s2130 = sadd.s32 32767, %s2129
    %s2131 = sadd.s32 %s2125, %s2130
    %s2132 = sand.u32 %s2131, 4294901760
    %s2133 = scalar_select %p2127, 2143289344, %s2132
    %s2135 = sshrl.u32 %s2133, 16
    %s2136 = sld [smem:[#allocation6 + $0x9]]
    %p2138 = scmp.ne.f32.partialorder %s2136, %s2136
    %s2139 = sshrl.u32 %s2136, 16
    %s2140 = sand.u32 %s2139, 1
    %s2141 = sadd.s32 32767, %s2140
    %s2142 = sadd.s32 %s2136, %s2141
    %s2143 = sand.u32 %s2142, 4294901760
    %s2144 = scalar_select %p2138, 2143289344, %s2143
    %s2146 = sshrl.u32 %s2144, 16
    %s2147 = sshll.u32 %s2135, 16
    %s2148 = sor.u32 %s2135, %s2147
    %v2149 = vstv %s2148
    %v2151 = vmul.bf16 %v70, %v2149
    %v2152 = vmul.bf16 %v71, %v2149
    %v2153 = vmul.bf16 %v72, %v2149
    %v2154 = vmul.bf16 %v73, %v2149
    %v2155 = vmul.bf16 %v74, %v2149
    %v2156 = vmul.bf16 %v75, %v2149
    %v2157 = vmul.bf16 %v76, %v2149
    %v2158 = vmul.bf16 %v77, %v2149
    %s2159 = sshll.u32 %s2146, 16
    %s2160 = sor.u32 %s2146, %s2159
    %v2161 = vstv %s2160
    %v2163 = vadd.bf16 %v2151, %v2161
    %v2164 = vadd.bf16 %v2152, %v2161
    %v2165 = vadd.bf16 %v2153, %v2161
    %v2166 = vadd.bf16 %v2154, %v2161
    %v2167 = vadd.bf16 %v2155, %v2161
    %v2168 = vadd.bf16 %v2156, %v2161
    %v2169 = vadd.bf16 %v2157, %v2161
    %v2170 = vadd.bf16 %v2158, %v2161
    %v2171 = vmax.bf16 %v2163, 0
    %v2172 = vmax.bf16 %v2164, 0
    %v2173 = vmax.bf16 %v2165, 0
    %v2174 = vmax.bf16 %v2166, 0
    %v2175 = vmax.bf16 %v2167, 0
    %v2176 = vmax.bf16 %v2168, 0
    %v2177 = vmax.bf16 %v2169, 0
    %v2178 = vmax.bf16 %v2170, 0
    %v2179 = vld [vmem:[%s1 + $0x240] sm:$0xf]
    %v2180 = vld [vmem:[%s1 + $0x244] sm:$0xf]
    %v2181 = vld [vmem:[%s1 + $0x248] sm:$0xf]
    %v2182 = vld [vmem:[%s1 + $0x24c] sm:$0xf]
    %v2183 = vld [vmem:[%s1 + $0x250] sm:$0xf]
    %v2184 = vld [vmem:[%s1 + $0x254] sm:$0xf]
    %v2185 = vld [vmem:[%s1 + $0x258] sm:$0xf]
    %v2186 = vld [vmem:[%s1 + $0x25c] sm:$0xf]
    %v2187 = vld [vmem:[%s1 + $0x260] sm:$0xf]
    %v2188 = vld [vmem:[%s1 + $0x264] sm:$0xf]
    %v2189 = vld [vmem:[%s1 + $0x268] sm:$0xf]
    %v2190 = vld [vmem:[%s1 + $0x26c] sm:$0xf]
    %v2191 = vld [vmem:[%s1 + $0x270] sm:$0xf]
    %v2192 = vld [vmem:[%s1 + $0x274] sm:$0xf]
    %v2193 = vld [vmem:[%s1 + $0x278] sm:$0xf]
    %v2194 = vld [vmem:[%s1 + $0x27c] sm:$0xf]
    %v2211 = vunpack.c.l.b16 %v2179
    %v2212 = vunpack.c.l.b16 %v2180
    %v2213 = vunpack.c.l.b16 %v2181
    %v2214 = vunpack.c.l.b16 %v2182
    %v2215 = vunpack.c.l.b16 %v2183
    %v2216 = vunpack.c.l.b16 %v2184
    %v2217 = vunpack.c.l.b16 %v2185
    %v2218 = vunpack.c.l.b16 %v2186
    %v2219 = vunpack.c.l.b16 %v2187
    %v2220 = vunpack.c.l.b16 %v2188
    %v2221 = vunpack.c.l.b16 %v2189
    %v2222 = vunpack.c.l.b16 %v2190
    %v2223 = vunpack.c.l.b16 %v2191
    %v2224 = vunpack.c.l.b16 %v2192
    %v2225 = vunpack.c.l.b16 %v2193
    %v2226 = vunpack.c.l.b16 %v2194
    %v2227 = vpack.c.b16 %v2212, %v2211
    %v2228 = vpack.c.b16 %v2214, %v2213
    %v2229 = vpack.c.b16 %v2216, %v2215
    %v2230 = vpack.c.b16 %v2218, %v2217
    %v2231 = vpack.c.b16 %v2220, %v2219
    %v2232 = vpack.c.b16 %v2222, %v2221
    %v2233 = vpack.c.b16 %v2224, %v2223
    %v2234 = vpack.c.b16 %v2226, %v2225
    %2243 = vmatprep.subr.bf16.mxu0 0
    %2244 = vmatpush1.bf16.msra.mxu0 %v2234
    %2245 = vmatprep.subr.bf16.mxu0 0
    %2246 = vmatpush1.bf16.msra.mxu0 %v2233
    %2247 = vmatprep.subr.bf16.mxu0 0
    %2248 = vmatpush1.bf16.msra.mxu0 %v2232
    %2249 = vmatprep.subr.bf16.mxu0 0
    %2250 = vmatpush1.bf16.msra.mxu0 %v2231
    %2251 = vmatprep.subr.bf16.mxu0 0
    %2252 = vmatpush1.bf16.msra.mxu0 %v2230
    %2253 = vmatprep.subr.bf16.mxu0 0
    %2254 = vmatpush1.bf16.msra.mxu0 %v2229
    %2255 = vmatprep.subr.bf16.mxu0 0
    %2256 = vmatpush1.bf16.msra.mxu0 %v2228
    %2257 = vmatprep.subr.bf16.mxu0 0
    %2258 = vmatpush1.bf16.msra.mxu0 %v2227
    %2259 = vmatprep.subr.bf16.mxu0 0
    %2260 = vmatpush2.bf16.msra.mxu0 0
    %2261 = vmatprep.subr.bf16.mxu0 0
    %2262 = vmatpush2.bf16.msra.mxu0 0
    %2263 = vmatprep.subr.bf16.mxu0 0
    %2264 = vmatpush2.bf16.msra.mxu0 0
    %2265 = vmatprep.subr.bf16.mxu0 0
    %2266 = vmatpush2.bf16.msra.mxu0 0
    %2267 = vmatprep.subr.bf16.mxu0 0
    %2268 = vmatpush2.bf16.msra.mxu0 0
    %2269 = vmatprep.subr.bf16.mxu0 0
    %2270 = vmatpush2.bf16.msra.mxu0 0
    %2271 = vmatprep.subr.bf16.mxu0 0
    %2272 = vmatpush2.bf16.msra.mxu0 0
    %2273 = vmatprep.subr.bf16.mxu0 0
    %2274 = vmatpush2.bf16.msra.mxu0 0
    %2275 = vmatprep.mubr.bf16.mxu0 0
    %2276 = vmatmul.mubr.bf16.gmra.mxu0 %v2171
    %v2277 = vpop.f32.mrf.mxu0
    %v2278 = vadd.f32 0.0, %v2277
    %v2279 = vpop.f32.mrf.mxu0
    %v2280 = vpop.f32.mrf.mxu0
    %v2281 = vadd.f32 0.0, %v2280
    %v2282 = vpop.f32.mrf.mxu0
    %2283 = vmatprep.mubr.bf16.mxu0 0
    %2284 = vmatmul.mubr.bf16.gmra.mxu0 %v2172
    %v2285 = vpop.f32.mrf.mxu0
    %v2286 = vadd.f32 0.0, %v2285
    %v2287 = vpop.f32.mrf.mxu0
    %v2288 = vpop.f32.mrf.mxu0
    %v2289 = vadd.f32 0.0, %v2288
    %v2290 = vpop.f32.mrf.mxu0
    %2291 = vmatprep.mubr.bf16.mxu0 0
    %2292 = vmatmul.mubr.bf16.gmra.mxu0 %v2173
    %v2293 = vpop.f32.mrf.mxu0
    %v2294 = vadd.f32 0.0, %v2293
    %v2295 = vpop.f32.mrf.mxu0
    %v2296 = vpop.f32.mrf.mxu0
    %v2297 = vadd.f32 0.0, %v2296
    %v2298 = vpop.f32.mrf.mxu0
    %2299 = vmatprep.mubr.bf16.mxu0 0
    %2300 = vmatmul.mubr.bf16.gmra.mxu0 %v2174
    %v2301 = vpop.f32.mrf.mxu0
    %v2302 = vadd.f32 0.0, %v2301
    %v2303 = vpop.f32.mrf.mxu0
    %v2304 = vpop.f32.mrf.mxu0
    %v2305 = vadd.f32 0.0, %v2304
    %v2306 = vpop.f32.mrf.mxu0
    %2307 = vmatprep.mubr.bf16.mxu0 0
    %2308 = vmatmul.mubr.bf16.gmra.mxu0 %v2175
    %v2309 = vpop.f32.mrf.mxu0
    %v2310 = vadd.f32 0.0, %v2309
    %v2311 = vpop.f32.mrf.mxu0
    %v2312 = vpop.f32.mrf.mxu0
    %v2313 = vadd.f32 0.0, %v2312
    %v2314 = vpop.f32.mrf.mxu0
    %2315 = vmatprep.mubr.bf16.mxu0 0
    %2316 = vmatmul.mubr.bf16.gmra.mxu0 %v2176
    %v2317 = vpop.f32.mrf.mxu0
    %v2318 = vadd.f32 0.0, %v2317
    %v2319 = vpop.f32.mrf.mxu0
    %v2320 = vpop.f32.mrf.mxu0
    %v2321 = vadd.f32 0.0, %v2320
    %v2322 = vpop.f32.mrf.mxu0
    %2323 = vmatprep.mubr.bf16.mxu0 0
    %2324 = vmatmul.mubr.bf16.gmra.mxu0 %v2177
    %v2325 = vpop.f32.mrf.mxu0
    %v2326 = vadd.f32 0.0, %v2325
    %v2327 = vpop.f32.mrf.mxu0
    %v2328 = vpop.f32.mrf.mxu0
    %v2329 = vadd.f32 0.0, %v2328
    %v2330 = vpop.f32.mrf.mxu0
    %2331 = vmatprep.mubr.bf16.mxu0 0
    %2332 = vmatmul.mubr.bf16.gmra.mxu0 %v2178
    %v2333 = vpop.f32.mrf.mxu0
    %v2334 = vadd.f32 0.0, %v2333
    %v2335 = vpop.f32.mrf.mxu0
    %v2336 = vpop.f32.mrf.mxu0
    %v2337 = vadd.f32 0.0, %v2336
    %v2338 = vpop.f32.mrf.mxu0
    %2339 = vdwg.mxu0
    %v2340 = vadd.f32 %v2109, %v2278
    %v2341 = vadd.f32 %v2110, %v2281
    %v2342 = vadd.f32 %v2111, %v2286
    %v2343 = vadd.f32 %v2112, %v2289
    %v2344 = vadd.f32 %v2113, %v2294
    %v2345 = vadd.f32 %v2114, %v2297
    %v2346 = vadd.f32 %v2115, %v2302
    %v2347 = vadd.f32 %v2116, %v2305
    %v2348 = vadd.f32 %v2117, %v2310
    %v2349 = vadd.f32 %v2118, %v2313
    %v2350 = vadd.f32 %v2119, %v2318
    %v2351 = vadd.f32 %v2120, %v2321
    %v2352 = vadd.f32 %v2121, %v2326
    %v2353 = vadd.f32 %v2122, %v2329
    %v2354 = vadd.f32 %v2123, %v2334
    %v2355 = vadd.f32 %v2124, %v2337
    %s2356 = sld [smem:[#allocation3 + $0xa]]
    %p2358 = scmp.ne.f32.partialorder %s2356, %s2356
    %s2359 = sshrl.u32 %s2356, 16
    %s2360 = sand.u32 %s2359, 1
    %s2361 = sadd.s32 32767, %s2360
    %s2362 = sadd.s32 %s2356, %s2361
    %s2363 = sand.u32 %s2362, 4294901760
    %s2364 = scalar_select %p2358, 2143289344, %s2363
    %s2366 = sshrl.u32 %s2364, 16
    %s2367 = sld [smem:[#allocation6 + $0xa]]
    %p2369 = scmp.ne.f32.partialorder %s2367, %s2367
    %s2370 = sshrl.u32 %s2367, 16
    %s2371 = sand.u32 %s2370, 1
    %s2372 = sadd.s32 32767, %s2371
    %s2373 = sadd.s32 %s2367, %s2372
    %s2374 = sand.u32 %s2373, 4294901760
    %s2375 = scalar_select %p2369, 2143289344, %s2374
    %s2377 = sshrl.u32 %s2375, 16
    %s2378 = sshll.u32 %s2366, 16
    %s2379 = sor.u32 %s2366, %s2378
    %v2380 = vstv %s2379
    %v2382 = vmul.bf16 %v70, %v2380
    %v2383 = vmul.bf16 %v71, %v2380
    %v2384 = vmul.bf16 %v72, %v2380
    %v2385 = vmul.bf16 %v73, %v2380
    %v2386 = vmul.bf16 %v74, %v2380
    %v2387 = vmul.bf16 %v75, %v2380
    %v2388 = vmul.bf16 %v76, %v2380
    %v2389 = vmul.bf16 %v77, %v2380
    %s2390 = sshll.u32 %s2377, 16
    %s2391 = sor.u32 %s2377, %s2390
    %v2392 = vstv %s2391
    %v2394 = vadd.bf16 %v2382, %v2392
    %v2395 = vadd.bf16 %v2383, %v2392
    %v2396 = vadd.bf16 %v2384, %v2392
    %v2397 = vadd.bf16 %v2385, %v2392
    %v2398 = vadd.bf16 %v2386, %v2392
    %v2399 = vadd.bf16 %v2387, %v2392
    %v2400 = vadd.bf16 %v2388, %v2392
    %v2401 = vadd.bf16 %v2389, %v2392
    %v2402 = vmax.bf16 %v2394, 0
    %v2403 = vmax.bf16 %v2395, 0
    %v2404 = vmax.bf16 %v2396, 0
    %v2405 = vmax.bf16 %v2397, 0
    %v2406 = vmax.bf16 %v2398, 0
    %v2407 = vmax.bf16 %v2399, 0
    %v2408 = vmax.bf16 %v2400, 0
    %v2409 = vmax.bf16 %v2401, 0
    %v2410 = vld [vmem:[%s1 + $0x280] sm:$0xf]
    %v2411 = vld [vmem:[%s1 + $0x284] sm:$0xf]
    %v2412 = vld [vmem:[%s1 + $0x288] sm:$0xf]
    %v2413 = vld [vmem:[%s1 + $0x28c] sm:$0xf]
    %v2414 = vld [vmem:[%s1 + $0x290] sm:$0xf]
    %v2415 = vld [vmem:[%s1 + $0x294] sm:$0xf]
    %v2416 = vld [vmem:[%s1 + $0x298] sm:$0xf]
    %v2417 = vld [vmem:[%s1 + $0x29c] sm:$0xf]
    %v2418 = vld [vmem:[%s1 + $0x2a0] sm:$0xf]
    %v2419 = vld [vmem:[%s1 + $0x2a4] sm:$0xf]
    %v2420 = vld [vmem:[%s1 + $0x2a8] sm:$0xf]
    %v2421 = vld [vmem:[%s1 + $0x2ac] sm:$0xf]
    %v2422 = vld [vmem:[%s1 + $0x2b0] sm:$0xf]
    %v2423 = vld [vmem:[%s1 + $0x2b4] sm:$0xf]
    %v2424 = vld [vmem:[%s1 + $0x2b8] sm:$0xf]
    %v2425 = vld [vmem:[%s1 + $0x2bc] sm:$0xf]
    %v2442 = vunpack.c.l.b16 %v2410
    %v2443 = vunpack.c.l.b16 %v2411
    %v2444 = vunpack.c.l.b16 %v2412
    %v2445 = vunpack.c.l.b16 %v2413
    %v2446 = vunpack.c.l.b16 %v2414
    %v2447 = vunpack.c.l.b16 %v2415
    %v2448 = vunpack.c.l.b16 %v2416
    %v2449 = vunpack.c.l.b16 %v2417
    %v2450 = vunpack.c.l.b16 %v2418
    %v2451 = vunpack.c.l.b16 %v2419
    %v2452 = vunpack.c.l.b16 %v2420
    %v2453 = vunpack.c.l.b16 %v2421
    %v2454 = vunpack.c.l.b16 %v2422
    %v2455 = vunpack.c.l.b16 %v2423
    %v2456 = vunpack.c.l.b16 %v2424
    %v2457 = vunpack.c.l.b16 %v2425
    %v2458 = vpack.c.b16 %v2443, %v2442
    %v2459 = vpack.c.b16 %v2445, %v2444
    %v2460 = vpack.c.b16 %v2447, %v2446
    %v2461 = vpack.c.b16 %v2449, %v2448
    %v2462 = vpack.c.b16 %v2451, %v2450
    %v2463 = vpack.c.b16 %v2453, %v2452
    %v2464 = vpack.c.b16 %v2455, %v2454
    %v2465 = vpack.c.b16 %v2457, %v2456
    %2474 = vmatprep.subr.bf16.mxu0 0
    %2475 = vmatpush1.bf16.msra.mxu0 %v2465
    %2476 = vmatprep.subr.bf16.mxu0 0
    %2477 = vmatpush1.bf16.msra.mxu0 %v2464
    %2478 = vmatprep.subr.bf16.mxu0 0
    %2479 = vmatpush1.bf16.msra.mxu0 %v2463
    %2480 = vmatprep.subr.bf16.mxu0 0
    %2481 = vmatpush1.bf16.msra.mxu0 %v2462
    %2482 = vmatprep.subr.bf16.mxu0 0
    %2483 = vmatpush1.bf16.msra.mxu0 %v2461
    %2484 = vmatprep.subr.bf16.mxu0 0
    %2485 = vmatpush1.bf16.msra.mxu0 %v2460
    %2486 = vmatprep.subr.bf16.mxu0 0
    %2487 = vmatpush1.bf16.msra.mxu0 %v2459
    %2488 = vmatprep.subr.bf16.mxu0 0
    %2489 = vmatpush1.bf16.msra.mxu0 %v2458
    %2490 = vmatprep.subr.bf16.mxu0 0
    %2491 = vmatpush2.bf16.msra.mxu0 0
    %2492 = vmatprep.subr.bf16.mxu0 0
    %2493 = vmatpush2.bf16.msra.mxu0 0
    %2494 = vmatprep.subr.bf16.mxu0 0
    %2495 = vmatpush2.bf16.msra.mxu0 0
    %2496 = vmatprep.subr.bf16.mxu0 0
    %2497 = vmatpush2.bf16.msra.mxu0 0
    %2498 = vmatprep.subr.bf16.mxu0 0
    %2499 = vmatpush2.bf16.msra.mxu0 0
    %2500 = vmatprep.subr.bf16.mxu0 0
    %2501 = vmatpush2.bf16.msra.mxu0 0
    %2502 = vmatprep.subr.bf16.mxu0 0
    %2503 = vmatpush2.bf16.msra.mxu0 0
    %2504 = vmatprep.subr.bf16.mxu0 0
    %2505 = vmatpush2.bf16.msra.mxu0 0
    %2506 = vmatprep.mubr.bf16.mxu0 0
    %2507 = vmatmul.mubr.bf16.gmra.mxu0 %v2402
    %v2508 = vpop.f32.mrf.mxu0
    %v2509 = vadd.f32 0.0, %v2508
    %v2510 = vpop.f32.mrf.mxu0
    %v2511 = vpop.f32.mrf.mxu0
    %v2512 = vadd.f32 0.0, %v2511
    %v2513 = vpop.f32.mrf.mxu0
    %2514 = vmatprep.mubr.bf16.mxu0 0
    %2515 = vmatmul.mubr.bf16.gmra.mxu0 %v2403
    %v2516 = vpop.f32.mrf.mxu0
    %v2517 = vadd.f32 0.0, %v2516
    %v2518 = vpop.f32.mrf.mxu0
    %v2519 = vpop.f32.mrf.mxu0
    %v2520 = vadd.f32 0.0, %v2519
    %v2521 = vpop.f32.mrf.mxu0
    %2522 = vmatprep.mubr.bf16.mxu0 0
    %2523 = vmatmul.mubr.bf16.gmra.mxu0 %v2404
    %v2524 = vpop.f32.mrf.mxu0
    %v2525 = vadd.f32 0.0, %v2524
    %v2526 = vpop.f32.mrf.mxu0
    %v2527 = vpop.f32.mrf.mxu0
    %v2528 = vadd.f32 0.0, %v2527
    %v2529 = vpop.f32.mrf.mxu0
    %2530 = vmatprep.mubr.bf16.mxu0 0
    %2531 = vmatmul.mubr.bf16.gmra.mxu0 %v2405
    %v2532 = vpop.f32.mrf.mxu0
    %v2533 = vadd.f32 0.0, %v2532
    %v2534 = vpop.f32.mrf.mxu0
    %v2535 = vpop.f32.mrf.mxu0
    %v2536 = vadd.f32 0.0, %v2535
    %v2537 = vpop.f32.mrf.mxu0
    %2538 = vmatprep.mubr.bf16.mxu0 0
    %2539 = vmatmul.mubr.bf16.gmra.mxu0 %v2406
    %v2540 = vpop.f32.mrf.mxu0
    %v2541 = vadd.f32 0.0, %v2540
    %v2542 = vpop.f32.mrf.mxu0
    %v2543 = vpop.f32.mrf.mxu0
    %v2544 = vadd.f32 0.0, %v2543
    %v2545 = vpop.f32.mrf.mxu0
    %2546 = vmatprep.mubr.bf16.mxu0 0
    %2547 = vmatmul.mubr.bf16.gmra.mxu0 %v2407
    %v2548 = vpop.f32.mrf.mxu0
    %v2549 = vadd.f32 0.0, %v2548
    %v2550 = vpop.f32.mrf.mxu0
    %v2551 = vpop.f32.mrf.mxu0
    %v2552 = vadd.f32 0.0, %v2551
    %v2553 = vpop.f32.mrf.mxu0
    %2554 = vmatprep.mubr.bf16.mxu0 0
    %2555 = vmatmul.mubr.bf16.gmra.mxu0 %v2408
    %v2556 = vpop.f32.mrf.mxu0
    %v2557 = vadd.f32 0.0, %v2556
    %v2558 = vpop.f32.mrf.mxu0
    %v2559 = vpop.f32.mrf.mxu0
    %v2560 = vadd.f32 0.0, %v2559
    %v2561 = vpop.f32.mrf.mxu0
    %2562 = vmatprep.mubr.bf16.mxu0 0
    %2563 = vmatmul.mubr.bf16.gmra.mxu0 %v2409
    %v2564 = vpop.f32.mrf.mxu0
    %v2565 = vadd.f32 0.0, %v2564
    %v2566 = vpop.f32.mrf.mxu0
    %v2567 = vpop.f32.mrf.mxu0
    %v2568 = vadd.f32 0.0, %v2567
    %v2569 = vpop.f32.mrf.mxu0
    %2570 = vdwg.mxu0
    %v2571 = vadd.f32 %v2340, %v2509
    %v2572 = vadd.f32 %v2341, %v2512
    %v2573 = vadd.f32 %v2342, %v2517
    %v2574 = vadd.f32 %v2343, %v2520
    %v2575 = vadd.f32 %v2344, %v2525
    %v2576 = vadd.f32 %v2345, %v2528
    %v2577 = vadd.f32 %v2346, %v2533
    %v2578 = vadd.f32 %v2347, %v2536
    %v2579 = vadd.f32 %v2348, %v2541
    %v2580 = vadd.f32 %v2349, %v2544
    %v2581 = vadd.f32 %v2350, %v2549
    %v2582 = vadd.f32 %v2351, %v2552
    %v2583 = vadd.f32 %v2352, %v2557
    %v2584 = vadd.f32 %v2353, %v2560
    %v2585 = vadd.f32 %v2354, %v2565
    %v2586 = vadd.f32 %v2355, %v2568
    %s2587 = sld [smem:[#allocation3 + $0xb]]
    %p2589 = scmp.ne.f32.partialorder %s2587, %s2587
    %s2590 = sshrl.u32 %s2587, 16
    %s2591 = sand.u32 %s2590, 1
    %s2592 = sadd.s32 32767, %s2591
    %s2593 = sadd.s32 %s2587, %s2592
    %s2594 = sand.u32 %s2593, 4294901760
    %s2595 = scalar_select %p2589, 2143289344, %s2594
    %s2597 = sshrl.u32 %s2595, 16
    %s2598 = sld [smem:[#allocation6 + $0xb]]
    %p2600 = scmp.ne.f32.partialorder %s2598, %s2598
    %s2601 = sshrl.u32 %s2598, 16
    %s2602 = sand.u32 %s2601, 1
    %s2603 = sadd.s32 32767, %s2602
    %s2604 = sadd.s32 %s2598, %s2603
    %s2605 = sand.u32 %s2604, 4294901760
    %s2606 = scalar_select %p2600, 2143289344, %s2605
    %s2608 = sshrl.u32 %s2606, 16
    %s2609 = sshll.u32 %s2597, 16
    %s2610 = sor.u32 %s2597, %s2609
    %v2611 = vstv %s2610
    %v2613 = vmul.bf16 %v70, %v2611
    %v2614 = vmul.bf16 %v71, %v2611
    %v2615 = vmul.bf16 %v72, %v2611
    %v2616 = vmul.bf16 %v73, %v2611
    %v2617 = vmul.bf16 %v74, %v2611
    %v2618 = vmul.bf16 %v75, %v2611
    %v2619 = vmul.bf16 %v76, %v2611
    %v2620 = vmul.bf16 %v77, %v2611
    %s2621 = sshll.u32 %s2608, 16
    %s2622 = sor.u32 %s2608, %s2621
    %v2623 = vstv %s2622
    %v2625 = vadd.bf16 %v2613, %v2623
    %v2626 = vadd.bf16 %v2614, %v2623
    %v2627 = vadd.bf16 %v2615, %v2623
    %v2628 = vadd.bf16 %v2616, %v2623
    %v2629 = vadd.bf16 %v2617, %v2623
    %v2630 = vadd.bf16 %v2618, %v2623
    %v2631 = vadd.bf16 %v2619, %v2623
    %v2632 = vadd.bf16 %v2620, %v2623
    %v2633 = vmax.bf16 %v2625, 0
    %v2634 = vmax.bf16 %v2626, 0
    %v2635 = vmax.bf16 %v2627, 0
    %v2636 = vmax.bf16 %v2628, 0
    %v2637 = vmax.bf16 %v2629, 0
    %v2638 = vmax.bf16 %v2630, 0
    %v2639 = vmax.bf16 %v2631, 0
    %v2640 = vmax.bf16 %v2632, 0
    %v2641 = vld [vmem:[%s1 + $0x2c0] sm:$0xf]
    %v2642 = vld [vmem:[%s1 + $0x2c4] sm:$0xf]
    %v2643 = vld [vmem:[%s1 + $0x2c8] sm:$0xf]
    %v2644 = vld [vmem:[%s1 + $0x2cc] sm:$0xf]
    %v2645 = vld [vmem:[%s1 + $0x2d0] sm:$0xf]
    %v2646 = vld [vmem:[%s1 + $0x2d4] sm:$0xf]
    %v2647 = vld [vmem:[%s1 + $0x2d8] sm:$0xf]
    %v2648 = vld [vmem:[%s1 + $0x2dc] sm:$0xf]
    %v2649 = vld [vmem:[%s1 + $0x2e0] sm:$0xf]
    %v2650 = vld [vmem:[%s1 + $0x2e4] sm:$0xf]
    %v2651 = vld [vmem:[%s1 + $0x2e8] sm:$0xf]
    %v2652 = vld [vmem:[%s1 + $0x2ec] sm:$0xf]
    %v2653 = vld [vmem:[%s1 + $0x2f0] sm:$0xf]
    %v2654 = vld [vmem:[%s1 + $0x2f4] sm:$0xf]
    %v2655 = vld [vmem:[%s1 + $0x2f8] sm:$0xf]
    %v2656 = vld [vmem:[%s1 + $0x2fc] sm:$0xf]
    %v2673 = vunpack.c.l.b16 %v2641
    %v2674 = vunpack.c.l.b16 %v2642
    %v2675 = vunpack.c.l.b16 %v2643
    %v2676 = vunpack.c.l.b16 %v2644
    %v2677 = vunpack.c.l.b16 %v2645
    %v2678 = vunpack.c.l.b16 %v2646
    %v2679 = vunpack.c.l.b16 %v2647
    %v2680 = vunpack.c.l.b16 %v2648
    %v2681 = vunpack.c.l.b16 %v2649
    %v2682 = vunpack.c.l.b16 %v2650
    %v2683 = vunpack.c.l.b16 %v2651
    %v2684 = vunpack.c.l.b16 %v2652
    %v2685 = vunpack.c.l.b16 %v2653
    %v2686 = vunpack.c.l.b16 %v2654
    %v2687 = vunpack.c.l.b16 %v2655
    %v2688 = vunpack.c.l.b16 %v2656
    %v2689 = vpack.c.b16 %v2674, %v2673
    %v2690 = vpack.c.b16 %v2676, %v2675
    %v2691 = vpack.c.b16 %v2678, %v2677
    %v2692 = vpack.c.b16 %v2680, %v2679
    %v2693 = vpack.c.b16 %v2682, %v2681
    %v2694 = vpack.c.b16 %v2684, %v2683
    %v2695 = vpack.c.b16 %v2686, %v2685
    %v2696 = vpack.c.b16 %v2688, %v2687
    %2705 = vmatprep.subr.bf16.mxu0 0
    %2706 = vmatpush1.bf16.msra.mxu0 %v2696
    %2707 = vmatprep.subr.bf16.mxu0 0
    %2708 = vmatpush1.bf16.msra.mxu0 %v2695
    %2709 = vmatprep.subr.bf16.mxu0 0
    %2710 = vmatpush1.bf16.msra.mxu0 %v2694
    %2711 = vmatprep.subr.bf16.mxu0 0
    %2712 = vmatpush1.bf16.msra.mxu0 %v2693
    %2713 = vmatprep.subr.bf16.mxu0 0
    %2714 = vmatpush1.bf16.msra.mxu0 %v2692
    %2715 = vmatprep.subr.bf16.mxu0 0
    %2716 = vmatpush1.bf16.msra.mxu0 %v2691
    %2717 = vmatprep.subr.bf16.mxu0 0
    %2718 = vmatpush1.bf16.msra.mxu0 %v2690
    %2719 = vmatprep.subr.bf16.mxu0 0
    %2720 = vmatpush1.bf16.msra.mxu0 %v2689
    %2721 = vmatprep.subr.bf16.mxu0 0
    %2722 = vmatpush2.bf16.msra.mxu0 0
    %2723 = vmatprep.subr.bf16.mxu0 0
    %2724 = vmatpush2.bf16.msra.mxu0 0
    %2725 = vmatprep.subr.bf16.mxu0 0
    %2726 = vmatpush2.bf16.msra.mxu0 0
    %2727 = vmatprep.subr.bf16.mxu0 0
    %2728 = vmatpush2.bf16.msra.mxu0 0
    %2729 = vmatprep.subr.bf16.mxu0 0
    %2730 = vmatpush2.bf16.msra.mxu0 0
    %2731 = vmatprep.subr.bf16.mxu0 0
    %2732 = vmatpush2.bf16.msra.mxu0 0
    %2733 = vmatprep.subr.bf16.mxu0 0
    %2734 = vmatpush2.bf16.msra.mxu0 0
    %2735 = vmatprep.subr.bf16.mxu0 0
    %2736 = vmatpush2.bf16.msra.mxu0 0
    %2737 = vmatprep.mubr.bf16.mxu0 0
    %2738 = vmatmul.mubr.bf16.gmra.mxu0 %v2633
    %v2739 = vpop.f32.mrf.mxu0
    %v2740 = vadd.f32 0.0, %v2739
    %v2741 = vpop.f32.mrf.mxu0
    %v2742 = vpop.f32.mrf.mxu0
    %v2743 = vadd.f32 0.0, %v2742
    %v2744 = vpop.f32.mrf.mxu0
    %2745 = vmatprep.mubr.bf16.mxu0 0
    %2746 = vmatmul.mubr.bf16.gmra.mxu0 %v2634
    %v2747 = vpop.f32.mrf.mxu0
    %v2748 = vadd.f32 0.0, %v2747
    %v2749 = vpop.f32.mrf.mxu0
    %v2750 = vpop.f32.mrf.mxu0
    %v2751 = vadd.f32 0.0, %v2750
    %v2752 = vpop.f32.mrf.mxu0
    %2753 = vmatprep.mubr.bf16.mxu0 0
    %2754 = vmatmul.mubr.bf16.gmra.mxu0 %v2635
    %v2755 = vpop.f32.mrf.mxu0
    %v2756 = vadd.f32 0.0, %v2755
    %v2757 = vpop.f32.mrf.mxu0
    %v2758 = vpop.f32.mrf.mxu0
    %v2759 = vadd.f32 0.0, %v2758
    %v2760 = vpop.f32.mrf.mxu0
    %2761 = vmatprep.mubr.bf16.mxu0 0
    %2762 = vmatmul.mubr.bf16.gmra.mxu0 %v2636
    %v2763 = vpop.f32.mrf.mxu0
    %v2764 = vadd.f32 0.0, %v2763
    %v2765 = vpop.f32.mrf.mxu0
    %v2766 = vpop.f32.mrf.mxu0
    %v2767 = vadd.f32 0.0, %v2766
    %v2768 = vpop.f32.mrf.mxu0
    %2769 = vmatprep.mubr.bf16.mxu0 0
    %2770 = vmatmul.mubr.bf16.gmra.mxu0 %v2637
    %v2771 = vpop.f32.mrf.mxu0
    %v2772 = vadd.f32 0.0, %v2771
    %v2773 = vpop.f32.mrf.mxu0
    %v2774 = vpop.f32.mrf.mxu0
    %v2775 = vadd.f32 0.0, %v2774
    %v2776 = vpop.f32.mrf.mxu0
    %2777 = vmatprep.mubr.bf16.mxu0 0
    %2778 = vmatmul.mubr.bf16.gmra.mxu0 %v2638
    %v2779 = vpop.f32.mrf.mxu0
    %v2780 = vadd.f32 0.0, %v2779
    %v2781 = vpop.f32.mrf.mxu0
    %v2782 = vpop.f32.mrf.mxu0
    %v2783 = vadd.f32 0.0, %v2782
    %v2784 = vpop.f32.mrf.mxu0
    %2785 = vmatprep.mubr.bf16.mxu0 0
    %2786 = vmatmul.mubr.bf16.gmra.mxu0 %v2639
    %v2787 = vpop.f32.mrf.mxu0
    %v2788 = vadd.f32 0.0, %v2787
    %v2789 = vpop.f32.mrf.mxu0
    %v2790 = vpop.f32.mrf.mxu0
    %v2791 = vadd.f32 0.0, %v2790
    %v2792 = vpop.f32.mrf.mxu0
    %2793 = vmatprep.mubr.bf16.mxu0 0
    %2794 = vmatmul.mubr.bf16.gmra.mxu0 %v2640
    %v2795 = vpop.f32.mrf.mxu0
    %v2796 = vadd.f32 0.0, %v2795
    %v2797 = vpop.f32.mrf.mxu0
    %v2798 = vpop.f32.mrf.mxu0
    %v2799 = vadd.f32 0.0, %v2798
    %v2800 = vpop.f32.mrf.mxu0
    %2801 = vdwg.mxu0
    %v2802 = vadd.f32 %v2571, %v2740
    %v2803 = vadd.f32 %v2572, %v2743
    %v2804 = vadd.f32 %v2573, %v2748
    %v2805 = vadd.f32 %v2574, %v2751
    %v2806 = vadd.f32 %v2575, %v2756
    %v2807 = vadd.f32 %v2576, %v2759
    %v2808 = vadd.f32 %v2577, %v2764
    %v2809 = vadd.f32 %v2578, %v2767
    %v2810 = vadd.f32 %v2579, %v2772
    %v2811 = vadd.f32 %v2580, %v2775
    %v2812 = vadd.f32 %v2581, %v2780
    %v2813 = vadd.f32 %v2582, %v2783
    %v2814 = vadd.f32 %v2583, %v2788
    %v2815 = vadd.f32 %v2584, %v2791
    %v2816 = vadd.f32 %v2585, %v2796
    %v2817 = vadd.f32 %v2586, %v2799
    %s2818 = sld [smem:[#allocation3 + $0xc]]
    %p2820 = scmp.ne.f32.partialorder %s2818, %s2818
    %s2821 = sshrl.u32 %s2818, 16
    %s2822 = sand.u32 %s2821, 1
    %s2823 = sadd.s32 32767, %s2822
    %s2824 = sadd.s32 %s2818, %s2823
    %s2825 = sand.u32 %s2824, 4294901760
    %s2826 = scalar_select %p2820, 2143289344, %s2825
    %s2828 = sshrl.u32 %s2826, 16
    %s2829 = sld [smem:[#allocation6 + $0xc]]
    %p2831 = scmp.ne.f32.partialorder %s2829, %s2829
    %s2832 = sshrl.u32 %s2829, 16
    %s2833 = sand.u32 %s2832, 1
    %s2834 = sadd.s32 32767, %s2833
    %s2835 = sadd.s32 %s2829, %s2834
    %s2836 = sand.u32 %s2835, 4294901760
    %s2837 = scalar_select %p2831, 2143289344, %s2836
    %s2839 = sshrl.u32 %s2837, 16
    %s2840 = sshll.u32 %s2828, 16
    %s2841 = sor.u32 %s2828, %s2840
    %v2842 = vstv %s2841
    %v2844 = vmul.bf16 %v70, %v2842
    %v2845 = vmul.bf16 %v71, %v2842
    %v2846 = vmul.bf16 %v72, %v2842
    %v2847 = vmul.bf16 %v73, %v2842
    %v2848 = vmul.bf16 %v74, %v2842
    %v2849 = vmul.bf16 %v75, %v2842
    %v2850 = vmul.bf16 %v76, %v2842
    %v2851 = vmul.bf16 %v77, %v2842
    %s2852 = sshll.u32 %s2839, 16
    %s2853 = sor.u32 %s2839, %s2852
    %v2854 = vstv %s2853
    %v2856 = vadd.bf16 %v2844, %v2854
    %v2857 = vadd.bf16 %v2845, %v2854
    %v2858 = vadd.bf16 %v2846, %v2854
    %v2859 = vadd.bf16 %v2847, %v2854
    %v2860 = vadd.bf16 %v2848, %v2854
    %v2861 = vadd.bf16 %v2849, %v2854
    %v2862 = vadd.bf16 %v2850, %v2854
    %v2863 = vadd.bf16 %v2851, %v2854
    %v2864 = vmax.bf16 %v2856, 0
    %v2865 = vmax.bf16 %v2857, 0
    %v2866 = vmax.bf16 %v2858, 0
    %v2867 = vmax.bf16 %v2859, 0
    %v2868 = vmax.bf16 %v2860, 0
    %v2869 = vmax.bf16 %v2861, 0
    %v2870 = vmax.bf16 %v2862, 0
    %v2871 = vmax.bf16 %v2863, 0
    %v2872 = vld [vmem:[%s1 + $0x300] sm:$0xf]
    %v2873 = vld [vmem:[%s1 + $0x304] sm:$0xf]
    %v2874 = vld [vmem:[%s1 + $0x308] sm:$0xf]
    %v2875 = vld [vmem:[%s1 + $0x30c] sm:$0xf]
    %v2876 = vld [vmem:[%s1 + $0x310] sm:$0xf]
    %v2877 = vld [vmem:[%s1 + $0x314] sm:$0xf]
    %v2878 = vld [vmem:[%s1 + $0x318] sm:$0xf]
    %v2879 = vld [vmem:[%s1 + $0x31c] sm:$0xf]
    %v2880 = vld [vmem:[%s1 + $0x320] sm:$0xf]
    %v2881 = vld [vmem:[%s1 + $0x324] sm:$0xf]
    %v2882 = vld [vmem:[%s1 + $0x328] sm:$0xf]
    %v2883 = vld [vmem:[%s1 + $0x32c] sm:$0xf]
    %v2884 = vld [vmem:[%s1 + $0x330] sm:$0xf]
    %v2885 = vld [vmem:[%s1 + $0x334] sm:$0xf]
    %v2886 = vld [vmem:[%s1 + $0x338] sm:$0xf]
    %v2887 = vld [vmem:[%s1 + $0x33c] sm:$0xf]
    %v2904 = vunpack.c.l.b16 %v2872
    %v2905 = vunpack.c.l.b16 %v2873
    %v2906 = vunpack.c.l.b16 %v2874
    %v2907 = vunpack.c.l.b16 %v2875
    %v2908 = vunpack.c.l.b16 %v2876
    %v2909 = vunpack.c.l.b16 %v2877
    %v2910 = vunpack.c.l.b16 %v2878
    %v2911 = vunpack.c.l.b16 %v2879
    %v2912 = vunpack.c.l.b16 %v2880
    %v2913 = vunpack.c.l.b16 %v2881
    %v2914 = vunpack.c.l.b16 %v2882
    %v2915 = vunpack.c.l.b16 %v2883
    %v2916 = vunpack.c.l.b16 %v2884
    %v2917 = vunpack.c.l.b16 %v2885
    %v2918 = vunpack.c.l.b16 %v2886
    %v2919 = vunpack.c.l.b16 %v2887
    %v2920 = vpack.c.b16 %v2905, %v2904
    %v2921 = vpack.c.b16 %v2907, %v2906
    %v2922 = vpack.c.b16 %v2909, %v2908
    %v2923 = vpack.c.b16 %v2911, %v2910
    %v2924 = vpack.c.b16 %v2913, %v2912
    %v2925 = vpack.c.b16 %v2915, %v2914
    %v2926 = vpack.c.b16 %v2917, %v2916
    %v2927 = vpack.c.b16 %v2919, %v2918
    %2936 = vmatprep.subr.bf16.mxu0 0
    %2937 = vmatpush1.bf16.msra.mxu0 %v2927
    %2938 = vmatprep.subr.bf16.mxu0 0
    %2939 = vmatpush1.bf16.msra.mxu0 %v2926
    %2940 = vmatprep.subr.bf16.mxu0 0
    %2941 = vmatpush1.bf16.msra.mxu0 %v2925
    %2942 = vmatprep.subr.bf16.mxu0 0
    %2943 = vmatpush1.bf16.msra.mxu0 %v2924
    %2944 = vmatprep.subr.bf16.mxu0 0
    %2945 = vmatpush1.bf16.msra.mxu0 %v2923
    %2946 = vmatprep.subr.bf16.mxu0 0
    %2947 = vmatpush1.bf16.msra.mxu0 %v2922
    %2948 = vmatprep.subr.bf16.mxu0 0
    %2949 = vmatpush1.bf16.msra.mxu0 %v2921
    %2950 = vmatprep.subr.bf16.mxu0 0
    %2951 = vmatpush1.bf16.msra.mxu0 %v2920
    %2952 = vmatprep.subr.bf16.mxu0 0
    %2953 = vmatpush2.bf16.msra.mxu0 0
    %2954 = vmatprep.subr.bf16.mxu0 0
    %2955 = vmatpush2.bf16.msra.mxu0 0
    %2956 = vmatprep.subr.bf16.mxu0 0
    %2957 = vmatpush2.bf16.msra.mxu0 0
    %2958 = vmatprep.subr.bf16.mxu0 0
    %2959 = vmatpush2.bf16.msra.mxu0 0
    %2960 = vmatprep.subr.bf16.mxu0 0
    %2961 = vmatpush2.bf16.msra.mxu0 0
    %2962 = vmatprep.subr.bf16.mxu0 0
    %2963 = vmatpush2.bf16.msra.mxu0 0
    %2964 = vmatprep.subr.bf16.mxu0 0
    %2965 = vmatpush2.bf16.msra.mxu0 0
    %2966 = vmatprep.subr.bf16.mxu0 0
    %2967 = vmatpush2.bf16.msra.mxu0 0
    %2968 = vmatprep.mubr.bf16.mxu0 0
    %2969 = vmatmul.mubr.bf16.gmra.mxu0 %v2864
    %v2970 = vpop.f32.mrf.mxu0
    %v2971 = vadd.f32 0.0, %v2970
    %v2972 = vpop.f32.mrf.mxu0
    %v2973 = vpop.f32.mrf.mxu0
    %v2974 = vadd.f32 0.0, %v2973
    %v2975 = vpop.f32.mrf.mxu0
    %2976 = vmatprep.mubr.bf16.mxu0 0
    %2977 = vmatmul.mubr.bf16.gmra.mxu0 %v2865
    %v2978 = vpop.f32.mrf.mxu0
    %v2979 = vadd.f32 0.0, %v2978
    %v2980 = vpop.f32.mrf.mxu0
    %v2981 = vpop.f32.mrf.mxu0
    %v2982 = vadd.f32 0.0, %v2981
    %v2983 = vpop.f32.mrf.mxu0
    %2984 = vmatprep.mubr.bf16.mxu0 0
    %2985 = vmatmul.mubr.bf16.gmra.mxu0 %v2866
    %v2986 = vpop.f32.mrf.mxu0
    %v2987 = vadd.f32 0.0, %v2986
    %v2988 = vpop.f32.mrf.mxu0
    %v2989 = vpop.f32.mrf.mxu0
    %v2990 = vadd.f32 0.0, %v2989
    %v2991 = vpop.f32.mrf.mxu0
    %2992 = vmatprep.mubr.bf16.mxu0 0
    %2993 = vmatmul.mubr.bf16.gmra.mxu0 %v2867
    %v2994 = vpop.f32.mrf.mxu0
    %v2995 = vadd.f32 0.0, %v2994
    %v2996 = vpop.f32.mrf.mxu0
    %v2997 = vpop.f32.mrf.mxu0
    %v2998 = vadd.f32 0.0, %v2997
    %v2999 = vpop.f32.mrf.mxu0
    %3000 = vmatprep.mubr.bf16.mxu0 0
    %3001 = vmatmul.mubr.bf16.gmra.mxu0 %v2868
    %v3002 = vpop.f32.mrf.mxu0
    %v3003 = vadd.f32 0.0, %v3002
    %v3004 = vpop.f32.mrf.mxu0
    %v3005 = vpop.f32.mrf.mxu0
    %v3006 = vadd.f32 0.0, %v3005
    %v3007 = vpop.f32.mrf.mxu0
    %3008 = vmatprep.mubr.bf16.mxu0 0
    %3009 = vmatmul.mubr.bf16.gmra.mxu0 %v2869
    %v3010 = vpop.f32.mrf.mxu0
    %v3011 = vadd.f32 0.0, %v3010
    %v3012 = vpop.f32.mrf.mxu0
    %v3013 = vpop.f32.mrf.mxu0
    %v3014 = vadd.f32 0.0, %v3013
    %v3015 = vpop.f32.mrf.mxu0
    %3016 = vmatprep.mubr.bf16.mxu0 0
    %3017 = vmatmul.mubr.bf16.gmra.mxu0 %v2870
    %v3018 = vpop.f32.mrf.mxu0
    %v3019 = vadd.f32 0.0, %v3018
    %v3020 = vpop.f32.mrf.mxu0
    %v3021 = vpop.f32.mrf.mxu0
    %v3022 = vadd.f32 0.0, %v3021
    %v3023 = vpop.f32.mrf.mxu0
    %3024 = vmatprep.mubr.bf16.mxu0 0
    %3025 = vmatmul.mubr.bf16.gmra.mxu0 %v2871
    %v3026 = vpop.f32.mrf.mxu0
    %v3027 = vadd.f32 0.0, %v3026
    %v3028 = vpop.f32.mrf.mxu0
    %v3029 = vpop.f32.mrf.mxu0
    %v3030 = vadd.f32 0.0, %v3029
    %v3031 = vpop.f32.mrf.mxu0
    %3032 = vdwg.mxu0
    %v3033 = vadd.f32 %v2802, %v2971
    %v3034 = vadd.f32 %v2803, %v2974
    %v3035 = vadd.f32 %v2804, %v2979
    %v3036 = vadd.f32 %v2805, %v2982
    %v3037 = vadd.f32 %v2806, %v2987
    %v3038 = vadd.f32 %v2807, %v2990
    %v3039 = vadd.f32 %v2808, %v2995
    %v3040 = vadd.f32 %v2809, %v2998
    %v3041 = vadd.f32 %v2810, %v3003
    %v3042 = vadd.f32 %v2811, %v3006
    %v3043 = vadd.f32 %v2812, %v3011
    %v3044 = vadd.f32 %v2813, %v3014
    %v3045 = vadd.f32 %v2814, %v3019
    %v3046 = vadd.f32 %v2815, %v3022
    %v3047 = vadd.f32 %v2816, %v3027
    %v3048 = vadd.f32 %v2817, %v3030
    %s3049 = sld [smem:[#allocation3 + $0xd]]
    %p3051 = scmp.ne.f32.partialorder %s3049, %s3049
    %s3052 = sshrl.u32 %s3049, 16
    %s3053 = sand.u32 %s3052, 1
    %s3054 = sadd.s32 32767, %s3053
    %s3055 = sadd.s32 %s3049, %s3054
    %s3056 = sand.u32 %s3055, 4294901760
    %s3057 = scalar_select %p3051, 2143289344, %s3056
    %s3059 = sshrl.u32 %s3057, 16
    %s3060 = sld [smem:[#allocation6 + $0xd]]
    %p3062 = scmp.ne.f32.partialorder %s3060, %s3060
    %s3063 = sshrl.u32 %s3060, 16
    %s3064 = sand.u32 %s3063, 1
    %s3065 = sadd.s32 32767, %s3064
    %s3066 = sadd.s32 %s3060, %s3065
    %s3067 = sand.u32 %s3066, 4294901760
    %s3068 = scalar_select %p3062, 2143289344, %s3067
    %s3070 = sshrl.u32 %s3068, 16
    %s3071 = sshll.u32 %s3059, 16
    %s3072 = sor.u32 %s3059, %s3071
    %v3073 = vstv %s3072
    %v3075 = vmul.bf16 %v70, %v3073
    %v3076 = vmul.bf16 %v71, %v3073
    %v3077 = vmul.bf16 %v72, %v3073
    %v3078 = vmul.bf16 %v73, %v3073
    %v3079 = vmul.bf16 %v74, %v3073
    %v3080 = vmul.bf16 %v75, %v3073
    %v3081 = vmul.bf16 %v76, %v3073
    %v3082 = vmul.bf16 %v77, %v3073
    %s3083 = sshll.u32 %s3070, 16
    %s3084 = sor.u32 %s3070, %s3083
    %v3085 = vstv %s3084
    %v3087 = vadd.bf16 %v3075, %v3085
    %v3088 = vadd.bf16 %v3076, %v3085
    %v3089 = vadd.bf16 %v3077, %v3085
    %v3090 = vadd.bf16 %v3078, %v3085
    %v3091 = vadd.bf16 %v3079, %v3085
    %v3092 = vadd.bf16 %v3080, %v3085
    %v3093 = vadd.bf16 %v3081, %v3085
    %v3094 = vadd.bf16 %v3082, %v3085
    %v3095 = vmax.bf16 %v3087, 0
    %v3096 = vmax.bf16 %v3088, 0
    %v3097 = vmax.bf16 %v3089, 0
    %v3098 = vmax.bf16 %v3090, 0
    %v3099 = vmax.bf16 %v3091, 0
    %v3100 = vmax.bf16 %v3092, 0
    %v3101 = vmax.bf16 %v3093, 0
    %v3102 = vmax.bf16 %v3094, 0
    %v3103 = vld [vmem:[%s1 + $0x340] sm:$0xf]
    %v3104 = vld [vmem:[%s1 + $0x344] sm:$0xf]
    %v3105 = vld [vmem:[%s1 + $0x348] sm:$0xf]
    %v3106 = vld [vmem:[%s1 + $0x34c] sm:$0xf]
    %v3107 = vld [vmem:[%s1 + $0x350] sm:$0xf]
    %v3108 = vld [vmem:[%s1 + $0x354] sm:$0xf]
    %v3109 = vld [vmem:[%s1 + $0x358] sm:$0xf]
    %v3110 = vld [vmem:[%s1 + $0x35c] sm:$0xf]
    %v3111 = vld [vmem:[%s1 + $0x360] sm:$0xf]
    %v3112 = vld [vmem:[%s1 + $0x364] sm:$0xf]
    %v3113 = vld [vmem:[%s1 + $0x368] sm:$0xf]
    %v3114 = vld [vmem:[%s1 + $0x36c] sm:$0xf]
    %v3115 = vld [vmem:[%s1 + $0x370] sm:$0xf]
    %v3116 = vld [vmem:[%s1 + $0x374] sm:$0xf]
    %v3117 = vld [vmem:[%s1 + $0x378] sm:$0xf]
    %v3118 = vld [vmem:[%s1 + $0x37c] sm:$0xf]
    %v3135 = vunpack.c.l.b16 %v3103
    %v3136 = vunpack.c.l.b16 %v3104
    %v3137 = vunpack.c.l.b16 %v3105
    %v3138 = vunpack.c.l.b16 %v3106
    %v3139 = vunpack.c.l.b16 %v3107
    %v3140 = vunpack.c.l.b16 %v3108
    %v3141 = vunpack.c.l.b16 %v3109
    %v3142 = vunpack.c.l.b16 %v3110
    %v3143 = vunpack.c.l.b16 %v3111
    %v3144 = vunpack.c.l.b16 %v3112
    %v3145 = vunpack.c.l.b16 %v3113
    %v3146 = vunpack.c.l.b16 %v3114
    %v3147 = vunpack.c.l.b16 %v3115
    %v3148 = vunpack.c.l.b16 %v3116
    %v3149 = vunpack.c.l.b16 %v3117
    %v3150 = vunpack.c.l.b16 %v3118
    %v3151 = vpack.c.b16 %v3136, %v3135
    %v3152 = vpack.c.b16 %v3138, %v3137
    %v3153 = vpack.c.b16 %v3140, %v3139
    %v3154 = vpack.c.b16 %v3142, %v3141
    %v3155 = vpack.c.b16 %v3144, %v3143
    %v3156 = vpack.c.b16 %v3146, %v3145
    %v3157 = vpack.c.b16 %v3148, %v3147
    %v3158 = vpack.c.b16 %v3150, %v3149
    %3167 = vmatprep.subr.bf16.mxu0 0
    %3168 = vmatpush1.bf16.msra.mxu0 %v3158
    %3169 = vmatprep.subr.bf16.mxu0 0
    %3170 = vmatpush1.bf16.msra.mxu0 %v3157
    %3171 = vmatprep.subr.bf16.mxu0 0
    %3172 = vmatpush1.bf16.msra.mxu0 %v3156
    %3173 = vmatprep.subr.bf16.mxu0 0
    %3174 = vmatpush1.bf16.msra.mxu0 %v3155
    %3175 = vmatprep.subr.bf16.mxu0 0
    %3176 = vmatpush1.bf16.msra.mxu0 %v3154
    %3177 = vmatprep.subr.bf16.mxu0 0
    %3178 = vmatpush1.bf16.msra.mxu0 %v3153
    %3179 = vmatprep.subr.bf16.mxu0 0
    %3180 = vmatpush1.bf16.msra.mxu0 %v3152
    %3181 = vmatprep.subr.bf16.mxu0 0
    %3182 = vmatpush1.bf16.msra.mxu0 %v3151
    %3183 = vmatprep.subr.bf16.mxu0 0
    %3184 = vmatpush2.bf16.msra.mxu0 0
    %3185 = vmatprep.subr.bf16.mxu0 0
    %3186 = vmatpush2.bf16.msra.mxu0 0
    %3187 = vmatprep.subr.bf16.mxu0 0
    %3188 = vmatpush2.bf16.msra.mxu0 0
    %3189 = vmatprep.subr.bf16.mxu0 0
    %3190 = vmatpush2.bf16.msra.mxu0 0
    %3191 = vmatprep.subr.bf16.mxu0 0
    %3192 = vmatpush2.bf16.msra.mxu0 0
    %3193 = vmatprep.subr.bf16.mxu0 0
    %3194 = vmatpush2.bf16.msra.mxu0 0
    %3195 = vmatprep.subr.bf16.mxu0 0
    %3196 = vmatpush2.bf16.msra.mxu0 0
    %3197 = vmatprep.subr.bf16.mxu0 0
    %3198 = vmatpush2.bf16.msra.mxu0 0
    %3199 = vmatprep.mubr.bf16.mxu0 0
    %3200 = vmatmul.mubr.bf16.gmra.mxu0 %v3095
    %v3201 = vpop.f32.mrf.mxu0
    %v3202 = vadd.f32 0.0, %v3201
    %v3203 = vpop.f32.mrf.mxu0
    %v3204 = vpop.f32.mrf.mxu0
    %v3205 = vadd.f32 0.0, %v3204
    %v3206 = vpop.f32.mrf.mxu0
    %3207 = vmatprep.mubr.bf16.mxu0 0
    %3208 = vmatmul.mubr.bf16.gmra.mxu0 %v3096
    %v3209 = vpop.f32.mrf.mxu0
    %v3210 = vadd.f32 0.0, %v3209
    %v3211 = vpop.f32.mrf.mxu0
    %v3212 = vpop.f32.mrf.mxu0
    %v3213 = vadd.f32 0.0, %v3212
    %v3214 = vpop.f32.mrf.mxu0
    %3215 = vmatprep.mubr.bf16.mxu0 0
    %3216 = vmatmul.mubr.bf16.gmra.mxu0 %v3097
    %v3217 = vpop.f32.mrf.mxu0
    %v3218 = vadd.f32 0.0, %v3217
    %v3219 = vpop.f32.mrf.mxu0
    %v3220 = vpop.f32.mrf.mxu0
    %v3221 = vadd.f32 0.0, %v3220
    %v3222 = vpop.f32.mrf.mxu0
    %3223 = vmatprep.mubr.bf16.mxu0 0
    %3224 = vmatmul.mubr.bf16.gmra.mxu0 %v3098
    %v3225 = vpop.f32.mrf.mxu0
    %v3226 = vadd.f32 0.0, %v3225
    %v3227 = vpop.f32.mrf.mxu0
    %v3228 = vpop.f32.mrf.mxu0
    %v3229 = vadd.f32 0.0, %v3228
    %v3230 = vpop.f32.mrf.mxu0
    %3231 = vmatprep.mubr.bf16.mxu0 0
    %3232 = vmatmul.mubr.bf16.gmra.mxu0 %v3099
    %v3233 = vpop.f32.mrf.mxu0
    %v3234 = vadd.f32 0.0, %v3233
    %v3235 = vpop.f32.mrf.mxu0
    %v3236 = vpop.f32.mrf.mxu0
    %v3237 = vadd.f32 0.0, %v3236
    %v3238 = vpop.f32.mrf.mxu0
    %3239 = vmatprep.mubr.bf16.mxu0 0
    %3240 = vmatmul.mubr.bf16.gmra.mxu0 %v3100
    %v3241 = vpop.f32.mrf.mxu0
    %v3242 = vadd.f32 0.0, %v3241
    %v3243 = vpop.f32.mrf.mxu0
    %v3244 = vpop.f32.mrf.mxu0
    %v3245 = vadd.f32 0.0, %v3244
    %v3246 = vpop.f32.mrf.mxu0
    %3247 = vmatprep.mubr.bf16.mxu0 0
    %3248 = vmatmul.mubr.bf16.gmra.mxu0 %v3101
    %v3249 = vpop.f32.mrf.mxu0
    %v3250 = vadd.f32 0.0, %v3249
    %v3251 = vpop.f32.mrf.mxu0
    %v3252 = vpop.f32.mrf.mxu0
    %v3253 = vadd.f32 0.0, %v3252
    %v3254 = vpop.f32.mrf.mxu0
    %3255 = vmatprep.mubr.bf16.mxu0 0
    %3256 = vmatmul.mubr.bf16.gmra.mxu0 %v3102
    %v3257 = vpop.f32.mrf.mxu0
    %v3258 = vadd.f32 0.0, %v3257
    %v3259 = vpop.f32.mrf.mxu0
    %v3260 = vpop.f32.mrf.mxu0
    %v3261 = vadd.f32 0.0, %v3260
    %v3262 = vpop.f32.mrf.mxu0
    %3263 = vdwg.mxu0
    %v3264 = vadd.f32 %v3033, %v3202
    %v3265 = vadd.f32 %v3034, %v3205
    %v3266 = vadd.f32 %v3035, %v3210
    %v3267 = vadd.f32 %v3036, %v3213
    %v3268 = vadd.f32 %v3037, %v3218
    %v3269 = vadd.f32 %v3038, %v3221
    %v3270 = vadd.f32 %v3039, %v3226
    %v3271 = vadd.f32 %v3040, %v3229
    %v3272 = vadd.f32 %v3041, %v3234
    %v3273 = vadd.f32 %v3042, %v3237
    %v3274 = vadd.f32 %v3043, %v3242
    %v3275 = vadd.f32 %v3044, %v3245
    %v3276 = vadd.f32 %v3045, %v3250
    %v3277 = vadd.f32 %v3046, %v3253
    %v3278 = vadd.f32 %v3047, %v3258
    %v3279 = vadd.f32 %v3048, %v3261
    %s3280 = sld [smem:[#allocation3 + $0xe]]
    %p3282 = scmp.ne.f32.partialorder %s3280, %s3280
    %s3283 = sshrl.u32 %s3280, 16
    %s3284 = sand.u32 %s3283, 1
    %s3285 = sadd.s32 32767, %s3284
    %s3286 = sadd.s32 %s3280, %s3285
    %s3287 = sand.u32 %s3286, 4294901760
    %s3288 = scalar_select %p3282, 2143289344, %s3287
    %s3290 = sshrl.u32 %s3288, 16
    %s3291 = sld [smem:[#allocation6 + $0xe]]
    %p3293 = scmp.ne.f32.partialorder %s3291, %s3291
    %s3294 = sshrl.u32 %s3291, 16
    %s3295 = sand.u32 %s3294, 1
    %s3296 = sadd.s32 32767, %s3295
    %s3297 = sadd.s32 %s3291, %s3296
    %s3298 = sand.u32 %s3297, 4294901760
    %s3299 = scalar_select %p3293, 2143289344, %s3298
    %s3301 = sshrl.u32 %s3299, 16
    %s3302 = sshll.u32 %s3290, 16
    %s3303 = sor.u32 %s3290, %s3302
    %v3304 = vstv %s3303
    %v3306 = vmul.bf16 %v70, %v3304
    %v3307 = vmul.bf16 %v71, %v3304
    %v3308 = vmul.bf16 %v72, %v3304
    %v3309 = vmul.bf16 %v73, %v3304
    %v3310 = vmul.bf16 %v74, %v3304
    %v3311 = vmul.bf16 %v75, %v3304
    %v3312 = vmul.bf16 %v76, %v3304
    %v3313 = vmul.bf16 %v77, %v3304
    %s3314 = sshll.u32 %s3301, 16
    %s3315 = sor.u32 %s3301, %s3314
    %v3316 = vstv %s3315
    %v3318 = vadd.bf16 %v3306, %v3316
    %v3319 = vadd.bf16 %v3307, %v3316
    %v3320 = vadd.bf16 %v3308, %v3316
    %v3321 = vadd.bf16 %v3309, %v3316
    %v3322 = vadd.bf16 %v3310, %v3316
    %v3323 = vadd.bf16 %v3311, %v3316
    %v3324 = vadd.bf16 %v3312, %v3316
    %v3325 = vadd.bf16 %v3313, %v3316
    %v3326 = vmax.bf16 %v3318, 0
    %v3327 = vmax.bf16 %v3319, 0
    %v3328 = vmax.bf16 %v3320, 0
    %v3329 = vmax.bf16 %v3321, 0
    %v3330 = vmax.bf16 %v3322, 0
    %v3331 = vmax.bf16 %v3323, 0
    %v3332 = vmax.bf16 %v3324, 0
    %v3333 = vmax.bf16 %v3325, 0
    %v3334 = vld [vmem:[%s1 + $0x380] sm:$0xf]
    %v3335 = vld [vmem:[%s1 + $0x384] sm:$0xf]
    %v3336 = vld [vmem:[%s1 + $0x388] sm:$0xf]
    %v3337 = vld [vmem:[%s1 + $0x38c] sm:$0xf]
    %v3338 = vld [vmem:[%s1 + $0x390] sm:$0xf]
    %v3339 = vld [vmem:[%s1 + $0x394] sm:$0xf]
    %v3340 = vld [vmem:[%s1 + $0x398] sm:$0xf]
    %v3341 = vld [vmem:[%s1 + $0x39c] sm:$0xf]
    %v3342 = vld [vmem:[%s1 + $0x3a0] sm:$0xf]
    %v3343 = vld [vmem:[%s1 + $0x3a4] sm:$0xf]
    %v3344 = vld [vmem:[%s1 + $0x3a8] sm:$0xf]
    %v3345 = vld [vmem:[%s1 + $0x3ac] sm:$0xf]
    %v3346 = vld [vmem:[%s1 + $0x3b0] sm:$0xf]
    %v3347 = vld [vmem:[%s1 + $0x3b4] sm:$0xf]
    %v3348 = vld [vmem:[%s1 + $0x3b8] sm:$0xf]
    %v3349 = vld [vmem:[%s1 + $0x3bc] sm:$0xf]
    %v3366 = vunpack.c.l.b16 %v3334
    %v3367 = vunpack.c.l.b16 %v3335
    %v3368 = vunpack.c.l.b16 %v3336
    %v3369 = vunpack.c.l.b16 %v3337
    %v3370 = vunpack.c.l.b16 %v3338
    %v3371 = vunpack.c.l.b16 %v3339
    %v3372 = vunpack.c.l.b16 %v3340
    %v3373 = vunpack.c.l.b16 %v3341
    %v3374 = vunpack.c.l.b16 %v3342
    %v3375 = vunpack.c.l.b16 %v3343
    %v3376 = vunpack.c.l.b16 %v3344
    %v3377 = vunpack.c.l.b16 %v3345
    %v3378 = vunpack.c.l.b16 %v3346
    %v3379 = vunpack.c.l.b16 %v3347
    %v3380 = vunpack.c.l.b16 %v3348
    %v3381 = vunpack.c.l.b16 %v3349
    %v3382 = vpack.c.b16 %v3367, %v3366
    %v3383 = vpack.c.b16 %v3369, %v3368
    %v3384 = vpack.c.b16 %v3371, %v3370
    %v3385 = vpack.c.b16 %v3373, %v3372
    %v3386 = vpack.c.b16 %v3375, %v3374
    %v3387 = vpack.c.b16 %v3377, %v3376
    %v3388 = vpack.c.b16 %v3379, %v3378
    %v3389 = vpack.c.b16 %v3381, %v3380
    %3398 = vmatprep.subr.bf16.mxu0 0
    %3399 = vmatpush1.bf16.msra.mxu0 %v3389
    %3400 = vmatprep.subr.bf16.mxu0 0
    %3401 = vmatpush1.bf16.msra.mxu0 %v3388
    %3402 = vmatprep.subr.bf16.mxu0 0
    %3403 = vmatpush1.bf16.msra.mxu0 %v3387
    %3404 = vmatprep.subr.bf16.mxu0 0
    %3405 = vmatpush1.bf16.msra.mxu0 %v3386
    %3406 = vmatprep.subr.bf16.mxu0 0
    %3407 = vmatpush1.bf16.msra.mxu0 %v3385
    %3408 = vmatprep.subr.bf16.mxu0 0
    %3409 = vmatpush1.bf16.msra.mxu0 %v3384
    %3410 = vmatprep.subr.bf16.mxu0 0
    %3411 = vmatpush1.bf16.msra.mxu0 %v3383
    %3412 = vmatprep.subr.bf16.mxu0 0
    %3413 = vmatpush1.bf16.msra.mxu0 %v3382
    %3414 = vmatprep.subr.bf16.mxu0 0
    %3415 = vmatpush2.bf16.msra.mxu0 0
    %3416 = vmatprep.subr.bf16.mxu0 0
    %3417 = vmatpush2.bf16.msra.mxu0 0
    %3418 = vmatprep.subr.bf16.mxu0 0
    %3419 = vmatpush2.bf16.msra.mxu0 0
    %3420 = vmatprep.subr.bf16.mxu0 0
    %3421 = vmatpush2.bf16.msra.mxu0 0
    %3422 = vmatprep.subr.bf16.mxu0 0
    %3423 = vmatpush2.bf16.msra.mxu0 0
    %3424 = vmatprep.subr.bf16.mxu0 0
    %3425 = vmatpush2.bf16.msra.mxu0 0
    %3426 = vmatprep.subr.bf16.mxu0 0
    %3427 = vmatpush2.bf16.msra.mxu0 0
    %3428 = vmatprep.subr.bf16.mxu0 0
    %3429 = vmatpush2.bf16.msra.mxu0 0
    %3430 = vmatprep.mubr.bf16.mxu0 0
    %3431 = vmatmul.mubr.bf16.gmra.mxu0 %v3326
    %v3432 = vpop.f32.mrf.mxu0
    %v3433 = vadd.f32 0.0, %v3432
    %v3434 = vpop.f32.mrf.mxu0
    %v3435 = vpop.f32.mrf.mxu0
    %v3436 = vadd.f32 0.0, %v3435
    %v3437 = vpop.f32.mrf.mxu0
    %3438 = vmatprep.mubr.bf16.mxu0 0
    %3439 = vmatmul.mubr.bf16.gmra.mxu0 %v3327
    %v3440 = vpop.f32.mrf.mxu0
    %v3441 = vadd.f32 0.0, %v3440
    %v3442 = vpop.f32.mrf.mxu0
    %v3443 = vpop.f32.mrf.mxu0
    %v3444 = vadd.f32 0.0, %v3443
    %v3445 = vpop.f32.mrf.mxu0
    %3446 = vmatprep.mubr.bf16.mxu0 0
    %3447 = vmatmul.mubr.bf16.gmra.mxu0 %v3328
    %v3448 = vpop.f32.mrf.mxu0
    %v3449 = vadd.f32 0.0, %v3448
    %v3450 = vpop.f32.mrf.mxu0
    %v3451 = vpop.f32.mrf.mxu0
    %v3452 = vadd.f32 0.0, %v3451
    %v3453 = vpop.f32.mrf.mxu0
    %3454 = vmatprep.mubr.bf16.mxu0 0
    %3455 = vmatmul.mubr.bf16.gmra.mxu0 %v3329
    %v3456 = vpop.f32.mrf.mxu0
    %v3457 = vadd.f32 0.0, %v3456
    %v3458 = vpop.f32.mrf.mxu0
    %v3459 = vpop.f32.mrf.mxu0
    %v3460 = vadd.f32 0.0, %v3459
    %v3461 = vpop.f32.mrf.mxu0
    %3462 = vmatprep.mubr.bf16.mxu0 0
    %3463 = vmatmul.mubr.bf16.gmra.mxu0 %v3330
    %v3464 = vpop.f32.mrf.mxu0
    %v3465 = vadd.f32 0.0, %v3464
    %v3466 = vpop.f32.mrf.mxu0
    %v3467 = vpop.f32.mrf.mxu0
    %v3468 = vadd.f32 0.0, %v3467
    %v3469 = vpop.f32.mrf.mxu0
    %3470 = vmatprep.mubr.bf16.mxu0 0
    %3471 = vmatmul.mubr.bf16.gmra.mxu0 %v3331
    %v3472 = vpop.f32.mrf.mxu0
    %v3473 = vadd.f32 0.0, %v3472
    %v3474 = vpop.f32.mrf.mxu0
    %v3475 = vpop.f32.mrf.mxu0
    %v3476 = vadd.f32 0.0, %v3475
    %v3477 = vpop.f32.mrf.mxu0
    %3478 = vmatprep.mubr.bf16.mxu0 0
    %3479 = vmatmul.mubr.bf16.gmra.mxu0 %v3332
    %v3480 = vpop.f32.mrf.mxu0
    %v3481 = vadd.f32 0.0, %v3480
    %v3482 = vpop.f32.mrf.mxu0
    %v3483 = vpop.f32.mrf.mxu0
    %v3484 = vadd.f32 0.0, %v3483
    %v3485 = vpop.f32.mrf.mxu0
    %3486 = vmatprep.mubr.bf16.mxu0 0
    %3487 = vmatmul.mubr.bf16.gmra.mxu0 %v3333
    %v3488 = vpop.f32.mrf.mxu0
    %v3489 = vadd.f32 0.0, %v3488
    %v3490 = vpop.f32.mrf.mxu0
    %v3491 = vpop.f32.mrf.mxu0
    %v3492 = vadd.f32 0.0, %v3491
    %v3493 = vpop.f32.mrf.mxu0
    %3494 = vdwg.mxu0
    %v3495 = vadd.f32 %v3264, %v3433
    %v3496 = vadd.f32 %v3265, %v3436
    %v3497 = vadd.f32 %v3266, %v3441
    %v3498 = vadd.f32 %v3267, %v3444
    %v3499 = vadd.f32 %v3268, %v3449
    %v3500 = vadd.f32 %v3269, %v3452
    %v3501 = vadd.f32 %v3270, %v3457
    %v3502 = vadd.f32 %v3271, %v3460
    %v3503 = vadd.f32 %v3272, %v3465
    %v3504 = vadd.f32 %v3273, %v3468
    %v3505 = vadd.f32 %v3274, %v3473
    %v3506 = vadd.f32 %v3275, %v3476
    %v3507 = vadd.f32 %v3276, %v3481
    %v3508 = vadd.f32 %v3277, %v3484
    %v3509 = vadd.f32 %v3278, %v3489
    %v3510 = vadd.f32 %v3279, %v3492
    %s3511 = sld [smem:[#allocation3 + $0xf]]
    %p3513 = scmp.ne.f32.partialorder %s3511, %s3511
    %s3514 = sshrl.u32 %s3511, 16
    %s3515 = sand.u32 %s3514, 1
    %s3516 = sadd.s32 32767, %s3515
    %s3517 = sadd.s32 %s3511, %s3516
    %s3518 = sand.u32 %s3517, 4294901760
    %s3519 = scalar_select %p3513, 2143289344, %s3518
    %s3521 = sshrl.u32 %s3519, 16
    %s3522 = sld [smem:[#allocation6 + $0xf]]
    %p3524 = scmp.ne.f32.partialorder %s3522, %s3522
    %s3525 = sshrl.u32 %s3522, 16
    %s3526 = sand.u32 %s3525, 1
    %s3527 = sadd.s32 32767, %s3526
    %s3528 = sadd.s32 %s3522, %s3527
    %s3529 = sand.u32 %s3528, 4294901760
    %s3530 = scalar_select %p3524, 2143289344, %s3529
    %s3532 = sshrl.u32 %s3530, 16
    %s3533 = sshll.u32 %s3521, 16
    %s3534 = sor.u32 %s3521, %s3533
    %v3535 = vstv %s3534
    %v3537 = vmul.bf16 %v70, %v3535
    %v3538 = vmul.bf16 %v71, %v3535
    %v3539 = vmul.bf16 %v72, %v3535
    %v3540 = vmul.bf16 %v73, %v3535
    %v3541 = vmul.bf16 %v74, %v3535
    %v3542 = vmul.bf16 %v75, %v3535
    %v3543 = vmul.bf16 %v76, %v3535
    %v3544 = vmul.bf16 %v77, %v3535
    %s3545 = sshll.u32 %s3532, 16
    %s3546 = sor.u32 %s3532, %s3545
    %v3547 = vstv %s3546
    %v3549 = vadd.bf16 %v3537, %v3547
    %v3550 = vadd.bf16 %v3538, %v3547
    %v3551 = vadd.bf16 %v3539, %v3547
    %v3552 = vadd.bf16 %v3540, %v3547
    %v3553 = vadd.bf16 %v3541, %v3547
    %v3554 = vadd.bf16 %v3542, %v3547
    %v3555 = vadd.bf16 %v3543, %v3547
    %v3556 = vadd.bf16 %v3544, %v3547
    %v3557 = vmax.bf16 %v3549, 0
    %v3558 = vmax.bf16 %v3550, 0
    %v3559 = vmax.bf16 %v3551, 0
    %v3560 = vmax.bf16 %v3552, 0
    %v3561 = vmax.bf16 %v3553, 0
    %v3562 = vmax.bf16 %v3554, 0
    %v3563 = vmax.bf16 %v3555, 0
    %v3564 = vmax.bf16 %v3556, 0
    %v3565 = vld [vmem:[%s1 + $0x3c0] sm:$0xf]
    %v3566 = vld [vmem:[%s1 + $0x3c4] sm:$0xf]
    %v3567 = vld [vmem:[%s1 + $0x3c8] sm:$0xf]
    %v3568 = vld [vmem:[%s1 + $0x3cc] sm:$0xf]
    %v3569 = vld [vmem:[%s1 + $0x3d0] sm:$0xf]
    %v3570 = vld [vmem:[%s1 + $0x3d4] sm:$0xf]
    %v3571 = vld [vmem:[%s1 + $0x3d8] sm:$0xf]
    %v3572 = vld [vmem:[%s1 + $0x3dc] sm:$0xf]
    %v3573 = vld [vmem:[%s1 + $0x3e0] sm:$0xf]
    %v3574 = vld [vmem:[%s1 + $0x3e4] sm:$0xf]
    %v3575 = vld [vmem:[%s1 + $0x3e8] sm:$0xf]
    %v3576 = vld [vmem:[%s1 + $0x3ec] sm:$0xf]
    %v3577 = vld [vmem:[%s1 + $0x3f0] sm:$0xf]
    %v3578 = vld [vmem:[%s1 + $0x3f4] sm:$0xf]
    %v3579 = vld [vmem:[%s1 + $0x3f8] sm:$0xf]
    %v3580 = vld [vmem:[%s1 + $0x3fc] sm:$0xf]
    %v3597 = vunpack.c.l.b16 %v3565
    %v3598 = vunpack.c.l.b16 %v3566
    %v3599 = vunpack.c.l.b16 %v3567
    %v3600 = vunpack.c.l.b16 %v3568
    %v3601 = vunpack.c.l.b16 %v3569
    %v3602 = vunpack.c.l.b16 %v3570
    %v3603 = vunpack.c.l.b16 %v3571
    %v3604 = vunpack.c.l.b16 %v3572
    %v3605 = vunpack.c.l.b16 %v3573
    %v3606 = vunpack.c.l.b16 %v3574
    %v3607 = vunpack.c.l.b16 %v3575
    %v3608 = vunpack.c.l.b16 %v3576
    %v3609 = vunpack.c.l.b16 %v3577
    %v3610 = vunpack.c.l.b16 %v3578
    %v3611 = vunpack.c.l.b16 %v3579
    %v3612 = vunpack.c.l.b16 %v3580
    %v3613 = vpack.c.b16 %v3598, %v3597
    %v3614 = vpack.c.b16 %v3600, %v3599
    %v3615 = vpack.c.b16 %v3602, %v3601
    %v3616 = vpack.c.b16 %v3604, %v3603
    %v3617 = vpack.c.b16 %v3606, %v3605
    %v3618 = vpack.c.b16 %v3608, %v3607
    %v3619 = vpack.c.b16 %v3610, %v3609
    %v3620 = vpack.c.b16 %v3612, %v3611
    %3629 = vmatprep.subr.bf16.mxu0 0
    %3630 = vmatpush1.bf16.msra.mxu0 %v3620
    %3631 = vmatprep.subr.bf16.mxu0 0
    %3632 = vmatpush1.bf16.msra.mxu0 %v3619
    %3633 = vmatprep.subr.bf16.mxu0 0
    %3634 = vmatpush1.bf16.msra.mxu0 %v3618
    %3635 = vmatprep.subr.bf16.mxu0 0
    %3636 = vmatpush1.bf16.msra.mxu0 %v3617
    %3637 = vmatprep.subr.bf16.mxu0 0
    %3638 = vmatpush1.bf16.msra.mxu0 %v3616
    %3639 = vmatprep.subr.bf16.mxu0 0
    %3640 = vmatpush1.bf16.msra.mxu0 %v3615
    %3641 = vmatprep.subr.bf16.mxu0 0
    %3642 = vmatpush1.bf16.msra.mxu0 %v3614
    %3643 = vmatprep.subr.bf16.mxu0 0
    %3644 = vmatpush1.bf16.msra.mxu0 %v3613
    %3645 = vmatprep.subr.bf16.mxu0 0
    %3646 = vmatpush2.bf16.msra.mxu0 0
    %3647 = vmatprep.subr.bf16.mxu0 0
    %3648 = vmatpush2.bf16.msra.mxu0 0
    %3649 = vmatprep.subr.bf16.mxu0 0
    %3650 = vmatpush2.bf16.msra.mxu0 0
    %3651 = vmatprep.subr.bf16.mxu0 0
    %3652 = vmatpush2.bf16.msra.mxu0 0
    %3653 = vmatprep.subr.bf16.mxu0 0
    %3654 = vmatpush2.bf16.msra.mxu0 0
    %3655 = vmatprep.subr.bf16.mxu0 0
    %3656 = vmatpush2.bf16.msra.mxu0 0
    %3657 = vmatprep.subr.bf16.mxu0 0
    %3658 = vmatpush2.bf16.msra.mxu0 0
    %3659 = vmatprep.subr.bf16.mxu0 0
    %3660 = vmatpush2.bf16.msra.mxu0 0
    %3661 = vmatprep.mubr.bf16.mxu0 0
    %3662 = vmatmul.mubr.bf16.gmra.mxu0 %v3557
    %v3663 = vpop.f32.mrf.mxu0
    %v3664 = vadd.f32 0.0, %v3663
    %v3665 = vpop.f32.mrf.mxu0
    %v3666 = vpop.f32.mrf.mxu0
    %v3667 = vadd.f32 0.0, %v3666
    %v3668 = vpop.f32.mrf.mxu0
    %3669 = vmatprep.mubr.bf16.mxu0 0
    %3670 = vmatmul.mubr.bf16.gmra.mxu0 %v3558
    %v3671 = vpop.f32.mrf.mxu0
    %v3672 = vadd.f32 0.0, %v3671
    %v3673 = vpop.f32.mrf.mxu0
    %v3674 = vpop.f32.mrf.mxu0
    %v3675 = vadd.f32 0.0, %v3674
    %v3676 = vpop.f32.mrf.mxu0
    %3677 = vmatprep.mubr.bf16.mxu0 0
    %3678 = vmatmul.mubr.bf16.gmra.mxu0 %v3559
    %v3679 = vpop.f32.mrf.mxu0
    %v3680 = vadd.f32 0.0, %v3679
    %v3681 = vpop.f32.mrf.mxu0
    %v3682 = vpop.f32.mrf.mxu0
    %v3683 = vadd.f32 0.0, %v3682
    %v3684 = vpop.f32.mrf.mxu0
    %3685 = vmatprep.mubr.bf16.mxu0 0
    %3686 = vmatmul.mubr.bf16.gmra.mxu0 %v3560
    %v3687 = vpop.f32.mrf.mxu0
    %v3688 = vadd.f32 0.0, %v3687
    %v3689 = vpop.f32.mrf.mxu0
    %v3690 = vpop.f32.mrf.mxu0
    %v3691 = vadd.f32 0.0, %v3690
    %v3692 = vpop.f32.mrf.mxu0
    %3693 = vmatprep.mubr.bf16.mxu0 0
    %3694 = vmatmul.mubr.bf16.gmra.mxu0 %v3561
    %v3695 = vpop.f32.mrf.mxu0
    %v3696 = vadd.f32 0.0, %v3695
    %v3697 = vpop.f32.mrf.mxu0
    %v3698 = vpop.f32.mrf.mxu0
    %v3699 = vadd.f32 0.0, %v3698
    %v3700 = vpop.f32.mrf.mxu0
    %3701 = vmatprep.mubr.bf16.mxu0 0
    %3702 = vmatmul.mubr.bf16.gmra.mxu0 %v3562
    %v3703 = vpop.f32.mrf.mxu0
    %v3704 = vadd.f32 0.0, %v3703
    %v3705 = vpop.f32.mrf.mxu0
    %v3706 = vpop.f32.mrf.mxu0
    %v3707 = vadd.f32 0.0, %v3706
    %v3708 = vpop.f32.mrf.mxu0
    %3709 = vmatprep.mubr.bf16.mxu0 0
    %3710 = vmatmul.mubr.bf16.gmra.mxu0 %v3563
    %v3711 = vpop.f32.mrf.mxu0
    %v3712 = vadd.f32 0.0, %v3711
    %v3713 = vpop.f32.mrf.mxu0
    %v3714 = vpop.f32.mrf.mxu0
    %v3715 = vadd.f32 0.0, %v3714
    %v3716 = vpop.f32.mrf.mxu0
    %3717 = vmatprep.mubr.bf16.mxu0 0
    %3718 = vmatmul.mubr.bf16.gmra.mxu0 %v3564
    %v3719 = vpop.f32.mrf.mxu0
    %v3720 = vadd.f32 0.0, %v3719
    %v3721 = vpop.f32.mrf.mxu0
    %v3722 = vpop.f32.mrf.mxu0
    %v3723 = vadd.f32 0.0, %v3722
    %v3724 = vpop.f32.mrf.mxu0
    %3725 = vdwg.mxu0
    %v3726 = vadd.f32 %v3495, %v3664
    %v3727 = vadd.f32 %v3496, %v3667
    %v3728 = vadd.f32 %v3497, %v3672
    %v3729 = vadd.f32 %v3498, %v3675
    %v3730 = vadd.f32 %v3499, %v3680
    %v3731 = vadd.f32 %v3500, %v3683
    %v3732 = vadd.f32 %v3501, %v3688
    %v3733 = vadd.f32 %v3502, %v3691
    %v3734 = vadd.f32 %v3503, %v3696
    %v3735 = vadd.f32 %v3504, %v3699
    %v3736 = vadd.f32 %v3505, %v3704
    %v3737 = vadd.f32 %v3506, %v3707
    %v3738 = vadd.f32 %v3507, %v3712
    %v3739 = vadd.f32 %v3508, %v3715
    %v3740 = vadd.f32 %v3509, %v3720
    %v3741 = vadd.f32 %v3510, %v3723
    %v3742 = vld [vmem:[%s2] sm:$0x1]
    %v3744 = vlaneseq
    %v3745 = vshrl.u32 %v3744, 7
    %v3746 = vsub.s32 0, %v3745
    %v3747 = vrot.slane %v3742, %v3746
    %v3749 = vadd.f32 %v3726, %v3747
    %v3750 = vadd.f32 %v3727, %v3747
    %v3751 = vadd.f32 %v3728, %v3747
    %v3752 = vadd.f32 %v3729, %v3747
    %v3753 = vadd.f32 %v3730, %v3747
    %v3754 = vadd.f32 %v3731, %v3747
    %v3755 = vadd.f32 %v3732, %v3747
    %v3756 = vadd.f32 %v3733, %v3747
    %v3757 = vadd.f32 %v3734, %v3747
    %v3758 = vadd.f32 %v3735, %v3747
    %v3759 = vadd.f32 %v3736, %v3747
    %v3760 = vadd.f32 %v3737, %v3747
    %v3761 = vadd.f32 %v3738, %v3747
    %v3762 = vadd.f32 %v3739, %v3747
    %v3763 = vadd.f32 %v3740, %v3747
    %v3764 = vadd.f32 %v3741, %v3747
    %v3765 = vmax.f32 %v3749, 0.0
    %v3766 = vmax.f32 %v3750, 0.0
    %v3767 = vmax.f32 %v3751, 0.0
    %v3768 = vmax.f32 %v3752, 0.0
    %v3769 = vmax.f32 %v3753, 0.0
    %v3770 = vmax.f32 %v3754, 0.0
    %v3771 = vmax.f32 %v3755, 0.0
    %v3772 = vmax.f32 %v3756, 0.0
    %v3773 = vmax.f32 %v3757, 0.0
    %v3774 = vmax.f32 %v3758, 0.0
    %v3775 = vmax.f32 %v3759, 0.0
    %v3776 = vmax.f32 %v3760, 0.0
    %v3777 = vmax.f32 %v3761, 0.0
    %v3778 = vmax.f32 %v3762, 0.0
    %v3779 = vmax.f32 %v3763, 0.0
    %v3780 = vmax.f32 %v3764, 0.0
    %v3781 = vld [vmem:[%s3] sm:$0x1]
    %s3782 = sld [smem:[#allocation2]]
    %v3783 = vstv %s3782
    %vm3784 = vcmask 261120
    %v3786 = vsel %vm3784, %v3781, 0
    %v3789 = vsel %vm3784, %v3765, 0
    %v3792 = vsel %vm3784, %v3766, 0
    %v3795 = vsel %vm3784, %v3767, 0
    %v3798 = vsel %vm3784, %v3768, 0
    %v3801 = vsel %vm3784, %v3769, 0
    %v3804 = vsel %vm3784, %v3770, 0
    %v3807 = vsel %vm3784, %v3771, 0
    %v3810 = vsel %vm3784, %v3772, 0
    %v3813 = vsel %vm3784, %v3773, 0
    %v3816 = vsel %vm3784, %v3774, 0
    %v3819 = vsel %vm3784, %v3775, 0
    %v3822 = vsel %vm3784, %v3776, 0
    %v3825 = vsel %vm3784, %v3777, 0
    %v3828 = vsel %vm3784, %v3778, 0
    %v3831 = vsel %vm3784, %v3779, 0
    %v3834 = vsel %vm3784, %v3780, 0
    %3836 = vmatprep.subr.mxu0 0.0
    %3837 = vmatpush1.xpose.msra.mxu0 %v3834
    %3838 = vmatprep.subr.mxu0 0.0
    %3839 = vmatpush1.xpose.msra.mxu0 %v3831
    %3840 = vmatprep.subr.mxu0 0.0
    %3841 = vmatpush1.xpose.msra.mxu0 %v3828
    %3842 = vmatprep.subr.mxu0 0.0
    %3843 = vmatpush1.xpose.msra.mxu0 %v3825
    %3844 = vmatprep.subr.mxu0 0.0
    %3845 = vmatpush1.xpose.msra.mxu0 %v3822
    %3846 = vmatprep.subr.mxu0 0.0
    %3847 = vmatpush1.xpose.msra.mxu0 %v3819
    %3848 = vmatprep.subr.mxu0 0.0
    %3849 = vmatpush1.xpose.msra.mxu0 %v3816
    %3850 = vmatprep.subr.mxu0 0.0
    %3851 = vmatpush1.xpose.msra.mxu0 %v3813
    %3852 = vmatprep.subr.mxu0 0.0
    %3853 = vmatpush1.xpose.msra.mxu0 %v3810
    %3854 = vmatprep.subr.mxu0 0.0
    %3855 = vmatpush1.xpose.msra.mxu0 %v3807
    %3856 = vmatprep.subr.mxu0 0.0
    %3857 = vmatpush1.xpose.msra.mxu0 %v3804
    %3858 = vmatprep.subr.mxu0 0.0
    %3859 = vmatpush1.xpose.msra.mxu0 %v3801
    %3860 = vmatprep.subr.mxu0 0.0
    %3861 = vmatpush1.xpose.msra.mxu0 %v3798
    %3862 = vmatprep.subr.mxu0 0.0
    %3863 = vmatpush1.xpose.msra.mxu0 %v3795
    %3864 = vmatprep.subr.mxu0 0.0
    %3865 = vmatpush1.xpose.msra.mxu0 %v3792
    %3866 = vmatprep.subr.mxu0 0.0
    %3867 = vmatpush1.xpose.msra.mxu0 %v3789
    %3868 = vmatprep.subr.mxu0 0.0
    %3869 = vmatpush2.xpose.msra.mxu0 0.0
    %3870 = vmatprep.subr.mxu0 0.0
    %3871 = vmatpush2.xpose.msra.mxu0 0.0
    %3872 = vmatprep.subr.mxu0 0.0
    %3873 = vmatpush2.xpose.msra.mxu0 0.0
    %3874 = vmatprep.subr.mxu0 0.0
    %3875 = vmatpush2.xpose.msra.mxu0 0.0
    %3876 = vmatprep.subr.mxu0 0.0
    %3877 = vmatpush2.xpose.msra.mxu0 0.0
    %3878 = vmatprep.subr.mxu0 0.0
    %3879 = vmatpush2.xpose.msra.mxu0 0.0
    %3880 = vmatprep.subr.mxu0 0.0
    %3881 = vmatpush2.xpose.msra.mxu0 0.0
    %3882 = vmatprep.subr.mxu0 0.0
    %3883 = vmatpush2.xpose.msra.mxu0 0.0
    %3884 = vmatprep.subr.mxu0 0.0
    %3885 = vmatpush2.xpose.msra.mxu0 0.0
    %3886 = vmatprep.subr.mxu0 0.0
    %3887 = vmatpush2.xpose.msra.mxu0 0.0
    %3888 = vmatprep.subr.mxu0 0.0
    %3889 = vmatpush2.xpose.msra.mxu0 0.0
    %3890 = vmatprep.subr.mxu0 0.0
    %3891 = vmatpush2.xpose.msra.mxu0 0.0
    %3892 = vmatprep.subr.mxu0 0.0
    %3893 = vmatpush2.xpose.msra.mxu0 0.0
    %3894 = vmatprep.subr.mxu0 0.0
    %3895 = vmatpush2.xpose.msra.mxu0 0.0
    %3896 = vmatprep.subr.mxu0 0.0
    %3897 = vmatpush2.xpose.msra.mxu0 0.0
    %3898 = vmatprep.subr.mxu0 0.0
    %3899 = vmatpush2.xpose.msra.mxu0 0.0
    %3900 = vmatprep.mubr.f32.mxu0 0.0
    %3901 = vmatmul.mubr.f32.gmra.mxu0 %v3786
    %v3902 = vpop.f32.mrf.mxu0
    %v3903 = vadd.f32 %v3783, %v3902
    %v3904 = vpop.f32.mrf.mxu0
    %3905 = vdwg.mxu0
    %3906 = vst [vmem:[#allocation8] sm:$0x1] %v3903
    // Predicated region
    $region38: #{tpu_custom_call.1} parent=1 // pred_check
      _
    $region39: #{tpu_custom_call.1} parent=1 // pred_check_branch
      %3908 = sbr.rel (0) target = $region41
    $region40: #{tpu_custom_call.1} parent=1 // pred_region
      %s3910 = ssub.s32 16, 16
      %3911 = vsyncadd [#allocation4], %s3910
      %s3913 = sshll.u32 [#allocation8], 4
      %s3914 = int_to_ptr.vmem [resolvable:$true] %s3913
      %3916 = dma.vmem_to_hbm [thread:$0]  %s3914, 16, %s7, [#allocation4]
    $region41: #{tpu_custom_call.1} parent=1 // pred_fallthru
      _
    // Predicated region
    $region42: #{tpu_custom_call.1} parent=1 // pred_check
      _
    $region43: #{tpu_custom_call.1} parent=1 // pred_check_branch
      %3918 = sbr.rel (0) target = $region45
    $region44: #{tpu_custom_call.1} parent=1 // pred_region
      %3919 = dma.done [#allocation4], 16
    $region45: #{tpu_custom_call.1} parent=1 // pred_fallthru
      _
    %3920 = vsyncpa [#allocation4], 1
    %3921 = vsyncpa [#allocation5], 1
    %3922 = vsyncpa [#allocation7], 1

</llo_original>
